<compile_context>
chip_gen: v6e
topology: v6e:2x2x1
jax: 0.10.0
libtpu: 0.0.40
codegen_flags: <defaults>
</compile_context>

<pallas_src>
import functools

import jax
import jax.numpy as jnp
from jax.experimental import pallas as pl
from jax.experimental.pallas import tpu as pltpu


def _round_up(x, m):
    return ((x + m - 1) // m) * m


# ----------------------------------------------------------------------------
# Pallas kernel: one batch tile of the fused TextCNN forward
# ----------------------------------------------------------------------------
def _cnn_text_kernel(*refs, kernel_sizes, seq_len, block_width, col_off,
                     tap_col_stride, tap_lane_stride, activation, fuse_gather):
    """Fused TextCNN forward for one batch tile.

    fuse_gather=True : refs = (ids, table, wconv, bconv, fcw, fcb, out)
      ids   : (TB*L, 1)          int32
      table : (Vp, D_pad)        bf16   (VMEM resident, single-buffered)
    fuse_gather=False: refs = (emb, wconv, bconv, fcw, fcb, out)
      emb   : (TB*L, D_pad)      bf16   (streamed, XLA did the gather)
    Shared:
      wconv : (D_pad, total_cols) bf16  fused conv taps   (resident)
      bconv : (1, n_ks*W)         f32   conv biases       (resident)
      fcw   : (n_ks*W, CLS_pad)   bf16  fc weight         (resident)
      fcb   : (1, CLS_pad)        f32   fc bias           (resident)
      out   : (TB, CLS_pad)       f32   padded logits
    """
    if fuse_gather:
        ids_ref, table_ref = refs[:2]
        wconv_ref, bconv_ref, fcw_ref, fcb_ref, out_ref = refs[2:]
    else:
        emb_ref = refs[0]
        wconv_ref, bconv_ref, fcw_ref, fcb_ref, out_ref = refs[1:]

    L = seq_len
    W = block_width
    cdtype = wconv_ref.dtype                  # compute dtype (bf16)

    if activation == "relu":
        act = lambda v: jnp.maximum(v, 0.0)
    elif activation == "tanh":
        act = jnp.tanh
    else:
        act = lambda v: v

    # ---- Embedding lookup. --------------------------------------------------
    if fuse_gather:
        # Small vocab: table is VMEM resident; gather = one-hot matmul on MXU.
        ids = ids_ref[...]                                           # (TBL, 1)
        TBL = ids.shape[0]
        Vp = table_ref.shape[0]
        iota = jax.lax.broadcasted_iota(jnp.int32, (TBL, Vp), 1)
        onehot = (iota == ids).astype(cdtype)
        emb2d = jnp.dot(onehot, table_ref[...],
                        preferred_element_type=jnp.float32).astype(cdtype)
    else:
        emb2d = emb_ref[...]                                         # (TBL, D_pad)
        TBL = emb2d.shape[0]
    TB = TBL // L

    # ---- All conv taps of every kernel size in ONE lane-dense MXU matmul. --
    p_all = jnp.dot(emb2d, wconv_ref[...],
                    preferred_element_type=jnp.float32)              # (TBL, total)

    bias_all = bconv_ref[...]                                        # (1, n*W)
    tpos = jax.lax.broadcasted_iota(jnp.int32, (L, W), 0)            # time index
    neg_inf = jnp.float32(-jnp.inf)

    # ---- Per kernel size: roll-and-accumulate taps, bias, act, mask, max. --
    pooled = []
    for i, K in enumerate(kernel_sizes):
        base = col_off[i]
        base_blk = p_all[:, base:base + W]                           # lane-aligned
        acc = None
        for k in range(K):
            if tap_col_stride:
                c0 = base + k * tap_col_stride
                blk = p_all[:, c0:c0 + W]
            else:
                blk = base_blk                 # packed layout: taps share block
            # Time alignment: shift tap k down by (K-1-k) rows so row r holds
            # conv output at t = r-(K-1).  Small XLU sublane rotate instead of
            # an unaligned sublane slice; wrapped rows (t < K-1) masked below.
            tshift = (K - 1) - k
            if tshift:
                blk = pltpu.roll(blk, shift=tshift, axis=0)
            if tap_lane_stride and k:
                # Packed layout: tap k lives at lane offset k*C inside the
                # 128-lane block; rotate lanes so it lands on lanes [0, C).
                blk = pltpu.roll(blk, shift=W - k * tap_lane_stride, axis=1)
            acc = blk if acc is None else acc + blk

        conv = (acc.reshape(TB, L, W)
                + bias_all[:, i * W:(i + 1) * W].reshape(1, 1, W))
        conv = act(conv)
        # Mask invalid time rows AFTER the activation (masking pre-activation
        # would turn -inf into 0 under ReLU and corrupt the max).
        conv = jnp.where((tpos >= K - 1).reshape(1, L, W), conv, neg_inf)
        pooled.append(jnp.max(conv, axis=1))                         # (TB, W)

    # ---- Dropout (eval mode) is identity; final linear layer. --------------
    # TODO(synk): training-mode dropout (random masking) not implemented.
    feat = jnp.concatenate(pooled, axis=-1).astype(cdtype)           # (TB, n*W)
    logits = jnp.dot(feat, fcw_ref[...],
                     preferred_element_type=jnp.float32) + fcb_ref[...]
    out_ref[...] = logits.astype(out_ref.dtype)


def _resident_spec(shape):
    """Constant-index resident weight block (stays in VMEM across grid steps).

    Single-buffered: double-buffering a block whose index never changes only
    doubles VMEM without hiding anything.  Falls back to the default if this
    JAX build does not accept pipeline_mode on BlockSpec.
    """
    buffered = getattr(pl, "Buffered", None)
    if buffered is not None:
        try:
            return pl.BlockSpec(shape, lambda i: (0, 0),
                                pipeline_mode=buffered(1))
        except TypeError:
            pass
    return pl.BlockSpec(shape, lambda i: (0, 0))


# ----------------------------------------------------------------------------
# Wrapper
# ----------------------------------------------------------------------------
def cnn_text_forward(token_ids, params, *, kernel_sizes, activation="relu",
                     batch_tile=32, compute_dtype=jnp.bfloat16, gather="auto",
                     vmem_table_budget=4 * 1024 * 1024):
    """Forward pass matching _CNNText.forward (eval mode).

    token_ids : (B, L) int32, every id must lie in [0, vocab).  Out-of-range
                ids silently gather a zero row (nn.Embedding would raise).
    params    : dict with
        'embed'  : (V, D)
        'conv_w' : list of (C, 1, K, D)    (PyTorch Conv2d layout)
        'conv_b' : list of (C,)
        'fc_w'   : (class_num, n*C)        (PyTorch Linear layout)
        'fc_b'   : (class_num,)
    gather    : "auto" | "onehot" (VMEM-resident table, MXU one-hot gather)
                | "xla" (table stays in HBM; XLA gathers, embeddings streamed)
    returns   : (B, class_num) float32 logits
    """
    kernel_sizes = tuple(int(k) for k in kernel_sizes)
    n_ks = len(kernel_sizes)
    B, L = token_ids.shape
    V, D = params["embed"].shape
    class_num = int(params["fc_b"].shape[0])
    C = int(params["conv_w"][0].shape[0])
    assert L >= max(kernel_sizes), (
        "sequence length must be >= largest conv kernel size")

    f32 = jnp.float32

    # --- Batch tiling: TB*L ~ 1K rows per step, TB multiple of 8. -----------
    TB = max(8, min(int(batch_tile), _round_up(B, 8)))
    TB = _round_up(TB, 8)
    B_pad = _round_up(max(B, TB), TB)
    grid = (B_pad // TB,)

    # --- Lane padding. -------------------------------------------------------
    D_pad = _round_up(D, 128)
    CLS_pad = _round_up(class_num, 128)
    Vp = _round_up(V, 128)

    # --- Channel/tap packing layout (reduces C<<128 padding waste). ---------
    if max(kernel_sizes) * C <= 128:
        W = 128                       # one 128-lane block per kernel size
        tap_col_stride = 0            # taps share the block ...
        tap_lane_stride = C           # ... at lane offset k*C
        col_span = [W] * n_ks
    else:
        C_pad = _round_up(C, 128)     # fallback: one C_pad-lane block per tap
        W = C_pad
        tap_col_stride = C_pad
        tap_lane_stride = 0
        col_span = [K * C_pad for K in kernel_sizes]
    col_off, off = [], 0
    for span in col_span:
        col_off.append(off)
        off += span
    total_cols = off

    # --- Token ids (batch padded, flattened to (B_pad*L, 1)). ---------------
    ids = jnp.zeros((B_pad, L), jnp.int32).at[:B].set(token_ids.astype(jnp.int32))

    # --- Embedding table, vocab + dim padded, cast to compute dtype. --------
    table = (jnp.zeros((Vp, D_pad), f32)
             .at[:V, :D].set(params["embed"].astype(f32))
             .astype(compute_dtype))

    # --- Fused conv weight / bias in the packed column layout. --------------
    w_conv = jnp.zeros((D_pad, total_cols), f32)
    b_conv = jnp.zeros((1, n_ks * W), f32)
    for i, (K, w, b) in enumerate(zip(kernel_sizes, params["conv_w"],
                                      params["conv_b"])):
        for k in range(K):
            col = col_off[i] + k * tap_col_stride + k * tap_lane_stride
            wk = jnp.transpose(w[:, 0, k, :]).astype(f32)            # (D, C)
            w_conv = w_conv.at[:D, col:col + C].set(wk)
        b_conv = b_conv.at[0, i * W:i * W + C].set(b.astype(f32))
    w_conv = w_conv.astype(compute_dtype)

    # --- FC weight laid out to match the pooled feature blocks. -------------
    # Rows for padding / garbage lanes are zero so they contribute nothing.
    fc_w_t = jnp.transpose(params["fc_w"]).astype(f32)               # (n*C, cls)
    fc_w = jnp.zeros((n_ks * W, CLS_pad), f32)
    for i in range(n_ks):
        fc_w = fc_w.at[i * W:i * W + C, :class_num].set(
            fc_w_t[i * C:(i + 1) * C, :])
    fc_w = fc_w.astype(compute_dtype)
    fc_b = jnp.zeros((1, CLS_pad), f32).at[0, :class_num].set(
        params["fc_b"].astype(f32))

    # --- Gather strategy. -----------------------------------------------------
    table_bytes = Vp * D_pad * jnp.dtype(compute_dtype).itemsize
    if gather == "auto":
        fuse_gather = (Vp <= 1024) and (table_bytes <= vmem_table_budget)
    elif gather == "onehot":
        fuse_gather = True
    elif gather == "xla":
        fuse_gather = False
    else:
        raise ValueError(f"unknown gather mode: {gather!r}")

    if fuse_gather:
        data_inputs = (ids.reshape(B_pad * L, 1), table)
        data_specs = [pl.BlockSpec((TB * L, 1), lambda i: (i, 0)),
                      _resident_spec((Vp, D_pad))]
    else:
        # Large vocab: gather with XLA (table stays in HBM there) and stream
        # the per-tile embeddings through the normal double-buffered pipeline.
        # TODO(synk): in-kernel DMA row gather to avoid this HBM round trip.
        emb = jnp.take(table, ids.reshape(-1), axis=0)               # (B_pad*L, D_pad)
        data_inputs = (emb,)
        data_specs = [pl.BlockSpec((TB * L, D_pad), lambda i: (i, 0))]

    in_specs = data_specs + [
        _resident_spec((D_pad, total_cols)),
        _resident_spec((1, n_ks * W)),
        _resident_spec((n_ks * W, CLS_pad)),
        _resident_spec((1, CLS_pad)),
    ]
    out_specs = pl.BlockSpec((TB, CLS_pad), lambda i: (i, 0))

    inputs = data_inputs + (w_conv, b_conv, fc_w, fc_b)

    # --- Advisory cost estimate for the XLA scheduler. -----------------------
    flops = 2 * B_pad * L * D_pad * total_cols              # fused conv matmul
    flops += 2 * B_pad * (n_ks * W) * CLS_pad               # fc matmul
    if fuse_gather:
        flops += 2 * B_pad * L * Vp * D_pad                 # one-hot gather
    transcendentals = (B_pad * L * n_ks * W) if activation == "tanh" else 0
    bytes_accessed = sum(int(x.size) * x.dtype.itemsize for x in inputs)
    bytes_accessed += B_pad * CLS_pad * 4

    kernel = functools.partial(
        _cnn_text_kernel, kernel_sizes=kernel_sizes, seq_len=L, block_width=W,
        col_off=tuple(col_off), tap_col_stride=tap_col_stride,
        tap_lane_stride=tap_lane_stride, activation=activation,
        fuse_gather=fuse_gather)

    out = pl.pallas_call(
        kernel,
        out_shape=jax.ShapeDtypeStruct((B_pad, CLS_pad), jnp.float32),
        grid=grid,
        in_specs=in_specs,
        out_specs=out_specs,
        compiler_params=pltpu.CompilerParams(
            dimension_semantics=("parallel",),
            # Fits v7x's 64 MiB physical VMEM; raise toward 96-128 MiB on
            # v5e/v6e if batch tiles / resident tables are scaled up.
            vmem_limit_bytes=48 * 1024 * 1024),
        cost_estimate=pl.CostEstimate(
            flops=flops, transcendentals=transcendentals,
            bytes_accessed=bytes_accessed),
    )(*inputs)
    return out[:B, :class_num]


# ----------------------------------------------------------------------------
# Pure-JAX f32 reference (for correctness check)
# ----------------------------------------------------------------------------
def cnn_text_reference(token_ids, params, *, kernel_sizes, activation="relu"):
    emb = jnp.take(params["embed"], token_ids, axis=0)               # (B, L, D)
    B, L, D = emb.shape
    if activation == "relu":
        act = lambda v: jnp.maximum(v, 0.0)
    elif activation == "tanh":
        act = jnp.tanh
    else:
        act = lambda v: v
    pooled = []
    for K, w, b in zip(kernel_sizes, params["conv_w"], params["conv_b"]):
        C = w.shape[0]
        T = L - K + 1
        windows = jnp.stack([emb[:, t:t + K, :].reshape(B, K * D)
                             for t in range(T)], axis=1)             # (B, T, K*D)
        conv = windows @ jnp.transpose(w.reshape(C, K * D)) + b      # (B, T, C)
        pooled.append(jnp.max(act(conv), axis=1))
    feat = jnp.concatenate(pooled, axis=-1)
    return feat @ jnp.transpose(params["fc_w"]) + params["fc_b"]


# ----------------------------------------------------------------------------
# Main
# ----------------------------------------------------------------------------
if __name__ == "__main__":
    embed_num = 50        # vocab size
    embed_dim = 32
    class_num = 4
    kernel_num = 8
    kernel_sizes = (2, 3, 4)
    activation = "relu"
    # 128 rows = 4 batch tiles of 32 -> >=2 tiles per TensorCore on v7x and a
    # real pipeline on v5e/v6e; TB*L = 1024 rows of MXU work per grid step.
    B, L = 128, 32

    key = jax.random.PRNGKey(0)
    keys = jax.random.split(key, 4 + 2 * len(kernel_sizes))

    params = {
        "embed": 0.1 * jax.random.normal(keys[0], (embed_num, embed_dim),
                                         dtype=jnp.float32),
        "conv_w": [],
        "conv_b": [],
        "fc_w": 0.1 * jax.random.normal(
            keys[1], (class_num, len(kernel_sizes) * kernel_num),
            dtype=jnp.float32),
        "fc_b": 0.1 * jax.random.normal(keys[2], (class_num,),
                                        dtype=jnp.float32),
    }
    for i, K in enumerate(kernel_sizes):
        params["conv_w"].append(
            0.1 * jax.random.normal(keys[3 + 2 * i],
                                    (kernel_num, 1, K, embed_dim),
                                    dtype=jnp.float32))
        params["conv_b"].append(
            0.1 * jax.random.normal(keys[4 + 2 * i], (kernel_num,),
                                    dtype=jnp.float32))

    token_ids = jax.random.randint(keys[-1], (B, L), 0, embed_num,
                                   dtype=jnp.int32)

    ref = cnn_text_reference(token_ids, params,
                             kernel_sizes=kernel_sizes,
                             activation=activation)

    # Default path: small vocab -> fused one-hot gather, resident table.
    logits = cnn_text_forward(token_ids, params,
                              kernel_sizes=kernel_sizes,
                              activation=activation)
    logits = jax.block_until_ready(logits)
    assert logits.shape == (B, class_num)
    # bf16 weights/activations with f32 accumulation vs pure-f32 reference.
    assert jnp.allclose(logits, ref, atol=2e-2, rtol=2e-2), (
        "Pallas kernel (one-hot gather) mismatch vs. reference")

    # Large-vocab path: HBM table, XLA gather, streamed embedding tiles.
    logits_hbm = cnn_text_forward(token_ids, params,
                                  kernel_sizes=kernel_sizes,
                                  activation=activation, gather="xla")
    logits_hbm = jax.block_until_ready(logits_hbm)
    assert jnp.allclose(logits_hbm, ref, atol=2e-2, rtol=2e-2), (
        "Pallas kernel (streamed-embedding) mismatch vs. reference")

    print("KERNEL_OK")
</pallas_src>

<mosaic_0001>
module attributes {stable_mosaic.version = 11 : i64} {
  func.func @_cnn_text_kernel(%arg0: i32, %arg1: memref<1024x1xi32, #tpu.memory_space<vmem>>, %arg2: memref<128x128xbf16, #tpu.memory_space<vmem>>, %arg3: memref<128x384xbf16, #tpu.memory_space<vmem>>, %arg4: memref<1x384xf32, #tpu.memory_space<vmem>>, %arg5: memref<384x128xbf16, #tpu.memory_space<vmem>>, %arg6: memref<1x128xf32, #tpu.memory_space<vmem>>, %arg7: memref<32x128xf32, #tpu.memory_space<vmem>>) attributes {dimension_semantics = [#tpu.dimension_semantics<parallel>], iteration_bounds = array<i64: 4>, scalar_prefetch = 0 : i64, scratch_operands = 0 : i64, tpu.core_type = #tpu.core_type<tc>, window_params = [{transform_indices = @transform_0, window_bounds = array<i64: 1024, 1>}, {pipeline_mode = #tpu.pipeline_mode<synchronous>, transform_indices = @transform_1, window_bounds = array<i64: 128, 128>}, {pipeline_mode = #tpu.pipeline_mode<synchronous>, transform_indices = @transform_2, window_bounds = array<i64: 128, 384>}, {pipeline_mode = #tpu.pipeline_mode<synchronous>, transform_indices = @transform_3, window_bounds = array<i64: 1, 384>}, {pipeline_mode = #tpu.pipeline_mode<synchronous>, transform_indices = @transform_4, window_bounds = array<i64: 384, 128>}, {pipeline_mode = #tpu.pipeline_mode<synchronous>, transform_indices = @transform_5, window_bounds = array<i64: 1, 128>}, {transform_indices = @transform_6, window_bounds = array<i64: 32, 128>}]} {
    %c0 = arith.constant 0 : index
    %c0_0 = arith.constant 0 : index
    %0 = vector.load %arg1[%c0, %c0_0] : memref<1024x1xi32, #tpu.memory_space<vmem>>, vector<1024x1xi32>
    %1 = tpu.iota {dimensions = array<i32: 1>} : vector<1024x128xi32>
    %2 = vector.broadcast %0 : vector<1024x1xi32> to vector<1024x128xi32>
    %3 = arith.cmpi eq, %1, %2 : vector<1024x128xi32>
    %4 = arith.extui %3 : vector<1024x128xi1> to vector<1024x128xi32>
    %5 = arith.sitofp %4 : vector<1024x128xi32> to vector<1024x128xf32>
    %6 = arith.truncf %5 : vector<1024x128xf32> to vector<1024x128xbf16>
    %c0_1 = arith.constant 0 : index
    %c0_2 = arith.constant 0 : index
    %7 = vector.load %arg2[%c0_1, %c0_2] : memref<128x128xbf16, #tpu.memory_space<vmem>>, vector<128x128xbf16>
    %cst = arith.constant dense<0.000000e+00> : vector<1024x128xf32>
    %8 = tpu.matmul %6, %7, %cst {dimension_numbers = #tpu.dot_dimension_numbers<[1], [0], [0], [1], [0, 0, 1, 1], [], []>} : vector<1024x128xbf16>, vector<128x128xbf16>, vector<1024x128xf32> -> vector<1024x128xf32>
    %9 = arith.truncf %8 : vector<1024x128xf32> to vector<1024x128xbf16>
    %c0_3 = arith.constant 0 : index
    %c0_4 = arith.constant 0 : index
    %10 = vector.load %arg3[%c0_3, %c0_4] : memref<128x384xbf16, #tpu.memory_space<vmem>>, vector<128x384xbf16>
    %cst_5 = arith.constant dense<0.000000e+00> : vector<1024x384xf32>
    %11 = tpu.matmul %9, %10, %cst_5 {dimension_numbers = #tpu.dot_dimension_numbers<[1], [0], [0], [1], [0, 0, 1, 1], [], []>} : vector<1024x128xbf16>, vector<128x384xbf16>, vector<1024x384xf32> -> vector<1024x384xf32>
    %c0_6 = arith.constant 0 : index
    %c0_7 = arith.constant 0 : index
    %12 = vector.load %arg4[%c0_6, %c0_7] : memref<1x384xf32, #tpu.memory_space<vmem>>, vector<1x384xf32>
    %13 = tpu.iota {dimensions = array<i32: 0>} : vector<32x128xi32>
    %14 = vector.extract_strided_slice %11 {offsets = [0, 0], sizes = [1024, 128], strides = [1, 1]} : vector<1024x384xf32> to vector<1024x128xf32>
    %c1_i32 = arith.constant 1 : i32
    %15 = tpu.dynamic_rotate %14 by %c1_i32 dim 0 : vector<1024x128xf32>, i32 -> vector<1024x128xf32>
    %c120_i32 = arith.constant 120 : i32
    %16 = tpu.dynamic_rotate %14 by %c120_i32 dim 1 : vector<1024x128xf32>, i32 -> vector<1024x128xf32>
    %17 = arith.addf %15, %16 : vector<1024x128xf32>
    %18 = vector.shape_cast %17 : vector<1024x128xf32> to vector<32x32x128xf32>
    %19 = vector.extract_strided_slice %12 {offsets = [0, 0], sizes = [1, 128], strides = [1, 1]} : vector<1x384xf32> to vector<1x128xf32>
    %20 = vector.shape_cast %19 : vector<1x128xf32> to vector<1x1x128xf32>
    %21 = vector.broadcast %20 : vector<1x1x128xf32> to vector<32x32x128xf32>
    %22 = arith.addf %18, %21 : vector<32x32x128xf32>
    %cst_8 = arith.constant 0.000000e+00 : f32
    %23 = vector.broadcast %cst_8 : f32 to vector<32x32x128xf32>
    %24 = arith.maximumf %22, %23 : vector<32x32x128xf32>
    %c1_i32_9 = arith.constant 1 : i32
    %25 = vector.broadcast %c1_i32_9 : i32 to vector<32x128xi32>
    %26 = arith.cmpi sge, %13, %25 : vector<32x128xi32>
    %27 = vector.shape_cast %26 : vector<32x128xi1> to vector<1x32x128xi1>
    %cst_10 = arith.constant 0xFF800000 : f32
    %28 = vector.shape_cast %27 : vector<1x32x128xi1> to vector<1x32x128xi1>
    %29 = vector.broadcast %28 : vector<1x32x128xi1> to vector<32x32x128xi1>
    %30 = vector.broadcast %cst_10 : f32 to vector<32x32x128xf32>
    %31 = arith.select %29, %24, %30 : vector<32x32x128xi1>, vector<32x32x128xf32>
    %cst_11 = arith.constant dense<0xFF800000> : vector<32x128xf32>
    %32 = vector.multi_reduction <maximumf>, %31, %cst_11 [1] : vector<32x32x128xf32> to vector<32x128xf32>
    %33 = vector.extract_strided_slice %11 {offsets = [0, 128], sizes = [1024, 128], strides = [1, 1]} : vector<1024x384xf32> to vector<1024x128xf32>
    %c2_i32 = arith.constant 2 : i32
    %34 = tpu.dynamic_rotate %33 by %c2_i32 dim 0 : vector<1024x128xf32>, i32 -> vector<1024x128xf32>
    %c1_i32_12 = arith.constant 1 : i32
    %35 = tpu.dynamic_rotate %33 by %c1_i32_12 dim 0 : vector<1024x128xf32>, i32 -> vector<1024x128xf32>
    %c120_i32_13 = arith.constant 120 : i32
    %36 = tpu.dynamic_rotate %35 by %c120_i32_13 dim 1 : vector<1024x128xf32>, i32 -> vector<1024x128xf32>
    %37 = arith.addf %34, %36 : vector<1024x128xf32>
    %c112_i32 = arith.constant 112 : i32
    %38 = tpu.dynamic_rotate %33 by %c112_i32 dim 1 : vector<1024x128xf32>, i32 -> vector<1024x128xf32>
    %39 = arith.addf %37, %38 : vector<1024x128xf32>
    %40 = vector.shape_cast %39 : vector<1024x128xf32> to vector<32x32x128xf32>
    %41 = vector.extract_strided_slice %12 {offsets = [0, 128], sizes = [1, 128], strides = [1, 1]} : vector<1x384xf32> to vector<1x128xf32>
    %42 = vector.shape_cast %41 : vector<1x128xf32> to vector<1x1x128xf32>
    %43 = vector.broadcast %42 : vector<1x1x128xf32> to vector<32x32x128xf32>
    %44 = arith.addf %40, %43 : vector<32x32x128xf32>
    %cst_14 = arith.constant 0.000000e+00 : f32
    %45 = vector.broadcast %cst_14 : f32 to vector<32x32x128xf32>
    %46 = arith.maximumf %44, %45 : vector<32x32x128xf32>
    %c2_i32_15 = arith.constant 2 : i32
    %47 = vector.broadcast %c2_i32_15 : i32 to vector<32x128xi32>
    %48 = arith.cmpi sge, %13, %47 : vector<32x128xi32>
    %49 = vector.shape_cast %48 : vector<32x128xi1> to vector<1x32x128xi1>
    %cst_16 = arith.constant 0xFF800000 : f32
    %50 = vector.shape_cast %49 : vector<1x32x128xi1> to vector<1x32x128xi1>
    %51 = vector.broadcast %50 : vector<1x32x128xi1> to vector<32x32x128xi1>
    %52 = vector.broadcast %cst_16 : f32 to vector<32x32x128xf32>
    %53 = arith.select %51, %46, %52 : vector<32x32x128xi1>, vector<32x32x128xf32>
    %cst_17 = arith.constant dense<0xFF800000> : vector<32x128xf32>
    %54 = vector.multi_reduction <maximumf>, %53, %cst_17 [1] : vector<32x32x128xf32> to vector<32x128xf32>
    %55 = vector.extract_strided_slice %11 {offsets = [0, 256], sizes = [1024, 128], strides = [1, 1]} : vector<1024x384xf32> to vector<1024x128xf32>
    %c3_i32 = arith.constant 3 : i32
    %56 = tpu.dynamic_rotate %55 by %c3_i32 dim 0 : vector<1024x128xf32>, i32 -> vector<1024x128xf32>
    %c2_i32_18 = arith.constant 2 : i32
    %57 = tpu.dynamic_rotate %55 by %c2_i32_18 dim 0 : vector<1024x128xf32>, i32 -> vector<1024x128xf32>
    %c120_i32_19 = arith.constant 120 : i32
    %58 = tpu.dynamic_rotate %57 by %c120_i32_19 dim 1 : vector<1024x128xf32>, i32 -> vector<1024x128xf32>
    %59 = arith.addf %56, %58 : vector<1024x128xf32>
    %c1_i32_20 = arith.constant 1 : i32
    %60 = tpu.dynamic_rotate %55 by %c1_i32_20 dim 0 : vector<1024x128xf32>, i32 -> vector<1024x128xf32>
    %c112_i32_21 = arith.constant 112 : i32
    %61 = tpu.dynamic_rotate %60 by %c112_i32_21 dim 1 : vector<1024x128xf32>, i32 -> vector<1024x128xf32>
    %62 = arith.addf %59, %61 : vector<1024x128xf32>
    %c104_i32 = arith.constant 104 : i32
    %63 = tpu.dynamic_rotate %55 by %c104_i32 dim 1 : vector<1024x128xf32>, i32 -> vector<1024x128xf32>
    %64 = arith.addf %62, %63 : vector<1024x128xf32>
    %65 = vector.shape_cast %64 : vector<1024x128xf32> to vector<32x32x128xf32>
    %66 = vector.extract_strided_slice %12 {offsets = [0, 256], sizes = [1, 128], strides = [1, 1]} : vector<1x384xf32> to vector<1x128xf32>
    %67 = vector.shape_cast %66 : vector<1x128xf32> to vector<1x1x128xf32>
    %68 = vector.broadcast %67 : vector<1x1x128xf32> to vector<32x32x128xf32>
    %69 = arith.addf %65, %68 : vector<32x32x128xf32>
    %cst_22 = arith.constant 0.000000e+00 : f32
    %70 = vector.broadcast %cst_22 : f32 to vector<32x32x128xf32>
    %71 = arith.maximumf %69, %70 : vector<32x32x128xf32>
    %c3_i32_23 = arith.constant 3 : i32
    %72 = vector.broadcast %c3_i32_23 : i32 to vector<32x128xi32>
    %73 = arith.cmpi sge, %13, %72 : vector<32x128xi32>
    %74 = vector.shape_cast %73 : vector<32x128xi1> to vector<1x32x128xi1>
    %cst_24 = arith.constant 0xFF800000 : f32
    %75 = vector.shape_cast %74 : vector<1x32x128xi1> to vector<1x32x128xi1>
    %76 = vector.broadcast %75 : vector<1x32x128xi1> to vector<32x32x128xi1>
    %77 = vector.broadcast %cst_24 : f32 to vector<32x32x128xf32>
    %78 = arith.select %76, %71, %77 : vector<32x32x128xi1>, vector<32x32x128xf32>
    %cst_25 = arith.constant dense<0xFF800000> : vector<32x128xf32>
    %79 = vector.multi_reduction <maximumf>, %78, %cst_25 [1] : vector<32x32x128xf32> to vector<32x128xf32>
    %80 = tpu.concatenate %32, %54, %79 in 1 : vector<32x128xf32>, vector<32x128xf32>, vector<32x128xf32> -> vector<32x384xf32>
    %81 = arith.truncf %80 : vector<32x384xf32> to vector<32x384xbf16>
    %c0_26 = arith.constant 0 : index
    %c0_27 = arith.constant 0 : index
    %82 = vector.load %arg5[%c0_26, %c0_27] : memref<384x128xbf16, #tpu.memory_space<vmem>>, vector<384x128xbf16>
    %cst_28 = arith.constant dense<0.000000e+00> : vector<32x128xf32>
    %83 = tpu.matmul %81, %82, %cst_28 {dimension_numbers = #tpu.dot_dimension_numbers<[1], [0], [0], [1], [0, 0, 1, 1], [], []>} : vector<32x384xbf16>, vector<384x128xbf16>, vector<32x128xf32> -> vector<32x128xf32>
    %c0_29 = arith.constant 0 : index
    %c0_30 = arith.constant 0 : index
    %84 = vector.load %arg6[%c0_29, %c0_30] : memref<1x128xf32, #tpu.memory_space<vmem>>, vector<1x128xf32>
    %85 = vector.broadcast %84 : vector<1x128xf32> to vector<32x128xf32>
    %86 = arith.addf %83, %85 : vector<32x128xf32>
    %c0_31 = arith.constant 0 : index
    %c0_32 = arith.constant 0 : index
    %87 = vector.load %arg7[%c0_31, %c0_32] : memref<32x128xf32, #tpu.memory_space<vmem>>, vector<32x128xf32>
    tpu.vector_store %arg7[%c0_31, %c0_32], %86 {strides = array<i32>} : memref<32x128xf32, #tpu.memory_space<vmem>>, vector<32x128xf32>,
    return
  }
  func.func @transform_0(%arg0: i32) -> (i32, i32) {
    %c0_i32 = arith.constant 0 : i32
    %c0_i32_0 = arith.constant 0 : i32
    return %arg0, %c0_i32 : i32, i32
  }
  func.func @transform_1(%arg0: i32) -> (i32, i32) {
    %c0_i32 = arith.constant 0 : i32
    %c0_i32_0 = arith.constant 0 : i32
    %c0_i32_1 = arith.constant 0 : i32
    return %c0_i32, %c0_i32_0 : i32, i32
  }
  func.func @transform_2(%arg0: i32) -> (i32, i32) {
    %c0_i32 = arith.constant 0 : i32
    %c0_i32_0 = arith.constant 0 : i32
    %c0_i32_1 = arith.constant 0 : i32
    return %c0_i32, %c0_i32_0 : i32, i32
  }
  func.func @transform_3(%arg0: i32) -> (i32, i32) {
    %c0_i32 = arith.constant 0 : i32
    %c0_i32_0 = arith.constant 0 : i32
    %c0_i32_1 = arith.constant 0 : i32
    return %c0_i32, %c0_i32_0 : i32, i32
  }
  func.func @transform_4(%arg0: i32) -> (i32, i32) {
    %c0_i32 = arith.constant 0 : i32
    %c0_i32_0 = arith.constant 0 : i32
    %c0_i32_1 = arith.constant 0 : i32
    return %c0_i32, %c0_i32_0 : i32, i32
  }
  func.func @transform_5(%arg0: i32) -> (i32, i32) {
    %c0_i32 = arith.constant 0 : i32
    %c0_i32_0 = arith.constant 0 : i32
    %c0_i32_1 = arith.constant 0 : i32
    return %c0_i32, %c0_i32_0 : i32, i32
  }
  func.func @transform_6(%arg0: i32) -> (i32, i32) {
    %c0_i32 = arith.constant 0 : i32
    %c0_i32_0 = arith.constant 0 : i32
    return %arg0, %c0_i32 : i32, i32
  }
}

</mosaic_0001>

<llo_original>
// kernel: tpu_custom_call.1
$region0: #{tpu_custom_call.1}
  #allocation0 [shape = 'u32[]', space=smem, size = 0x4, offset = 0x4, fixed_abs, tag = 'smem constant byte address 0x4 - core index']
  #allocation1 [shape = 'u32[144,128]{1,0:T(1,128)}', space=vmem, size = 0x12000, scoped, tag = 'internal scratch']
  %s0 = inlined_call_operand.vmem [shape: s32[4096,1], index: 0, kind: input, shape index: {}]
  %s1 = inlined_call_operand.vmem [shape: bf16[128,128], index: 1, kind: input, shape index: {}]
  %s2 = inlined_call_operand.vmem [shape: bf16[128,384], index: 2, kind: input, shape index: {}]
  %s3 = inlined_call_operand.vmem [shape: f32[1,384], index: 3, kind: input, shape index: {}]
  %s4 = inlined_call_operand.vmem [shape: bf16[384,128], index: 4, kind: input, shape index: {}]
  %s5 = inlined_call_operand.vmem [shape: f32[1,128], index: 5, kind: input, shape index: {}]
  %s6 = inlined_call_operand.hbm [shape: f32[128,128], index: 6, kind: output, shape index: {}]
  %s7 = sld [smem:[#allocation0]]
  $region57: #{tpu_custom_call.1} parent=0
    _
  %s9 = ssub.s32 1, %s7
  %s10 = scalar_select 0, %s9, %s7
  $region1: #{tpu_custom_call.1} parent=0
    #allocation2 [shape = 'u8[32768]{0}', space=vmem, size = 0x8000, scoped, tag = 'output window, operand 0']
    #allocation3 [shape = 's32[2]{0}', space=sflag, size = 0x8, scoped, tag = 'scoped memory for tpu_custom_call.1']
    %11 = vsyncpa [#allocation3], 0
    %s12 = scalar_lea.sflag [#allocation3], 1
    %13 = vsyncpa %s12, 0
    loop: start=0, step=1, limit=6
    $region2: #{tpu_custom_call.1} parent=1 // loop_pre_header
      _
    $region3: #{tpu_custom_call.1} parent=1 // loop_header
      %s15 = sphi 0, %s19
      %p16 = scmp.ge.s32.totalorder %s15, 6
      %s25 = sphi 0, %s27
      %s28 = sphi 0, %s25
      %s29 = sphi 0, %s28
      %s45 = sphi 0, %s29
      %s49 = sphi 0, %s49
      %s51 = sphi 0, %s49
      %s52 = sphi 0, %s51
      %s66 = sphi 0, %s52
      %s70 = sphi 0, %s70
      %s72 = sphi 0, %s70
      %s73 = sphi 0, %s72
      %s87 = sphi 0, %s73
      %s91 = sphi 0, %s91
      %s93 = sphi 0, %s91
      %s94 = sphi 0, %s93
      %s108 = sphi 0, %s94
      %s112 = sphi 0, %s112
      %s114 = sphi 0, %s112
      %s115 = sphi 0, %s114
      %s129 = sphi 0, %s115
      %s133 = sphi 0, %s133
      %s135 = sphi 0, %s133
      %s136 = sphi 0, %s135
      %s150 = sphi 0, %s136
      %s156 = sphi 0, %s158
      %s159 = sphi 0, %s156
      %s160 = sphi 0, %s159
      %s176 = sphi 0, %s160
    $region4: #{tpu_custom_call.1} parent=1 // loop_header_branch
      %18 = sbr.rel (%p16) target = $region8
    $region5: #{tpu_custom_call.1} parent=1 // loop_body
      %s20 = ssub.s32 %s15, 1
      %s21 = ssub.s32 %s15, 2
      %s22 = sadd.s32 %s15, 1
      %s23 = ssub.s32 %s15, %s22
      %p24 = scmp.eq.s32.totalorder %s23, 0
      %s26 = sadd.s32 %s25, 1
      %s27 = scalar_select %p24, %s25, %s26
      %p30 = pneg %p24
      %p31 = scmp.eq.s32.totalorder %s15, 3
      %p32 = por %p30, %p31
      %p33 = scmp.ne.s32.totalorder %s25, %s28
      %p34 = scmp.eq.s32.totalorder %s15, 0
      %p35 = por %p33, %p34
      %p36 = scmp.ne.s32.totalorder %s25, %s28
      %p37 = scmp.eq.s32.totalorder %s20, 3
      %p38 = por %p36, %p37
      %p39 = scmp.ne.s32.totalorder %s28, %s29
      %p40 = scmp.eq.s32.totalorder %s20, 0
      %p41 = por %p39, %p40
      %p42 = scmp.ne.s32.totalorder %s28, %s29
      %p43 = scmp.eq.s32.totalorder %s21, 3
      %p44 = por %p42, %p43
      %p46 = scmp.ne.s32.totalorder %s29, %s45
      %p47 = scmp.eq.s32.totalorder %s21, 0
      %p48 = por %p46, %p47
      %s50 = sadd.s32 %s49, 1
      %p53 = scmp.eq.s32.totalorder %s15, 3
      %p54 = scmp.ne.s32.totalorder %s49, %s51
      %p55 = scmp.eq.s32.totalorder %s15, 0
      %p56 = por %p54, %p55
      %p57 = scmp.ne.s32.totalorder %s49, %s51
      %p58 = scmp.eq.s32.totalorder %s20, 3
      %p59 = por %p57, %p58
      %p60 = scmp.ne.s32.totalorder %s51, %s52
      %p61 = scmp.eq.s32.totalorder %s20, 0
      %p62 = por %p60, %p61
      %p63 = scmp.ne.s32.totalorder %s51, %s52
      %p64 = scmp.eq.s32.totalorder %s21, 3
      %p65 = por %p63, %p64
      %p67 = scmp.ne.s32.totalorder %s52, %s66
      %p68 = scmp.eq.s32.totalorder %s21, 0
      %p69 = por %p67, %p68
      %s71 = sadd.s32 %s70, 1
      %p74 = scmp.eq.s32.totalorder %s15, 3
      %p75 = scmp.ne.s32.totalorder %s70, %s72
      %p76 = scmp.eq.s32.totalorder %s15, 0
      %p77 = por %p75, %p76
      %p78 = scmp.ne.s32.totalorder %s70, %s72
      %p79 = scmp.eq.s32.totalorder %s20, 3
      %p80 = por %p78, %p79
      %p81 = scmp.ne.s32.totalorder %s72, %s73
      %p82 = scmp.eq.s32.totalorder %s20, 0
      %p83 = por %p81, %p82
      %p84 = scmp.ne.s32.totalorder %s72, %s73
      %p85 = scmp.eq.s32.totalorder %s21, 3
      %p86 = por %p84, %p85
      %p88 = scmp.ne.s32.totalorder %s73, %s87
      %p89 = scmp.eq.s32.totalorder %s21, 0
      %p90 = por %p88, %p89
      %s92 = sadd.s32 %s91, 1
      %p95 = scmp.eq.s32.totalorder %s15, 3
      %p96 = scmp.ne.s32.totalorder %s91, %s93
      %p97 = scmp.eq.s32.totalorder %s15, 0
      %p98 = por %p96, %p97
      %p99 = scmp.ne.s32.totalorder %s91, %s93
      %p100 = scmp.eq.s32.totalorder %s20, 3
      %p101 = por %p99, %p100
      %p102 = scmp.ne.s32.totalorder %s93, %s94
      %p103 = scmp.eq.s32.totalorder %s20, 0
      %p104 = por %p102, %p103
      %p105 = scmp.ne.s32.totalorder %s93, %s94
      %p106 = scmp.eq.s32.totalorder %s21, 3
      %p107 = por %p105, %p106
      %p109 = scmp.ne.s32.totalorder %s94, %s108
      %p110 = scmp.eq.s32.totalorder %s21, 0
      %p111 = por %p109, %p110
      %s113 = sadd.s32 %s112, 1
      %p116 = scmp.eq.s32.totalorder %s15, 3
      %p117 = scmp.ne.s32.totalorder %s112, %s114
      %p118 = scmp.eq.s32.totalorder %s15, 0
      %p119 = por %p117, %p118
      %p120 = scmp.ne.s32.totalorder %s112, %s114
      %p121 = scmp.eq.s32.totalorder %s20, 3
      %p122 = por %p120, %p121
      %p123 = scmp.ne.s32.totalorder %s114, %s115
      %p124 = scmp.eq.s32.totalorder %s20, 0
      %p125 = por %p123, %p124
      %p126 = scmp.ne.s32.totalorder %s114, %s115
      %p127 = scmp.eq.s32.totalorder %s21, 3
      %p128 = por %p126, %p127
      %p130 = scmp.ne.s32.totalorder %s115, %s129
      %p131 = scmp.eq.s32.totalorder %s21, 0
      %p132 = por %p130, %p131
      %s134 = sadd.s32 %s133, 1
      %p137 = scmp.eq.s32.totalorder %s15, 3
      %p138 = scmp.ne.s32.totalorder %s133, %s135
      %p139 = scmp.eq.s32.totalorder %s15, 0
      %p140 = por %p138, %p139
      %p141 = scmp.ne.s32.totalorder %s133, %s135
      %p142 = scmp.eq.s32.totalorder %s20, 3
      %p143 = por %p141, %p142
      %p144 = scmp.ne.s32.totalorder %s135, %s136
      %p145 = scmp.eq.s32.totalorder %s20, 0
      %p146 = por %p144, %p145
      %p147 = scmp.ne.s32.totalorder %s135, %s136
      %p148 = scmp.eq.s32.totalorder %s21, 3
      %p149 = por %p147, %p148
      %p151 = scmp.ne.s32.totalorder %s136, %s150
      %p152 = scmp.eq.s32.totalorder %s21, 0
      %p153 = por %p151, %p152
      %s154 = ssub.s32 %s15, %s22
      %p155 = scmp.eq.s32.totalorder %s154, 0
      %s157 = sadd.s32 %s156, 1
      %s158 = scalar_select %p155, %s156, %s157
      %p161 = pneg %p155
      %p162 = scmp.eq.s32.totalorder %s15, 3
      %p163 = por %p161, %p162
      %p164 = scmp.ne.s32.totalorder %s156, %s159
      %p165 = scmp.eq.s32.totalorder %s15, 0
      %p166 = por %p164, %p165
      %p167 = scmp.ne.s32.totalorder %s156, %s159
      %p168 = scmp.eq.s32.totalorder %s20, 3
      %p169 = por %p167, %p168
      %p170 = scmp.ne.s32.totalorder %s159, %s160
      %p171 = scmp.eq.s32.totalorder %s20, 0
      %p172 = por %p170, %p171
      %p173 = scmp.ne.s32.totalorder %s159, %s160
      %p174 = scmp.eq.s32.totalorder %s21, 3
      %p175 = por %p173, %p174
      %p177 = scmp.ne.s32.totalorder %s160, %s176
      %p178 = scmp.eq.s32.totalorder %s21, 0
      %p179 = por %p177, %p178
      %p180 = scmp.le.s32.totalorder 1, %s15
      %p181 = scmp.lt.s32.totalorder %s15, 5
      %p182 = pnand %p180, %p181
      %p183 = pneg %p182
      // Predicated region
      $region9: #{tpu_custom_call.1} parent=5 // pred_check
        _
      $region10: #{tpu_custom_call.1} parent=5 // pred_check_branch
        %185 = sbr.rel (%p182) target = $region12
      $region11: #{tpu_custom_call.1} parent=5 // pred_region
        %s186 = ssub.s32 %s15, 1
        // Predicated region
        $region13: #{tpu_custom_call.1} parent=11 // pred_check
          %p187 = pneg %p62
        $region14: #{tpu_custom_call.1} parent=11 // pred_check_branch
          %189 = sbr.rel (%p187) target = $region16
        $region15: #{tpu_custom_call.1} parent=11 // pred_region
          _
        $region16: #{tpu_custom_call.1} parent=11 // pred_fallthru
          _
        // Predicated region
        $region17: #{tpu_custom_call.1} parent=11 // pred_check
          %p190 = pneg %p83
        $region18: #{tpu_custom_call.1} parent=11 // pred_check_branch
          %192 = sbr.rel (%p190) target = $region20
        $region19: #{tpu_custom_call.1} parent=11 // pred_region
          _
        $region20: #{tpu_custom_call.1} parent=11 // pred_fallthru
          _
        // Predicated region
        $region21: #{tpu_custom_call.1} parent=11 // pred_check
          %p193 = pneg %p104
        $region22: #{tpu_custom_call.1} parent=11 // pred_check_branch
          %195 = sbr.rel (%p193) target = $region24
        $region23: #{tpu_custom_call.1} parent=11 // pred_region
          _
        $region24: #{tpu_custom_call.1} parent=11 // pred_fallthru
          _
        // Predicated region
        $region25: #{tpu_custom_call.1} parent=11 // pred_check
          %p196 = pneg %p125
        $region26: #{tpu_custom_call.1} parent=11 // pred_check_branch
          %198 = sbr.rel (%p196) target = $region28
        $region27: #{tpu_custom_call.1} parent=11 // pred_region
          _
        $region28: #{tpu_custom_call.1} parent=11 // pred_fallthru
          _
        // Predicated region
        $region29: #{tpu_custom_call.1} parent=11 // pred_check
          %p199 = pneg %p146
        $region30: #{tpu_custom_call.1} parent=11 // pred_check_branch
          %201 = sbr.rel (%p199) target = $region32
        $region31: #{tpu_custom_call.1} parent=11 // pred_region
          _
        $region32: #{tpu_custom_call.1} parent=11 // pred_fallthru
          _
      $region12: #{tpu_custom_call.1} parent=5 // pred_fallthru
        _
      %p202 = scmp.lt.s32.totalorder %s15, 4
      // Predicated region
      $region33: #{tpu_custom_call.1} parent=5 // pred_check
        %p203 = pneg %p202
      $region34: #{tpu_custom_call.1} parent=5 // pred_check_branch
        %205 = sbr.rel (%p203) target = $region36
      $region35: #{tpu_custom_call.1} parent=5 // pred_region
        // Predicated region
        $region37: #{tpu_custom_call.1} parent=35 // pred_check
          %p206 = pneg %p35
        $region38: #{tpu_custom_call.1} parent=35 // pred_check_branch
          %208 = sbr.rel (%p206) target = $region40
        $region39: #{tpu_custom_call.1} parent=35 // pred_region
          %s209 = smul.u32 128, %s15
          %p210 = scmp.lt.s32.totalorder %s209, 511
          %s211 = scalar_select %p210, %s209, 511
          %s212 = smul.addr %s211, 8
          %s213 = scalar_lea.vmem %s0, %s212
          %s214 = smul.u32 128, %s15
        $region40: #{tpu_custom_call.1} parent=35 // pred_fallthru
          _
      $region36: #{tpu_custom_call.1} parent=5 // pred_fallthru
        _
      %p215 = scmp.le.s32.totalorder 1, %s15
      %p216 = scmp.lt.s32.totalorder %s15, 5
      %p217 = pnand %p215, %p216
      %p218 = pneg %p217
      // Predicated region
      $region41: #{tpu_custom_call.1} parent=5 // pred_check
        _
      $region42: #{tpu_custom_call.1} parent=5 // pred_check_branch
        %220 = sbr.rel (%p217) target = $region44
      $region43: #{tpu_custom_call.1} parent=5 // pred_region
        %s221 = ssub.s32 %s15, 1
        %s222 = smul.u32 128, %s20
        %p223 = scmp.lt.s32.totalorder %s222, 511
        %s224 = scalar_select %p223, %s222, 511
        %s225 = smul.addr %s224, 8
        %s226 = scalar_lea.vmem %s0, %s225
        %p227 = pneg %p41
        %p228 = pneg %p38
        %p229 = pneg %p62
        %p230 = pneg %p59
        %p231 = pneg %p83
        %p232 = pneg %p80
        %p233 = pneg %p104
        %p234 = pneg %p101
        %p235 = pneg %p125
        %p236 = pneg %p122
        %p237 = pneg %p146
        %p238 = pneg %p143
        %p239 = pneg %p172
        %p240 = pneg %p169
        %s241 = sand.u32 %s159, 1
        %s242 = scalar_lea.sflag [#allocation3], %s241
        %s243 = sand.u32 %s159, 1
        %s244 = smul.addr %s243, 32
        %s245 = scalar_lea.vmem [#allocation2], %s244
        %s246 = smul.u32 128, %s20
        %p247 = scmp.lt.s32.totalorder %s246, 511
        %s248 = scalar_select %p247, %s246, 511
        %s249 = smul.addr %s248, 8
        %s250 = scalar_lea.vmem %s0, %s249
        %s251 = smul.u32 128, %s20
        %s252 = smul.u32 4, %s20
        %v254 = vld [vmem:[%s250] sm:$0xff]
        %v255 = vld [vmem:[%s250 + $0x8] sm:$0xff]
        %v256 = vld [vmem:[%s250 + $0x10] sm:$0xff]
        %v257 = vld [vmem:[%s250 + $0x18] sm:$0xff]
        %v258 = vld [vmem:[%s250 + $0x20] sm:$0xff]
        %v259 = vld [vmem:[%s250 + $0x28] sm:$0xff]
        %v260 = vld [vmem:[%s250 + $0x30] sm:$0xff]
        %v261 = vld [vmem:[%s250 + $0x38] sm:$0xff]
        %v262 = vld [vmem:[%s250 + $0x40] sm:$0xff]
        %v263 = vld [vmem:[%s250 + $0x48] sm:$0xff]
        %v264 = vld [vmem:[%s250 + $0x50] sm:$0xff]
        %v265 = vld [vmem:[%s250 + $0x58] sm:$0xff]
        %v266 = vld [vmem:[%s250 + $0x60] sm:$0xff]
        %v267 = vld [vmem:[%s250 + $0x68] sm:$0xff]
        %v268 = vld [vmem:[%s250 + $0x70] sm:$0xff]
        %v269 = vld [vmem:[%s250 + $0x78] sm:$0xff]
        %v270 = vld [vmem:[%s250 + $0x80] sm:$0xff]
        %v271 = vld [vmem:[%s250 + $0x88] sm:$0xff]
        %v272 = vld [vmem:[%s250 + $0x90] sm:$0xff]
        %v273 = vld [vmem:[%s250 + $0x98] sm:$0xff]
        %v274 = vld [vmem:[%s250 + $0xa0] sm:$0xff]
        %v275 = vld [vmem:[%s250 + $0xa8] sm:$0xff]
        %v276 = vld [vmem:[%s250 + $0xb0] sm:$0xff]
        %v277 = vld [vmem:[%s250 + $0xb8] sm:$0xff]
        %v278 = vld [vmem:[%s250 + $0xc0] sm:$0xff]
        %v279 = vld [vmem:[%s250 + $0xc8] sm:$0xff]
        %v280 = vld [vmem:[%s250 + $0xd0] sm:$0xff]
        %v281 = vld [vmem:[%s250 + $0xd8] sm:$0xff]
        %v282 = vld [vmem:[%s250 + $0xe0] sm:$0xff]
        %v283 = vld [vmem:[%s250 + $0xe8] sm:$0xff]
        %v284 = vld [vmem:[%s250 + $0xf0] sm:$0xff]
        %v285 = vld [vmem:[%s250 + $0xf8] sm:$0xff]
        %v286 = vld [vmem:[%s250 + $0x100] sm:$0xff]
        %v287 = vld [vmem:[%s250 + $0x108] sm:$0xff]
        %v288 = vld [vmem:[%s250 + $0x110] sm:$0xff]
        %v289 = vld [vmem:[%s250 + $0x118] sm:$0xff]
        %v290 = vld [vmem:[%s250 + $0x120] sm:$0xff]
        %v291 = vld [vmem:[%s250 + $0x128] sm:$0xff]
        %v292 = vld [vmem:[%s250 + $0x130] sm:$0xff]
        %v293 = vld [vmem:[%s250 + $0x138] sm:$0xff]
        %v294 = vld [vmem:[%s250 + $0x140] sm:$0xff]
        %v295 = vld [vmem:[%s250 + $0x148] sm:$0xff]
        %v296 = vld [vmem:[%s250 + $0x150] sm:$0xff]
        %v297 = vld [vmem:[%s250 + $0x158] sm:$0xff]
        %v298 = vld [vmem:[%s250 + $0x160] sm:$0xff]
        %v299 = vld [vmem:[%s250 + $0x168] sm:$0xff]
        %v300 = vld [vmem:[%s250 + $0x170] sm:$0xff]
        %v301 = vld [vmem:[%s250 + $0x178] sm:$0xff]
        %v302 = vld [vmem:[%s250 + $0x180] sm:$0xff]
        %v303 = vld [vmem:[%s250 + $0x188] sm:$0xff]
        %v304 = vld [vmem:[%s250 + $0x190] sm:$0xff]
        %v305 = vld [vmem:[%s250 + $0x198] sm:$0xff]
        %v306 = vld [vmem:[%s250 + $0x1a0] sm:$0xff]
        %v307 = vld [vmem:[%s250 + $0x1a8] sm:$0xff]
        %v308 = vld [vmem:[%s250 + $0x1b0] sm:$0xff]
        %v309 = vld [vmem:[%s250 + $0x1b8] sm:$0xff]
        %v310 = vld [vmem:[%s250 + $0x1c0] sm:$0xff]
        %v311 = vld [vmem:[%s250 + $0x1c8] sm:$0xff]
        %v312 = vld [vmem:[%s250 + $0x1d0] sm:$0xff]
        %v313 = vld [vmem:[%s250 + $0x1d8] sm:$0xff]
        %v314 = vld [vmem:[%s250 + $0x1e0] sm:$0xff]
        %v315 = vld [vmem:[%s250 + $0x1e8] sm:$0xff]
        %v316 = vld [vmem:[%s250 + $0x1f0] sm:$0xff]
        %v317 = vld [vmem:[%s250 + $0x1f8] sm:$0xff]
        %v318 = vld [vmem:[%s250 + $0x200] sm:$0xff]
        %v319 = vld [vmem:[%s250 + $0x208] sm:$0xff]
        %v320 = vld [vmem:[%s250 + $0x210] sm:$0xff]
        %v321 = vld [vmem:[%s250 + $0x218] sm:$0xff]
        %v322 = vld [vmem:[%s250 + $0x220] sm:$0xff]
        %v323 = vld [vmem:[%s250 + $0x228] sm:$0xff]
        %v324 = vld [vmem:[%s250 + $0x230] sm:$0xff]
        %v325 = vld [vmem:[%s250 + $0x238] sm:$0xff]
        %v326 = vld [vmem:[%s250 + $0x240] sm:$0xff]
        %v327 = vld [vmem:[%s250 + $0x248] sm:$0xff]
        %v328 = vld [vmem:[%s250 + $0x250] sm:$0xff]
        %v329 = vld [vmem:[%s250 + $0x258] sm:$0xff]
        %v330 = vld [vmem:[%s250 + $0x260] sm:$0xff]
        %v331 = vld [vmem:[%s250 + $0x268] sm:$0xff]
        %v332 = vld [vmem:[%s250 + $0x270] sm:$0xff]
        %v333 = vld [vmem:[%s250 + $0x278] sm:$0xff]
        %v334 = vld [vmem:[%s250 + $0x280] sm:$0xff]
        %v335 = vld [vmem:[%s250 + $0x288] sm:$0xff]
        %v336 = vld [vmem:[%s250 + $0x290] sm:$0xff]
        %v337 = vld [vmem:[%s250 + $0x298] sm:$0xff]
        %v338 = vld [vmem:[%s250 + $0x2a0] sm:$0xff]
        %v339 = vld [vmem:[%s250 + $0x2a8] sm:$0xff]
        %v340 = vld [vmem:[%s250 + $0x2b0] sm:$0xff]
        %v341 = vld [vmem:[%s250 + $0x2b8] sm:$0xff]
        %v342 = vld [vmem:[%s250 + $0x2c0] sm:$0xff]
        %v343 = vld [vmem:[%s250 + $0x2c8] sm:$0xff]
        %v344 = vld [vmem:[%s250 + $0x2d0] sm:$0xff]
        %v345 = vld [vmem:[%s250 + $0x2d8] sm:$0xff]
        %v346 = vld [vmem:[%s250 + $0x2e0] sm:$0xff]
        %v347 = vld [vmem:[%s250 + $0x2e8] sm:$0xff]
        %v348 = vld [vmem:[%s250 + $0x2f0] sm:$0xff]
        %v349 = vld [vmem:[%s250 + $0x2f8] sm:$0xff]
        %v350 = vld [vmem:[%s250 + $0x300] sm:$0xff]
        %v351 = vld [vmem:[%s250 + $0x308] sm:$0xff]
        %v352 = vld [vmem:[%s250 + $0x310] sm:$0xff]
        %v353 = vld [vmem:[%s250 + $0x318] sm:$0xff]
        %v354 = vld [vmem:[%s250 + $0x320] sm:$0xff]
        %v355 = vld [vmem:[%s250 + $0x328] sm:$0xff]
        %v356 = vld [vmem:[%s250 + $0x330] sm:$0xff]
        %v357 = vld [vmem:[%s250 + $0x338] sm:$0xff]
        %v358 = vld [vmem:[%s250 + $0x340] sm:$0xff]
        %v359 = vld [vmem:[%s250 + $0x348] sm:$0xff]
        %v360 = vld [vmem:[%s250 + $0x350] sm:$0xff]
        %v361 = vld [vmem:[%s250 + $0x358] sm:$0xff]
        %v362 = vld [vmem:[%s250 + $0x360] sm:$0xff]
        %v363 = vld [vmem:[%s250 + $0x368] sm:$0xff]
        %v364 = vld [vmem:[%s250 + $0x370] sm:$0xff]
        %v365 = vld [vmem:[%s250 + $0x378] sm:$0xff]
        %v366 = vld [vmem:[%s250 + $0x380] sm:$0xff]
        %v367 = vld [vmem:[%s250 + $0x388] sm:$0xff]
        %v368 = vld [vmem:[%s250 + $0x390] sm:$0xff]
        %v369 = vld [vmem:[%s250 + $0x398] sm:$0xff]
        %v370 = vld [vmem:[%s250 + $0x3a0] sm:$0xff]
        %v371 = vld [vmem:[%s250 + $0x3a8] sm:$0xff]
        %v372 = vld [vmem:[%s250 + $0x3b0] sm:$0xff]
        %v373 = vld [vmem:[%s250 + $0x3b8] sm:$0xff]
        %v374 = vld [vmem:[%s250 + $0x3c0] sm:$0xff]
        %v375 = vld [vmem:[%s250 + $0x3c8] sm:$0xff]
        %v376 = vld [vmem:[%s250 + $0x3d0] sm:$0xff]
        %v377 = vld [vmem:[%s250 + $0x3d8] sm:$0xff]
        %v378 = vld [vmem:[%s250 + $0x3e0] sm:$0xff]
        %v379 = vld [vmem:[%s250 + $0x3e8] sm:$0xff]
        %v380 = vld [vmem:[%s250 + $0x3f0] sm:$0xff]
        %v381 = vld [vmem:[%s250 + $0x3f8] sm:$0xff]
        %v382 = vlaneseq
        %v383 = vand.u32 %v382, 127
        %384 = vset.pattern.permute.xlu0 0
        %385 = vperm.xlu0 %384, %v254
        %v386 = vpop.permute.xlu0 %385
        %387 = vset.pattern.permute.xlu0 0
        %388 = vperm.xlu0 %387, %v255
        %v389 = vpop.permute.xlu0 %388
        %390 = vset.pattern.permute.xlu0 0
        %391 = vperm.xlu0 %390, %v256
        %v392 = vpop.permute.xlu0 %391
        %393 = vset.pattern.permute.xlu0 0
        %394 = vperm.xlu0 %393, %v257
        %v395 = vpop.permute.xlu0 %394
        %396 = vset.pattern.permute.xlu0 0
        %397 = vperm.xlu0 %396, %v258
        %v398 = vpop.permute.xlu0 %397
        %399 = vset.pattern.permute.xlu0 0
        %400 = vperm.xlu0 %399, %v259
        %v401 = vpop.permute.xlu0 %400
        %402 = vset.pattern.permute.xlu0 0
        %403 = vperm.xlu0 %402, %v260
        %v404 = vpop.permute.xlu0 %403
        %405 = vset.pattern.permute.xlu0 0
        %406 = vperm.xlu0 %405, %v261
        %v407 = vpop.permute.xlu0 %406
        %408 = vset.pattern.permute.xlu0 0
        %409 = vperm.xlu0 %408, %v262
        %v410 = vpop.permute.xlu0 %409
        %411 = vset.pattern.permute.xlu0 0
        %412 = vperm.xlu0 %411, %v263
        %v413 = vpop.permute.xlu0 %412
        %414 = vset.pattern.permute.xlu0 0
        %415 = vperm.xlu0 %414, %v264
        %v416 = vpop.permute.xlu0 %415
        %417 = vset.pattern.permute.xlu0 0
        %418 = vperm.xlu0 %417, %v265
        %v419 = vpop.permute.xlu0 %418
        %420 = vset.pattern.permute.xlu0 0
        %421 = vperm.xlu0 %420, %v266
        %v422 = vpop.permute.xlu0 %421
        %423 = vset.pattern.permute.xlu0 0
        %424 = vperm.xlu0 %423, %v267
        %v425 = vpop.permute.xlu0 %424
        %426 = vset.pattern.permute.xlu0 0
        %427 = vperm.xlu0 %426, %v268
        %v428 = vpop.permute.xlu0 %427
        %429 = vset.pattern.permute.xlu0 0
        %430 = vperm.xlu0 %429, %v269
        %v431 = vpop.permute.xlu0 %430
        %432 = vset.pattern.permute.xlu0 0
        %433 = vperm.xlu0 %432, %v270
        %v434 = vpop.permute.xlu0 %433
        %435 = vset.pattern.permute.xlu0 0
        %436 = vperm.xlu0 %435, %v271
        %v437 = vpop.permute.xlu0 %436
        %438 = vset.pattern.permute.xlu0 0
        %439 = vperm.xlu0 %438, %v272
        %v440 = vpop.permute.xlu0 %439
        %441 = vset.pattern.permute.xlu0 0
        %442 = vperm.xlu0 %441, %v273
        %v443 = vpop.permute.xlu0 %442
        %444 = vset.pattern.permute.xlu0 0
        %445 = vperm.xlu0 %444, %v274
        %v446 = vpop.permute.xlu0 %445
        %447 = vset.pattern.permute.xlu0 0
        %448 = vperm.xlu0 %447, %v275
        %v449 = vpop.permute.xlu0 %448
        %450 = vset.pattern.permute.xlu0 0
        %451 = vperm.xlu0 %450, %v276
        %v452 = vpop.permute.xlu0 %451
        %453 = vset.pattern.permute.xlu0 0
        %454 = vperm.xlu0 %453, %v277
        %v455 = vpop.permute.xlu0 %454
        %456 = vset.pattern.permute.xlu0 0
        %457 = vperm.xlu0 %456, %v278
        %v458 = vpop.permute.xlu0 %457
        %459 = vset.pattern.permute.xlu0 0
        %460 = vperm.xlu0 %459, %v279
        %v461 = vpop.permute.xlu0 %460
        %462 = vset.pattern.permute.xlu0 0
        %463 = vperm.xlu0 %462, %v280
        %v464 = vpop.permute.xlu0 %463
        %465 = vset.pattern.permute.xlu0 0
        %466 = vperm.xlu0 %465, %v281
        %v467 = vpop.permute.xlu0 %466
        %468 = vset.pattern.permute.xlu0 0
        %469 = vperm.xlu0 %468, %v282
        %v470 = vpop.permute.xlu0 %469
        %471 = vset.pattern.permute.xlu0 0
        %472 = vperm.xlu0 %471, %v283
        %v473 = vpop.permute.xlu0 %472
        %474 = vset.pattern.permute.xlu0 0
        %475 = vperm.xlu0 %474, %v284
        %v476 = vpop.permute.xlu0 %475
        %477 = vset.pattern.permute.xlu0 0
        %478 = vperm.xlu0 %477, %v285
        %v479 = vpop.permute.xlu0 %478
        %480 = vset.pattern.permute.xlu0 0
        %481 = vperm.xlu0 %480, %v286
        %v482 = vpop.permute.xlu0 %481
        %483 = vset.pattern.permute.xlu0 0
        %484 = vperm.xlu0 %483, %v287
        %v485 = vpop.permute.xlu0 %484
        %486 = vset.pattern.permute.xlu0 0
        %487 = vperm.xlu0 %486, %v288
        %v488 = vpop.permute.xlu0 %487
        %489 = vset.pattern.permute.xlu0 0
        %490 = vperm.xlu0 %489, %v289
        %v491 = vpop.permute.xlu0 %490
        %492 = vset.pattern.permute.xlu0 0
        %493 = vperm.xlu0 %492, %v290
        %v494 = vpop.permute.xlu0 %493
        %495 = vset.pattern.permute.xlu0 0
        %496 = vperm.xlu0 %495, %v291
        %v497 = vpop.permute.xlu0 %496
        %498 = vset.pattern.permute.xlu0 0
        %499 = vperm.xlu0 %498, %v292
        %v500 = vpop.permute.xlu0 %499
        %501 = vset.pattern.permute.xlu0 0
        %502 = vperm.xlu0 %501, %v293
        %v503 = vpop.permute.xlu0 %502
        %504 = vset.pattern.permute.xlu0 0
        %505 = vperm.xlu0 %504, %v294
        %v506 = vpop.permute.xlu0 %505
        %507 = vset.pattern.permute.xlu0 0
        %508 = vperm.xlu0 %507, %v295
        %v509 = vpop.permute.xlu0 %508
        %510 = vset.pattern.permute.xlu0 0
        %511 = vperm.xlu0 %510, %v296
        %v512 = vpop.permute.xlu0 %511
        %513 = vset.pattern.permute.xlu0 0
        %514 = vperm.xlu0 %513, %v297
        %v515 = vpop.permute.xlu0 %514
        %516 = vset.pattern.permute.xlu0 0
        %517 = vperm.xlu0 %516, %v298
        %v518 = vpop.permute.xlu0 %517
        %519 = vset.pattern.permute.xlu0 0
        %520 = vperm.xlu0 %519, %v299
        %v521 = vpop.permute.xlu0 %520
        %522 = vset.pattern.permute.xlu0 0
        %523 = vperm.xlu0 %522, %v300
        %v524 = vpop.permute.xlu0 %523
        %525 = vset.pattern.permute.xlu0 0
        %526 = vperm.xlu0 %525, %v301
        %v527 = vpop.permute.xlu0 %526
        %528 = vset.pattern.permute.xlu0 0
        %529 = vperm.xlu0 %528, %v302
        %v530 = vpop.permute.xlu0 %529
        %531 = vset.pattern.permute.xlu0 0
        %532 = vperm.xlu0 %531, %v303
        %v533 = vpop.permute.xlu0 %532
        %534 = vset.pattern.permute.xlu0 0
        %535 = vperm.xlu0 %534, %v304
        %v536 = vpop.permute.xlu0 %535
        %537 = vset.pattern.permute.xlu0 0
        %538 = vperm.xlu0 %537, %v305
        %v539 = vpop.permute.xlu0 %538
        %540 = vset.pattern.permute.xlu0 0
        %541 = vperm.xlu0 %540, %v306
        %v542 = vpop.permute.xlu0 %541
        %543 = vset.pattern.permute.xlu0 0
        %544 = vperm.xlu0 %543, %v307
        %v545 = vpop.permute.xlu0 %544
        %546 = vset.pattern.permute.xlu0 0
        %547 = vperm.xlu0 %546, %v308
        %v548 = vpop.permute.xlu0 %547
        %549 = vset.pattern.permute.xlu0 0
        %550 = vperm.xlu0 %549, %v309
        %v551 = vpop.permute.xlu0 %550
        %552 = vset.pattern.permute.xlu0 0
        %553 = vperm.xlu0 %552, %v310
        %v554 = vpop.permute.xlu0 %553
        %555 = vset.pattern.permute.xlu0 0
        %556 = vperm.xlu0 %555, %v311
        %v557 = vpop.permute.xlu0 %556
        %558 = vset.pattern.permute.xlu0 0
        %559 = vperm.xlu0 %558, %v312
        %v560 = vpop.permute.xlu0 %559
        %561 = vset.pattern.permute.xlu0 0
        %562 = vperm.xlu0 %561, %v313
        %v563 = vpop.permute.xlu0 %562
        %564 = vset.pattern.permute.xlu0 0
        %565 = vperm.xlu0 %564, %v314
        %v566 = vpop.permute.xlu0 %565
        %567 = vset.pattern.permute.xlu0 0
        %568 = vperm.xlu0 %567, %v315
        %v569 = vpop.permute.xlu0 %568
        %570 = vset.pattern.permute.xlu0 0
        %571 = vperm.xlu0 %570, %v316
        %v572 = vpop.permute.xlu0 %571
        %573 = vset.pattern.permute.xlu0 0
        %574 = vperm.xlu0 %573, %v317
        %v575 = vpop.permute.xlu0 %574
        %576 = vset.pattern.permute.xlu0 0
        %577 = vperm.xlu0 %576, %v318
        %v578 = vpop.permute.xlu0 %577
        %579 = vset.pattern.permute.xlu0 0
        %580 = vperm.xlu0 %579, %v319
        %v581 = vpop.permute.xlu0 %580
        %582 = vset.pattern.permute.xlu0 0
        %583 = vperm.xlu0 %582, %v320
        %v584 = vpop.permute.xlu0 %583
        %585 = vset.pattern.permute.xlu0 0
        %586 = vperm.xlu0 %585, %v321
        %v587 = vpop.permute.xlu0 %586
        %588 = vset.pattern.permute.xlu0 0
        %589 = vperm.xlu0 %588, %v322
        %v590 = vpop.permute.xlu0 %589
        %591 = vset.pattern.permute.xlu0 0
        %592 = vperm.xlu0 %591, %v323
        %v593 = vpop.permute.xlu0 %592
        %594 = vset.pattern.permute.xlu0 0
        %595 = vperm.xlu0 %594, %v324
        %v596 = vpop.permute.xlu0 %595
        %597 = vset.pattern.permute.xlu0 0
        %598 = vperm.xlu0 %597, %v325
        %v599 = vpop.permute.xlu0 %598
        %600 = vset.pattern.permute.xlu0 0
        %601 = vperm.xlu0 %600, %v326
        %v602 = vpop.permute.xlu0 %601
        %603 = vset.pattern.permute.xlu0 0
        %604 = vperm.xlu0 %603, %v327
        %v605 = vpop.permute.xlu0 %604
        %606 = vset.pattern.permute.xlu0 0
        %607 = vperm.xlu0 %606, %v328
        %v608 = vpop.permute.xlu0 %607
        %609 = vset.pattern.permute.xlu0 0
        %610 = vperm.xlu0 %609, %v329
        %v611 = vpop.permute.xlu0 %610
        %612 = vset.pattern.permute.xlu0 0
        %613 = vperm.xlu0 %612, %v330
        %v614 = vpop.permute.xlu0 %613
        %615 = vset.pattern.permute.xlu0 0
        %616 = vperm.xlu0 %615, %v331
        %v617 = vpop.permute.xlu0 %616
        %618 = vset.pattern.permute.xlu0 0
        %619 = vperm.xlu0 %618, %v332
        %v620 = vpop.permute.xlu0 %619
        %621 = vset.pattern.permute.xlu0 0
        %622 = vperm.xlu0 %621, %v333
        %v623 = vpop.permute.xlu0 %622
        %624 = vset.pattern.permute.xlu0 0
        %625 = vperm.xlu0 %624, %v334
        %v626 = vpop.permute.xlu0 %625
        %627 = vset.pattern.permute.xlu0 0
        %628 = vperm.xlu0 %627, %v335
        %v629 = vpop.permute.xlu0 %628
        %630 = vset.pattern.permute.xlu0 0
        %631 = vperm.xlu0 %630, %v336
        %v632 = vpop.permute.xlu0 %631
        %633 = vset.pattern.permute.xlu0 0
        %634 = vperm.xlu0 %633, %v337
        %v635 = vpop.permute.xlu0 %634
        %636 = vset.pattern.permute.xlu0 0
        %637 = vperm.xlu0 %636, %v338
        %v638 = vpop.permute.xlu0 %637
        %639 = vset.pattern.permute.xlu0 0
        %640 = vperm.xlu0 %639, %v339
        %v641 = vpop.permute.xlu0 %640
        %642 = vset.pattern.permute.xlu0 0
        %643 = vperm.xlu0 %642, %v340
        %v644 = vpop.permute.xlu0 %643
        %645 = vset.pattern.permute.xlu0 0
        %646 = vperm.xlu0 %645, %v341
        %v647 = vpop.permute.xlu0 %646
        %648 = vset.pattern.permute.xlu0 0
        %649 = vperm.xlu0 %648, %v342
        %v650 = vpop.permute.xlu0 %649
        %651 = vset.pattern.permute.xlu0 0
        %652 = vperm.xlu0 %651, %v343
        %v653 = vpop.permute.xlu0 %652
        %654 = vset.pattern.permute.xlu0 0
        %655 = vperm.xlu0 %654, %v344
        %v656 = vpop.permute.xlu0 %655
        %657 = vset.pattern.permute.xlu0 0
        %658 = vperm.xlu0 %657, %v345
        %v659 = vpop.permute.xlu0 %658
        %660 = vset.pattern.permute.xlu0 0
        %661 = vperm.xlu0 %660, %v346
        %v662 = vpop.permute.xlu0 %661
        %663 = vset.pattern.permute.xlu0 0
        %664 = vperm.xlu0 %663, %v347
        %v665 = vpop.permute.xlu0 %664
        %666 = vset.pattern.permute.xlu0 0
        %667 = vperm.xlu0 %666, %v348
        %v668 = vpop.permute.xlu0 %667
        %669 = vset.pattern.permute.xlu0 0
        %670 = vperm.xlu0 %669, %v349
        %v671 = vpop.permute.xlu0 %670
        %672 = vset.pattern.permute.xlu0 0
        %673 = vperm.xlu0 %672, %v350
        %v674 = vpop.permute.xlu0 %673
        %675 = vset.pattern.permute.xlu0 0
        %676 = vperm.xlu0 %675, %v351
        %v677 = vpop.permute.xlu0 %676
        %678 = vset.pattern.permute.xlu0 0
        %679 = vperm.xlu0 %678, %v352
        %v680 = vpop.permute.xlu0 %679
        %681 = vset.pattern.permute.xlu0 0
        %682 = vperm.xlu0 %681, %v353
        %v683 = vpop.permute.xlu0 %682
        %684 = vset.pattern.permute.xlu0 0
        %685 = vperm.xlu0 %684, %v354
        %v686 = vpop.permute.xlu0 %685
        %687 = vset.pattern.permute.xlu0 0
        %688 = vperm.xlu0 %687, %v355
        %v689 = vpop.permute.xlu0 %688
        %690 = vset.pattern.permute.xlu0 0
        %691 = vperm.xlu0 %690, %v356
        %v692 = vpop.permute.xlu0 %691
        %693 = vset.pattern.permute.xlu0 0
        %694 = vperm.xlu0 %693, %v357
        %v695 = vpop.permute.xlu0 %694
        %696 = vset.pattern.permute.xlu0 0
        %697 = vperm.xlu0 %696, %v358
        %v698 = vpop.permute.xlu0 %697
        %699 = vset.pattern.permute.xlu0 0
        %700 = vperm.xlu0 %699, %v359
        %v701 = vpop.permute.xlu0 %700
        %702 = vset.pattern.permute.xlu0 0
        %703 = vperm.xlu0 %702, %v360
        %v704 = vpop.permute.xlu0 %703
        %705 = vset.pattern.permute.xlu0 0
        %706 = vperm.xlu0 %705, %v361
        %v707 = vpop.permute.xlu0 %706
        %708 = vset.pattern.permute.xlu0 0
        %709 = vperm.xlu0 %708, %v362
        %v710 = vpop.permute.xlu0 %709
        %711 = vset.pattern.permute.xlu0 0
        %712 = vperm.xlu0 %711, %v363
        %v713 = vpop.permute.xlu0 %712
        %714 = vset.pattern.permute.xlu0 0
        %715 = vperm.xlu0 %714, %v364
        %v716 = vpop.permute.xlu0 %715
        %717 = vset.pattern.permute.xlu0 0
        %718 = vperm.xlu0 %717, %v365
        %v719 = vpop.permute.xlu0 %718
        %720 = vset.pattern.permute.xlu0 0
        %721 = vperm.xlu0 %720, %v366
        %v722 = vpop.permute.xlu0 %721
        %723 = vset.pattern.permute.xlu0 0
        %724 = vperm.xlu0 %723, %v367
        %v725 = vpop.permute.xlu0 %724
        %726 = vset.pattern.permute.xlu0 0
        %727 = vperm.xlu0 %726, %v368
        %v728 = vpop.permute.xlu0 %727
        %729 = vset.pattern.permute.xlu0 0
        %730 = vperm.xlu0 %729, %v369
        %v731 = vpop.permute.xlu0 %730
        %732 = vset.pattern.permute.xlu0 0
        %733 = vperm.xlu0 %732, %v370
        %v734 = vpop.permute.xlu0 %733
        %735 = vset.pattern.permute.xlu0 0
        %736 = vperm.xlu0 %735, %v371
        %v737 = vpop.permute.xlu0 %736
        %738 = vset.pattern.permute.xlu0 0
        %739 = vperm.xlu0 %738, %v372
        %v740 = vpop.permute.xlu0 %739
        %741 = vset.pattern.permute.xlu0 0
        %742 = vperm.xlu0 %741, %v373
        %v743 = vpop.permute.xlu0 %742
        %744 = vset.pattern.permute.xlu0 0
        %745 = vperm.xlu0 %744, %v374
        %v746 = vpop.permute.xlu0 %745
        %747 = vset.pattern.permute.xlu0 0
        %748 = vperm.xlu0 %747, %v375
        %v749 = vpop.permute.xlu0 %748
        %750 = vset.pattern.permute.xlu0 0
        %751 = vperm.xlu0 %750, %v376
        %v752 = vpop.permute.xlu0 %751
        %753 = vset.pattern.permute.xlu0 0
        %754 = vperm.xlu0 %753, %v377
        %v755 = vpop.permute.xlu0 %754
        %756 = vset.pattern.permute.xlu0 0
        %757 = vperm.xlu0 %756, %v378
        %v758 = vpop.permute.xlu0 %757
        %759 = vset.pattern.permute.xlu0 0
        %760 = vperm.xlu0 %759, %v379
        %v761 = vpop.permute.xlu0 %760
        %762 = vset.pattern.permute.xlu0 0
        %763 = vperm.xlu0 %762, %v380
        %v764 = vpop.permute.xlu0 %763
        %765 = vset.pattern.permute.xlu0 0
        %766 = vperm.xlu0 %765, %v381
        %v767 = vpop.permute.xlu0 %766
        %vm768 = vcmp.eq.s32.totalorder %v383, %v386
        %vm769 = vcmp.eq.s32.totalorder %v383, %v389
        %vm770 = vcmp.eq.s32.totalorder %v383, %v392
        %vm771 = vcmp.eq.s32.totalorder %v383, %v395
        %vm772 = vcmp.eq.s32.totalorder %v383, %v398
        %vm773 = vcmp.eq.s32.totalorder %v383, %v401
        %vm774 = vcmp.eq.s32.totalorder %v383, %v404
        %vm775 = vcmp.eq.s32.totalorder %v383, %v407
        %vm776 = vcmp.eq.s32.totalorder %v383, %v410
        %vm777 = vcmp.eq.s32.totalorder %v383, %v413
        %vm778 = vcmp.eq.s32.totalorder %v383, %v416
        %vm779 = vcmp.eq.s32.totalorder %v383, %v419
        %vm780 = vcmp.eq.s32.totalorder %v383, %v422
        %vm781 = vcmp.eq.s32.totalorder %v383, %v425
        %vm782 = vcmp.eq.s32.totalorder %v383, %v428
        %vm783 = vcmp.eq.s32.totalorder %v383, %v431
        %vm784 = vcmp.eq.s32.totalorder %v383, %v434
        %vm785 = vcmp.eq.s32.totalorder %v383, %v437
        %vm786 = vcmp.eq.s32.totalorder %v383, %v440
        %vm787 = vcmp.eq.s32.totalorder %v383, %v443
        %vm788 = vcmp.eq.s32.totalorder %v383, %v446
        %vm789 = vcmp.eq.s32.totalorder %v383, %v449
        %vm790 = vcmp.eq.s32.totalorder %v383, %v452
        %vm791 = vcmp.eq.s32.totalorder %v383, %v455
        %vm792 = vcmp.eq.s32.totalorder %v383, %v458
        %vm793 = vcmp.eq.s32.totalorder %v383, %v461
        %vm794 = vcmp.eq.s32.totalorder %v383, %v464
        %vm795 = vcmp.eq.s32.totalorder %v383, %v467
        %vm796 = vcmp.eq.s32.totalorder %v383, %v470
        %vm797 = vcmp.eq.s32.totalorder %v383, %v473
        %vm798 = vcmp.eq.s32.totalorder %v383, %v476
        %vm799 = vcmp.eq.s32.totalorder %v383, %v479
        %vm800 = vcmp.eq.s32.totalorder %v383, %v482
        %vm801 = vcmp.eq.s32.totalorder %v383, %v485
        %vm802 = vcmp.eq.s32.totalorder %v383, %v488
        %vm803 = vcmp.eq.s32.totalorder %v383, %v491
        %vm804 = vcmp.eq.s32.totalorder %v383, %v494
        %vm805 = vcmp.eq.s32.totalorder %v383, %v497
        %vm806 = vcmp.eq.s32.totalorder %v383, %v500
        %vm807 = vcmp.eq.s32.totalorder %v383, %v503
        %vm808 = vcmp.eq.s32.totalorder %v383, %v506
        %vm809 = vcmp.eq.s32.totalorder %v383, %v509
        %vm810 = vcmp.eq.s32.totalorder %v383, %v512
        %vm811 = vcmp.eq.s32.totalorder %v383, %v515
        %vm812 = vcmp.eq.s32.totalorder %v383, %v518
        %vm813 = vcmp.eq.s32.totalorder %v383, %v521
        %vm814 = vcmp.eq.s32.totalorder %v383, %v524
        %vm815 = vcmp.eq.s32.totalorder %v383, %v527
        %vm816 = vcmp.eq.s32.totalorder %v383, %v530
        %vm817 = vcmp.eq.s32.totalorder %v383, %v533
        %vm818 = vcmp.eq.s32.totalorder %v383, %v536
        %vm819 = vcmp.eq.s32.totalorder %v383, %v539
        %vm820 = vcmp.eq.s32.totalorder %v383, %v542
        %vm821 = vcmp.eq.s32.totalorder %v383, %v545
        %vm822 = vcmp.eq.s32.totalorder %v383, %v548
        %vm823 = vcmp.eq.s32.totalorder %v383, %v551
        %vm824 = vcmp.eq.s32.totalorder %v383, %v554
        %vm825 = vcmp.eq.s32.totalorder %v383, %v557
        %vm826 = vcmp.eq.s32.totalorder %v383, %v560
        %vm827 = vcmp.eq.s32.totalorder %v383, %v563
        %vm828 = vcmp.eq.s32.totalorder %v383, %v566
        %vm829 = vcmp.eq.s32.totalorder %v383, %v569
        %vm830 = vcmp.eq.s32.totalorder %v383, %v572
        %vm831 = vcmp.eq.s32.totalorder %v383, %v575
        %vm832 = vcmp.eq.s32.totalorder %v383, %v578
        %vm833 = vcmp.eq.s32.totalorder %v383, %v581
        %vm834 = vcmp.eq.s32.totalorder %v383, %v584
        %vm835 = vcmp.eq.s32.totalorder %v383, %v587
        %vm836 = vcmp.eq.s32.totalorder %v383, %v590
        %vm837 = vcmp.eq.s32.totalorder %v383, %v593
        %vm838 = vcmp.eq.s32.totalorder %v383, %v596
        %vm839 = vcmp.eq.s32.totalorder %v383, %v599
        %vm840 = vcmp.eq.s32.totalorder %v383, %v602
        %vm841 = vcmp.eq.s32.totalorder %v383, %v605
        %vm842 = vcmp.eq.s32.totalorder %v383, %v608
        %vm843 = vcmp.eq.s32.totalorder %v383, %v611
        %vm844 = vcmp.eq.s32.totalorder %v383, %v614
        %vm845 = vcmp.eq.s32.totalorder %v383, %v617
        %vm846 = vcmp.eq.s32.totalorder %v383, %v620
        %vm847 = vcmp.eq.s32.totalorder %v383, %v623
        %vm848 = vcmp.eq.s32.totalorder %v383, %v626
        %vm849 = vcmp.eq.s32.totalorder %v383, %v629
        %vm850 = vcmp.eq.s32.totalorder %v383, %v632
        %vm851 = vcmp.eq.s32.totalorder %v383, %v635
        %vm852 = vcmp.eq.s32.totalorder %v383, %v638
        %vm853 = vcmp.eq.s32.totalorder %v383, %v641
        %vm854 = vcmp.eq.s32.totalorder %v383, %v644
        %vm855 = vcmp.eq.s32.totalorder %v383, %v647
        %vm856 = vcmp.eq.s32.totalorder %v383, %v650
        %vm857 = vcmp.eq.s32.totalorder %v383, %v653
        %vm858 = vcmp.eq.s32.totalorder %v383, %v656
        %vm859 = vcmp.eq.s32.totalorder %v383, %v659
        %vm860 = vcmp.eq.s32.totalorder %v383, %v662
        %vm861 = vcmp.eq.s32.totalorder %v383, %v665
        %vm862 = vcmp.eq.s32.totalorder %v383, %v668
        %vm863 = vcmp.eq.s32.totalorder %v383, %v671
        %vm864 = vcmp.eq.s32.totalorder %v383, %v674
        %vm865 = vcmp.eq.s32.totalorder %v383, %v677
        %vm866 = vcmp.eq.s32.totalorder %v383, %v680
        %vm867 = vcmp.eq.s32.totalorder %v383, %v683
        %vm868 = vcmp.eq.s32.totalorder %v383, %v686
        %vm869 = vcmp.eq.s32.totalorder %v383, %v689
        %vm870 = vcmp.eq.s32.totalorder %v383, %v692
        %vm871 = vcmp.eq.s32.totalorder %v383, %v695
        %vm872 = vcmp.eq.s32.totalorder %v383, %v698
        %vm873 = vcmp.eq.s32.totalorder %v383, %v701
        %vm874 = vcmp.eq.s32.totalorder %v383, %v704
        %vm875 = vcmp.eq.s32.totalorder %v383, %v707
        %vm876 = vcmp.eq.s32.totalorder %v383, %v710
        %vm877 = vcmp.eq.s32.totalorder %v383, %v713
        %vm878 = vcmp.eq.s32.totalorder %v383, %v716
        %vm879 = vcmp.eq.s32.totalorder %v383, %v719
        %vm880 = vcmp.eq.s32.totalorder %v383, %v722
        %vm881 = vcmp.eq.s32.totalorder %v383, %v725
        %vm882 = vcmp.eq.s32.totalorder %v383, %v728
        %vm883 = vcmp.eq.s32.totalorder %v383, %v731
        %vm884 = vcmp.eq.s32.totalorder %v383, %v734
        %vm885 = vcmp.eq.s32.totalorder %v383, %v737
        %vm886 = vcmp.eq.s32.totalorder %v383, %v740
        %vm887 = vcmp.eq.s32.totalorder %v383, %v743
        %vm888 = vcmp.eq.s32.totalorder %v383, %v746
        %vm889 = vcmp.eq.s32.totalorder %v383, %v749
        %vm890 = vcmp.eq.s32.totalorder %v383, %v752
        %vm891 = vcmp.eq.s32.totalorder %v383, %v755
        %vm892 = vcmp.eq.s32.totalorder %v383, %v758
        %vm893 = vcmp.eq.s32.totalorder %v383, %v761
        %vm894 = vcmp.eq.s32.totalorder %v383, %v764
        %vm895 = vcmp.eq.s32.totalorder %v383, %v767
        %v896 = vsel %vm768, 1, 0
        %v897 = vsel %vm769, 1, 0
        %v898 = vsel %vm770, 1, 0
        %v899 = vsel %vm771, 1, 0
        %v900 = vsel %vm772, 1, 0
        %v901 = vsel %vm773, 1, 0
        %v902 = vsel %vm774, 1, 0
        %v903 = vsel %vm775, 1, 0
        %v904 = vsel %vm776, 1, 0
        %v905 = vsel %vm777, 1, 0
        %v906 = vsel %vm778, 1, 0
        %v907 = vsel %vm779, 1, 0
        %v908 = vsel %vm780, 1, 0
        %v909 = vsel %vm781, 1, 0
        %v910 = vsel %vm782, 1, 0
        %v911 = vsel %vm783, 1, 0
        %v912 = vsel %vm784, 1, 0
        %v913 = vsel %vm785, 1, 0
        %v914 = vsel %vm786, 1, 0
        %v915 = vsel %vm787, 1, 0
        %v916 = vsel %vm788, 1, 0
        %v917 = vsel %vm789, 1, 0
        %v918 = vsel %vm790, 1, 0
        %v919 = vsel %vm791, 1, 0
        %v920 = vsel %vm792, 1, 0
        %v921 = vsel %vm793, 1, 0
        %v922 = vsel %vm794, 1, 0
        %v923 = vsel %vm795, 1, 0
        %v924 = vsel %vm796, 1, 0
        %v925 = vsel %vm797, 1, 0
        %v926 = vsel %vm798, 1, 0
        %v927 = vsel %vm799, 1, 0
        %v928 = vsel %vm800, 1, 0
        %v929 = vsel %vm801, 1, 0
        %v930 = vsel %vm802, 1, 0
        %v931 = vsel %vm803, 1, 0
        %v932 = vsel %vm804, 1, 0
        %v933 = vsel %vm805, 1, 0
        %v934 = vsel %vm806, 1, 0
        %v935 = vsel %vm807, 1, 0
        %v936 = vsel %vm808, 1, 0
        %v937 = vsel %vm809, 1, 0
        %v938 = vsel %vm810, 1, 0
        %v939 = vsel %vm811, 1, 0
        %v940 = vsel %vm812, 1, 0
        %v941 = vsel %vm813, 1, 0
        %v942 = vsel %vm814, 1, 0
        %v943 = vsel %vm815, 1, 0
        %v944 = vsel %vm816, 1, 0
        %v945 = vsel %vm817, 1, 0
        %v946 = vsel %vm818, 1, 0
        %v947 = vsel %vm819, 1, 0
        %v948 = vsel %vm820, 1, 0
        %v949 = vsel %vm821, 1, 0
        %v950 = vsel %vm822, 1, 0
        %v951 = vsel %vm823, 1, 0
        %v952 = vsel %vm824, 1, 0
        %v953 = vsel %vm825, 1, 0
        %v954 = vsel %vm826, 1, 0
        %v955 = vsel %vm827, 1, 0
        %v956 = vsel %vm828, 1, 0
        %v957 = vsel %vm829, 1, 0
        %v958 = vsel %vm830, 1, 0
        %v959 = vsel %vm831, 1, 0
        %v960 = vsel %vm832, 1, 0
        %v961 = vsel %vm833, 1, 0
        %v962 = vsel %vm834, 1, 0
        %v963 = vsel %vm835, 1, 0
        %v964 = vsel %vm836, 1, 0
        %v965 = vsel %vm837, 1, 0
        %v966 = vsel %vm838, 1, 0
        %v967 = vsel %vm839, 1, 0
        %v968 = vsel %vm840, 1, 0
        %v969 = vsel %vm841, 1, 0
        %v970 = vsel %vm842, 1, 0
        %v971 = vsel %vm843, 1, 0
        %v972 = vsel %vm844, 1, 0
        %v973 = vsel %vm845, 1, 0
        %v974 = vsel %vm846, 1, 0
        %v975 = vsel %vm847, 1, 0
        %v976 = vsel %vm848, 1, 0
        %v977 = vsel %vm849, 1, 0
        %v978 = vsel %vm850, 1, 0
        %v979 = vsel %vm851, 1, 0
        %v980 = vsel %vm852, 1, 0
        %v981 = vsel %vm853, 1, 0
        %v982 = vsel %vm854, 1, 0
        %v983 = vsel %vm855, 1, 0
        %v984 = vsel %vm856, 1, 0
        %v985 = vsel %vm857, 1, 0
        %v986 = vsel %vm858, 1, 0
        %v987 = vsel %vm859, 1, 0
        %v988 = vsel %vm860, 1, 0
        %v989 = vsel %vm861, 1, 0
        %v990 = vsel %vm862, 1, 0
        %v991 = vsel %vm863, 1, 0
        %v992 = vsel %vm864, 1, 0
        %v993 = vsel %vm865, 1, 0
        %v994 = vsel %vm866, 1, 0
        %v995 = vsel %vm867, 1, 0
        %v996 = vsel %vm868, 1, 0
        %v997 = vsel %vm869, 1, 0
        %v998 = vsel %vm870, 1, 0
        %v999 = vsel %vm871, 1, 0
        %v1000 = vsel %vm872, 1, 0
        %v1001 = vsel %vm873, 1, 0
        %v1002 = vsel %vm874, 1, 0
        %v1003 = vsel %vm875, 1, 0
        %v1004 = vsel %vm876, 1, 0
        %v1005 = vsel %vm877, 1, 0
        %v1006 = vsel %vm878, 1, 0
        %v1007 = vsel %vm879, 1, 0
        %v1008 = vsel %vm880, 1, 0
        %v1009 = vsel %vm881, 1, 0
        %v1010 = vsel %vm882, 1, 0
        %v1011 = vsel %vm883, 1, 0
        %v1012 = vsel %vm884, 1, 0
        %v1013 = vsel %vm885, 1, 0
        %v1014 = vsel %vm886, 1, 0
        %v1015 = vsel %vm887, 1, 0
        %v1016 = vsel %vm888, 1, 0
        %v1017 = vsel %vm889, 1, 0
        %v1018 = vsel %vm890, 1, 0
        %v1019 = vsel %vm891, 1, 0
        %v1020 = vsel %vm892, 1, 0
        %v1021 = vsel %vm893, 1, 0
        %v1022 = vsel %vm894, 1, 0
        %v1023 = vsel %vm895, 1, 0
        %v1024 = vcvt.s32.f32 %v896
        %v1025 = vcvt.s32.f32 %v897
        %v1026 = vcvt.s32.f32 %v898
        %v1027 = vcvt.s32.f32 %v899
        %v1028 = vcvt.s32.f32 %v900
        %v1029 = vcvt.s32.f32 %v901
        %v1030 = vcvt.s32.f32 %v902
        %v1031 = vcvt.s32.f32 %v903
        %v1032 = vcvt.s32.f32 %v904
        %v1033 = vcvt.s32.f32 %v905
        %v1034 = vcvt.s32.f32 %v906
        %v1035 = vcvt.s32.f32 %v907
        %v1036 = vcvt.s32.f32 %v908
        %v1037 = vcvt.s32.f32 %v909
        %v1038 = vcvt.s32.f32 %v910
        %v1039 = vcvt.s32.f32 %v911
        %v1040 = vcvt.s32.f32 %v912
        %v1041 = vcvt.s32.f32 %v913
        %v1042 = vcvt.s32.f32 %v914
        %v1043 = vcvt.s32.f32 %v915
        %v1044 = vcvt.s32.f32 %v916
        %v1045 = vcvt.s32.f32 %v917
        %v1046 = vcvt.s32.f32 %v918
        %v1047 = vcvt.s32.f32 %v919
        %v1048 = vcvt.s32.f32 %v920
        %v1049 = vcvt.s32.f32 %v921
        %v1050 = vcvt.s32.f32 %v922
        %v1051 = vcvt.s32.f32 %v923
        %v1052 = vcvt.s32.f32 %v924
        %v1053 = vcvt.s32.f32 %v925
        %v1054 = vcvt.s32.f32 %v926
        %v1055 = vcvt.s32.f32 %v927
        %v1056 = vcvt.s32.f32 %v928
        %v1057 = vcvt.s32.f32 %v929
        %v1058 = vcvt.s32.f32 %v930
        %v1059 = vcvt.s32.f32 %v931
        %v1060 = vcvt.s32.f32 %v932
        %v1061 = vcvt.s32.f32 %v933
        %v1062 = vcvt.s32.f32 %v934
        %v1063 = vcvt.s32.f32 %v935
        %v1064 = vcvt.s32.f32 %v936
        %v1065 = vcvt.s32.f32 %v937
        %v1066 = vcvt.s32.f32 %v938
        %v1067 = vcvt.s32.f32 %v939
        %v1068 = vcvt.s32.f32 %v940
        %v1069 = vcvt.s32.f32 %v941
        %v1070 = vcvt.s32.f32 %v942
        %v1071 = vcvt.s32.f32 %v943
        %v1072 = vcvt.s32.f32 %v944
        %v1073 = vcvt.s32.f32 %v945
        %v1074 = vcvt.s32.f32 %v946
        %v1075 = vcvt.s32.f32 %v947
        %v1076 = vcvt.s32.f32 %v948
        %v1077 = vcvt.s32.f32 %v949
        %v1078 = vcvt.s32.f32 %v950
        %v1079 = vcvt.s32.f32 %v951
        %v1080 = vcvt.s32.f32 %v952
        %v1081 = vcvt.s32.f32 %v953
        %v1082 = vcvt.s32.f32 %v954
        %v1083 = vcvt.s32.f32 %v955
        %v1084 = vcvt.s32.f32 %v956
        %v1085 = vcvt.s32.f32 %v957
        %v1086 = vcvt.s32.f32 %v958
        %v1087 = vcvt.s32.f32 %v959
        %v1088 = vcvt.s32.f32 %v960
        %v1089 = vcvt.s32.f32 %v961
        %v1090 = vcvt.s32.f32 %v962
        %v1091 = vcvt.s32.f32 %v963
        %v1092 = vcvt.s32.f32 %v964
        %v1093 = vcvt.s32.f32 %v965
        %v1094 = vcvt.s32.f32 %v966
        %v1095 = vcvt.s32.f32 %v967
        %v1096 = vcvt.s32.f32 %v968
        %v1097 = vcvt.s32.f32 %v969
        %v1098 = vcvt.s32.f32 %v970
        %v1099 = vcvt.s32.f32 %v971
        %v1100 = vcvt.s32.f32 %v972
        %v1101 = vcvt.s32.f32 %v973
        %v1102 = vcvt.s32.f32 %v974
        %v1103 = vcvt.s32.f32 %v975
        %v1104 = vcvt.s32.f32 %v976
        %v1105 = vcvt.s32.f32 %v977
        %v1106 = vcvt.s32.f32 %v978
        %v1107 = vcvt.s32.f32 %v979
        %v1108 = vcvt.s32.f32 %v980
        %v1109 = vcvt.s32.f32 %v981
        %v1110 = vcvt.s32.f32 %v982
        %v1111 = vcvt.s32.f32 %v983
        %v1112 = vcvt.s32.f32 %v984
        %v1113 = vcvt.s32.f32 %v985
        %v1114 = vcvt.s32.f32 %v986
        %v1115 = vcvt.s32.f32 %v987
        %v1116 = vcvt.s32.f32 %v988
        %v1117 = vcvt.s32.f32 %v989
        %v1118 = vcvt.s32.f32 %v990
        %v1119 = vcvt.s32.f32 %v991
        %v1120 = vcvt.s32.f32 %v992
        %v1121 = vcvt.s32.f32 %v993
        %v1122 = vcvt.s32.f32 %v994
        %v1123 = vcvt.s32.f32 %v995
        %v1124 = vcvt.s32.f32 %v996
        %v1125 = vcvt.s32.f32 %v997
        %v1126 = vcvt.s32.f32 %v998
        %v1127 = vcvt.s32.f32 %v999
        %v1128 = vcvt.s32.f32 %v1000
        %v1129 = vcvt.s32.f32 %v1001
        %v1130 = vcvt.s32.f32 %v1002
        %v1131 = vcvt.s32.f32 %v1003
        %v1132 = vcvt.s32.f32 %v1004
        %v1133 = vcvt.s32.f32 %v1005
        %v1134 = vcvt.s32.f32 %v1006
        %v1135 = vcvt.s32.f32 %v1007
        %v1136 = vcvt.s32.f32 %v1008
        %v1137 = vcvt.s32.f32 %v1009
        %v1138 = vcvt.s32.f32 %v1010
        %v1139 = vcvt.s32.f32 %v1011
        %v1140 = vcvt.s32.f32 %v1012
        %v1141 = vcvt.s32.f32 %v1013
        %v1142 = vcvt.s32.f32 %v1014
        %v1143 = vcvt.s32.f32 %v1015
        %v1144 = vcvt.s32.f32 %v1016
        %v1145 = vcvt.s32.f32 %v1017
        %v1146 = vcvt.s32.f32 %v1018
        %v1147 = vcvt.s32.f32 %v1019
        %v1148 = vcvt.s32.f32 %v1020
        %v1149 = vcvt.s32.f32 %v1021
        %v1150 = vcvt.s32.f32 %v1022
        %v1151 = vcvt.s32.f32 %v1023
        %v1152 = vpack.c.bf16 %v1025, %v1024
        %v1153 = vpack.c.bf16 %v1027, %v1026
        %v1154 = vpack.c.bf16 %v1029, %v1028
        %v1155 = vpack.c.bf16 %v1031, %v1030
        %v1156 = vpack.c.bf16 %v1033, %v1032
        %v1157 = vpack.c.bf16 %v1035, %v1034
        %v1158 = vpack.c.bf16 %v1037, %v1036
        %v1159 = vpack.c.bf16 %v1039, %v1038
        %v1160 = vpack.c.bf16 %v1041, %v1040
        %v1161 = vpack.c.bf16 %v1043, %v1042
        %v1162 = vpack.c.bf16 %v1045, %v1044
        %v1163 = vpack.c.bf16 %v1047, %v1046
        %v1164 = vpack.c.bf16 %v1049, %v1048
        %v1165 = vpack.c.bf16 %v1051, %v1050
        %v1166 = vpack.c.bf16 %v1053, %v1052
        %v1167 = vpack.c.bf16 %v1055, %v1054
        %v1168 = vpack.c.bf16 %v1057, %v1056
        %v1169 = vpack.c.bf16 %v1059, %v1058
        %v1170 = vpack.c.bf16 %v1061, %v1060
        %v1171 = vpack.c.bf16 %v1063, %v1062
        %v1172 = vpack.c.bf16 %v1065, %v1064
        %v1173 = vpack.c.bf16 %v1067, %v1066
        %v1174 = vpack.c.bf16 %v1069, %v1068
        %v1175 = vpack.c.bf16 %v1071, %v1070
        %v1176 = vpack.c.bf16 %v1073, %v1072
        %v1177 = vpack.c.bf16 %v1075, %v1074
        %v1178 = vpack.c.bf16 %v1077, %v1076
        %v1179 = vpack.c.bf16 %v1079, %v1078
        %v1180 = vpack.c.bf16 %v1081, %v1080
        %v1181 = vpack.c.bf16 %v1083, %v1082
        %v1182 = vpack.c.bf16 %v1085, %v1084
        %v1183 = vpack.c.bf16 %v1087, %v1086
        %v1184 = vpack.c.bf16 %v1089, %v1088
        %v1185 = vpack.c.bf16 %v1091, %v1090
        %v1186 = vpack.c.bf16 %v1093, %v1092
        %v1187 = vpack.c.bf16 %v1095, %v1094
        %v1188 = vpack.c.bf16 %v1097, %v1096
        %v1189 = vpack.c.bf16 %v1099, %v1098
        %v1190 = vpack.c.bf16 %v1101, %v1100
        %v1191 = vpack.c.bf16 %v1103, %v1102
        %v1192 = vpack.c.bf16 %v1105, %v1104
        %v1193 = vpack.c.bf16 %v1107, %v1106
        %v1194 = vpack.c.bf16 %v1109, %v1108
        %v1195 = vpack.c.bf16 %v1111, %v1110
        %v1196 = vpack.c.bf16 %v1113, %v1112
        %v1197 = vpack.c.bf16 %v1115, %v1114
        %v1198 = vpack.c.bf16 %v1117, %v1116
        %v1199 = vpack.c.bf16 %v1119, %v1118
        %v1200 = vpack.c.bf16 %v1121, %v1120
        %v1201 = vpack.c.bf16 %v1123, %v1122
        %v1202 = vpack.c.bf16 %v1125, %v1124
        %v1203 = vpack.c.bf16 %v1127, %v1126
        %v1204 = vpack.c.bf16 %v1129, %v1128
        %v1205 = vpack.c.bf16 %v1131, %v1130
        %v1206 = vpack.c.bf16 %v1133, %v1132
        %v1207 = vpack.c.bf16 %v1135, %v1134
        %v1208 = vpack.c.bf16 %v1137, %v1136
        %v1209 = vpack.c.bf16 %v1139, %v1138
        %v1210 = vpack.c.bf16 %v1141, %v1140
        %v1211 = vpack.c.bf16 %v1143, %v1142
        %v1212 = vpack.c.bf16 %v1145, %v1144
        %v1213 = vpack.c.bf16 %v1147, %v1146
        %v1214 = vpack.c.bf16 %v1149, %v1148
        %v1215 = vpack.c.bf16 %v1151, %v1150
        %v1216 = vld [vmem:[%s1] sm:$0xf]
        %v1217 = vld [vmem:[%s1 + $0x4] sm:$0xf]
        %v1218 = vld [vmem:[%s1 + $0x8] sm:$0xf]
        %v1219 = vld [vmem:[%s1 + $0xc] sm:$0xf]
        %v1220 = vld [vmem:[%s1 + $0x10] sm:$0xf]
        %v1221 = vld [vmem:[%s1 + $0x14] sm:$0xf]
        %v1222 = vld [vmem:[%s1 + $0x18] sm:$0xf]
        %v1223 = vld [vmem:[%s1 + $0x1c] sm:$0xf]
        %v1224 = vld [vmem:[%s1 + $0x20] sm:$0xf]
        %v1225 = vld [vmem:[%s1 + $0x24] sm:$0xf]
        %v1226 = vld [vmem:[%s1 + $0x28] sm:$0xf]
        %v1227 = vld [vmem:[%s1 + $0x2c] sm:$0xf]
        %v1228 = vld [vmem:[%s1 + $0x30] sm:$0xf]
        %v1229 = vld [vmem:[%s1 + $0x34] sm:$0xf]
        %v1230 = vld [vmem:[%s1 + $0x38] sm:$0xf]
        %v1231 = vld [vmem:[%s1 + $0x3c] sm:$0xf]
        %v1248 = vunpack.c.l.b16 %v1216
        %v1249 = vunpack.c.l.b16 %v1217
        %v1250 = vunpack.c.l.b16 %v1218
        %v1251 = vunpack.c.l.b16 %v1219
        %v1252 = vunpack.c.l.b16 %v1220
        %v1253 = vunpack.c.l.b16 %v1221
        %v1254 = vunpack.c.l.b16 %v1222
        %v1255 = vunpack.c.l.b16 %v1223
        %v1256 = vunpack.c.l.b16 %v1224
        %v1257 = vunpack.c.l.b16 %v1225
        %v1258 = vunpack.c.l.b16 %v1226
        %v1259 = vunpack.c.l.b16 %v1227
        %v1260 = vunpack.c.l.b16 %v1228
        %v1261 = vunpack.c.l.b16 %v1229
        %v1262 = vunpack.c.l.b16 %v1230
        %v1263 = vunpack.c.l.b16 %v1231
        %v1264 = vpack.c.b16 %v1249, %v1248
        %v1265 = vpack.c.b16 %v1251, %v1250
        %v1266 = vpack.c.b16 %v1253, %v1252
        %v1267 = vpack.c.b16 %v1255, %v1254
        %v1268 = vpack.c.b16 %v1257, %v1256
        %v1269 = vpack.c.b16 %v1259, %v1258
        %v1270 = vpack.c.b16 %v1261, %v1260
        %v1271 = vpack.c.b16 %v1263, %v1262
        %1280 = vmatprep.subr.bf16.mxu0 0
        %1281 = vmatpush1.bf16.msra.mxu0 %v1271
        %1282 = vmatprep.subr.bf16.mxu0 0
        %1283 = vmatpush1.bf16.msra.mxu0 %v1270
        %1284 = vmatprep.subr.bf16.mxu0 0
        %1285 = vmatpush1.bf16.msra.mxu0 %v1269
        %1286 = vmatprep.subr.bf16.mxu0 0
        %1287 = vmatpush1.bf16.msra.mxu0 %v1268
        %1288 = vmatprep.subr.bf16.mxu0 0
        %1289 = vmatpush1.bf16.msra.mxu0 %v1267
        %1290 = vmatprep.subr.bf16.mxu0 0
        %1291 = vmatpush1.bf16.msra.mxu0 %v1266
        %1292 = vmatprep.subr.bf16.mxu0 0
        %1293 = vmatpush1.bf16.msra.mxu0 %v1265
        %1294 = vmatprep.subr.bf16.mxu0 0
        %1295 = vmatpush1.bf16.msra.mxu0 %v1264
        %1296 = vmatprep.subr.bf16.mxu0 0
        %1297 = vmatpush2.bf16.msra.mxu0 0
        %1298 = vmatprep.subr.bf16.mxu0 0
        %1299 = vmatpush2.bf16.msra.mxu0 0
        %1300 = vmatprep.subr.bf16.mxu0 0
        %1301 = vmatpush2.bf16.msra.mxu0 0
        %1302 = vmatprep.subr.bf16.mxu0 0
        %1303 = vmatpush2.bf16.msra.mxu0 0
        %1304 = vmatprep.subr.bf16.mxu0 0
        %1305 = vmatpush2.bf16.msra.mxu0 0
        %1306 = vmatprep.subr.bf16.mxu0 0
        %1307 = vmatpush2.bf16.msra.mxu0 0
        %1308 = vmatprep.subr.bf16.mxu0 0
        %1309 = vmatpush2.bf16.msra.mxu0 0
        %1310 = vmatprep.subr.bf16.mxu0 0
        %1311 = vmatpush2.bf16.msra.mxu0 0
        %1312 = vmatprep.mubr.bf16.mxu0 0
        %1313 = vmatmul.mubr.bf16.gmra.mxu0 %v1152
        %v1314 = vpop.f32.mrf.mxu0
        %v1315 = vadd.f32 0.0, %v1314
        %v1316 = vpop.f32.mrf.mxu0
        %v1317 = vpop.f32.mrf.mxu0
        %v1318 = vadd.f32 0.0, %v1317
        %v1319 = vpop.f32.mrf.mxu0
        %1320 = vmatprep.mubr.bf16.mxu0 0
        %1321 = vmatmul.mubr.bf16.gmra.mxu0 %v1153
        %v1322 = vpop.f32.mrf.mxu0
        %v1323 = vadd.f32 0.0, %v1322
        %v1324 = vpop.f32.mrf.mxu0
        %v1325 = vpop.f32.mrf.mxu0
        %v1326 = vadd.f32 0.0, %v1325
        %v1327 = vpop.f32.mrf.mxu0
        %1328 = vmatprep.mubr.bf16.mxu0 0
        %1329 = vmatmul.mubr.bf16.gmra.mxu0 %v1154
        %v1330 = vpop.f32.mrf.mxu0
        %v1331 = vadd.f32 0.0, %v1330
        %v1332 = vpop.f32.mrf.mxu0
        %v1333 = vpop.f32.mrf.mxu0
        %v1334 = vadd.f32 0.0, %v1333
        %v1335 = vpop.f32.mrf.mxu0
        %1336 = vmatprep.mubr.bf16.mxu0 0
        %1337 = vmatmul.mubr.bf16.gmra.mxu0 %v1155
        %v1338 = vpop.f32.mrf.mxu0
        %v1339 = vadd.f32 0.0, %v1338
        %v1340 = vpop.f32.mrf.mxu0
        %v1341 = vpop.f32.mrf.mxu0
        %v1342 = vadd.f32 0.0, %v1341
        %v1343 = vpop.f32.mrf.mxu0
        %1344 = vmatprep.mubr.bf16.mxu0 0
        %1345 = vmatmul.mubr.bf16.gmra.mxu0 %v1156
        %v1346 = vpop.f32.mrf.mxu0
        %v1347 = vadd.f32 0.0, %v1346
        %v1348 = vpop.f32.mrf.mxu0
        %v1349 = vpop.f32.mrf.mxu0
        %v1350 = vadd.f32 0.0, %v1349
        %v1351 = vpop.f32.mrf.mxu0
        %1352 = vmatprep.mubr.bf16.mxu0 0
        %1353 = vmatmul.mubr.bf16.gmra.mxu0 %v1157
        %v1354 = vpop.f32.mrf.mxu0
        %v1355 = vadd.f32 0.0, %v1354
        %v1356 = vpop.f32.mrf.mxu0
        %v1357 = vpop.f32.mrf.mxu0
        %v1358 = vadd.f32 0.0, %v1357
        %v1359 = vpop.f32.mrf.mxu0
        %1360 = vmatprep.mubr.bf16.mxu0 0
        %1361 = vmatmul.mubr.bf16.gmra.mxu0 %v1158
        %v1362 = vpop.f32.mrf.mxu0
        %v1363 = vadd.f32 0.0, %v1362
        %v1364 = vpop.f32.mrf.mxu0
        %v1365 = vpop.f32.mrf.mxu0
        %v1366 = vadd.f32 0.0, %v1365
        %v1367 = vpop.f32.mrf.mxu0
        %1368 = vmatprep.mubr.bf16.mxu0 0
        %1369 = vmatmul.mubr.bf16.gmra.mxu0 %v1159
        %v1370 = vpop.f32.mrf.mxu0
        %v1371 = vadd.f32 0.0, %v1370
        %v1372 = vpop.f32.mrf.mxu0
        %v1373 = vpop.f32.mrf.mxu0
        %v1374 = vadd.f32 0.0, %v1373
        %v1375 = vpop.f32.mrf.mxu0
        %1376 = vmatprep.mubr.bf16.mxu0 0
        %1377 = vmatmul.mubr.bf16.gmra.mxu0 %v1160
        %v1378 = vpop.f32.mrf.mxu0
        %v1379 = vadd.f32 0.0, %v1378
        %v1380 = vpop.f32.mrf.mxu0
        %v1381 = vpop.f32.mrf.mxu0
        %v1382 = vadd.f32 0.0, %v1381
        %v1383 = vpop.f32.mrf.mxu0
        %1384 = vmatprep.mubr.bf16.mxu0 0
        %1385 = vmatmul.mubr.bf16.gmra.mxu0 %v1161
        %v1386 = vpop.f32.mrf.mxu0
        %v1387 = vadd.f32 0.0, %v1386
        %v1388 = vpop.f32.mrf.mxu0
        %v1389 = vpop.f32.mrf.mxu0
        %v1390 = vadd.f32 0.0, %v1389
        %v1391 = vpop.f32.mrf.mxu0
        %1392 = vmatprep.mubr.bf16.mxu0 0
        %1393 = vmatmul.mubr.bf16.gmra.mxu0 %v1162
        %v1394 = vpop.f32.mrf.mxu0
        %v1395 = vadd.f32 0.0, %v1394
        %v1396 = vpop.f32.mrf.mxu0
        %v1397 = vpop.f32.mrf.mxu0
        %v1398 = vadd.f32 0.0, %v1397
        %v1399 = vpop.f32.mrf.mxu0
        %1400 = vmatprep.mubr.bf16.mxu0 0
        %1401 = vmatmul.mubr.bf16.gmra.mxu0 %v1163
        %v1402 = vpop.f32.mrf.mxu0
        %v1403 = vadd.f32 0.0, %v1402
        %v1404 = vpop.f32.mrf.mxu0
        %v1405 = vpop.f32.mrf.mxu0
        %v1406 = vadd.f32 0.0, %v1405
        %v1407 = vpop.f32.mrf.mxu0
        %1408 = vmatprep.mubr.bf16.mxu0 0
        %1409 = vmatmul.mubr.bf16.gmra.mxu0 %v1164
        %v1410 = vpop.f32.mrf.mxu0
        %v1411 = vadd.f32 0.0, %v1410
        %v1412 = vpop.f32.mrf.mxu0
        %v1413 = vpop.f32.mrf.mxu0
        %v1414 = vadd.f32 0.0, %v1413
        %v1415 = vpop.f32.mrf.mxu0
        %1416 = vmatprep.mubr.bf16.mxu0 0
        %1417 = vmatmul.mubr.bf16.gmra.mxu0 %v1165
        %v1418 = vpop.f32.mrf.mxu0
        %v1419 = vadd.f32 0.0, %v1418
        %v1420 = vpop.f32.mrf.mxu0
        %v1421 = vpop.f32.mrf.mxu0
        %v1422 = vadd.f32 0.0, %v1421
        %v1423 = vpop.f32.mrf.mxu0
        %1424 = vmatprep.mubr.bf16.mxu0 0
        %1425 = vmatmul.mubr.bf16.gmra.mxu0 %v1166
        %v1426 = vpop.f32.mrf.mxu0
        %v1427 = vadd.f32 0.0, %v1426
        %v1428 = vpop.f32.mrf.mxu0
        %v1429 = vpop.f32.mrf.mxu0
        %v1430 = vadd.f32 0.0, %v1429
        %v1431 = vpop.f32.mrf.mxu0
        %1432 = vmatprep.mubr.bf16.mxu0 0
        %1433 = vmatmul.mubr.bf16.gmra.mxu0 %v1167
        %v1434 = vpop.f32.mrf.mxu0
        %v1435 = vadd.f32 0.0, %v1434
        %v1436 = vpop.f32.mrf.mxu0
        %v1437 = vpop.f32.mrf.mxu0
        %v1438 = vadd.f32 0.0, %v1437
        %v1439 = vpop.f32.mrf.mxu0
        %1440 = vmatprep.mubr.bf16.mxu0 0
        %1441 = vmatmul.mubr.bf16.gmra.mxu0 %v1168
        %v1442 = vpop.f32.mrf.mxu0
        %v1443 = vadd.f32 0.0, %v1442
        %v1444 = vpop.f32.mrf.mxu0
        %v1445 = vpop.f32.mrf.mxu0
        %v1446 = vadd.f32 0.0, %v1445
        %v1447 = vpop.f32.mrf.mxu0
        %1448 = vmatprep.mubr.bf16.mxu0 0
        %1449 = vmatmul.mubr.bf16.gmra.mxu0 %v1169
        %v1450 = vpop.f32.mrf.mxu0
        %v1451 = vadd.f32 0.0, %v1450
        %v1452 = vpop.f32.mrf.mxu0
        %v1453 = vpop.f32.mrf.mxu0
        %v1454 = vadd.f32 0.0, %v1453
        %v1455 = vpop.f32.mrf.mxu0
        %1456 = vmatprep.mubr.bf16.mxu0 0
        %1457 = vmatmul.mubr.bf16.gmra.mxu0 %v1170
        %v1458 = vpop.f32.mrf.mxu0
        %v1459 = vadd.f32 0.0, %v1458
        %v1460 = vpop.f32.mrf.mxu0
        %v1461 = vpop.f32.mrf.mxu0
        %v1462 = vadd.f32 0.0, %v1461
        %v1463 = vpop.f32.mrf.mxu0
        %1464 = vmatprep.mubr.bf16.mxu0 0
        %1465 = vmatmul.mubr.bf16.gmra.mxu0 %v1171
        %v1466 = vpop.f32.mrf.mxu0
        %v1467 = vadd.f32 0.0, %v1466
        %v1468 = vpop.f32.mrf.mxu0
        %v1469 = vpop.f32.mrf.mxu0
        %v1470 = vadd.f32 0.0, %v1469
        %v1471 = vpop.f32.mrf.mxu0
        %1472 = vmatprep.mubr.bf16.mxu0 0
        %1473 = vmatmul.mubr.bf16.gmra.mxu0 %v1172
        %v1474 = vpop.f32.mrf.mxu0
        %v1475 = vadd.f32 0.0, %v1474
        %v1476 = vpop.f32.mrf.mxu0
        %v1477 = vpop.f32.mrf.mxu0
        %v1478 = vadd.f32 0.0, %v1477
        %v1479 = vpop.f32.mrf.mxu0
        %1480 = vmatprep.mubr.bf16.mxu0 0
        %1481 = vmatmul.mubr.bf16.gmra.mxu0 %v1173
        %v1482 = vpop.f32.mrf.mxu0
        %v1483 = vadd.f32 0.0, %v1482
        %v1484 = vpop.f32.mrf.mxu0
        %v1485 = vpop.f32.mrf.mxu0
        %v1486 = vadd.f32 0.0, %v1485
        %v1487 = vpop.f32.mrf.mxu0
        %1488 = vmatprep.mubr.bf16.mxu0 0
        %1489 = vmatmul.mubr.bf16.gmra.mxu0 %v1174
        %v1490 = vpop.f32.mrf.mxu0
        %v1491 = vadd.f32 0.0, %v1490
        %v1492 = vpop.f32.mrf.mxu0
        %v1493 = vpop.f32.mrf.mxu0
        %v1494 = vadd.f32 0.0, %v1493
        %v1495 = vpop.f32.mrf.mxu0
        %1496 = vmatprep.mubr.bf16.mxu0 0
        %1497 = vmatmul.mubr.bf16.gmra.mxu0 %v1175
        %v1498 = vpop.f32.mrf.mxu0
        %v1499 = vadd.f32 0.0, %v1498
        %v1500 = vpop.f32.mrf.mxu0
        %v1501 = vpop.f32.mrf.mxu0
        %v1502 = vadd.f32 0.0, %v1501
        %v1503 = vpop.f32.mrf.mxu0
        %1504 = vmatprep.mubr.bf16.mxu0 0
        %1505 = vmatmul.mubr.bf16.gmra.mxu0 %v1176
        %v1506 = vpop.f32.mrf.mxu0
        %v1507 = vadd.f32 0.0, %v1506
        %v1508 = vpop.f32.mrf.mxu0
        %v1509 = vpop.f32.mrf.mxu0
        %v1510 = vadd.f32 0.0, %v1509
        %v1511 = vpop.f32.mrf.mxu0
        %1512 = vmatprep.mubr.bf16.mxu0 0
        %1513 = vmatmul.mubr.bf16.gmra.mxu0 %v1177
        %v1514 = vpop.f32.mrf.mxu0
        %v1515 = vadd.f32 0.0, %v1514
        %v1516 = vpop.f32.mrf.mxu0
        %v1517 = vpop.f32.mrf.mxu0
        %v1518 = vadd.f32 0.0, %v1517
        %v1519 = vpop.f32.mrf.mxu0
        %1520 = vmatprep.mubr.bf16.mxu0 0
        %1521 = vmatmul.mubr.bf16.gmra.mxu0 %v1178
        %v1522 = vpop.f32.mrf.mxu0
        %v1523 = vadd.f32 0.0, %v1522
        %v1524 = vpop.f32.mrf.mxu0
        %v1525 = vpop.f32.mrf.mxu0
        %v1526 = vadd.f32 0.0, %v1525
        %v1527 = vpop.f32.mrf.mxu0
        %1528 = vmatprep.mubr.bf16.mxu0 0
        %1529 = vmatmul.mubr.bf16.gmra.mxu0 %v1179
        %v1530 = vpop.f32.mrf.mxu0
        %v1531 = vadd.f32 0.0, %v1530
        %v1532 = vpop.f32.mrf.mxu0
        %v1533 = vpop.f32.mrf.mxu0
        %v1534 = vadd.f32 0.0, %v1533
        %v1535 = vpop.f32.mrf.mxu0
        %1536 = vmatprep.mubr.bf16.mxu0 0
        %1537 = vmatmul.mubr.bf16.gmra.mxu0 %v1180
        %v1538 = vpop.f32.mrf.mxu0
        %v1539 = vadd.f32 0.0, %v1538
        %v1540 = vpop.f32.mrf.mxu0
        %v1541 = vpop.f32.mrf.mxu0
        %v1542 = vadd.f32 0.0, %v1541
        %v1543 = vpop.f32.mrf.mxu0
        %1544 = vmatprep.mubr.bf16.mxu0 0
        %1545 = vmatmul.mubr.bf16.gmra.mxu0 %v1181
        %v1546 = vpop.f32.mrf.mxu0
        %v1547 = vadd.f32 0.0, %v1546
        %v1548 = vpop.f32.mrf.mxu0
        %v1549 = vpop.f32.mrf.mxu0
        %v1550 = vadd.f32 0.0, %v1549
        %v1551 = vpop.f32.mrf.mxu0
        %1552 = vmatprep.mubr.bf16.mxu0 0
        %1553 = vmatmul.mubr.bf16.gmra.mxu0 %v1182
        %v1554 = vpop.f32.mrf.mxu0
        %v1555 = vadd.f32 0.0, %v1554
        %v1556 = vpop.f32.mrf.mxu0
        %v1557 = vpop.f32.mrf.mxu0
        %v1558 = vadd.f32 0.0, %v1557
        %v1559 = vpop.f32.mrf.mxu0
        %1560 = vmatprep.mubr.bf16.mxu0 0
        %1561 = vmatmul.mubr.bf16.gmra.mxu0 %v1183
        %v1562 = vpop.f32.mrf.mxu0
        %v1563 = vadd.f32 0.0, %v1562
        %v1564 = vpop.f32.mrf.mxu0
        %v1565 = vpop.f32.mrf.mxu0
        %v1566 = vadd.f32 0.0, %v1565
        %v1567 = vpop.f32.mrf.mxu0
        %1568 = vmatprep.mubr.bf16.mxu0 0
        %1569 = vmatmul.mubr.bf16.gmra.mxu0 %v1184
        %v1570 = vpop.f32.mrf.mxu0
        %v1571 = vadd.f32 0.0, %v1570
        %v1572 = vpop.f32.mrf.mxu0
        %v1573 = vpop.f32.mrf.mxu0
        %v1574 = vadd.f32 0.0, %v1573
        %v1575 = vpop.f32.mrf.mxu0
        %1576 = vmatprep.mubr.bf16.mxu0 0
        %1577 = vmatmul.mubr.bf16.gmra.mxu0 %v1185
        %v1578 = vpop.f32.mrf.mxu0
        %v1579 = vadd.f32 0.0, %v1578
        %v1580 = vpop.f32.mrf.mxu0
        %v1581 = vpop.f32.mrf.mxu0
        %v1582 = vadd.f32 0.0, %v1581
        %v1583 = vpop.f32.mrf.mxu0
        %1584 = vmatprep.mubr.bf16.mxu0 0
        %1585 = vmatmul.mubr.bf16.gmra.mxu0 %v1186
        %v1586 = vpop.f32.mrf.mxu0
        %v1587 = vadd.f32 0.0, %v1586
        %v1588 = vpop.f32.mrf.mxu0
        %v1589 = vpop.f32.mrf.mxu0
        %v1590 = vadd.f32 0.0, %v1589
        %v1591 = vpop.f32.mrf.mxu0
        %1592 = vmatprep.mubr.bf16.mxu0 0
        %1593 = vmatmul.mubr.bf16.gmra.mxu0 %v1187
        %v1594 = vpop.f32.mrf.mxu0
        %v1595 = vadd.f32 0.0, %v1594
        %v1596 = vpop.f32.mrf.mxu0
        %v1597 = vpop.f32.mrf.mxu0
        %v1598 = vadd.f32 0.0, %v1597
        %v1599 = vpop.f32.mrf.mxu0
        %1600 = vmatprep.mubr.bf16.mxu0 0
        %1601 = vmatmul.mubr.bf16.gmra.mxu0 %v1188
        %v1602 = vpop.f32.mrf.mxu0
        %v1603 = vadd.f32 0.0, %v1602
        %v1604 = vpop.f32.mrf.mxu0
        %v1605 = vpop.f32.mrf.mxu0
        %v1606 = vadd.f32 0.0, %v1605
        %v1607 = vpop.f32.mrf.mxu0
        %1608 = vmatprep.mubr.bf16.mxu0 0
        %1609 = vmatmul.mubr.bf16.gmra.mxu0 %v1189
        %v1610 = vpop.f32.mrf.mxu0
        %v1611 = vadd.f32 0.0, %v1610
        %v1612 = vpop.f32.mrf.mxu0
        %v1613 = vpop.f32.mrf.mxu0
        %v1614 = vadd.f32 0.0, %v1613
        %v1615 = vpop.f32.mrf.mxu0
        %1616 = vmatprep.mubr.bf16.mxu0 0
        %1617 = vmatmul.mubr.bf16.gmra.mxu0 %v1190
        %v1618 = vpop.f32.mrf.mxu0
        %v1619 = vadd.f32 0.0, %v1618
        %v1620 = vpop.f32.mrf.mxu0
        %v1621 = vpop.f32.mrf.mxu0
        %v1622 = vadd.f32 0.0, %v1621
        %v1623 = vpop.f32.mrf.mxu0
        %1624 = vmatprep.mubr.bf16.mxu0 0
        %1625 = vmatmul.mubr.bf16.gmra.mxu0 %v1191
        %v1626 = vpop.f32.mrf.mxu0
        %v1627 = vadd.f32 0.0, %v1626
        %v1628 = vpop.f32.mrf.mxu0
        %v1629 = vpop.f32.mrf.mxu0
        %v1630 = vadd.f32 0.0, %v1629
        %v1631 = vpop.f32.mrf.mxu0
        %1632 = vmatprep.mubr.bf16.mxu0 0
        %1633 = vmatmul.mubr.bf16.gmra.mxu0 %v1192
        %v1634 = vpop.f32.mrf.mxu0
        %v1635 = vadd.f32 0.0, %v1634
        %v1636 = vpop.f32.mrf.mxu0
        %v1637 = vpop.f32.mrf.mxu0
        %v1638 = vadd.f32 0.0, %v1637
        %v1639 = vpop.f32.mrf.mxu0
        %1640 = vmatprep.mubr.bf16.mxu0 0
        %1641 = vmatmul.mubr.bf16.gmra.mxu0 %v1193
        %v1642 = vpop.f32.mrf.mxu0
        %v1643 = vadd.f32 0.0, %v1642
        %v1644 = vpop.f32.mrf.mxu0
        %v1645 = vpop.f32.mrf.mxu0
        %v1646 = vadd.f32 0.0, %v1645
        %v1647 = vpop.f32.mrf.mxu0
        %1648 = vmatprep.mubr.bf16.mxu0 0
        %1649 = vmatmul.mubr.bf16.gmra.mxu0 %v1194
        %v1650 = vpop.f32.mrf.mxu0
        %v1651 = vadd.f32 0.0, %v1650
        %v1652 = vpop.f32.mrf.mxu0
        %v1653 = vpop.f32.mrf.mxu0
        %v1654 = vadd.f32 0.0, %v1653
        %v1655 = vpop.f32.mrf.mxu0
        %1656 = vmatprep.mubr.bf16.mxu0 0
        %1657 = vmatmul.mubr.bf16.gmra.mxu0 %v1195
        %v1658 = vpop.f32.mrf.mxu0
        %v1659 = vadd.f32 0.0, %v1658
        %v1660 = vpop.f32.mrf.mxu0
        %v1661 = vpop.f32.mrf.mxu0
        %v1662 = vadd.f32 0.0, %v1661
        %v1663 = vpop.f32.mrf.mxu0
        %1664 = vmatprep.mubr.bf16.mxu0 0
        %1665 = vmatmul.mubr.bf16.gmra.mxu0 %v1196
        %v1666 = vpop.f32.mrf.mxu0
        %v1667 = vadd.f32 0.0, %v1666
        %v1668 = vpop.f32.mrf.mxu0
        %v1669 = vpop.f32.mrf.mxu0
        %v1670 = vadd.f32 0.0, %v1669
        %v1671 = vpop.f32.mrf.mxu0
        %1672 = vmatprep.mubr.bf16.mxu0 0
        %1673 = vmatmul.mubr.bf16.gmra.mxu0 %v1197
        %v1674 = vpop.f32.mrf.mxu0
        %v1675 = vadd.f32 0.0, %v1674
        %v1676 = vpop.f32.mrf.mxu0
        %v1677 = vpop.f32.mrf.mxu0
        %v1678 = vadd.f32 0.0, %v1677
        %v1679 = vpop.f32.mrf.mxu0
        %1680 = vmatprep.mubr.bf16.mxu0 0
        %1681 = vmatmul.mubr.bf16.gmra.mxu0 %v1198
        %v1682 = vpop.f32.mrf.mxu0
        %v1683 = vadd.f32 0.0, %v1682
        %v1684 = vpop.f32.mrf.mxu0
        %v1685 = vpop.f32.mrf.mxu0
        %v1686 = vadd.f32 0.0, %v1685
        %v1687 = vpop.f32.mrf.mxu0
        %1688 = vmatprep.mubr.bf16.mxu0 0
        %1689 = vmatmul.mubr.bf16.gmra.mxu0 %v1199
        %v1690 = vpop.f32.mrf.mxu0
        %v1691 = vadd.f32 0.0, %v1690
        %v1692 = vpop.f32.mrf.mxu0
        %v1693 = vpop.f32.mrf.mxu0
        %v1694 = vadd.f32 0.0, %v1693
        %v1695 = vpop.f32.mrf.mxu0
        %1696 = vmatprep.mubr.bf16.mxu0 0
        %1697 = vmatmul.mubr.bf16.gmra.mxu0 %v1200
        %v1698 = vpop.f32.mrf.mxu0
        %v1699 = vadd.f32 0.0, %v1698
        %v1700 = vpop.f32.mrf.mxu0
        %v1701 = vpop.f32.mrf.mxu0
        %v1702 = vadd.f32 0.0, %v1701
        %v1703 = vpop.f32.mrf.mxu0
        %1704 = vmatprep.mubr.bf16.mxu0 0
        %1705 = vmatmul.mubr.bf16.gmra.mxu0 %v1201
        %v1706 = vpop.f32.mrf.mxu0
        %v1707 = vadd.f32 0.0, %v1706
        %v1708 = vpop.f32.mrf.mxu0
        %v1709 = vpop.f32.mrf.mxu0
        %v1710 = vadd.f32 0.0, %v1709
        %v1711 = vpop.f32.mrf.mxu0
        %1712 = vmatprep.mubr.bf16.mxu0 0
        %1713 = vmatmul.mubr.bf16.gmra.mxu0 %v1202
        %v1714 = vpop.f32.mrf.mxu0
        %v1715 = vadd.f32 0.0, %v1714
        %v1716 = vpop.f32.mrf.mxu0
        %v1717 = vpop.f32.mrf.mxu0
        %v1718 = vadd.f32 0.0, %v1717
        %v1719 = vpop.f32.mrf.mxu0
        %1720 = vmatprep.mubr.bf16.mxu0 0
        %1721 = vmatmul.mubr.bf16.gmra.mxu0 %v1203
        %v1722 = vpop.f32.mrf.mxu0
        %v1723 = vadd.f32 0.0, %v1722
        %v1724 = vpop.f32.mrf.mxu0
        %v1725 = vpop.f32.mrf.mxu0
        %v1726 = vadd.f32 0.0, %v1725
        %v1727 = vpop.f32.mrf.mxu0
        %1728 = vmatprep.mubr.bf16.mxu0 0
        %1729 = vmatmul.mubr.bf16.gmra.mxu0 %v1204
        %v1730 = vpop.f32.mrf.mxu0
        %v1731 = vadd.f32 0.0, %v1730
        %v1732 = vpop.f32.mrf.mxu0
        %v1733 = vpop.f32.mrf.mxu0
        %v1734 = vadd.f32 0.0, %v1733
        %v1735 = vpop.f32.mrf.mxu0
        %1736 = vmatprep.mubr.bf16.mxu0 0
        %1737 = vmatmul.mubr.bf16.gmra.mxu0 %v1205
        %v1738 = vpop.f32.mrf.mxu0
        %v1739 = vadd.f32 0.0, %v1738
        %v1740 = vpop.f32.mrf.mxu0
        %v1741 = vpop.f32.mrf.mxu0
        %v1742 = vadd.f32 0.0, %v1741
        %v1743 = vpop.f32.mrf.mxu0
        %1744 = vmatprep.mubr.bf16.mxu0 0
        %1745 = vmatmul.mubr.bf16.gmra.mxu0 %v1206
        %v1746 = vpop.f32.mrf.mxu0
        %v1747 = vadd.f32 0.0, %v1746
        %v1748 = vpop.f32.mrf.mxu0
        %v1749 = vpop.f32.mrf.mxu0
        %v1750 = vadd.f32 0.0, %v1749
        %v1751 = vpop.f32.mrf.mxu0
        %1752 = vmatprep.mubr.bf16.mxu0 0
        %1753 = vmatmul.mubr.bf16.gmra.mxu0 %v1207
        %v1754 = vpop.f32.mrf.mxu0
        %v1755 = vadd.f32 0.0, %v1754
        %v1756 = vpop.f32.mrf.mxu0
        %v1757 = vpop.f32.mrf.mxu0
        %v1758 = vadd.f32 0.0, %v1757
        %v1759 = vpop.f32.mrf.mxu0
        %1760 = vmatprep.mubr.bf16.mxu0 0
        %1761 = vmatmul.mubr.bf16.gmra.mxu0 %v1208
        %v1762 = vpop.f32.mrf.mxu0
        %v1763 = vadd.f32 0.0, %v1762
        %v1764 = vpop.f32.mrf.mxu0
        %v1765 = vpop.f32.mrf.mxu0
        %v1766 = vadd.f32 0.0, %v1765
        %v1767 = vpop.f32.mrf.mxu0
        %1768 = vmatprep.mubr.bf16.mxu0 0
        %1769 = vmatmul.mubr.bf16.gmra.mxu0 %v1209
        %v1770 = vpop.f32.mrf.mxu0
        %v1771 = vadd.f32 0.0, %v1770
        %v1772 = vpop.f32.mrf.mxu0
        %v1773 = vpop.f32.mrf.mxu0
        %v1774 = vadd.f32 0.0, %v1773
        %v1775 = vpop.f32.mrf.mxu0
        %1776 = vmatprep.mubr.bf16.mxu0 0
        %1777 = vmatmul.mubr.bf16.gmra.mxu0 %v1210
        %v1778 = vpop.f32.mrf.mxu0
        %v1779 = vadd.f32 0.0, %v1778
        %v1780 = vpop.f32.mrf.mxu0
        %v1781 = vpop.f32.mrf.mxu0
        %v1782 = vadd.f32 0.0, %v1781
        %v1783 = vpop.f32.mrf.mxu0
        %1784 = vmatprep.mubr.bf16.mxu0 0
        %1785 = vmatmul.mubr.bf16.gmra.mxu0 %v1211
        %v1786 = vpop.f32.mrf.mxu0
        %v1787 = vadd.f32 0.0, %v1786
        %v1788 = vpop.f32.mrf.mxu0
        %v1789 = vpop.f32.mrf.mxu0
        %v1790 = vadd.f32 0.0, %v1789
        %v1791 = vpop.f32.mrf.mxu0
        %1792 = vmatprep.mubr.bf16.mxu0 0
        %1793 = vmatmul.mubr.bf16.gmra.mxu0 %v1212
        %v1794 = vpop.f32.mrf.mxu0
        %v1795 = vadd.f32 0.0, %v1794
        %v1796 = vpop.f32.mrf.mxu0
        %v1797 = vpop.f32.mrf.mxu0
        %v1798 = vadd.f32 0.0, %v1797
        %v1799 = vpop.f32.mrf.mxu0
        %1800 = vmatprep.mubr.bf16.mxu0 0
        %1801 = vmatmul.mubr.bf16.gmra.mxu0 %v1213
        %v1802 = vpop.f32.mrf.mxu0
        %v1803 = vadd.f32 0.0, %v1802
        %v1804 = vpop.f32.mrf.mxu0
        %v1805 = vpop.f32.mrf.mxu0
        %v1806 = vadd.f32 0.0, %v1805
        %v1807 = vpop.f32.mrf.mxu0
        %1808 = vmatprep.mubr.bf16.mxu0 0
        %1809 = vmatmul.mubr.bf16.gmra.mxu0 %v1214
        %v1810 = vpop.f32.mrf.mxu0
        %v1811 = vadd.f32 0.0, %v1810
        %v1812 = vpop.f32.mrf.mxu0
        %v1813 = vpop.f32.mrf.mxu0
        %v1814 = vadd.f32 0.0, %v1813
        %v1815 = vpop.f32.mrf.mxu0
        %1816 = vmatprep.mubr.bf16.mxu0 0
        %1817 = vmatmul.mubr.bf16.gmra.mxu0 %v1215
        %v1818 = vpop.f32.mrf.mxu0
        %v1819 = vadd.f32 0.0, %v1818
        %v1820 = vpop.f32.mrf.mxu0
        %v1821 = vpop.f32.mrf.mxu0
        %v1822 = vadd.f32 0.0, %v1821
        %v1823 = vpop.f32.mrf.mxu0
        %1824 = vdwg.mxu0
        %v1825 = vpack.c.bf16 %v1318, %v1315
        %v1826 = vpack.c.bf16 %v1326, %v1323
        %v1827 = vpack.c.bf16 %v1334, %v1331
        %v1828 = vpack.c.bf16 %v1342, %v1339
        %v1829 = vpack.c.bf16 %v1350, %v1347
        %v1830 = vpack.c.bf16 %v1358, %v1355
        %v1831 = vpack.c.bf16 %v1366, %v1363
        %v1832 = vpack.c.bf16 %v1374, %v1371
        %v1833 = vpack.c.bf16 %v1382, %v1379
        %v1834 = vpack.c.bf16 %v1390, %v1387
        %v1835 = vpack.c.bf16 %v1398, %v1395
        %v1836 = vpack.c.bf16 %v1406, %v1403
        %v1837 = vpack.c.bf16 %v1414, %v1411
        %v1838 = vpack.c.bf16 %v1422, %v1419
        %v1839 = vpack.c.bf16 %v1430, %v1427
        %v1840 = vpack.c.bf16 %v1438, %v1435
        %v1841 = vpack.c.bf16 %v1446, %v1443
        %v1842 = vpack.c.bf16 %v1454, %v1451
        %v1843 = vpack.c.bf16 %v1462, %v1459
        %v1844 = vpack.c.bf16 %v1470, %v1467
        %v1845 = vpack.c.bf16 %v1478, %v1475
        %v1846 = vpack.c.bf16 %v1486, %v1483
        %v1847 = vpack.c.bf16 %v1494, %v1491
        %v1848 = vpack.c.bf16 %v1502, %v1499
        %v1849 = vpack.c.bf16 %v1510, %v1507
        %v1850 = vpack.c.bf16 %v1518, %v1515
        %v1851 = vpack.c.bf16 %v1526, %v1523
        %v1852 = vpack.c.bf16 %v1534, %v1531
        %v1853 = vpack.c.bf16 %v1542, %v1539
        %v1854 = vpack.c.bf16 %v1550, %v1547
        %v1855 = vpack.c.bf16 %v1558, %v1555
        %v1856 = vpack.c.bf16 %v1566, %v1563
        %v1857 = vpack.c.bf16 %v1574, %v1571
        %v1858 = vpack.c.bf16 %v1582, %v1579
        %v1859 = vpack.c.bf16 %v1590, %v1587
        %v1860 = vpack.c.bf16 %v1598, %v1595
        %v1861 = vpack.c.bf16 %v1606, %v1603
        %v1862 = vpack.c.bf16 %v1614, %v1611
        %v1863 = vpack.c.bf16 %v1622, %v1619
        %v1864 = vpack.c.bf16 %v1630, %v1627
        %v1865 = vpack.c.bf16 %v1638, %v1635
        %v1866 = vpack.c.bf16 %v1646, %v1643
        %v1867 = vpack.c.bf16 %v1654, %v1651
        %v1868 = vpack.c.bf16 %v1662, %v1659
        %v1869 = vpack.c.bf16 %v1670, %v1667
        %v1870 = vpack.c.bf16 %v1678, %v1675
        %v1871 = vpack.c.bf16 %v1686, %v1683
        %v1872 = vpack.c.bf16 %v1694, %v1691
        %v1873 = vpack.c.bf16 %v1702, %v1699
        %v1874 = vpack.c.bf16 %v1710, %v1707
        %v1875 = vpack.c.bf16 %v1718, %v1715
        %v1876 = vpack.c.bf16 %v1726, %v1723
        %v1877 = vpack.c.bf16 %v1734, %v1731
        %v1878 = vpack.c.bf16 %v1742, %v1739
        %v1879 = vpack.c.bf16 %v1750, %v1747
        %v1880 = vpack.c.bf16 %v1758, %v1755
        %v1881 = vpack.c.bf16 %v1766, %v1763
        %v1882 = vpack.c.bf16 %v1774, %v1771
        %v1883 = vpack.c.bf16 %v1782, %v1779
        %v1884 = vpack.c.bf16 %v1790, %v1787
        %v1885 = vpack.c.bf16 %v1798, %v1795
        %v1886 = vpack.c.bf16 %v1806, %v1803
        %v1887 = vpack.c.bf16 %v1814, %v1811
        %v1888 = vpack.c.bf16 %v1822, %v1819
        %v1889 = vld [vmem:[%s2] sm:$0xff]
        %v1890 = vld [vmem:[%s2 + $0x8] sm:$0xf]
        %v1891 = vld [vmem:[%s2 + $0xc] sm:$0xff]
        %v1892 = vld [vmem:[%s2 + $0x14] sm:$0xf]
        %v1893 = vld [vmem:[%s2 + $0x18] sm:$0xff]
        %v1894 = vld [vmem:[%s2 + $0x20] sm:$0xf]
        %v1895 = vld [vmem:[%s2 + $0x24] sm:$0xff]
        %v1896 = vld [vmem:[%s2 + $0x2c] sm:$0xf]
        %v1897 = vld [vmem:[%s2 + $0x30] sm:$0xff]
        %v1898 = vld [vmem:[%s2 + $0x38] sm:$0xf]
        %v1899 = vld [vmem:[%s2 + $0x3c] sm:$0xff]
        %v1900 = vld [vmem:[%s2 + $0x44] sm:$0xf]
        %v1901 = vld [vmem:[%s2 + $0x48] sm:$0xff]
        %v1902 = vld [vmem:[%s2 + $0x50] sm:$0xf]
        %v1903 = vld [vmem:[%s2 + $0x54] sm:$0xff]
        %v1904 = vld [vmem:[%s2 + $0x5c] sm:$0xf]
        %v1905 = vld [vmem:[%s2 + $0x60] sm:$0xff]
        %v1906 = vld [vmem:[%s2 + $0x68] sm:$0xf]
        %v1907 = vld [vmem:[%s2 + $0x6c] sm:$0xff]
        %v1908 = vld [vmem:[%s2 + $0x74] sm:$0xf]
        %v1909 = vld [vmem:[%s2 + $0x78] sm:$0xff]
        %v1910 = vld [vmem:[%s2 + $0x80] sm:$0xf]
        %v1911 = vld [vmem:[%s2 + $0x84] sm:$0xff]
        %v1912 = vld [vmem:[%s2 + $0x8c] sm:$0xf]
        %v1913 = vld [vmem:[%s2 + $0x90] sm:$0xff]
        %v1914 = vld [vmem:[%s2 + $0x98] sm:$0xf]
        %v1915 = vld [vmem:[%s2 + $0x9c] sm:$0xff]
        %v1916 = vld [vmem:[%s2 + $0xa4] sm:$0xf]
        %v1917 = vld [vmem:[%s2 + $0xa8] sm:$0xff]
        %v1918 = vld [vmem:[%s2 + $0xb0] sm:$0xf]
        %v1919 = vld [vmem:[%s2 + $0xb4] sm:$0xff]
        %v1920 = vld [vmem:[%s2 + $0xbc] sm:$0xf]
        %v1953 = vunpack.c.l.b16 %v1889
        %v1954 = vunpack.c.h.b16 %v1889
        %v1955 = vunpack.c.l.b16 %v1890
        %v1956 = vunpack.c.l.b16 %v1891
        %v1957 = vunpack.c.h.b16 %v1891
        %v1958 = vunpack.c.l.b16 %v1892
        %v1959 = vunpack.c.l.b16 %v1893
        %v1960 = vunpack.c.h.b16 %v1893
        %v1961 = vunpack.c.l.b16 %v1894
        %v1962 = vunpack.c.l.b16 %v1895
        %v1963 = vunpack.c.h.b16 %v1895
        %v1964 = vunpack.c.l.b16 %v1896
        %v1965 = vunpack.c.l.b16 %v1897
        %v1966 = vunpack.c.h.b16 %v1897
        %v1967 = vunpack.c.l.b16 %v1898
        %v1968 = vunpack.c.l.b16 %v1899
        %v1969 = vunpack.c.h.b16 %v1899
        %v1970 = vunpack.c.l.b16 %v1900
        %v1971 = vunpack.c.l.b16 %v1901
        %v1972 = vunpack.c.h.b16 %v1901
        %v1973 = vunpack.c.l.b16 %v1902
        %v1974 = vunpack.c.l.b16 %v1903
        %v1975 = vunpack.c.h.b16 %v1903
        %v1976 = vunpack.c.l.b16 %v1904
        %v1977 = vunpack.c.l.b16 %v1905
        %v1978 = vunpack.c.h.b16 %v1905
        %v1979 = vunpack.c.l.b16 %v1906
        %v1980 = vunpack.c.l.b16 %v1907
        %v1981 = vunpack.c.h.b16 %v1907
        %v1982 = vunpack.c.l.b16 %v1908
        %v1983 = vunpack.c.l.b16 %v1909
        %v1984 = vunpack.c.h.b16 %v1909
        %v1985 = vunpack.c.l.b16 %v1910
        %v1986 = vunpack.c.l.b16 %v1911
        %v1987 = vunpack.c.h.b16 %v1911
        %v1988 = vunpack.c.l.b16 %v1912
        %v1989 = vunpack.c.l.b16 %v1913
        %v1990 = vunpack.c.h.b16 %v1913
        %v1991 = vunpack.c.l.b16 %v1914
        %v1992 = vunpack.c.l.b16 %v1915
        %v1993 = vunpack.c.h.b16 %v1915
        %v1994 = vunpack.c.l.b16 %v1916
        %v1995 = vunpack.c.l.b16 %v1917
        %v1996 = vunpack.c.h.b16 %v1917
        %v1997 = vunpack.c.l.b16 %v1918
        %v1998 = vunpack.c.l.b16 %v1919
        %v1999 = vunpack.c.h.b16 %v1919
        %v2000 = vunpack.c.l.b16 %v1920
        %v2001 = vpack.c.b16 %v1956, %v1953
        %v2002 = vpack.c.b16 %v1957, %v1954
        %v2003 = vpack.c.b16 %v1958, %v1955
        %v2004 = vpack.c.b16 %v1962, %v1959
        %v2005 = vpack.c.b16 %v1963, %v1960
        %v2006 = vpack.c.b16 %v1964, %v1961
        %v2007 = vpack.c.b16 %v1968, %v1965
        %v2008 = vpack.c.b16 %v1969, %v1966
        %v2009 = vpack.c.b16 %v1970, %v1967
        %v2010 = vpack.c.b16 %v1974, %v1971
        %v2011 = vpack.c.b16 %v1975, %v1972
        %v2012 = vpack.c.b16 %v1976, %v1973
        %v2013 = vpack.c.b16 %v1980, %v1977
        %v2014 = vpack.c.b16 %v1981, %v1978
        %v2015 = vpack.c.b16 %v1982, %v1979
        %v2016 = vpack.c.b16 %v1986, %v1983
        %v2017 = vpack.c.b16 %v1987, %v1984
        %v2018 = vpack.c.b16 %v1988, %v1985
        %v2019 = vpack.c.b16 %v1992, %v1989
        %v2020 = vpack.c.b16 %v1993, %v1990
        %v2021 = vpack.c.b16 %v1994, %v1991
        %v2022 = vpack.c.b16 %v1998, %v1995
        %v2023 = vpack.c.b16 %v1999, %v1996
        %v2024 = vpack.c.b16 %v2000, %v1997
        %2049 = vmatprep.subr.bf16.mxu0 %v2023
        %2050 = vmatpush1.bf16.msra.mxu0 %v2022
        %2051 = vmatprep.subr.bf16.mxu0 %v2020
        %2052 = vmatpush1.bf16.msra.mxu0 %v2019
        %2053 = vmatprep.subr.bf16.mxu0 %v2017
        %2054 = vmatpush1.bf16.msra.mxu0 %v2016
        %2055 = vmatprep.subr.bf16.mxu0 %v2014
        %2056 = vmatpush1.bf16.msra.mxu0 %v2013
        %2057 = vmatprep.subr.bf16.mxu0 %v2011
        %2058 = vmatpush1.bf16.msra.mxu0 %v2010
        %2059 = vmatprep.subr.bf16.mxu0 %v2008
        %2060 = vmatpush1.bf16.msra.mxu0 %v2007
        %2061 = vmatprep.subr.bf16.mxu0 %v2005
        %2062 = vmatpush1.bf16.msra.mxu0 %v2004
        %2063 = vmatprep.subr.bf16.mxu0 %v2002
        %2064 = vmatpush1.bf16.msra.mxu0 %v2001
        %2065 = vmatprep.subr.bf16.mxu0 0
        %2066 = vmatpush2.bf16.msra.mxu0 0
        %2067 = vmatprep.subr.bf16.mxu0 0
        %2068 = vmatpush2.bf16.msra.mxu0 0
        %2069 = vmatprep.subr.bf16.mxu0 0
        %2070 = vmatpush2.bf16.msra.mxu0 0
        %2071 = vmatprep.subr.bf16.mxu0 0
        %2072 = vmatpush2.bf16.msra.mxu0 0
        %2073 = vmatprep.subr.bf16.mxu0 0
        %2074 = vmatpush2.bf16.msra.mxu0 0
        %2075 = vmatprep.subr.bf16.mxu0 0
        %2076 = vmatpush2.bf16.msra.mxu0 0
        %2077 = vmatprep.subr.bf16.mxu0 0
        %2078 = vmatpush2.bf16.msra.mxu0 0
        %2079 = vmatprep.subr.bf16.mxu0 0
        %2080 = vmatpush2.bf16.msra.mxu0 0
        %2081 = vmatprep.mubr.bf16.mxu0 0
        %2082 = vmatmul.mubr.bf16.gmra.mxu0 %v1825
        %v2083 = vpop.f32.mrf.mxu0
        %v2084 = vadd.f32 0.0, %v2083
        %v2085 = vpop.f32.mrf.mxu0
        %v2086 = vadd.f32 0.0, %v2085
        %v2087 = vpop.f32.mrf.mxu0
        %v2088 = vadd.f32 0.0, %v2087
        %v2089 = vpop.f32.mrf.mxu0
        %v2090 = vadd.f32 0.0, %v2089
        %2091 = vmatprep.mubr.bf16.mxu0 0
        %2092 = vmatmul.mubr.bf16.gmra.mxu0 %v1826
        %v2093 = vpop.f32.mrf.mxu0
        %v2094 = vadd.f32 0.0, %v2093
        %v2095 = vpop.f32.mrf.mxu0
        %v2096 = vadd.f32 0.0, %v2095
        %v2097 = vpop.f32.mrf.mxu0
        %v2098 = vadd.f32 0.0, %v2097
        %v2099 = vpop.f32.mrf.mxu0
        %v2100 = vadd.f32 0.0, %v2099
        %2101 = vmatprep.mubr.bf16.mxu0 0
        %2102 = vmatmul.mubr.bf16.gmra.mxu0 %v1827
        %v2103 = vpop.f32.mrf.mxu0
        %v2104 = vadd.f32 0.0, %v2103
        %v2105 = vpop.f32.mrf.mxu0
        %v2106 = vadd.f32 0.0, %v2105
        %v2107 = vpop.f32.mrf.mxu0
        %v2108 = vadd.f32 0.0, %v2107
        %v2109 = vpop.f32.mrf.mxu0
        %v2110 = vadd.f32 0.0, %v2109
        %2111 = vmatprep.mubr.bf16.mxu0 0
        %2112 = vmatmul.mubr.bf16.gmra.mxu0 %v1828
        %v2113 = vpop.f32.mrf.mxu0
        %v2114 = vadd.f32 0.0, %v2113
        %v2115 = vpop.f32.mrf.mxu0
        %v2116 = vadd.f32 0.0, %v2115
        %v2117 = vpop.f32.mrf.mxu0
        %v2118 = vadd.f32 0.0, %v2117
        %v2119 = vpop.f32.mrf.mxu0
        %v2120 = vadd.f32 0.0, %v2119
        %2121 = vmatprep.mubr.bf16.mxu0 0
        %2122 = vmatmul.mubr.bf16.gmra.mxu0 %v1829
        %v2123 = vpop.f32.mrf.mxu0
        %v2124 = vadd.f32 0.0, %v2123
        %v2125 = vpop.f32.mrf.mxu0
        %v2126 = vadd.f32 0.0, %v2125
        %v2127 = vpop.f32.mrf.mxu0
        %v2128 = vadd.f32 0.0, %v2127
        %v2129 = vpop.f32.mrf.mxu0
        %v2130 = vadd.f32 0.0, %v2129
        %2131 = vmatprep.mubr.bf16.mxu0 0
        %2132 = vmatmul.mubr.bf16.gmra.mxu0 %v1830
        %v2133 = vpop.f32.mrf.mxu0
        %v2134 = vadd.f32 0.0, %v2133
        %v2135 = vpop.f32.mrf.mxu0
        %v2136 = vadd.f32 0.0, %v2135
        %v2137 = vpop.f32.mrf.mxu0
        %v2138 = vadd.f32 0.0, %v2137
        %v2139 = vpop.f32.mrf.mxu0
        %v2140 = vadd.f32 0.0, %v2139
        %2141 = vmatprep.mubr.bf16.mxu0 0
        %2142 = vmatmul.mubr.bf16.gmra.mxu0 %v1831
        %v2143 = vpop.f32.mrf.mxu0
        %v2144 = vadd.f32 0.0, %v2143
        %v2145 = vpop.f32.mrf.mxu0
        %v2146 = vadd.f32 0.0, %v2145
        %v2147 = vpop.f32.mrf.mxu0
        %v2148 = vadd.f32 0.0, %v2147
        %v2149 = vpop.f32.mrf.mxu0
        %v2150 = vadd.f32 0.0, %v2149
        %2151 = vmatprep.mubr.bf16.mxu0 0
        %2152 = vmatmul.mubr.bf16.gmra.mxu0 %v1832
        %v2153 = vpop.f32.mrf.mxu0
        %v2154 = vadd.f32 0.0, %v2153
        %v2155 = vpop.f32.mrf.mxu0
        %v2156 = vadd.f32 0.0, %v2155
        %v2157 = vpop.f32.mrf.mxu0
        %v2158 = vadd.f32 0.0, %v2157
        %v2159 = vpop.f32.mrf.mxu0
        %v2160 = vadd.f32 0.0, %v2159
        %2161 = vmatprep.mubr.bf16.mxu0 0
        %2162 = vmatmul.mubr.bf16.gmra.mxu0 %v1833
        %v2163 = vpop.f32.mrf.mxu0
        %v2164 = vadd.f32 0.0, %v2163
        %v2165 = vpop.f32.mrf.mxu0
        %v2166 = vadd.f32 0.0, %v2165
        %v2167 = vpop.f32.mrf.mxu0
        %v2168 = vadd.f32 0.0, %v2167
        %v2169 = vpop.f32.mrf.mxu0
        %v2170 = vadd.f32 0.0, %v2169
        %2171 = vmatprep.mubr.bf16.mxu0 0
        %2172 = vmatmul.mubr.bf16.gmra.mxu0 %v1834
        %v2173 = vpop.f32.mrf.mxu0
        %v2174 = vadd.f32 0.0, %v2173
        %v2175 = vpop.f32.mrf.mxu0
        %v2176 = vadd.f32 0.0, %v2175
        %v2177 = vpop.f32.mrf.mxu0
        %v2178 = vadd.f32 0.0, %v2177
        %v2179 = vpop.f32.mrf.mxu0
        %v2180 = vadd.f32 0.0, %v2179
        %2181 = vmatprep.mubr.bf16.mxu0 0
        %2182 = vmatmul.mubr.bf16.gmra.mxu0 %v1835
        %v2183 = vpop.f32.mrf.mxu0
        %v2184 = vadd.f32 0.0, %v2183
        %v2185 = vpop.f32.mrf.mxu0
        %v2186 = vadd.f32 0.0, %v2185
        %v2187 = vpop.f32.mrf.mxu0
        %v2188 = vadd.f32 0.0, %v2187
        %v2189 = vpop.f32.mrf.mxu0
        %v2190 = vadd.f32 0.0, %v2189
        %2191 = vmatprep.mubr.bf16.mxu0 0
        %2192 = vmatmul.mubr.bf16.gmra.mxu0 %v1836
        %v2193 = vpop.f32.mrf.mxu0
        %v2194 = vadd.f32 0.0, %v2193
        %v2195 = vpop.f32.mrf.mxu0
        %v2196 = vadd.f32 0.0, %v2195
        %v2197 = vpop.f32.mrf.mxu0
        %v2198 = vadd.f32 0.0, %v2197
        %v2199 = vpop.f32.mrf.mxu0
        %v2200 = vadd.f32 0.0, %v2199
        %2201 = vmatprep.mubr.bf16.mxu0 0
        %2202 = vmatmul.mubr.bf16.gmra.mxu0 %v1837
        %v2203 = vpop.f32.mrf.mxu0
        %v2204 = vadd.f32 0.0, %v2203
        %v2205 = vpop.f32.mrf.mxu0
        %v2206 = vadd.f32 0.0, %v2205
        %v2207 = vpop.f32.mrf.mxu0
        %v2208 = vadd.f32 0.0, %v2207
        %v2209 = vpop.f32.mrf.mxu0
        %v2210 = vadd.f32 0.0, %v2209
        %2211 = vmatprep.mubr.bf16.mxu0 0
        %2212 = vmatmul.mubr.bf16.gmra.mxu0 %v1838
        %v2213 = vpop.f32.mrf.mxu0
        %v2214 = vadd.f32 0.0, %v2213
        %v2215 = vpop.f32.mrf.mxu0
        %v2216 = vadd.f32 0.0, %v2215
        %v2217 = vpop.f32.mrf.mxu0
        %v2218 = vadd.f32 0.0, %v2217
        %v2219 = vpop.f32.mrf.mxu0
        %v2220 = vadd.f32 0.0, %v2219
        %2221 = vmatprep.mubr.bf16.mxu0 0
        %2222 = vmatmul.mubr.bf16.gmra.mxu0 %v1839
        %v2223 = vpop.f32.mrf.mxu0
        %v2224 = vadd.f32 0.0, %v2223
        %v2225 = vpop.f32.mrf.mxu0
        %v2226 = vadd.f32 0.0, %v2225
        %v2227 = vpop.f32.mrf.mxu0
        %v2228 = vadd.f32 0.0, %v2227
        %v2229 = vpop.f32.mrf.mxu0
        %v2230 = vadd.f32 0.0, %v2229
        %2231 = vmatprep.mubr.bf16.mxu0 0
        %2232 = vmatmul.mubr.bf16.gmra.mxu0 %v1840
        %v2233 = vpop.f32.mrf.mxu0
        %v2234 = vadd.f32 0.0, %v2233
        %v2235 = vpop.f32.mrf.mxu0
        %v2236 = vadd.f32 0.0, %v2235
        %v2237 = vpop.f32.mrf.mxu0
        %v2238 = vadd.f32 0.0, %v2237
        %v2239 = vpop.f32.mrf.mxu0
        %v2240 = vadd.f32 0.0, %v2239
        %2241 = vmatprep.mubr.bf16.mxu0 0
        %2242 = vmatmul.mubr.bf16.gmra.mxu0 %v1841
        %v2243 = vpop.f32.mrf.mxu0
        %v2244 = vadd.f32 0.0, %v2243
        %v2245 = vpop.f32.mrf.mxu0
        %v2246 = vadd.f32 0.0, %v2245
        %v2247 = vpop.f32.mrf.mxu0
        %v2248 = vadd.f32 0.0, %v2247
        %v2249 = vpop.f32.mrf.mxu0
        %v2250 = vadd.f32 0.0, %v2249
        %2251 = vmatprep.mubr.bf16.mxu0 0
        %2252 = vmatmul.mubr.bf16.gmra.mxu0 %v1842
        %v2253 = vpop.f32.mrf.mxu0
        %v2254 = vadd.f32 0.0, %v2253
        %v2255 = vpop.f32.mrf.mxu0
        %v2256 = vadd.f32 0.0, %v2255
        %v2257 = vpop.f32.mrf.mxu0
        %v2258 = vadd.f32 0.0, %v2257
        %v2259 = vpop.f32.mrf.mxu0
        %v2260 = vadd.f32 0.0, %v2259
        %2261 = vmatprep.mubr.bf16.mxu0 0
        %2262 = vmatmul.mubr.bf16.gmra.mxu0 %v1843
        %v2263 = vpop.f32.mrf.mxu0
        %v2264 = vadd.f32 0.0, %v2263
        %v2265 = vpop.f32.mrf.mxu0
        %v2266 = vadd.f32 0.0, %v2265
        %v2267 = vpop.f32.mrf.mxu0
        %v2268 = vadd.f32 0.0, %v2267
        %v2269 = vpop.f32.mrf.mxu0
        %v2270 = vadd.f32 0.0, %v2269
        %2271 = vmatprep.mubr.bf16.mxu0 0
        %2272 = vmatmul.mubr.bf16.gmra.mxu0 %v1844
        %v2273 = vpop.f32.mrf.mxu0
        %v2274 = vadd.f32 0.0, %v2273
        %v2275 = vpop.f32.mrf.mxu0
        %v2276 = vadd.f32 0.0, %v2275
        %v2277 = vpop.f32.mrf.mxu0
        %v2278 = vadd.f32 0.0, %v2277
        %v2279 = vpop.f32.mrf.mxu0
        %v2280 = vadd.f32 0.0, %v2279
        %2281 = vmatprep.mubr.bf16.mxu0 0
        %2282 = vmatmul.mubr.bf16.gmra.mxu0 %v1845
        %v2283 = vpop.f32.mrf.mxu0
        %v2284 = vadd.f32 0.0, %v2283
        %v2285 = vpop.f32.mrf.mxu0
        %v2286 = vadd.f32 0.0, %v2285
        %v2287 = vpop.f32.mrf.mxu0
        %v2288 = vadd.f32 0.0, %v2287
        %v2289 = vpop.f32.mrf.mxu0
        %v2290 = vadd.f32 0.0, %v2289
        %2291 = vmatprep.mubr.bf16.mxu0 0
        %2292 = vmatmul.mubr.bf16.gmra.mxu0 %v1846
        %v2293 = vpop.f32.mrf.mxu0
        %v2294 = vadd.f32 0.0, %v2293
        %v2295 = vpop.f32.mrf.mxu0
        %v2296 = vadd.f32 0.0, %v2295
        %v2297 = vpop.f32.mrf.mxu0
        %v2298 = vadd.f32 0.0, %v2297
        %v2299 = vpop.f32.mrf.mxu0
        %v2300 = vadd.f32 0.0, %v2299
        %2301 = vmatprep.mubr.bf16.mxu0 0
        %2302 = vmatmul.mubr.bf16.gmra.mxu0 %v1847
        %v2303 = vpop.f32.mrf.mxu0
        %v2304 = vadd.f32 0.0, %v2303
        %v2305 = vpop.f32.mrf.mxu0
        %v2306 = vadd.f32 0.0, %v2305
        %v2307 = vpop.f32.mrf.mxu0
        %v2308 = vadd.f32 0.0, %v2307
        %v2309 = vpop.f32.mrf.mxu0
        %v2310 = vadd.f32 0.0, %v2309
        %2311 = vmatprep.mubr.bf16.mxu0 0
        %2312 = vmatmul.mubr.bf16.gmra.mxu0 %v1848
        %v2313 = vpop.f32.mrf.mxu0
        %v2314 = vadd.f32 0.0, %v2313
        %v2315 = vpop.f32.mrf.mxu0
        %v2316 = vadd.f32 0.0, %v2315
        %v2317 = vpop.f32.mrf.mxu0
        %v2318 = vadd.f32 0.0, %v2317
        %v2319 = vpop.f32.mrf.mxu0
        %v2320 = vadd.f32 0.0, %v2319
        %2321 = vmatprep.mubr.bf16.mxu0 0
        %2322 = vmatmul.mubr.bf16.gmra.mxu0 %v1849
        %v2323 = vpop.f32.mrf.mxu0
        %v2324 = vadd.f32 0.0, %v2323
        %v2325 = vpop.f32.mrf.mxu0
        %v2326 = vadd.f32 0.0, %v2325
        %v2327 = vpop.f32.mrf.mxu0
        %v2328 = vadd.f32 0.0, %v2327
        %v2329 = vpop.f32.mrf.mxu0
        %v2330 = vadd.f32 0.0, %v2329
        %2331 = vmatprep.mubr.bf16.mxu0 0
        %2332 = vmatmul.mubr.bf16.gmra.mxu0 %v1850
        %v2333 = vpop.f32.mrf.mxu0
        %v2334 = vadd.f32 0.0, %v2333
        %v2335 = vpop.f32.mrf.mxu0
        %v2336 = vadd.f32 0.0, %v2335
        %v2337 = vpop.f32.mrf.mxu0
        %v2338 = vadd.f32 0.0, %v2337
        %v2339 = vpop.f32.mrf.mxu0
        %v2340 = vadd.f32 0.0, %v2339
        %2341 = vmatprep.mubr.bf16.mxu0 0
        %2342 = vmatmul.mubr.bf16.gmra.mxu0 %v1851
        %v2343 = vpop.f32.mrf.mxu0
        %v2344 = vadd.f32 0.0, %v2343
        %v2345 = vpop.f32.mrf.mxu0
        %v2346 = vadd.f32 0.0, %v2345
        %v2347 = vpop.f32.mrf.mxu0
        %v2348 = vadd.f32 0.0, %v2347
        %v2349 = vpop.f32.mrf.mxu0
        %v2350 = vadd.f32 0.0, %v2349
        %2351 = vmatprep.mubr.bf16.mxu0 0
        %2352 = vmatmul.mubr.bf16.gmra.mxu0 %v1852
        %v2353 = vpop.f32.mrf.mxu0
        %v2354 = vadd.f32 0.0, %v2353
        %v2355 = vpop.f32.mrf.mxu0
        %v2356 = vadd.f32 0.0, %v2355
        %v2357 = vpop.f32.mrf.mxu0
        %v2358 = vadd.f32 0.0, %v2357
        %v2359 = vpop.f32.mrf.mxu0
        %v2360 = vadd.f32 0.0, %v2359
        %2361 = vmatprep.mubr.bf16.mxu0 0
        %2362 = vmatmul.mubr.bf16.gmra.mxu0 %v1853
        %v2363 = vpop.f32.mrf.mxu0
        %v2364 = vadd.f32 0.0, %v2363
        %v2365 = vpop.f32.mrf.mxu0
        %v2366 = vadd.f32 0.0, %v2365
        %v2367 = vpop.f32.mrf.mxu0
        %v2368 = vadd.f32 0.0, %v2367
        %v2369 = vpop.f32.mrf.mxu0
        %v2370 = vadd.f32 0.0, %v2369
        %2371 = vmatprep.mubr.bf16.mxu0 0
        %2372 = vmatmul.mubr.bf16.gmra.mxu0 %v1854
        %v2373 = vpop.f32.mrf.mxu0
        %v2374 = vadd.f32 0.0, %v2373
        %v2375 = vpop.f32.mrf.mxu0
        %v2376 = vadd.f32 0.0, %v2375
        %v2377 = vpop.f32.mrf.mxu0
        %v2378 = vadd.f32 0.0, %v2377
        %v2379 = vpop.f32.mrf.mxu0
        %v2380 = vadd.f32 0.0, %v2379
        %2381 = vmatprep.mubr.bf16.mxu0 0
        %2382 = vmatmul.mubr.bf16.gmra.mxu0 %v1855
        %v2383 = vpop.f32.mrf.mxu0
        %v2384 = vadd.f32 0.0, %v2383
        %v2385 = vpop.f32.mrf.mxu0
        %v2386 = vadd.f32 0.0, %v2385
        %v2387 = vpop.f32.mrf.mxu0
        %v2388 = vadd.f32 0.0, %v2387
        %v2389 = vpop.f32.mrf.mxu0
        %v2390 = vadd.f32 0.0, %v2389
        %2391 = vmatprep.mubr.bf16.mxu0 0
        %2392 = vmatmul.mubr.bf16.gmra.mxu0 %v1856
        %v2393 = vpop.f32.mrf.mxu0
        %v2394 = vadd.f32 0.0, %v2393
        %v2395 = vpop.f32.mrf.mxu0
        %v2396 = vadd.f32 0.0, %v2395
        %v2397 = vpop.f32.mrf.mxu0
        %v2398 = vadd.f32 0.0, %v2397
        %v2399 = vpop.f32.mrf.mxu0
        %v2400 = vadd.f32 0.0, %v2399
        %2401 = vmatprep.mubr.bf16.mxu0 0
        %2402 = vmatmul.mubr.bf16.gmra.mxu0 %v1857
        %v2403 = vpop.f32.mrf.mxu0
        %v2404 = vadd.f32 0.0, %v2403
        %v2405 = vpop.f32.mrf.mxu0
        %v2406 = vadd.f32 0.0, %v2405
        %v2407 = vpop.f32.mrf.mxu0
        %v2408 = vadd.f32 0.0, %v2407
        %v2409 = vpop.f32.mrf.mxu0
        %v2410 = vadd.f32 0.0, %v2409
        %2411 = vmatprep.mubr.bf16.mxu0 0
        %2412 = vmatmul.mubr.bf16.gmra.mxu0 %v1858
        %v2413 = vpop.f32.mrf.mxu0
        %v2414 = vadd.f32 0.0, %v2413
        %v2415 = vpop.f32.mrf.mxu0
        %v2416 = vadd.f32 0.0, %v2415
        %v2417 = vpop.f32.mrf.mxu0
        %v2418 = vadd.f32 0.0, %v2417
        %v2419 = vpop.f32.mrf.mxu0
        %v2420 = vadd.f32 0.0, %v2419
        %2421 = vmatprep.mubr.bf16.mxu0 0
        %2422 = vmatmul.mubr.bf16.gmra.mxu0 %v1859
        %v2423 = vpop.f32.mrf.mxu0
        %v2424 = vadd.f32 0.0, %v2423
        %v2425 = vpop.f32.mrf.mxu0
        %v2426 = vadd.f32 0.0, %v2425
        %v2427 = vpop.f32.mrf.mxu0
        %v2428 = vadd.f32 0.0, %v2427
        %v2429 = vpop.f32.mrf.mxu0
        %v2430 = vadd.f32 0.0, %v2429
        %2431 = vmatprep.mubr.bf16.mxu0 0
        %2432 = vmatmul.mubr.bf16.gmra.mxu0 %v1860
        %v2433 = vpop.f32.mrf.mxu0
        %v2434 = vadd.f32 0.0, %v2433
        %v2435 = vpop.f32.mrf.mxu0
        %v2436 = vadd.f32 0.0, %v2435
        %v2437 = vpop.f32.mrf.mxu0
        %v2438 = vadd.f32 0.0, %v2437
        %v2439 = vpop.f32.mrf.mxu0
        %v2440 = vadd.f32 0.0, %v2439
        %2441 = vmatprep.mubr.bf16.mxu0 0
        %2442 = vmatmul.mubr.bf16.gmra.mxu0 %v1861
        %v2443 = vpop.f32.mrf.mxu0
        %v2444 = vadd.f32 0.0, %v2443
        %v2445 = vpop.f32.mrf.mxu0
        %v2446 = vadd.f32 0.0, %v2445
        %v2447 = vpop.f32.mrf.mxu0
        %v2448 = vadd.f32 0.0, %v2447
        %v2449 = vpop.f32.mrf.mxu0
        %v2450 = vadd.f32 0.0, %v2449
        %2451 = vmatprep.mubr.bf16.mxu0 0
        %2452 = vmatmul.mubr.bf16.gmra.mxu0 %v1862
        %v2453 = vpop.f32.mrf.mxu0
        %v2454 = vadd.f32 0.0, %v2453
        %v2455 = vpop.f32.mrf.mxu0
        %v2456 = vadd.f32 0.0, %v2455
        %v2457 = vpop.f32.mrf.mxu0
        %v2458 = vadd.f32 0.0, %v2457
        %v2459 = vpop.f32.mrf.mxu0
        %v2460 = vadd.f32 0.0, %v2459
        %2461 = vmatprep.mubr.bf16.mxu0 0
        %2462 = vmatmul.mubr.bf16.gmra.mxu0 %v1863
        %v2463 = vpop.f32.mrf.mxu0
        %v2464 = vadd.f32 0.0, %v2463
        %v2465 = vpop.f32.mrf.mxu0
        %v2466 = vadd.f32 0.0, %v2465
        %v2467 = vpop.f32.mrf.mxu0
        %v2468 = vadd.f32 0.0, %v2467
        %v2469 = vpop.f32.mrf.mxu0
        %v2470 = vadd.f32 0.0, %v2469
        %2471 = vmatprep.mubr.bf16.mxu0 0
        %2472 = vmatmul.mubr.bf16.gmra.mxu0 %v1864
        %v2473 = vpop.f32.mrf.mxu0
        %v2474 = vadd.f32 0.0, %v2473
        %v2475 = vpop.f32.mrf.mxu0
        %v2476 = vadd.f32 0.0, %v2475
        %v2477 = vpop.f32.mrf.mxu0
        %v2478 = vadd.f32 0.0, %v2477
        %v2479 = vpop.f32.mrf.mxu0
        %v2480 = vadd.f32 0.0, %v2479
        %2481 = vmatprep.mubr.bf16.mxu0 0
        %2482 = vmatmul.mubr.bf16.gmra.mxu0 %v1865
        %v2483 = vpop.f32.mrf.mxu0
        %v2484 = vadd.f32 0.0, %v2483
        %v2485 = vpop.f32.mrf.mxu0
        %v2486 = vadd.f32 0.0, %v2485
        %v2487 = vpop.f32.mrf.mxu0
        %v2488 = vadd.f32 0.0, %v2487
        %v2489 = vpop.f32.mrf.mxu0
        %v2490 = vadd.f32 0.0, %v2489
        %2491 = vmatprep.mubr.bf16.mxu0 0
        %2492 = vmatmul.mubr.bf16.gmra.mxu0 %v1866
        %v2493 = vpop.f32.mrf.mxu0
        %v2494 = vadd.f32 0.0, %v2493
        %v2495 = vpop.f32.mrf.mxu0
        %v2496 = vadd.f32 0.0, %v2495
        %v2497 = vpop.f32.mrf.mxu0
        %v2498 = vadd.f32 0.0, %v2497
        %v2499 = vpop.f32.mrf.mxu0
        %v2500 = vadd.f32 0.0, %v2499
        %2501 = vmatprep.mubr.bf16.mxu0 0
        %2502 = vmatmul.mubr.bf16.gmra.mxu0 %v1867
        %v2503 = vpop.f32.mrf.mxu0
        %v2504 = vadd.f32 0.0, %v2503
        %v2505 = vpop.f32.mrf.mxu0
        %v2506 = vadd.f32 0.0, %v2505
        %v2507 = vpop.f32.mrf.mxu0
        %v2508 = vadd.f32 0.0, %v2507
        %v2509 = vpop.f32.mrf.mxu0
        %v2510 = vadd.f32 0.0, %v2509
        %2511 = vmatprep.mubr.bf16.mxu0 0
        %2512 = vmatmul.mubr.bf16.gmra.mxu0 %v1868
        %v2513 = vpop.f32.mrf.mxu0
        %v2514 = vadd.f32 0.0, %v2513
        %v2515 = vpop.f32.mrf.mxu0
        %v2516 = vadd.f32 0.0, %v2515
        %v2517 = vpop.f32.mrf.mxu0
        %v2518 = vadd.f32 0.0, %v2517
        %v2519 = vpop.f32.mrf.mxu0
        %v2520 = vadd.f32 0.0, %v2519
        %2521 = vmatprep.mubr.bf16.mxu0 0
        %2522 = vmatmul.mubr.bf16.gmra.mxu0 %v1869
        %v2523 = vpop.f32.mrf.mxu0
        %v2524 = vadd.f32 0.0, %v2523
        %v2525 = vpop.f32.mrf.mxu0
        %v2526 = vadd.f32 0.0, %v2525
        %v2527 = vpop.f32.mrf.mxu0
        %v2528 = vadd.f32 0.0, %v2527
        %v2529 = vpop.f32.mrf.mxu0
        %v2530 = vadd.f32 0.0, %v2529
        %2531 = vmatprep.mubr.bf16.mxu0 0
        %2532 = vmatmul.mubr.bf16.gmra.mxu0 %v1870
        %v2533 = vpop.f32.mrf.mxu0
        %v2534 = vadd.f32 0.0, %v2533
        %v2535 = vpop.f32.mrf.mxu0
        %v2536 = vadd.f32 0.0, %v2535
        %v2537 = vpop.f32.mrf.mxu0
        %v2538 = vadd.f32 0.0, %v2537
        %v2539 = vpop.f32.mrf.mxu0
        %v2540 = vadd.f32 0.0, %v2539
        %2541 = vmatprep.mubr.bf16.mxu0 0
        %2542 = vmatmul.mubr.bf16.gmra.mxu0 %v1871
        %v2543 = vpop.f32.mrf.mxu0
        %v2544 = vadd.f32 0.0, %v2543
        %v2545 = vpop.f32.mrf.mxu0
        %v2546 = vadd.f32 0.0, %v2545
        %v2547 = vpop.f32.mrf.mxu0
        %v2548 = vadd.f32 0.0, %v2547
        %v2549 = vpop.f32.mrf.mxu0
        %v2550 = vadd.f32 0.0, %v2549
        %2551 = vmatprep.mubr.bf16.mxu0 0
        %2552 = vmatmul.mubr.bf16.gmra.mxu0 %v1872
        %v2553 = vpop.f32.mrf.mxu0
        %v2554 = vadd.f32 0.0, %v2553
        %v2555 = vpop.f32.mrf.mxu0
        %v2556 = vadd.f32 0.0, %v2555
        %v2557 = vpop.f32.mrf.mxu0
        %v2558 = vadd.f32 0.0, %v2557
        %v2559 = vpop.f32.mrf.mxu0
        %v2560 = vadd.f32 0.0, %v2559
        %2561 = vmatprep.mubr.bf16.mxu0 0
        %2562 = vmatmul.mubr.bf16.gmra.mxu0 %v1873
        %v2563 = vpop.f32.mrf.mxu0
        %v2564 = vadd.f32 0.0, %v2563
        %v2565 = vpop.f32.mrf.mxu0
        %v2566 = vadd.f32 0.0, %v2565
        %v2567 = vpop.f32.mrf.mxu0
        %v2568 = vadd.f32 0.0, %v2567
        %v2569 = vpop.f32.mrf.mxu0
        %v2570 = vadd.f32 0.0, %v2569
        %2571 = vmatprep.mubr.bf16.mxu0 0
        %2572 = vmatmul.mubr.bf16.gmra.mxu0 %v1874
        %v2573 = vpop.f32.mrf.mxu0
        %v2574 = vadd.f32 0.0, %v2573
        %v2575 = vpop.f32.mrf.mxu0
        %v2576 = vadd.f32 0.0, %v2575
        %v2577 = vpop.f32.mrf.mxu0
        %v2578 = vadd.f32 0.0, %v2577
        %v2579 = vpop.f32.mrf.mxu0
        %v2580 = vadd.f32 0.0, %v2579
        %2581 = vmatprep.mubr.bf16.mxu0 0
        %2582 = vmatmul.mubr.bf16.gmra.mxu0 %v1875
        %v2583 = vpop.f32.mrf.mxu0
        %v2584 = vadd.f32 0.0, %v2583
        %v2585 = vpop.f32.mrf.mxu0
        %v2586 = vadd.f32 0.0, %v2585
        %v2587 = vpop.f32.mrf.mxu0
        %v2588 = vadd.f32 0.0, %v2587
        %v2589 = vpop.f32.mrf.mxu0
        %v2590 = vadd.f32 0.0, %v2589
        %2591 = vmatprep.mubr.bf16.mxu0 0
        %2592 = vmatmul.mubr.bf16.gmra.mxu0 %v1876
        %v2593 = vpop.f32.mrf.mxu0
        %v2594 = vadd.f32 0.0, %v2593
        %v2595 = vpop.f32.mrf.mxu0
        %v2596 = vadd.f32 0.0, %v2595
        %v2597 = vpop.f32.mrf.mxu0
        %v2598 = vadd.f32 0.0, %v2597
        %v2599 = vpop.f32.mrf.mxu0
        %v2600 = vadd.f32 0.0, %v2599
        %2601 = vmatprep.mubr.bf16.mxu0 0
        %2602 = vmatmul.mubr.bf16.gmra.mxu0 %v1877
        %v2603 = vpop.f32.mrf.mxu0
        %v2604 = vadd.f32 0.0, %v2603
        %v2605 = vpop.f32.mrf.mxu0
        %v2606 = vadd.f32 0.0, %v2605
        %v2607 = vpop.f32.mrf.mxu0
        %v2608 = vadd.f32 0.0, %v2607
        %v2609 = vpop.f32.mrf.mxu0
        %v2610 = vadd.f32 0.0, %v2609
        %2611 = vmatprep.mubr.bf16.mxu0 0
        %2612 = vmatmul.mubr.bf16.gmra.mxu0 %v1878
        %v2613 = vpop.f32.mrf.mxu0
        %v2614 = vadd.f32 0.0, %v2613
        %v2615 = vpop.f32.mrf.mxu0
        %v2616 = vadd.f32 0.0, %v2615
        %v2617 = vpop.f32.mrf.mxu0
        %v2618 = vadd.f32 0.0, %v2617
        %v2619 = vpop.f32.mrf.mxu0
        %v2620 = vadd.f32 0.0, %v2619
        %2621 = vmatprep.mubr.bf16.mxu0 0
        %2622 = vmatmul.mubr.bf16.gmra.mxu0 %v1879
        %v2623 = vpop.f32.mrf.mxu0
        %v2624 = vadd.f32 0.0, %v2623
        %v2625 = vpop.f32.mrf.mxu0
        %v2626 = vadd.f32 0.0, %v2625
        %v2627 = vpop.f32.mrf.mxu0
        %v2628 = vadd.f32 0.0, %v2627
        %v2629 = vpop.f32.mrf.mxu0
        %v2630 = vadd.f32 0.0, %v2629
        %2631 = vmatprep.mubr.bf16.mxu0 0
        %2632 = vmatmul.mubr.bf16.gmra.mxu0 %v1880
        %v2633 = vpop.f32.mrf.mxu0
        %v2634 = vadd.f32 0.0, %v2633
        %v2635 = vpop.f32.mrf.mxu0
        %v2636 = vadd.f32 0.0, %v2635
        %v2637 = vpop.f32.mrf.mxu0
        %v2638 = vadd.f32 0.0, %v2637
        %v2639 = vpop.f32.mrf.mxu0
        %v2640 = vadd.f32 0.0, %v2639
        %2641 = vmatprep.mubr.bf16.mxu0 0
        %2642 = vmatmul.mubr.bf16.gmra.mxu0 %v1881
        %v2643 = vpop.f32.mrf.mxu0
        %v2644 = vadd.f32 0.0, %v2643
        %v2645 = vpop.f32.mrf.mxu0
        %v2646 = vadd.f32 0.0, %v2645
        %v2647 = vpop.f32.mrf.mxu0
        %v2648 = vadd.f32 0.0, %v2647
        %v2649 = vpop.f32.mrf.mxu0
        %v2650 = vadd.f32 0.0, %v2649
        %2651 = vmatprep.mubr.bf16.mxu0 0
        %2652 = vmatmul.mubr.bf16.gmra.mxu0 %v1882
        %v2653 = vpop.f32.mrf.mxu0
        %v2654 = vadd.f32 0.0, %v2653
        %v2655 = vpop.f32.mrf.mxu0
        %v2656 = vadd.f32 0.0, %v2655
        %v2657 = vpop.f32.mrf.mxu0
        %v2658 = vadd.f32 0.0, %v2657
        %v2659 = vpop.f32.mrf.mxu0
        %v2660 = vadd.f32 0.0, %v2659
        %2661 = vmatprep.mubr.bf16.mxu0 0
        %2662 = vmatmul.mubr.bf16.gmra.mxu0 %v1883
        %v2663 = vpop.f32.mrf.mxu0
        %v2664 = vadd.f32 0.0, %v2663
        %v2665 = vpop.f32.mrf.mxu0
        %v2666 = vadd.f32 0.0, %v2665
        %v2667 = vpop.f32.mrf.mxu0
        %v2668 = vadd.f32 0.0, %v2667
        %v2669 = vpop.f32.mrf.mxu0
        %v2670 = vadd.f32 0.0, %v2669
        %2671 = vmatprep.mubr.bf16.mxu0 0
        %2672 = vmatmul.mubr.bf16.gmra.mxu0 %v1884
        %v2673 = vpop.f32.mrf.mxu0
        %v2674 = vadd.f32 0.0, %v2673
        %v2675 = vpop.f32.mrf.mxu0
        %v2676 = vadd.f32 0.0, %v2675
        %v2677 = vpop.f32.mrf.mxu0
        %v2678 = vadd.f32 0.0, %v2677
        %v2679 = vpop.f32.mrf.mxu0
        %v2680 = vadd.f32 0.0, %v2679
        %2681 = vmatprep.mubr.bf16.mxu0 0
        %2682 = vmatmul.mubr.bf16.gmra.mxu0 %v1885
        %v2683 = vpop.f32.mrf.mxu0
        %v2684 = vadd.f32 0.0, %v2683
        %v2685 = vpop.f32.mrf.mxu0
        %v2686 = vadd.f32 0.0, %v2685
        %v2687 = vpop.f32.mrf.mxu0
        %v2688 = vadd.f32 0.0, %v2687
        %v2689 = vpop.f32.mrf.mxu0
        %v2690 = vadd.f32 0.0, %v2689
        %2691 = vmatprep.mubr.bf16.mxu0 0
        %2692 = vmatmul.mubr.bf16.gmra.mxu0 %v1886
        %v2693 = vpop.f32.mrf.mxu0
        %v2694 = vadd.f32 0.0, %v2693
        %v2695 = vpop.f32.mrf.mxu0
        %v2696 = vadd.f32 0.0, %v2695
        %v2697 = vpop.f32.mrf.mxu0
        %v2698 = vadd.f32 0.0, %v2697
        %v2699 = vpop.f32.mrf.mxu0
        %v2700 = vadd.f32 0.0, %v2699
        %2701 = vmatprep.mubr.bf16.mxu0 0
        %2702 = vmatmul.mubr.bf16.gmra.mxu0 %v1887
        %v2703 = vpop.f32.mrf.mxu0
        %v2704 = vadd.f32 0.0, %v2703
        %v2705 = vpop.f32.mrf.mxu0
        %v2706 = vadd.f32 0.0, %v2705
        %v2707 = vpop.f32.mrf.mxu0
        %v2708 = vadd.f32 0.0, %v2707
        %v2709 = vpop.f32.mrf.mxu0
        %v2710 = vadd.f32 0.0, %v2709
        %2711 = vmatprep.mubr.bf16.mxu0 0
        %2712 = vmatmul.mubr.bf16.gmra.mxu0 %v1888
        %v2713 = vpop.f32.mrf.mxu0
        %v2714 = vadd.f32 0.0, %v2713
        %v2715 = vpop.f32.mrf.mxu0
        %v2716 = vadd.f32 0.0, %v2715
        %v2717 = vpop.f32.mrf.mxu0
        %v2718 = vadd.f32 0.0, %v2717
        %v2719 = vpop.f32.mrf.mxu0
        %v2720 = vadd.f32 0.0, %v2719
        %2721 = vdwg.mxu0
        %2722 = vmatprep.subr.bf16.mxu0 0
        %2723 = vmatpush1.bf16.msra.mxu0 %v2024
        %2724 = vmatprep.subr.bf16.mxu0 0
        %2725 = vmatpush1.bf16.msra.mxu0 %v2021
        %2726 = vmatprep.subr.bf16.mxu0 0
        %2727 = vmatpush1.bf16.msra.mxu0 %v2018
        %2728 = vmatprep.subr.bf16.mxu0 0
        %2729 = vmatpush1.bf16.msra.mxu0 %v2015
        %2730 = vmatprep.subr.bf16.mxu0 0
        %2731 = vmatpush1.bf16.msra.mxu0 %v2012
        %2732 = vmatprep.subr.bf16.mxu0 0
        %2733 = vmatpush1.bf16.msra.mxu0 %v2009
        %2734 = vmatprep.subr.bf16.mxu0 0
        %2735 = vmatpush1.bf16.msra.mxu0 %v2006
        %2736 = vmatprep.subr.bf16.mxu0 0
        %2737 = vmatpush1.bf16.msra.mxu0 %v2003
        %2738 = vmatprep.subr.bf16.mxu0 0
        %2739 = vmatpush2.bf16.msra.mxu0 0
        %2740 = vmatprep.subr.bf16.mxu0 0
        %2741 = vmatpush2.bf16.msra.mxu0 0
        %2742 = vmatprep.subr.bf16.mxu0 0
        %2743 = vmatpush2.bf16.msra.mxu0 0
        %2744 = vmatprep.subr.bf16.mxu0 0
        %2745 = vmatpush2.bf16.msra.mxu0 0
        %2746 = vmatprep.subr.bf16.mxu0 0
        %2747 = vmatpush2.bf16.msra.mxu0 0
        %2748 = vmatprep.subr.bf16.mxu0 0
        %2749 = vmatpush2.bf16.msra.mxu0 0
        %2750 = vmatprep.subr.bf16.mxu0 0
        %2751 = vmatpush2.bf16.msra.mxu0 0
        %2752 = vmatprep.subr.bf16.mxu0 0
        %2753 = vmatpush2.bf16.msra.mxu0 0
        %2754 = vmatprep.mubr.bf16.mxu0 0
        %2755 = vmatmul.mubr.bf16.gmra.mxu0 %v1825
        %v2756 = vpop.f32.mrf.mxu0
        %v2757 = vadd.f32 0.0, %v2756
        %v2758 = vpop.f32.mrf.mxu0
        %v2759 = vpop.f32.mrf.mxu0
        %v2760 = vadd.f32 0.0, %v2759
        %v2761 = vpop.f32.mrf.mxu0
        %2762 = vmatprep.mubr.bf16.mxu0 0
        %2763 = vmatmul.mubr.bf16.gmra.mxu0 %v1826
        %v2764 = vpop.f32.mrf.mxu0
        %v2765 = vadd.f32 0.0, %v2764
        %v2766 = vpop.f32.mrf.mxu0
        %v2767 = vpop.f32.mrf.mxu0
        %v2768 = vadd.f32 0.0, %v2767
        %v2769 = vpop.f32.mrf.mxu0
        %2770 = vmatprep.mubr.bf16.mxu0 0
        %2771 = vmatmul.mubr.bf16.gmra.mxu0 %v1827
        %v2772 = vpop.f32.mrf.mxu0
        %v2773 = vadd.f32 0.0, %v2772
        %v2774 = vpop.f32.mrf.mxu0
        %v2775 = vpop.f32.mrf.mxu0
        %v2776 = vadd.f32 0.0, %v2775
        %v2777 = vpop.f32.mrf.mxu0
        %2778 = vmatprep.mubr.bf16.mxu0 0
        %2779 = vmatmul.mubr.bf16.gmra.mxu0 %v1828
        %v2780 = vpop.f32.mrf.mxu0
        %v2781 = vadd.f32 0.0, %v2780
        %v2782 = vpop.f32.mrf.mxu0
        %v2783 = vpop.f32.mrf.mxu0
        %v2784 = vadd.f32 0.0, %v2783
        %v2785 = vpop.f32.mrf.mxu0
        %2786 = vmatprep.mubr.bf16.mxu0 0
        %2787 = vmatmul.mubr.bf16.gmra.mxu0 %v1829
        %v2788 = vpop.f32.mrf.mxu0
        %v2789 = vadd.f32 0.0, %v2788
        %v2790 = vpop.f32.mrf.mxu0
        %v2791 = vpop.f32.mrf.mxu0
        %v2792 = vadd.f32 0.0, %v2791
        %v2793 = vpop.f32.mrf.mxu0
        %2794 = vmatprep.mubr.bf16.mxu0 0
        %2795 = vmatmul.mubr.bf16.gmra.mxu0 %v1830
        %v2796 = vpop.f32.mrf.mxu0
        %v2797 = vadd.f32 0.0, %v2796
        %v2798 = vpop.f32.mrf.mxu0
        %v2799 = vpop.f32.mrf.mxu0
        %v2800 = vadd.f32 0.0, %v2799
        %v2801 = vpop.f32.mrf.mxu0
        %2802 = vmatprep.mubr.bf16.mxu0 0
        %2803 = vmatmul.mubr.bf16.gmra.mxu0 %v1831
        %v2804 = vpop.f32.mrf.mxu0
        %v2805 = vadd.f32 0.0, %v2804
        %v2806 = vpop.f32.mrf.mxu0
        %v2807 = vpop.f32.mrf.mxu0
        %v2808 = vadd.f32 0.0, %v2807
        %v2809 = vpop.f32.mrf.mxu0
        %2810 = vmatprep.mubr.bf16.mxu0 0
        %2811 = vmatmul.mubr.bf16.gmra.mxu0 %v1832
        %v2812 = vpop.f32.mrf.mxu0
        %v2813 = vadd.f32 0.0, %v2812
        %v2814 = vpop.f32.mrf.mxu0
        %v2815 = vpop.f32.mrf.mxu0
        %v2816 = vadd.f32 0.0, %v2815
        %v2817 = vpop.f32.mrf.mxu0
        %2818 = vmatprep.mubr.bf16.mxu0 0
        %2819 = vmatmul.mubr.bf16.gmra.mxu0 %v1833
        %v2820 = vpop.f32.mrf.mxu0
        %v2821 = vadd.f32 0.0, %v2820
        %v2822 = vpop.f32.mrf.mxu0
        %v2823 = vpop.f32.mrf.mxu0
        %v2824 = vadd.f32 0.0, %v2823
        %v2825 = vpop.f32.mrf.mxu0
        %2826 = vmatprep.mubr.bf16.mxu0 0
        %2827 = vmatmul.mubr.bf16.gmra.mxu0 %v1834
        %v2828 = vpop.f32.mrf.mxu0
        %v2829 = vadd.f32 0.0, %v2828
        %v2830 = vpop.f32.mrf.mxu0
        %v2831 = vpop.f32.mrf.mxu0
        %v2832 = vadd.f32 0.0, %v2831
        %v2833 = vpop.f32.mrf.mxu0
        %2834 = vmatprep.mubr.bf16.mxu0 0
        %2835 = vmatmul.mubr.bf16.gmra.mxu0 %v1835
        %v2836 = vpop.f32.mrf.mxu0
        %v2837 = vadd.f32 0.0, %v2836
        %v2838 = vpop.f32.mrf.mxu0
        %v2839 = vpop.f32.mrf.mxu0
        %v2840 = vadd.f32 0.0, %v2839
        %v2841 = vpop.f32.mrf.mxu0
        %2842 = vmatprep.mubr.bf16.mxu0 0
        %2843 = vmatmul.mubr.bf16.gmra.mxu0 %v1836
        %v2844 = vpop.f32.mrf.mxu0
        %v2845 = vadd.f32 0.0, %v2844
        %v2846 = vpop.f32.mrf.mxu0
        %v2847 = vpop.f32.mrf.mxu0
        %v2848 = vadd.f32 0.0, %v2847
        %v2849 = vpop.f32.mrf.mxu0
        %2850 = vmatprep.mubr.bf16.mxu0 0
        %2851 = vmatmul.mubr.bf16.gmra.mxu0 %v1837
        %v2852 = vpop.f32.mrf.mxu0
        %v2853 = vadd.f32 0.0, %v2852
        %v2854 = vpop.f32.mrf.mxu0
        %v2855 = vpop.f32.mrf.mxu0
        %v2856 = vadd.f32 0.0, %v2855
        %v2857 = vpop.f32.mrf.mxu0
        %2858 = vmatprep.mubr.bf16.mxu0 0
        %2859 = vmatmul.mubr.bf16.gmra.mxu0 %v1838
        %v2860 = vpop.f32.mrf.mxu0
        %v2861 = vadd.f32 0.0, %v2860
        %v2862 = vpop.f32.mrf.mxu0
        %v2863 = vpop.f32.mrf.mxu0
        %v2864 = vadd.f32 0.0, %v2863
        %v2865 = vpop.f32.mrf.mxu0
        %2866 = vmatprep.mubr.bf16.mxu0 0
        %2867 = vmatmul.mubr.bf16.gmra.mxu0 %v1839
        %v2868 = vpop.f32.mrf.mxu0
        %v2869 = vadd.f32 0.0, %v2868
        %v2870 = vpop.f32.mrf.mxu0
        %v2871 = vpop.f32.mrf.mxu0
        %v2872 = vadd.f32 0.0, %v2871
        %v2873 = vpop.f32.mrf.mxu0
        %2874 = vmatprep.mubr.bf16.mxu0 0
        %2875 = vmatmul.mubr.bf16.gmra.mxu0 %v1840
        %v2876 = vpop.f32.mrf.mxu0
        %v2877 = vadd.f32 0.0, %v2876
        %v2878 = vpop.f32.mrf.mxu0
        %v2879 = vpop.f32.mrf.mxu0
        %v2880 = vadd.f32 0.0, %v2879
        %v2881 = vpop.f32.mrf.mxu0
        %2882 = vmatprep.mubr.bf16.mxu0 0
        %2883 = vmatmul.mubr.bf16.gmra.mxu0 %v1841
        %v2884 = vpop.f32.mrf.mxu0
        %v2885 = vadd.f32 0.0, %v2884
        %v2886 = vpop.f32.mrf.mxu0
        %v2887 = vpop.f32.mrf.mxu0
        %v2888 = vadd.f32 0.0, %v2887
        %v2889 = vpop.f32.mrf.mxu0
        %2890 = vmatprep.mubr.bf16.mxu0 0
        %2891 = vmatmul.mubr.bf16.gmra.mxu0 %v1842
        %v2892 = vpop.f32.mrf.mxu0
        %v2893 = vadd.f32 0.0, %v2892
        %v2894 = vpop.f32.mrf.mxu0
        %v2895 = vpop.f32.mrf.mxu0
        %v2896 = vadd.f32 0.0, %v2895
        %v2897 = vpop.f32.mrf.mxu0
        %2898 = vmatprep.mubr.bf16.mxu0 0
        %2899 = vmatmul.mubr.bf16.gmra.mxu0 %v1843
        %v2900 = vpop.f32.mrf.mxu0
        %v2901 = vadd.f32 0.0, %v2900
        %v2902 = vpop.f32.mrf.mxu0
        %v2903 = vpop.f32.mrf.mxu0
        %v2904 = vadd.f32 0.0, %v2903
        %v2905 = vpop.f32.mrf.mxu0
        %2906 = vmatprep.mubr.bf16.mxu0 0
        %2907 = vmatmul.mubr.bf16.gmra.mxu0 %v1844
        %v2908 = vpop.f32.mrf.mxu0
        %v2909 = vadd.f32 0.0, %v2908
        %v2910 = vpop.f32.mrf.mxu0
        %v2911 = vpop.f32.mrf.mxu0
        %v2912 = vadd.f32 0.0, %v2911
        %v2913 = vpop.f32.mrf.mxu0
        %2914 = vmatprep.mubr.bf16.mxu0 0
        %2915 = vmatmul.mubr.bf16.gmra.mxu0 %v1845
        %v2916 = vpop.f32.mrf.mxu0
        %v2917 = vadd.f32 0.0, %v2916
        %v2918 = vpop.f32.mrf.mxu0
        %v2919 = vpop.f32.mrf.mxu0
        %v2920 = vadd.f32 0.0, %v2919
        %v2921 = vpop.f32.mrf.mxu0
        %2922 = vmatprep.mubr.bf16.mxu0 0
        %2923 = vmatmul.mubr.bf16.gmra.mxu0 %v1846
        %v2924 = vpop.f32.mrf.mxu0
        %v2925 = vadd.f32 0.0, %v2924
        %v2926 = vpop.f32.mrf.mxu0
        %v2927 = vpop.f32.mrf.mxu0
        %v2928 = vadd.f32 0.0, %v2927
        %v2929 = vpop.f32.mrf.mxu0
        %2930 = vmatprep.mubr.bf16.mxu0 0
        %2931 = vmatmul.mubr.bf16.gmra.mxu0 %v1847
        %v2932 = vpop.f32.mrf.mxu0
        %v2933 = vadd.f32 0.0, %v2932
        %v2934 = vpop.f32.mrf.mxu0
        %v2935 = vpop.f32.mrf.mxu0
        %v2936 = vadd.f32 0.0, %v2935
        %v2937 = vpop.f32.mrf.mxu0
        %2938 = vmatprep.mubr.bf16.mxu0 0
        %2939 = vmatmul.mubr.bf16.gmra.mxu0 %v1848
        %v2940 = vpop.f32.mrf.mxu0
        %v2941 = vadd.f32 0.0, %v2940
        %v2942 = vpop.f32.mrf.mxu0
        %v2943 = vpop.f32.mrf.mxu0
        %v2944 = vadd.f32 0.0, %v2943
        %v2945 = vpop.f32.mrf.mxu0
        %2946 = vmatprep.mubr.bf16.mxu0 0
        %2947 = vmatmul.mubr.bf16.gmra.mxu0 %v1849
        %v2948 = vpop.f32.mrf.mxu0
        %v2949 = vadd.f32 0.0, %v2948
        %v2950 = vpop.f32.mrf.mxu0
        %v2951 = vpop.f32.mrf.mxu0
        %v2952 = vadd.f32 0.0, %v2951
        %v2953 = vpop.f32.mrf.mxu0
        %2954 = vmatprep.mubr.bf16.mxu0 0
        %2955 = vmatmul.mubr.bf16.gmra.mxu0 %v1850
        %v2956 = vpop.f32.mrf.mxu0
        %v2957 = vadd.f32 0.0, %v2956
        %v2958 = vpop.f32.mrf.mxu0
        %v2959 = vpop.f32.mrf.mxu0
        %v2960 = vadd.f32 0.0, %v2959
        %v2961 = vpop.f32.mrf.mxu0
        %2962 = vmatprep.mubr.bf16.mxu0 0
        %2963 = vmatmul.mubr.bf16.gmra.mxu0 %v1851
        %v2964 = vpop.f32.mrf.mxu0
        %v2965 = vadd.f32 0.0, %v2964
        %v2966 = vpop.f32.mrf.mxu0
        %v2967 = vpop.f32.mrf.mxu0
        %v2968 = vadd.f32 0.0, %v2967
        %v2969 = vpop.f32.mrf.mxu0
        %2970 = vmatprep.mubr.bf16.mxu0 0
        %2971 = vmatmul.mubr.bf16.gmra.mxu0 %v1852
        %v2972 = vpop.f32.mrf.mxu0
        %v2973 = vadd.f32 0.0, %v2972
        %v2974 = vpop.f32.mrf.mxu0
        %v2975 = vpop.f32.mrf.mxu0
        %v2976 = vadd.f32 0.0, %v2975
        %v2977 = vpop.f32.mrf.mxu0
        %2978 = vmatprep.mubr.bf16.mxu0 0
        %2979 = vmatmul.mubr.bf16.gmra.mxu0 %v1853
        %v2980 = vpop.f32.mrf.mxu0
        %v2981 = vadd.f32 0.0, %v2980
        %v2982 = vpop.f32.mrf.mxu0
        %v2983 = vpop.f32.mrf.mxu0
        %v2984 = vadd.f32 0.0, %v2983
        %v2985 = vpop.f32.mrf.mxu0
        %2986 = vmatprep.mubr.bf16.mxu0 0
        %2987 = vmatmul.mubr.bf16.gmra.mxu0 %v1854
        %v2988 = vpop.f32.mrf.mxu0
        %v2989 = vadd.f32 0.0, %v2988
        %v2990 = vpop.f32.mrf.mxu0
        %v2991 = vpop.f32.mrf.mxu0
        %v2992 = vadd.f32 0.0, %v2991
        %v2993 = vpop.f32.mrf.mxu0
        %2994 = vmatprep.mubr.bf16.mxu0 0
        %2995 = vmatmul.mubr.bf16.gmra.mxu0 %v1855
        %v2996 = vpop.f32.mrf.mxu0
        %v2997 = vadd.f32 0.0, %v2996
        %v2998 = vpop.f32.mrf.mxu0
        %v2999 = vpop.f32.mrf.mxu0
        %v3000 = vadd.f32 0.0, %v2999
        %v3001 = vpop.f32.mrf.mxu0
        %3002 = vmatprep.mubr.bf16.mxu0 0
        %3003 = vmatmul.mubr.bf16.gmra.mxu0 %v1856
        %v3004 = vpop.f32.mrf.mxu0
        %v3005 = vadd.f32 0.0, %v3004
        %v3006 = vpop.f32.mrf.mxu0
        %v3007 = vpop.f32.mrf.mxu0
        %v3008 = vadd.f32 0.0, %v3007
        %v3009 = vpop.f32.mrf.mxu0
        %3010 = vmatprep.mubr.bf16.mxu0 0
        %3011 = vmatmul.mubr.bf16.gmra.mxu0 %v1857
        %v3012 = vpop.f32.mrf.mxu0
        %v3013 = vadd.f32 0.0, %v3012
        %v3014 = vpop.f32.mrf.mxu0
        %v3015 = vpop.f32.mrf.mxu0
        %v3016 = vadd.f32 0.0, %v3015
        %v3017 = vpop.f32.mrf.mxu0
        %3018 = vmatprep.mubr.bf16.mxu0 0
        %3019 = vmatmul.mubr.bf16.gmra.mxu0 %v1858
        %v3020 = vpop.f32.mrf.mxu0
        %v3021 = vadd.f32 0.0, %v3020
        %v3022 = vpop.f32.mrf.mxu0
        %v3023 = vpop.f32.mrf.mxu0
        %v3024 = vadd.f32 0.0, %v3023
        %v3025 = vpop.f32.mrf.mxu0
        %3026 = vmatprep.mubr.bf16.mxu0 0
        %3027 = vmatmul.mubr.bf16.gmra.mxu0 %v1859
        %v3028 = vpop.f32.mrf.mxu0
        %v3029 = vadd.f32 0.0, %v3028
        %v3030 = vpop.f32.mrf.mxu0
        %v3031 = vpop.f32.mrf.mxu0
        %v3032 = vadd.f32 0.0, %v3031
        %v3033 = vpop.f32.mrf.mxu0
        %3034 = vmatprep.mubr.bf16.mxu0 0
        %3035 = vmatmul.mubr.bf16.gmra.mxu0 %v1860
        %v3036 = vpop.f32.mrf.mxu0
        %v3037 = vadd.f32 0.0, %v3036
        %v3038 = vpop.f32.mrf.mxu0
        %v3039 = vpop.f32.mrf.mxu0
        %v3040 = vadd.f32 0.0, %v3039
        %v3041 = vpop.f32.mrf.mxu0
        %3042 = vmatprep.mubr.bf16.mxu0 0
        %3043 = vmatmul.mubr.bf16.gmra.mxu0 %v1861
        %v3044 = vpop.f32.mrf.mxu0
        %v3045 = vadd.f32 0.0, %v3044
        %v3046 = vpop.f32.mrf.mxu0
        %v3047 = vpop.f32.mrf.mxu0
        %v3048 = vadd.f32 0.0, %v3047
        %v3049 = vpop.f32.mrf.mxu0
        %3050 = vmatprep.mubr.bf16.mxu0 0
        %3051 = vmatmul.mubr.bf16.gmra.mxu0 %v1862
        %v3052 = vpop.f32.mrf.mxu0
        %v3053 = vadd.f32 0.0, %v3052
        %v3054 = vpop.f32.mrf.mxu0
        %v3055 = vpop.f32.mrf.mxu0
        %v3056 = vadd.f32 0.0, %v3055
        %v3057 = vpop.f32.mrf.mxu0
        %3058 = vmatprep.mubr.bf16.mxu0 0
        %3059 = vmatmul.mubr.bf16.gmra.mxu0 %v1863
        %v3060 = vpop.f32.mrf.mxu0
        %v3061 = vadd.f32 0.0, %v3060
        %v3062 = vpop.f32.mrf.mxu0
        %v3063 = vpop.f32.mrf.mxu0
        %v3064 = vadd.f32 0.0, %v3063
        %v3065 = vpop.f32.mrf.mxu0
        %3066 = vmatprep.mubr.bf16.mxu0 0
        %3067 = vmatmul.mubr.bf16.gmra.mxu0 %v1864
        %v3068 = vpop.f32.mrf.mxu0
        %v3069 = vadd.f32 0.0, %v3068
        %v3070 = vpop.f32.mrf.mxu0
        %v3071 = vpop.f32.mrf.mxu0
        %v3072 = vadd.f32 0.0, %v3071
        %v3073 = vpop.f32.mrf.mxu0
        %3074 = vmatprep.mubr.bf16.mxu0 0
        %3075 = vmatmul.mubr.bf16.gmra.mxu0 %v1865
        %v3076 = vpop.f32.mrf.mxu0
        %v3077 = vadd.f32 0.0, %v3076
        %v3078 = vpop.f32.mrf.mxu0
        %v3079 = vpop.f32.mrf.mxu0
        %v3080 = vadd.f32 0.0, %v3079
        %v3081 = vpop.f32.mrf.mxu0
        %3082 = vmatprep.mubr.bf16.mxu0 0
        %3083 = vmatmul.mubr.bf16.gmra.mxu0 %v1866
        %v3084 = vpop.f32.mrf.mxu0
        %v3085 = vadd.f32 0.0, %v3084
        %v3086 = vpop.f32.mrf.mxu0
        %v3087 = vpop.f32.mrf.mxu0
        %v3088 = vadd.f32 0.0, %v3087
        %v3089 = vpop.f32.mrf.mxu0
        %3090 = vmatprep.mubr.bf16.mxu0 0
        %3091 = vmatmul.mubr.bf16.gmra.mxu0 %v1867
        %v3092 = vpop.f32.mrf.mxu0
        %v3093 = vadd.f32 0.0, %v3092
        %v3094 = vpop.f32.mrf.mxu0
        %v3095 = vpop.f32.mrf.mxu0
        %v3096 = vadd.f32 0.0, %v3095
        %v3097 = vpop.f32.mrf.mxu0
        %3098 = vmatprep.mubr.bf16.mxu0 0
        %3099 = vmatmul.mubr.bf16.gmra.mxu0 %v1868
        %v3100 = vpop.f32.mrf.mxu0
        %v3101 = vadd.f32 0.0, %v3100
        %v3102 = vpop.f32.mrf.mxu0
        %v3103 = vpop.f32.mrf.mxu0
        %v3104 = vadd.f32 0.0, %v3103
        %v3105 = vpop.f32.mrf.mxu0
        %3106 = vmatprep.mubr.bf16.mxu0 0
        %3107 = vmatmul.mubr.bf16.gmra.mxu0 %v1869
        %v3108 = vpop.f32.mrf.mxu0
        %v3109 = vadd.f32 0.0, %v3108
        %v3110 = vpop.f32.mrf.mxu0
        %v3111 = vpop.f32.mrf.mxu0
        %v3112 = vadd.f32 0.0, %v3111
        %v3113 = vpop.f32.mrf.mxu0
        %3114 = vmatprep.mubr.bf16.mxu0 0
        %3115 = vmatmul.mubr.bf16.gmra.mxu0 %v1870
        %v3116 = vpop.f32.mrf.mxu0
        %v3117 = vadd.f32 0.0, %v3116
        %v3118 = vpop.f32.mrf.mxu0
        %v3119 = vpop.f32.mrf.mxu0
        %v3120 = vadd.f32 0.0, %v3119
        %v3121 = vpop.f32.mrf.mxu0
        %3122 = vmatprep.mubr.bf16.mxu0 0
        %3123 = vmatmul.mubr.bf16.gmra.mxu0 %v1871
        %v3124 = vpop.f32.mrf.mxu0
        %v3125 = vadd.f32 0.0, %v3124
        %v3126 = vpop.f32.mrf.mxu0
        %v3127 = vpop.f32.mrf.mxu0
        %v3128 = vadd.f32 0.0, %v3127
        %v3129 = vpop.f32.mrf.mxu0
        %3130 = vmatprep.mubr.bf16.mxu0 0
        %3131 = vmatmul.mubr.bf16.gmra.mxu0 %v1872
        %v3132 = vpop.f32.mrf.mxu0
        %v3133 = vadd.f32 0.0, %v3132
        %v3134 = vpop.f32.mrf.mxu0
        %v3135 = vpop.f32.mrf.mxu0
        %v3136 = vadd.f32 0.0, %v3135
        %v3137 = vpop.f32.mrf.mxu0
        %3138 = vmatprep.mubr.bf16.mxu0 0
        %3139 = vmatmul.mubr.bf16.gmra.mxu0 %v1873
        %v3140 = vpop.f32.mrf.mxu0
        %v3141 = vadd.f32 0.0, %v3140
        %v3142 = vpop.f32.mrf.mxu0
        %v3143 = vpop.f32.mrf.mxu0
        %v3144 = vadd.f32 0.0, %v3143
        %v3145 = vpop.f32.mrf.mxu0
        %3146 = vmatprep.mubr.bf16.mxu0 0
        %3147 = vmatmul.mubr.bf16.gmra.mxu0 %v1874
        %v3148 = vpop.f32.mrf.mxu0
        %v3149 = vadd.f32 0.0, %v3148
        %v3150 = vpop.f32.mrf.mxu0
        %v3151 = vpop.f32.mrf.mxu0
        %v3152 = vadd.f32 0.0, %v3151
        %v3153 = vpop.f32.mrf.mxu0
        %3154 = vmatprep.mubr.bf16.mxu0 0
        %3155 = vmatmul.mubr.bf16.gmra.mxu0 %v1875
        %v3156 = vpop.f32.mrf.mxu0
        %v3157 = vadd.f32 0.0, %v3156
        %v3158 = vpop.f32.mrf.mxu0
        %v3159 = vpop.f32.mrf.mxu0
        %v3160 = vadd.f32 0.0, %v3159
        %v3161 = vpop.f32.mrf.mxu0
        %3162 = vmatprep.mubr.bf16.mxu0 0
        %3163 = vmatmul.mubr.bf16.gmra.mxu0 %v1876
        %v3164 = vpop.f32.mrf.mxu0
        %v3165 = vadd.f32 0.0, %v3164
        %v3166 = vpop.f32.mrf.mxu0
        %v3167 = vpop.f32.mrf.mxu0
        %v3168 = vadd.f32 0.0, %v3167
        %v3169 = vpop.f32.mrf.mxu0
        %3170 = vmatprep.mubr.bf16.mxu0 0
        %3171 = vmatmul.mubr.bf16.gmra.mxu0 %v1877
        %v3172 = vpop.f32.mrf.mxu0
        %v3173 = vadd.f32 0.0, %v3172
        %v3174 = vpop.f32.mrf.mxu0
        %v3175 = vpop.f32.mrf.mxu0
        %v3176 = vadd.f32 0.0, %v3175
        %v3177 = vpop.f32.mrf.mxu0
        %3178 = vmatprep.mubr.bf16.mxu0 0
        %3179 = vmatmul.mubr.bf16.gmra.mxu0 %v1878
        %v3180 = vpop.f32.mrf.mxu0
        %v3181 = vadd.f32 0.0, %v3180
        %v3182 = vpop.f32.mrf.mxu0
        %v3183 = vpop.f32.mrf.mxu0
        %v3184 = vadd.f32 0.0, %v3183
        %v3185 = vpop.f32.mrf.mxu0
        %3186 = vmatprep.mubr.bf16.mxu0 0
        %3187 = vmatmul.mubr.bf16.gmra.mxu0 %v1879
        %v3188 = vpop.f32.mrf.mxu0
        %v3189 = vadd.f32 0.0, %v3188
        %v3190 = vpop.f32.mrf.mxu0
        %v3191 = vpop.f32.mrf.mxu0
        %v3192 = vadd.f32 0.0, %v3191
        %v3193 = vpop.f32.mrf.mxu0
        %3194 = vmatprep.mubr.bf16.mxu0 0
        %3195 = vmatmul.mubr.bf16.gmra.mxu0 %v1880
        %v3196 = vpop.f32.mrf.mxu0
        %v3197 = vadd.f32 0.0, %v3196
        %v3198 = vpop.f32.mrf.mxu0
        %v3199 = vpop.f32.mrf.mxu0
        %v3200 = vadd.f32 0.0, %v3199
        %v3201 = vpop.f32.mrf.mxu0
        %3202 = vmatprep.mubr.bf16.mxu0 0
        %3203 = vmatmul.mubr.bf16.gmra.mxu0 %v1881
        %v3204 = vpop.f32.mrf.mxu0
        %v3205 = vadd.f32 0.0, %v3204
        %v3206 = vpop.f32.mrf.mxu0
        %v3207 = vpop.f32.mrf.mxu0
        %v3208 = vadd.f32 0.0, %v3207
        %v3209 = vpop.f32.mrf.mxu0
        %3210 = vmatprep.mubr.bf16.mxu0 0
        %3211 = vmatmul.mubr.bf16.gmra.mxu0 %v1882
        %v3212 = vpop.f32.mrf.mxu0
        %v3213 = vadd.f32 0.0, %v3212
        %v3214 = vpop.f32.mrf.mxu0
        %v3215 = vpop.f32.mrf.mxu0
        %v3216 = vadd.f32 0.0, %v3215
        %v3217 = vpop.f32.mrf.mxu0
        %3218 = vmatprep.mubr.bf16.mxu0 0
        %3219 = vmatmul.mubr.bf16.gmra.mxu0 %v1883
        %v3220 = vpop.f32.mrf.mxu0
        %v3221 = vadd.f32 0.0, %v3220
        %v3222 = vpop.f32.mrf.mxu0
        %v3223 = vpop.f32.mrf.mxu0
        %v3224 = vadd.f32 0.0, %v3223
        %v3225 = vpop.f32.mrf.mxu0
        %3226 = vmatprep.mubr.bf16.mxu0 0
        %3227 = vmatmul.mubr.bf16.gmra.mxu0 %v1884
        %v3228 = vpop.f32.mrf.mxu0
        %v3229 = vadd.f32 0.0, %v3228
        %v3230 = vpop.f32.mrf.mxu0
        %v3231 = vpop.f32.mrf.mxu0
        %v3232 = vadd.f32 0.0, %v3231
        %v3233 = vpop.f32.mrf.mxu0
        %3234 = vmatprep.mubr.bf16.mxu0 0
        %3235 = vmatmul.mubr.bf16.gmra.mxu0 %v1885
        %v3236 = vpop.f32.mrf.mxu0
        %v3237 = vadd.f32 0.0, %v3236
        %v3238 = vpop.f32.mrf.mxu0
        %v3239 = vpop.f32.mrf.mxu0
        %v3240 = vadd.f32 0.0, %v3239
        %v3241 = vpop.f32.mrf.mxu0
        %3242 = vmatprep.mubr.bf16.mxu0 0
        %3243 = vmatmul.mubr.bf16.gmra.mxu0 %v1886
        %v3244 = vpop.f32.mrf.mxu0
        %v3245 = vadd.f32 0.0, %v3244
        %v3246 = vpop.f32.mrf.mxu0
        %v3247 = vpop.f32.mrf.mxu0
        %v3248 = vadd.f32 0.0, %v3247
        %v3249 = vpop.f32.mrf.mxu0
        %3250 = vmatprep.mubr.bf16.mxu0 0
        %3251 = vmatmul.mubr.bf16.gmra.mxu0 %v1887
        %v3252 = vpop.f32.mrf.mxu0
        %v3253 = vadd.f32 0.0, %v3252
        %v3254 = vpop.f32.mrf.mxu0
        %v3255 = vpop.f32.mrf.mxu0
        %v3256 = vadd.f32 0.0, %v3255
        %v3257 = vpop.f32.mrf.mxu0
        %3258 = vmatprep.mubr.bf16.mxu0 0
        %3259 = vmatmul.mubr.bf16.gmra.mxu0 %v1888
        %v3260 = vpop.f32.mrf.mxu0
        %v3261 = vadd.f32 0.0, %v3260
        %v3262 = vpop.f32.mrf.mxu0
        %v3263 = vpop.f32.mrf.mxu0
        %v3264 = vadd.f32 0.0, %v3263
        %v3265 = vpop.f32.mrf.mxu0
        %3266 = vdwg.mxu0
        %v3267 = vld [vmem:[%s3] sm:$0x7]
        %v3268 = vlaneseq
        %v3269 = vshrl.u32 %v3268, 7
        %v3270 = vadd.s32 %v3269, 8
        %v3271 = vadd.s32 %v3269, 16
        %v3272 = vadd.s32 %v3269, 24
        %v3273 = vrot.slane %v2084, 7
        %v3274 = vrot.slane %v2088, 7
        %v3275 = vrot.slane %v2094, 7
        %v3276 = vrot.slane %v2098, 7
        %v3277 = vrot.slane %v2104, 7
        %v3278 = vrot.slane %v2108, 7
        %v3279 = vrot.slane %v2114, 7
        %v3280 = vrot.slane %v2118, 7
        %v3281 = vrot.slane %v2124, 7
        %v3282 = vrot.slane %v2128, 7
        %v3283 = vrot.slane %v2134, 7
        %v3284 = vrot.slane %v2138, 7
        %v3285 = vrot.slane %v2144, 7
        %v3286 = vrot.slane %v2148, 7
        %v3287 = vrot.slane %v2154, 7
        %v3288 = vrot.slane %v2158, 7
        %v3289 = vrot.slane %v2164, 7
        %v3290 = vrot.slane %v2168, 7
        %v3291 = vrot.slane %v2174, 7
        %v3292 = vrot.slane %v2178, 7
        %v3293 = vrot.slane %v2184, 7
        %v3294 = vrot.slane %v2188, 7
        %v3295 = vrot.slane %v2194, 7
        %v3296 = vrot.slane %v2198, 7
        %v3297 = vrot.slane %v2204, 7
        %v3298 = vrot.slane %v2208, 7
        %v3299 = vrot.slane %v2214, 7
        %v3300 = vrot.slane %v2218, 7
        %v3301 = vrot.slane %v2224, 7
        %v3302 = vrot.slane %v2228, 7
        %v3303 = vrot.slane %v2234, 7
        %v3304 = vrot.slane %v2238, 7
        %v3305 = vrot.slane %v2244, 7
        %v3306 = vrot.slane %v2248, 7
        %v3307 = vrot.slane %v2254, 7
        %v3308 = vrot.slane %v2258, 7
        %v3309 = vrot.slane %v2264, 7
        %v3310 = vrot.slane %v2268, 7
        %v3311 = vrot.slane %v2274, 7
        %v3312 = vrot.slane %v2278, 7
        %v3313 = vrot.slane %v2284, 7
        %v3314 = vrot.slane %v2288, 7
        %v3315 = vrot.slane %v2294, 7
        %v3316 = vrot.slane %v2298, 7
        %v3317 = vrot.slane %v2304, 7
        %v3318 = vrot.slane %v2308, 7
        %v3319 = vrot.slane %v2314, 7
        %v3320 = vrot.slane %v2318, 7
        %v3321 = vrot.slane %v2324, 7
        %v3322 = vrot.slane %v2328, 7
        %v3323 = vrot.slane %v2334, 7
        %v3324 = vrot.slane %v2338, 7
        %v3325 = vrot.slane %v2344, 7
        %v3326 = vrot.slane %v2348, 7
        %v3327 = vrot.slane %v2354, 7
        %v3328 = vrot.slane %v2358, 7
        %v3329 = vrot.slane %v2364, 7
        %v3330 = vrot.slane %v2368, 7
        %v3331 = vrot.slane %v2374, 7
        %v3332 = vrot.slane %v2378, 7
        %v3333 = vrot.slane %v2384, 7
        %v3334 = vrot.slane %v2388, 7
        %v3335 = vrot.slane %v2394, 7
        %v3336 = vrot.slane %v2398, 7
        %v3337 = vrot.slane %v2404, 7
        %v3338 = vrot.slane %v2408, 7
        %v3339 = vrot.slane %v2414, 7
        %v3340 = vrot.slane %v2418, 7
        %v3341 = vrot.slane %v2424, 7
        %v3342 = vrot.slane %v2428, 7
        %v3343 = vrot.slane %v2434, 7
        %v3344 = vrot.slane %v2438, 7
        %v3345 = vrot.slane %v2444, 7
        %v3346 = vrot.slane %v2448, 7
        %v3347 = vrot.slane %v2454, 7
        %v3348 = vrot.slane %v2458, 7
        %v3349 = vrot.slane %v2464, 7
        %v3350 = vrot.slane %v2468, 7
        %v3351 = vrot.slane %v2474, 7
        %v3352 = vrot.slane %v2478, 7
        %v3353 = vrot.slane %v2484, 7
        %v3354 = vrot.slane %v2488, 7
        %v3355 = vrot.slane %v2494, 7
        %v3356 = vrot.slane %v2498, 7
        %v3357 = vrot.slane %v2504, 7
        %v3358 = vrot.slane %v2508, 7
        %v3359 = vrot.slane %v2514, 7
        %v3360 = vrot.slane %v2518, 7
        %v3361 = vrot.slane %v2524, 7
        %v3362 = vrot.slane %v2528, 7
        %v3363 = vrot.slane %v2534, 7
        %v3364 = vrot.slane %v2538, 7
        %v3365 = vrot.slane %v2544, 7
        %v3366 = vrot.slane %v2548, 7
        %v3367 = vrot.slane %v2554, 7
        %v3368 = vrot.slane %v2558, 7
        %v3369 = vrot.slane %v2564, 7
        %v3370 = vrot.slane %v2568, 7
        %v3371 = vrot.slane %v2574, 7
        %v3372 = vrot.slane %v2578, 7
        %v3373 = vrot.slane %v2584, 7
        %v3374 = vrot.slane %v2588, 7
        %v3375 = vrot.slane %v2594, 7
        %v3376 = vrot.slane %v2598, 7
        %v3377 = vrot.slane %v2604, 7
        %v3378 = vrot.slane %v2608, 7
        %v3379 = vrot.slane %v2614, 7
        %v3380 = vrot.slane %v2618, 7
        %v3381 = vrot.slane %v2624, 7
        %v3382 = vrot.slane %v2628, 7
        %v3383 = vrot.slane %v2634, 7
        %v3384 = vrot.slane %v2638, 7
        %v3385 = vrot.slane %v2644, 7
        %v3386 = vrot.slane %v2648, 7
        %v3387 = vrot.slane %v2654, 7
        %v3388 = vrot.slane %v2658, 7
        %v3389 = vrot.slane %v2664, 7
        %v3390 = vrot.slane %v2668, 7
        %v3391 = vrot.slane %v2674, 7
        %v3392 = vrot.slane %v2678, 7
        %v3393 = vrot.slane %v2684, 7
        %v3394 = vrot.slane %v2688, 7
        %v3395 = vrot.slane %v2694, 7
        %v3396 = vrot.slane %v2698, 7
        %v3397 = vrot.slane %v2704, 7
        %v3398 = vrot.slane %v2708, 7
        %v3399 = vrot.slane %v2714, 7
        %v3400 = vrot.slane %v2718, 7
        %vm3401 = vcmp.lt.s32.totalorder %v3269, 1
        %v3402 = vsel %vm3401, %v3399, %v3400
        %v3403 = vsel %vm3401, %v3398, %v3399
        %v3404 = vsel %vm3401, %v3397, %v3398
        %v3405 = vsel %vm3401, %v3396, %v3397
        %v3406 = vsel %vm3401, %v3395, %v3396
        %v3407 = vsel %vm3401, %v3394, %v3395
        %v3408 = vsel %vm3401, %v3393, %v3394
        %v3409 = vsel %vm3401, %v3392, %v3393
        %v3410 = vsel %vm3401, %v3391, %v3392
        %v3411 = vsel %vm3401, %v3390, %v3391
        %v3412 = vsel %vm3401, %v3389, %v3390
        %v3413 = vsel %vm3401, %v3388, %v3389
        %v3414 = vsel %vm3401, %v3387, %v3388
        %v3415 = vsel %vm3401, %v3386, %v3387
        %v3416 = vsel %vm3401, %v3385, %v3386
        %v3417 = vsel %vm3401, %v3384, %v3385
        %v3418 = vsel %vm3401, %v3383, %v3384
        %v3419 = vsel %vm3401, %v3382, %v3383
        %v3420 = vsel %vm3401, %v3381, %v3382
        %v3421 = vsel %vm3401, %v3380, %v3381
        %v3422 = vsel %vm3401, %v3379, %v3380
        %v3423 = vsel %vm3401, %v3378, %v3379
        %v3424 = vsel %vm3401, %v3377, %v3378
        %v3425 = vsel %vm3401, %v3376, %v3377
        %v3426 = vsel %vm3401, %v3375, %v3376
        %v3427 = vsel %vm3401, %v3374, %v3375
        %v3428 = vsel %vm3401, %v3373, %v3374
        %v3429 = vsel %vm3401, %v3372, %v3373
        %v3430 = vsel %vm3401, %v3371, %v3372
        %v3431 = vsel %vm3401, %v3370, %v3371
        %v3432 = vsel %vm3401, %v3369, %v3370
        %v3433 = vsel %vm3401, %v3368, %v3369
        %v3434 = vsel %vm3401, %v3367, %v3368
        %v3435 = vsel %vm3401, %v3366, %v3367
        %v3436 = vsel %vm3401, %v3365, %v3366
        %v3437 = vsel %vm3401, %v3364, %v3365
        %v3438 = vsel %vm3401, %v3363, %v3364
        %v3439 = vsel %vm3401, %v3362, %v3363
        %v3440 = vsel %vm3401, %v3361, %v3362
        %v3441 = vsel %vm3401, %v3360, %v3361
        %v3442 = vsel %vm3401, %v3359, %v3360
        %v3443 = vsel %vm3401, %v3358, %v3359
        %v3444 = vsel %vm3401, %v3357, %v3358
        %v3445 = vsel %vm3401, %v3356, %v3357
        %v3446 = vsel %vm3401, %v3355, %v3356
        %v3447 = vsel %vm3401, %v3354, %v3355
        %v3448 = vsel %vm3401, %v3353, %v3354
        %v3449 = vsel %vm3401, %v3352, %v3353
        %v3450 = vsel %vm3401, %v3351, %v3352
        %v3451 = vsel %vm3401, %v3350, %v3351
        %v3452 = vsel %vm3401, %v3349, %v3350
        %v3453 = vsel %vm3401, %v3348, %v3349
        %v3454 = vsel %vm3401, %v3347, %v3348
        %v3455 = vsel %vm3401, %v3346, %v3347
        %v3456 = vsel %vm3401, %v3345, %v3346
        %v3457 = vsel %vm3401, %v3344, %v3345
        %v3458 = vsel %vm3401, %v3343, %v3344
        %v3459 = vsel %vm3401, %v3342, %v3343
        %v3460 = vsel %vm3401, %v3341, %v3342
        %v3461 = vsel %vm3401, %v3340, %v3341
        %v3462 = vsel %vm3401, %v3339, %v3340
        %v3463 = vsel %vm3401, %v3338, %v3339
        %v3464 = vsel %vm3401, %v3337, %v3338
        %v3465 = vsel %vm3401, %v3336, %v3337
        %v3466 = vsel %vm3401, %v3335, %v3336
        %v3467 = vsel %vm3401, %v3334, %v3335
        %v3468 = vsel %vm3401, %v3333, %v3334
        %v3469 = vsel %vm3401, %v3332, %v3333
        %v3470 = vsel %vm3401, %v3331, %v3332
        %v3471 = vsel %vm3401, %v3330, %v3331
        %v3472 = vsel %vm3401, %v3329, %v3330
        %v3473 = vsel %vm3401, %v3328, %v3329
        %v3474 = vsel %vm3401, %v3327, %v3328
        %v3475 = vsel %vm3401, %v3326, %v3327
        %v3476 = vsel %vm3401, %v3325, %v3326
        %v3477 = vsel %vm3401, %v3324, %v3325
        %v3478 = vsel %vm3401, %v3323, %v3324
        %v3479 = vsel %vm3401, %v3322, %v3323
        %v3480 = vsel %vm3401, %v3321, %v3322
        %v3481 = vsel %vm3401, %v3320, %v3321
        %v3482 = vsel %vm3401, %v3319, %v3320
        %v3483 = vsel %vm3401, %v3318, %v3319
        %v3484 = vsel %vm3401, %v3317, %v3318
        %v3485 = vsel %vm3401, %v3316, %v3317
        %v3486 = vsel %vm3401, %v3315, %v3316
        %v3487 = vsel %vm3401, %v3314, %v3315
        %v3488 = vsel %vm3401, %v3313, %v3314
        %v3489 = vsel %vm3401, %v3312, %v3313
        %v3490 = vsel %vm3401, %v3311, %v3312
        %v3491 = vsel %vm3401, %v3310, %v3311
        %v3492 = vsel %vm3401, %v3309, %v3310
        %v3493 = vsel %vm3401, %v3308, %v3309
        %v3494 = vsel %vm3401, %v3307, %v3308
        %v3495 = vsel %vm3401, %v3306, %v3307
        %v3496 = vsel %vm3401, %v3305, %v3306
        %v3497 = vsel %vm3401, %v3304, %v3305
        %v3498 = vsel %vm3401, %v3303, %v3304
        %v3499 = vsel %vm3401, %v3302, %v3303
        %v3500 = vsel %vm3401, %v3301, %v3302
        %v3501 = vsel %vm3401, %v3300, %v3301
        %v3502 = vsel %vm3401, %v3299, %v3300
        %v3503 = vsel %vm3401, %v3298, %v3299
        %v3504 = vsel %vm3401, %v3297, %v3298
        %v3505 = vsel %vm3401, %v3296, %v3297
        %v3506 = vsel %vm3401, %v3295, %v3296
        %v3507 = vsel %vm3401, %v3294, %v3295
        %v3508 = vsel %vm3401, %v3293, %v3294
        %v3509 = vsel %vm3401, %v3292, %v3293
        %v3510 = vsel %vm3401, %v3291, %v3292
        %v3511 = vsel %vm3401, %v3290, %v3291
        %v3512 = vsel %vm3401, %v3289, %v3290
        %v3513 = vsel %vm3401, %v3288, %v3289
        %v3514 = vsel %vm3401, %v3287, %v3288
        %v3515 = vsel %vm3401, %v3286, %v3287
        %v3516 = vsel %vm3401, %v3285, %v3286
        %v3517 = vsel %vm3401, %v3284, %v3285
        %v3518 = vsel %vm3401, %v3283, %v3284
        %v3519 = vsel %vm3401, %v3282, %v3283
        %v3520 = vsel %vm3401, %v3281, %v3282
        %v3521 = vsel %vm3401, %v3280, %v3281
        %v3522 = vsel %vm3401, %v3279, %v3280
        %v3523 = vsel %vm3401, %v3278, %v3279
        %v3524 = vsel %vm3401, %v3277, %v3278
        %v3525 = vsel %vm3401, %v3276, %v3277
        %v3526 = vsel %vm3401, %v3275, %v3276
        %v3527 = vsel %vm3401, %v3274, %v3275
        %v3528 = vsel %vm3401, %v3273, %v3274
        %v3529 = vsel %vm3401, %v3400, %v3273
        %3530 = vrot.lane.b32.xlu0 %v2084, 120
        %v3531 = vpop.permute.xlu0 %3530
        %3532 = vrot.lane.b32.xlu0 %v2088, 120
        %v3533 = vpop.permute.xlu0 %3532
        %3534 = vrot.lane.b32.xlu0 %v2094, 120
        %v3535 = vpop.permute.xlu0 %3534
        %3536 = vrot.lane.b32.xlu0 %v2098, 120
        %v3537 = vpop.permute.xlu0 %3536
        %3538 = vrot.lane.b32.xlu0 %v2104, 120
        %v3539 = vpop.permute.xlu0 %3538
        %3540 = vrot.lane.b32.xlu0 %v2108, 120
        %v3541 = vpop.permute.xlu0 %3540
        %3542 = vrot.lane.b32.xlu0 %v2114, 120
        %v3543 = vpop.permute.xlu0 %3542
        %3544 = vrot.lane.b32.xlu0 %v2118, 120
        %v3545 = vpop.permute.xlu0 %3544
        %3546 = vrot.lane.b32.xlu0 %v2124, 120
        %v3547 = vpop.permute.xlu0 %3546
        %3548 = vrot.lane.b32.xlu0 %v2128, 120
        %v3549 = vpop.permute.xlu0 %3548
        %3550 = vrot.lane.b32.xlu0 %v2134, 120
        %v3551 = vpop.permute.xlu0 %3550
        %3552 = vrot.lane.b32.xlu0 %v2138, 120
        %v3553 = vpop.permute.xlu0 %3552
        %3554 = vrot.lane.b32.xlu0 %v2144, 120
        %v3555 = vpop.permute.xlu0 %3554
        %3556 = vrot.lane.b32.xlu0 %v2148, 120
        %v3557 = vpop.permute.xlu0 %3556
        %3558 = vrot.lane.b32.xlu0 %v2154, 120
        %v3559 = vpop.permute.xlu0 %3558
        %3560 = vrot.lane.b32.xlu0 %v2158, 120
        %v3561 = vpop.permute.xlu0 %3560
        %3562 = vrot.lane.b32.xlu0 %v2164, 120
        %v3563 = vpop.permute.xlu0 %3562
        %3564 = vrot.lane.b32.xlu0 %v2168, 120
        %v3565 = vpop.permute.xlu0 %3564
        %3566 = vrot.lane.b32.xlu0 %v2174, 120
        %v3567 = vpop.permute.xlu0 %3566
        %3568 = vrot.lane.b32.xlu0 %v2178, 120
        %v3569 = vpop.permute.xlu0 %3568
        %3570 = vrot.lane.b32.xlu0 %v2184, 120
        %v3571 = vpop.permute.xlu0 %3570
        %3572 = vrot.lane.b32.xlu0 %v2188, 120
        %v3573 = vpop.permute.xlu0 %3572
        %3574 = vrot.lane.b32.xlu0 %v2194, 120
        %v3575 = vpop.permute.xlu0 %3574
        %3576 = vrot.lane.b32.xlu0 %v2198, 120
        %v3577 = vpop.permute.xlu0 %3576
        %3578 = vrot.lane.b32.xlu0 %v2204, 120
        %v3579 = vpop.permute.xlu0 %3578
        %3580 = vrot.lane.b32.xlu0 %v2208, 120
        %v3581 = vpop.permute.xlu0 %3580
        %3582 = vrot.lane.b32.xlu0 %v2214, 120
        %v3583 = vpop.permute.xlu0 %3582
        %3584 = vrot.lane.b32.xlu0 %v2218, 120
        %v3585 = vpop.permute.xlu0 %3584
        %3586 = vrot.lane.b32.xlu0 %v2224, 120
        %v3587 = vpop.permute.xlu0 %3586
        %3588 = vrot.lane.b32.xlu0 %v2228, 120
        %v3589 = vpop.permute.xlu0 %3588
        %3590 = vrot.lane.b32.xlu0 %v2234, 120
        %v3591 = vpop.permute.xlu0 %3590
        %3592 = vrot.lane.b32.xlu0 %v2238, 120
        %v3593 = vpop.permute.xlu0 %3592
        %3594 = vrot.lane.b32.xlu0 %v2244, 120
        %v3595 = vpop.permute.xlu0 %3594
        %3596 = vrot.lane.b32.xlu0 %v2248, 120
        %v3597 = vpop.permute.xlu0 %3596
        %3598 = vrot.lane.b32.xlu0 %v2254, 120
        %v3599 = vpop.permute.xlu0 %3598
        %3600 = vrot.lane.b32.xlu0 %v2258, 120
        %v3601 = vpop.permute.xlu0 %3600
        %3602 = vrot.lane.b32.xlu0 %v2264, 120
        %v3603 = vpop.permute.xlu0 %3602
        %3604 = vrot.lane.b32.xlu0 %v2268, 120
        %v3605 = vpop.permute.xlu0 %3604
        %3606 = vrot.lane.b32.xlu0 %v2274, 120
        %v3607 = vpop.permute.xlu0 %3606
        %3608 = vrot.lane.b32.xlu0 %v2278, 120
        %v3609 = vpop.permute.xlu0 %3608
        %3610 = vrot.lane.b32.xlu0 %v2284, 120
        %v3611 = vpop.permute.xlu0 %3610
        %3612 = vrot.lane.b32.xlu0 %v2288, 120
        %v3613 = vpop.permute.xlu0 %3612
        %3614 = vrot.lane.b32.xlu0 %v2294, 120
        %v3615 = vpop.permute.xlu0 %3614
        %3616 = vrot.lane.b32.xlu0 %v2298, 120
        %v3617 = vpop.permute.xlu0 %3616
        %3618 = vrot.lane.b32.xlu0 %v2304, 120
        %v3619 = vpop.permute.xlu0 %3618
        %3620 = vrot.lane.b32.xlu0 %v2308, 120
        %v3621 = vpop.permute.xlu0 %3620
        %3622 = vrot.lane.b32.xlu0 %v2314, 120
        %v3623 = vpop.permute.xlu0 %3622
        %3624 = vrot.lane.b32.xlu0 %v2318, 120
        %v3625 = vpop.permute.xlu0 %3624
        %3626 = vrot.lane.b32.xlu0 %v2324, 120
        %v3627 = vpop.permute.xlu0 %3626
        %3628 = vrot.lane.b32.xlu0 %v2328, 120
        %v3629 = vpop.permute.xlu0 %3628
        %3630 = vrot.lane.b32.xlu0 %v2334, 120
        %v3631 = vpop.permute.xlu0 %3630
        %3632 = vrot.lane.b32.xlu0 %v2338, 120
        %v3633 = vpop.permute.xlu0 %3632
        %3634 = vrot.lane.b32.xlu0 %v2344, 120
        %v3635 = vpop.permute.xlu0 %3634
        %3636 = vrot.lane.b32.xlu0 %v2348, 120
        %v3637 = vpop.permute.xlu0 %3636
        %3638 = vrot.lane.b32.xlu0 %v2354, 120
        %v3639 = vpop.permute.xlu0 %3638
        %3640 = vrot.lane.b32.xlu0 %v2358, 120
        %v3641 = vpop.permute.xlu0 %3640
        %3642 = vrot.lane.b32.xlu0 %v2364, 120
        %v3643 = vpop.permute.xlu0 %3642
        %3644 = vrot.lane.b32.xlu0 %v2368, 120
        %v3645 = vpop.permute.xlu0 %3644
        %3646 = vrot.lane.b32.xlu0 %v2374, 120
        %v3647 = vpop.permute.xlu0 %3646
        %3648 = vrot.lane.b32.xlu0 %v2378, 120
        %v3649 = vpop.permute.xlu0 %3648
        %3650 = vrot.lane.b32.xlu0 %v2384, 120
        %v3651 = vpop.permute.xlu0 %3650
        %3652 = vrot.lane.b32.xlu0 %v2388, 120
        %v3653 = vpop.permute.xlu0 %3652
        %3654 = vrot.lane.b32.xlu0 %v2394, 120
        %v3655 = vpop.permute.xlu0 %3654
        %3656 = vrot.lane.b32.xlu0 %v2398, 120
        %v3657 = vpop.permute.xlu0 %3656
        %3658 = vrot.lane.b32.xlu0 %v2404, 120
        %v3659 = vpop.permute.xlu0 %3658
        %3660 = vrot.lane.b32.xlu0 %v2408, 120
        %v3661 = vpop.permute.xlu0 %3660
        %3662 = vrot.lane.b32.xlu0 %v2414, 120
        %v3663 = vpop.permute.xlu0 %3662
        %3664 = vrot.lane.b32.xlu0 %v2418, 120
        %v3665 = vpop.permute.xlu0 %3664
        %3666 = vrot.lane.b32.xlu0 %v2424, 120
        %v3667 = vpop.permute.xlu0 %3666
        %3668 = vrot.lane.b32.xlu0 %v2428, 120
        %v3669 = vpop.permute.xlu0 %3668
        %3670 = vrot.lane.b32.xlu0 %v2434, 120
        %v3671 = vpop.permute.xlu0 %3670
        %3672 = vrot.lane.b32.xlu0 %v2438, 120
        %v3673 = vpop.permute.xlu0 %3672
        %3674 = vrot.lane.b32.xlu0 %v2444, 120
        %v3675 = vpop.permute.xlu0 %3674
        %3676 = vrot.lane.b32.xlu0 %v2448, 120
        %v3677 = vpop.permute.xlu0 %3676
        %3678 = vrot.lane.b32.xlu0 %v2454, 120
        %v3679 = vpop.permute.xlu0 %3678
        %3680 = vrot.lane.b32.xlu0 %v2458, 120
        %v3681 = vpop.permute.xlu0 %3680
        %3682 = vrot.lane.b32.xlu0 %v2464, 120
        %v3683 = vpop.permute.xlu0 %3682
        %3684 = vrot.lane.b32.xlu0 %v2468, 120
        %v3685 = vpop.permute.xlu0 %3684
        %3686 = vrot.lane.b32.xlu0 %v2474, 120
        %v3687 = vpop.permute.xlu0 %3686
        %3688 = vrot.lane.b32.xlu0 %v2478, 120
        %v3689 = vpop.permute.xlu0 %3688
        %3690 = vrot.lane.b32.xlu0 %v2484, 120
        %v3691 = vpop.permute.xlu0 %3690
        %3692 = vrot.lane.b32.xlu0 %v2488, 120
        %v3693 = vpop.permute.xlu0 %3692
        %3694 = vrot.lane.b32.xlu0 %v2494, 120
        %v3695 = vpop.permute.xlu0 %3694
        %3696 = vrot.lane.b32.xlu0 %v2498, 120
        %v3697 = vpop.permute.xlu0 %3696
        %3698 = vrot.lane.b32.xlu0 %v2504, 120
        %v3699 = vpop.permute.xlu0 %3698
        %3700 = vrot.lane.b32.xlu0 %v2508, 120
        %v3701 = vpop.permute.xlu0 %3700
        %3702 = vrot.lane.b32.xlu0 %v2514, 120
        %v3703 = vpop.permute.xlu0 %3702
        %3704 = vrot.lane.b32.xlu0 %v2518, 120
        %v3705 = vpop.permute.xlu0 %3704
        %3706 = vrot.lane.b32.xlu0 %v2524, 120
        %v3707 = vpop.permute.xlu0 %3706
        %3708 = vrot.lane.b32.xlu0 %v2528, 120
        %v3709 = vpop.permute.xlu0 %3708
        %3710 = vrot.lane.b32.xlu0 %v2534, 120
        %v3711 = vpop.permute.xlu0 %3710
        %3712 = vrot.lane.b32.xlu0 %v2538, 120
        %v3713 = vpop.permute.xlu0 %3712
        %3714 = vrot.lane.b32.xlu0 %v2544, 120
        %v3715 = vpop.permute.xlu0 %3714
        %3716 = vrot.lane.b32.xlu0 %v2548, 120
        %v3717 = vpop.permute.xlu0 %3716
        %3718 = vrot.lane.b32.xlu0 %v2554, 120
        %v3719 = vpop.permute.xlu0 %3718
        %3720 = vrot.lane.b32.xlu0 %v2558, 120
        %v3721 = vpop.permute.xlu0 %3720
        %3722 = vrot.lane.b32.xlu0 %v2564, 120
        %v3723 = vpop.permute.xlu0 %3722
        %3724 = vrot.lane.b32.xlu0 %v2568, 120
        %v3725 = vpop.permute.xlu0 %3724
        %3726 = vrot.lane.b32.xlu0 %v2574, 120
        %v3727 = vpop.permute.xlu0 %3726
        %3728 = vrot.lane.b32.xlu0 %v2578, 120
        %v3729 = vpop.permute.xlu0 %3728
        %3730 = vrot.lane.b32.xlu0 %v2584, 120
        %v3731 = vpop.permute.xlu0 %3730
        %3732 = vrot.lane.b32.xlu0 %v2588, 120
        %v3733 = vpop.permute.xlu0 %3732
        %3734 = vrot.lane.b32.xlu0 %v2594, 120
        %v3735 = vpop.permute.xlu0 %3734
        %3736 = vrot.lane.b32.xlu0 %v2598, 120
        %v3737 = vpop.permute.xlu0 %3736
        %3738 = vrot.lane.b32.xlu0 %v2604, 120
        %v3739 = vpop.permute.xlu0 %3738
        %3740 = vrot.lane.b32.xlu0 %v2608, 120
        %v3741 = vpop.permute.xlu0 %3740
        %3742 = vrot.lane.b32.xlu0 %v2614, 120
        %v3743 = vpop.permute.xlu0 %3742
        %3744 = vrot.lane.b32.xlu0 %v2618, 120
        %v3745 = vpop.permute.xlu0 %3744
        %3746 = vrot.lane.b32.xlu0 %v2624, 120
        %v3747 = vpop.permute.xlu0 %3746
        %3748 = vrot.lane.b32.xlu0 %v2628, 120
        %v3749 = vpop.permute.xlu0 %3748
        %3750 = vrot.lane.b32.xlu0 %v2634, 120
        %v3751 = vpop.permute.xlu0 %3750
        %3752 = vrot.lane.b32.xlu0 %v2638, 120
        %v3753 = vpop.permute.xlu0 %3752
        %3754 = vrot.lane.b32.xlu0 %v2644, 120
        %v3755 = vpop.permute.xlu0 %3754
        %3756 = vrot.lane.b32.xlu0 %v2648, 120
        %v3757 = vpop.permute.xlu0 %3756
        %3758 = vrot.lane.b32.xlu0 %v2654, 120
        %v3759 = vpop.permute.xlu0 %3758
        %3760 = vrot.lane.b32.xlu0 %v2658, 120
        %v3761 = vpop.permute.xlu0 %3760
        %3762 = vrot.lane.b32.xlu0 %v2664, 120
        %v3763 = vpop.permute.xlu0 %3762
        %3764 = vrot.lane.b32.xlu0 %v2668, 120
        %v3765 = vpop.permute.xlu0 %3764
        %3766 = vrot.lane.b32.xlu0 %v2674, 120
        %v3767 = vpop.permute.xlu0 %3766
        %3768 = vrot.lane.b32.xlu0 %v2678, 120
        %v3769 = vpop.permute.xlu0 %3768
        %3770 = vrot.lane.b32.xlu0 %v2684, 120
        %v3771 = vpop.permute.xlu0 %3770
        %3772 = vrot.lane.b32.xlu0 %v2688, 120
        %v3773 = vpop.permute.xlu0 %3772
        %3774 = vrot.lane.b32.xlu0 %v2694, 120
        %v3775 = vpop.permute.xlu0 %3774
        %3776 = vrot.lane.b32.xlu0 %v2698, 120
        %v3777 = vpop.permute.xlu0 %3776
        %3778 = vrot.lane.b32.xlu0 %v2704, 120
        %v3779 = vpop.permute.xlu0 %3778
        %3780 = vrot.lane.b32.xlu0 %v2708, 120
        %v3781 = vpop.permute.xlu0 %3780
        %3782 = vrot.lane.b32.xlu0 %v2714, 120
        %v3783 = vpop.permute.xlu0 %3782
        %3784 = vrot.lane.b32.xlu0 %v2718, 120
        %v3785 = vpop.permute.xlu0 %3784
        %v3786 = vadd.f32 %v3529, %v3531
        %v3787 = vadd.f32 %v3528, %v3533
        %v3788 = vadd.f32 %v3527, %v3535
        %v3789 = vadd.f32 %v3526, %v3537
        %v3790 = vadd.f32 %v3525, %v3539
        %v3791 = vadd.f32 %v3524, %v3541
        %v3792 = vadd.f32 %v3523, %v3543
        %v3793 = vadd.f32 %v3522, %v3545
        %v3794 = vadd.f32 %v3521, %v3547
        %v3795 = vadd.f32 %v3520, %v3549
        %v3796 = vadd.f32 %v3519, %v3551
        %v3797 = vadd.f32 %v3518, %v3553
        %v3798 = vadd.f32 %v3517, %v3555
        %v3799 = vadd.f32 %v3516, %v3557
        %v3800 = vadd.f32 %v3515, %v3559
        %v3801 = vadd.f32 %v3514, %v3561
        %v3802 = vadd.f32 %v3513, %v3563
        %v3803 = vadd.f32 %v3512, %v3565
        %v3804 = vadd.f32 %v3511, %v3567
        %v3805 = vadd.f32 %v3510, %v3569
        %v3806 = vadd.f32 %v3509, %v3571
        %v3807 = vadd.f32 %v3508, %v3573
        %v3808 = vadd.f32 %v3507, %v3575
        %v3809 = vadd.f32 %v3506, %v3577
        %v3810 = vadd.f32 %v3505, %v3579
        %v3811 = vadd.f32 %v3504, %v3581
        %v3812 = vadd.f32 %v3503, %v3583
        %v3813 = vadd.f32 %v3502, %v3585
        %v3814 = vadd.f32 %v3501, %v3587
        %v3815 = vadd.f32 %v3500, %v3589
        %v3816 = vadd.f32 %v3499, %v3591
        %v3817 = vadd.f32 %v3498, %v3593
        %v3818 = vadd.f32 %v3497, %v3595
        %v3819 = vadd.f32 %v3496, %v3597
        %v3820 = vadd.f32 %v3495, %v3599
        %v3821 = vadd.f32 %v3494, %v3601
        %v3822 = vadd.f32 %v3493, %v3603
        %v3823 = vadd.f32 %v3492, %v3605
        %v3824 = vadd.f32 %v3491, %v3607
        %v3825 = vadd.f32 %v3490, %v3609
        %v3826 = vadd.f32 %v3489, %v3611
        %v3827 = vadd.f32 %v3488, %v3613
        %v3828 = vadd.f32 %v3487, %v3615
        %v3829 = vadd.f32 %v3486, %v3617
        %v3830 = vadd.f32 %v3485, %v3619
        %v3831 = vadd.f32 %v3484, %v3621
        %v3832 = vadd.f32 %v3483, %v3623
        %v3833 = vadd.f32 %v3482, %v3625
        %v3834 = vadd.f32 %v3481, %v3627
        %v3835 = vadd.f32 %v3480, %v3629
        %v3836 = vadd.f32 %v3479, %v3631
        %v3837 = vadd.f32 %v3478, %v3633
        %v3838 = vadd.f32 %v3477, %v3635
        %v3839 = vadd.f32 %v3476, %v3637
        %v3840 = vadd.f32 %v3475, %v3639
        %v3841 = vadd.f32 %v3474, %v3641
        %v3842 = vadd.f32 %v3473, %v3643
        %v3843 = vadd.f32 %v3472, %v3645
        %v3844 = vadd.f32 %v3471, %v3647
        %v3845 = vadd.f32 %v3470, %v3649
        %v3846 = vadd.f32 %v3469, %v3651
        %v3847 = vadd.f32 %v3468, %v3653
        %v3848 = vadd.f32 %v3467, %v3655
        %v3849 = vadd.f32 %v3466, %v3657
        %v3850 = vadd.f32 %v3465, %v3659
        %v3851 = vadd.f32 %v3464, %v3661
        %v3852 = vadd.f32 %v3463, %v3663
        %v3853 = vadd.f32 %v3462, %v3665
        %v3854 = vadd.f32 %v3461, %v3667
        %v3855 = vadd.f32 %v3460, %v3669
        %v3856 = vadd.f32 %v3459, %v3671
        %v3857 = vadd.f32 %v3458, %v3673
        %v3858 = vadd.f32 %v3457, %v3675
        %v3859 = vadd.f32 %v3456, %v3677
        %v3860 = vadd.f32 %v3455, %v3679
        %v3861 = vadd.f32 %v3454, %v3681
        %v3862 = vadd.f32 %v3453, %v3683
        %v3863 = vadd.f32 %v3452, %v3685
        %v3864 = vadd.f32 %v3451, %v3687
        %v3865 = vadd.f32 %v3450, %v3689
        %v3866 = vadd.f32 %v3449, %v3691
        %v3867 = vadd.f32 %v3448, %v3693
        %v3868 = vadd.f32 %v3447, %v3695
        %v3869 = vadd.f32 %v3446, %v3697
        %v3870 = vadd.f32 %v3445, %v3699
        %v3871 = vadd.f32 %v3444, %v3701
        %v3872 = vadd.f32 %v3443, %v3703
        %v3873 = vadd.f32 %v3442, %v3705
        %v3874 = vadd.f32 %v3441, %v3707
        %v3875 = vadd.f32 %v3440, %v3709
        %v3876 = vadd.f32 %v3439, %v3711
        %v3877 = vadd.f32 %v3438, %v3713
        %v3878 = vadd.f32 %v3437, %v3715
        %v3879 = vadd.f32 %v3436, %v3717
        %v3880 = vadd.f32 %v3435, %v3719
        %v3881 = vadd.f32 %v3434, %v3721
        %v3882 = vadd.f32 %v3433, %v3723
        %v3883 = vadd.f32 %v3432, %v3725
        %v3884 = vadd.f32 %v3431, %v3727
        %v3885 = vadd.f32 %v3430, %v3729
        %v3886 = vadd.f32 %v3429, %v3731
        %v3887 = vadd.f32 %v3428, %v3733
        %v3888 = vadd.f32 %v3427, %v3735
        %v3889 = vadd.f32 %v3426, %v3737
        %v3890 = vadd.f32 %v3425, %v3739
        %v3891 = vadd.f32 %v3424, %v3741
        %v3892 = vadd.f32 %v3423, %v3743
        %v3893 = vadd.f32 %v3422, %v3745
        %v3894 = vadd.f32 %v3421, %v3747
        %v3895 = vadd.f32 %v3420, %v3749
        %v3896 = vadd.f32 %v3419, %v3751
        %v3897 = vadd.f32 %v3418, %v3753
        %v3898 = vadd.f32 %v3417, %v3755
        %v3899 = vadd.f32 %v3416, %v3757
        %v3900 = vadd.f32 %v3415, %v3759
        %v3901 = vadd.f32 %v3414, %v3761
        %v3902 = vadd.f32 %v3413, %v3763
        %v3903 = vadd.f32 %v3412, %v3765
        %v3904 = vadd.f32 %v3411, %v3767
        %v3905 = vadd.f32 %v3410, %v3769
        %v3906 = vadd.f32 %v3409, %v3771
        %v3907 = vadd.f32 %v3408, %v3773
        %v3908 = vadd.f32 %v3407, %v3775
        %v3909 = vadd.f32 %v3406, %v3777
        %v3910 = vadd.f32 %v3405, %v3779
        %v3911 = vadd.f32 %v3404, %v3781
        %v3912 = vadd.f32 %v3403, %v3783
        %v3913 = vadd.f32 %v3402, %v3785
        %v3915 = vlaneseq
        %v3916 = vshrl.u32 %v3915, 7
        %v3917 = vsub.s32 0, %v3916
        %v3918 = vrot.slane %v3267, %v3917
        %v3920 = vadd.f32 %v3786, %v3918
        %v3921 = vadd.f32 %v3787, %v3918
        %v3922 = vadd.f32 %v3788, %v3918
        %v3923 = vadd.f32 %v3789, %v3918
        %v3924 = vadd.f32 %v3790, %v3918
        %v3925 = vadd.f32 %v3791, %v3918
        %v3926 = vadd.f32 %v3792, %v3918
        %v3927 = vadd.f32 %v3793, %v3918
        %v3928 = vadd.f32 %v3794, %v3918
        %v3929 = vadd.f32 %v3795, %v3918
        %v3930 = vadd.f32 %v3796, %v3918
        %v3931 = vadd.f32 %v3797, %v3918
        %v3932 = vadd.f32 %v3798, %v3918
        %v3933 = vadd.f32 %v3799, %v3918
        %v3934 = vadd.f32 %v3800, %v3918
        %v3935 = vadd.f32 %v3801, %v3918
        %v3936 = vadd.f32 %v3802, %v3918
        %v3937 = vadd.f32 %v3803, %v3918
        %v3938 = vadd.f32 %v3804, %v3918
        %v3939 = vadd.f32 %v3805, %v3918
        %v3940 = vadd.f32 %v3806, %v3918
        %v3941 = vadd.f32 %v3807, %v3918
        %v3942 = vadd.f32 %v3808, %v3918
        %v3943 = vadd.f32 %v3809, %v3918
        %v3944 = vadd.f32 %v3810, %v3918
        %v3945 = vadd.f32 %v3811, %v3918
        %v3946 = vadd.f32 %v3812, %v3918
        %v3947 = vadd.f32 %v3813, %v3918
        %v3948 = vadd.f32 %v3814, %v3918
        %v3949 = vadd.f32 %v3815, %v3918
        %v3950 = vadd.f32 %v3816, %v3918
        %v3951 = vadd.f32 %v3817, %v3918
        %v3952 = vadd.f32 %v3818, %v3918
        %v3953 = vadd.f32 %v3819, %v3918
        %v3954 = vadd.f32 %v3820, %v3918
        %v3955 = vadd.f32 %v3821, %v3918
        %v3956 = vadd.f32 %v3822, %v3918
        %v3957 = vadd.f32 %v3823, %v3918
        %v3958 = vadd.f32 %v3824, %v3918
        %v3959 = vadd.f32 %v3825, %v3918
        %v3960 = vadd.f32 %v3826, %v3918
        %v3961 = vadd.f32 %v3827, %v3918
        %v3962 = vadd.f32 %v3828, %v3918
        %v3963 = vadd.f32 %v3829, %v3918
        %v3964 = vadd.f32 %v3830, %v3918
        %v3965 = vadd.f32 %v3831, %v3918
        %v3966 = vadd.f32 %v3832, %v3918
        %v3967 = vadd.f32 %v3833, %v3918
        %v3968 = vadd.f32 %v3834, %v3918
        %v3969 = vadd.f32 %v3835, %v3918
        %v3970 = vadd.f32 %v3836, %v3918
        %v3971 = vadd.f32 %v3837, %v3918
        %v3972 = vadd.f32 %v3838, %v3918
        %v3973 = vadd.f32 %v3839, %v3918
        %v3974 = vadd.f32 %v3840, %v3918
        %v3975 = vadd.f32 %v3841, %v3918
        %v3976 = vadd.f32 %v3842, %v3918
        %v3977 = vadd.f32 %v3843, %v3918
        %v3978 = vadd.f32 %v3844, %v3918
        %v3979 = vadd.f32 %v3845, %v3918
        %v3980 = vadd.f32 %v3846, %v3918
        %v3981 = vadd.f32 %v3847, %v3918
        %v3982 = vadd.f32 %v3848, %v3918
        %v3983 = vadd.f32 %v3849, %v3918
        %v3984 = vadd.f32 %v3850, %v3918
        %v3985 = vadd.f32 %v3851, %v3918
        %v3986 = vadd.f32 %v3852, %v3918
        %v3987 = vadd.f32 %v3853, %v3918
        %v3988 = vadd.f32 %v3854, %v3918
        %v3989 = vadd.f32 %v3855, %v3918
        %v3990 = vadd.f32 %v3856, %v3918
        %v3991 = vadd.f32 %v3857, %v3918
        %v3992 = vadd.f32 %v3858, %v3918
        %v3993 = vadd.f32 %v3859, %v3918
        %v3994 = vadd.f32 %v3860, %v3918
        %v3995 = vadd.f32 %v3861, %v3918
        %v3996 = vadd.f32 %v3862, %v3918
        %v3997 = vadd.f32 %v3863, %v3918
        %v3998 = vadd.f32 %v3864, %v3918
        %v3999 = vadd.f32 %v3865, %v3918
        %v4000 = vadd.f32 %v3866, %v3918
        %v4001 = vadd.f32 %v3867, %v3918
        %v4002 = vadd.f32 %v3868, %v3918
        %v4003 = vadd.f32 %v3869, %v3918
        %v4004 = vadd.f32 %v3870, %v3918
        %v4005 = vadd.f32 %v3871, %v3918
        %v4006 = vadd.f32 %v3872, %v3918
        %v4007 = vadd.f32 %v3873, %v3918
        %v4008 = vadd.f32 %v3874, %v3918
        %v4009 = vadd.f32 %v3875, %v3918
        %v4010 = vadd.f32 %v3876, %v3918
        %v4011 = vadd.f32 %v3877, %v3918
        %v4012 = vadd.f32 %v3878, %v3918
        %v4013 = vadd.f32 %v3879, %v3918
        %v4014 = vadd.f32 %v3880, %v3918
        %v4015 = vadd.f32 %v3881, %v3918
        %v4016 = vadd.f32 %v3882, %v3918
        %v4017 = vadd.f32 %v3883, %v3918
        %v4018 = vadd.f32 %v3884, %v3918
        %v4019 = vadd.f32 %v3885, %v3918
        %v4020 = vadd.f32 %v3886, %v3918
        %v4021 = vadd.f32 %v3887, %v3918
        %v4022 = vadd.f32 %v3888, %v3918
        %v4023 = vadd.f32 %v3889, %v3918
        %v4024 = vadd.f32 %v3890, %v3918
        %v4025 = vadd.f32 %v3891, %v3918
        %v4026 = vadd.f32 %v3892, %v3918
        %v4027 = vadd.f32 %v3893, %v3918
        %v4028 = vadd.f32 %v3894, %v3918
        %v4029 = vadd.f32 %v3895, %v3918
        %v4030 = vadd.f32 %v3896, %v3918
        %v4031 = vadd.f32 %v3897, %v3918
        %v4032 = vadd.f32 %v3898, %v3918
        %v4033 = vadd.f32 %v3899, %v3918
        %v4034 = vadd.f32 %v3900, %v3918
        %v4035 = vadd.f32 %v3901, %v3918
        %v4036 = vadd.f32 %v3902, %v3918
        %v4037 = vadd.f32 %v3903, %v3918
        %v4038 = vadd.f32 %v3904, %v3918
        %v4039 = vadd.f32 %v3905, %v3918
        %v4040 = vadd.f32 %v3906, %v3918
        %v4041 = vadd.f32 %v3907, %v3918
        %v4042 = vadd.f32 %v3908, %v3918
        %v4043 = vadd.f32 %v3909, %v3918
        %v4044 = vadd.f32 %v3910, %v3918
        %v4045 = vadd.f32 %v3911, %v3918
        %v4046 = vadd.f32 %v3912, %v3918
        %v4047 = vadd.f32 %v3913, %v3918
        %v4048 = vmax.f32 %v3920, 0.0
        %v4049 = vmax.f32 %v3921, 0.0
        %v4050 = vmax.f32 %v3922, 0.0
        %v4051 = vmax.f32 %v3923, 0.0
        %v4052 = vmax.f32 %v3924, 0.0
        %v4053 = vmax.f32 %v3925, 0.0
        %v4054 = vmax.f32 %v3926, 0.0
        %v4055 = vmax.f32 %v3927, 0.0
        %v4056 = vmax.f32 %v3928, 0.0
        %v4057 = vmax.f32 %v3929, 0.0
        %v4058 = vmax.f32 %v3930, 0.0
        %v4059 = vmax.f32 %v3931, 0.0
        %v4060 = vmax.f32 %v3932, 0.0
        %v4061 = vmax.f32 %v3933, 0.0
        %v4062 = vmax.f32 %v3934, 0.0
        %v4063 = vmax.f32 %v3935, 0.0
        %v4064 = vmax.f32 %v3936, 0.0
        %v4065 = vmax.f32 %v3937, 0.0
        %v4066 = vmax.f32 %v3938, 0.0
        %v4067 = vmax.f32 %v3939, 0.0
        %v4068 = vmax.f32 %v3940, 0.0
        %v4069 = vmax.f32 %v3941, 0.0
        %v4070 = vmax.f32 %v3942, 0.0
        %v4071 = vmax.f32 %v3943, 0.0
        %v4072 = vmax.f32 %v3944, 0.0
        %v4073 = vmax.f32 %v3945, 0.0
        %v4074 = vmax.f32 %v3946, 0.0
        %v4075 = vmax.f32 %v3947, 0.0
        %v4076 = vmax.f32 %v3948, 0.0
        %v4077 = vmax.f32 %v3949, 0.0
        %v4078 = vmax.f32 %v3950, 0.0
        %v4079 = vmax.f32 %v3951, 0.0
        %v4080 = vmax.f32 %v3952, 0.0
        %v4081 = vmax.f32 %v3953, 0.0
        %v4082 = vmax.f32 %v3954, 0.0
        %v4083 = vmax.f32 %v3955, 0.0
        %v4084 = vmax.f32 %v3956, 0.0
        %v4085 = vmax.f32 %v3957, 0.0
        %v4086 = vmax.f32 %v3958, 0.0
        %v4087 = vmax.f32 %v3959, 0.0
        %v4088 = vmax.f32 %v3960, 0.0
        %v4089 = vmax.f32 %v3961, 0.0
        %v4090 = vmax.f32 %v3962, 0.0
        %v4091 = vmax.f32 %v3963, 0.0
        %v4092 = vmax.f32 %v3964, 0.0
        %v4093 = vmax.f32 %v3965, 0.0
        %v4094 = vmax.f32 %v3966, 0.0
        %v4095 = vmax.f32 %v3967, 0.0
        %v4096 = vmax.f32 %v3968, 0.0
        %v4097 = vmax.f32 %v3969, 0.0
        %v4098 = vmax.f32 %v3970, 0.0
        %v4099 = vmax.f32 %v3971, 0.0
        %v4100 = vmax.f32 %v3972, 0.0
        %v4101 = vmax.f32 %v3973, 0.0
        %v4102 = vmax.f32 %v3974, 0.0
        %v4103 = vmax.f32 %v3975, 0.0
        %v4104 = vmax.f32 %v3976, 0.0
        %v4105 = vmax.f32 %v3977, 0.0
        %v4106 = vmax.f32 %v3978, 0.0
        %v4107 = vmax.f32 %v3979, 0.0
        %v4108 = vmax.f32 %v3980, 0.0
        %v4109 = vmax.f32 %v3981, 0.0
        %v4110 = vmax.f32 %v3982, 0.0
        %v4111 = vmax.f32 %v3983, 0.0
        %v4112 = vmax.f32 %v3984, 0.0
        %v4113 = vmax.f32 %v3985, 0.0
        %v4114 = vmax.f32 %v3986, 0.0
        %v4115 = vmax.f32 %v3987, 0.0
        %v4116 = vmax.f32 %v3988, 0.0
        %v4117 = vmax.f32 %v3989, 0.0
        %v4118 = vmax.f32 %v3990, 0.0
        %v4119 = vmax.f32 %v3991, 0.0
        %v4120 = vmax.f32 %v3992, 0.0
        %v4121 = vmax.f32 %v3993, 0.0
        %v4122 = vmax.f32 %v3994, 0.0
        %v4123 = vmax.f32 %v3995, 0.0
        %v4124 = vmax.f32 %v3996, 0.0
        %v4125 = vmax.f32 %v3997, 0.0
        %v4126 = vmax.f32 %v3998, 0.0
        %v4127 = vmax.f32 %v3999, 0.0
        %v4128 = vmax.f32 %v4000, 0.0
        %v4129 = vmax.f32 %v4001, 0.0
        %v4130 = vmax.f32 %v4002, 0.0
        %v4131 = vmax.f32 %v4003, 0.0
        %v4132 = vmax.f32 %v4004, 0.0
        %v4133 = vmax.f32 %v4005, 0.0
        %v4134 = vmax.f32 %v4006, 0.0
        %v4135 = vmax.f32 %v4007, 0.0
        %v4136 = vmax.f32 %v4008, 0.0
        %v4137 = vmax.f32 %v4009, 0.0
        %v4138 = vmax.f32 %v4010, 0.0
        %v4139 = vmax.f32 %v4011, 0.0
        %v4140 = vmax.f32 %v4012, 0.0
        %v4141 = vmax.f32 %v4013, 0.0
        %v4142 = vmax.f32 %v4014, 0.0
        %v4143 = vmax.f32 %v4015, 0.0
        %v4144 = vmax.f32 %v4016, 0.0
        %v4145 = vmax.f32 %v4017, 0.0
        %v4146 = vmax.f32 %v4018, 0.0
        %v4147 = vmax.f32 %v4019, 0.0
        %v4148 = vmax.f32 %v4020, 0.0
        %v4149 = vmax.f32 %v4021, 0.0
        %v4150 = vmax.f32 %v4022, 0.0
        %v4151 = vmax.f32 %v4023, 0.0
        %v4152 = vmax.f32 %v4024, 0.0
        %v4153 = vmax.f32 %v4025, 0.0
        %v4154 = vmax.f32 %v4026, 0.0
        %v4155 = vmax.f32 %v4027, 0.0
        %v4156 = vmax.f32 %v4028, 0.0
        %v4157 = vmax.f32 %v4029, 0.0
        %v4158 = vmax.f32 %v4030, 0.0
        %v4159 = vmax.f32 %v4031, 0.0
        %v4160 = vmax.f32 %v4032, 0.0
        %v4161 = vmax.f32 %v4033, 0.0
        %v4162 = vmax.f32 %v4034, 0.0
        %v4163 = vmax.f32 %v4035, 0.0
        %v4164 = vmax.f32 %v4036, 0.0
        %v4165 = vmax.f32 %v4037, 0.0
        %v4166 = vmax.f32 %v4038, 0.0
        %v4167 = vmax.f32 %v4039, 0.0
        %v4168 = vmax.f32 %v4040, 0.0
        %v4169 = vmax.f32 %v4041, 0.0
        %v4170 = vmax.f32 %v4042, 0.0
        %v4171 = vmax.f32 %v4043, 0.0
        %v4172 = vmax.f32 %v4044, 0.0
        %v4173 = vmax.f32 %v4045, 0.0
        %v4174 = vmax.f32 %v4046, 0.0
        %v4175 = vmax.f32 %v4047, 0.0
        %vm4176 = vcmp.ge.s32.totalorder %v3269, 1
        %vm4177 = vcmp.ge.s32.totalorder %v3270, 1
        %vm4178 = vcmp.ge.s32.totalorder %v3271, 1
        %vm4179 = vcmp.ge.s32.totalorder %v3272, 1
        %v4180 = vsel %vm4176, 1, 0
        %v4181 = vsel %vm4177, 1, 0
        %v4182 = vsel %vm4178, 1, 0
        %v4183 = vsel %vm4179, 1, 0
        %vm4184 = vcmp.eq.s32.totalorder %v4180, 1
        %vm4185 = vcmp.eq.s32.totalorder %v4181, 1
        %vm4186 = vcmp.eq.s32.totalorder %v4182, 1
        %vm4187 = vcmp.eq.s32.totalorder %v4183, 1
        %v4188 = vsel %vm4184, %v4048, -inf
        %v4189 = vsel %vm4185, %v4049, -inf
        %v4190 = vsel %vm4186, %v4050, -inf
        %v4191 = vsel %vm4187, %v4051, -inf
        %v4192 = vsel %vm4184, %v4052, -inf
        %v4193 = vsel %vm4185, %v4053, -inf
        %v4194 = vsel %vm4186, %v4054, -inf
        %v4195 = vsel %vm4187, %v4055, -inf
        %v4196 = vsel %vm4184, %v4056, -inf
        %v4197 = vsel %vm4185, %v4057, -inf
        %v4198 = vsel %vm4186, %v4058, -inf
        %v4199 = vsel %vm4187, %v4059, -inf
        %v4200 = vsel %vm4184, %v4060, -inf
        %v4201 = vsel %vm4185, %v4061, -inf
        %v4202 = vsel %vm4186, %v4062, -inf
        %v4203 = vsel %vm4187, %v4063, -inf
        %v4204 = vsel %vm4184, %v4064, -inf
        %v4205 = vsel %vm4185, %v4065, -inf
        %v4206 = vsel %vm4186, %v4066, -inf
        %v4207 = vsel %vm4187, %v4067, -inf
        %v4208 = vsel %vm4184, %v4068, -inf
        %v4209 = vsel %vm4185, %v4069, -inf
        %v4210 = vsel %vm4186, %v4070, -inf
        %v4211 = vsel %vm4187, %v4071, -inf
        %v4212 = vsel %vm4184, %v4072, -inf
        %v4213 = vsel %vm4185, %v4073, -inf
        %v4214 = vsel %vm4186, %v4074, -inf
        %v4215 = vsel %vm4187, %v4075, -inf
        %v4216 = vsel %vm4184, %v4076, -inf
        %v4217 = vsel %vm4185, %v4077, -inf
        %v4218 = vsel %vm4186, %v4078, -inf
        %v4219 = vsel %vm4187, %v4079, -inf
        %v4220 = vsel %vm4184, %v4080, -inf
        %v4221 = vsel %vm4185, %v4081, -inf
        %v4222 = vsel %vm4186, %v4082, -inf
        %v4223 = vsel %vm4187, %v4083, -inf
        %v4224 = vsel %vm4184, %v4084, -inf
        %v4225 = vsel %vm4185, %v4085, -inf
        %v4226 = vsel %vm4186, %v4086, -inf
        %v4227 = vsel %vm4187, %v4087, -inf
        %v4228 = vsel %vm4184, %v4088, -inf
        %v4229 = vsel %vm4185, %v4089, -inf
        %v4230 = vsel %vm4186, %v4090, -inf
        %v4231 = vsel %vm4187, %v4091, -inf
        %v4232 = vsel %vm4184, %v4092, -inf
        %v4233 = vsel %vm4185, %v4093, -inf
        %v4234 = vsel %vm4186, %v4094, -inf
        %v4235 = vsel %vm4187, %v4095, -inf
        %v4236 = vsel %vm4184, %v4096, -inf
        %v4237 = vsel %vm4185, %v4097, -inf
        %v4238 = vsel %vm4186, %v4098, -inf
        %v4239 = vsel %vm4187, %v4099, -inf
        %v4240 = vsel %vm4184, %v4100, -inf
        %v4241 = vsel %vm4185, %v4101, -inf
        %v4242 = vsel %vm4186, %v4102, -inf
        %v4243 = vsel %vm4187, %v4103, -inf
        %v4244 = vsel %vm4184, %v4104, -inf
        %v4245 = vsel %vm4185, %v4105, -inf
        %v4246 = vsel %vm4186, %v4106, -inf
        %v4247 = vsel %vm4187, %v4107, -inf
        %v4248 = vsel %vm4184, %v4108, -inf
        %v4249 = vsel %vm4185, %v4109, -inf
        %v4250 = vsel %vm4186, %v4110, -inf
        %v4251 = vsel %vm4187, %v4111, -inf
        %v4252 = vsel %vm4184, %v4112, -inf
        %v4253 = vsel %vm4185, %v4113, -inf
        %v4254 = vsel %vm4186, %v4114, -inf
        %v4255 = vsel %vm4187, %v4115, -inf
        %v4256 = vsel %vm4184, %v4116, -inf
        %v4257 = vsel %vm4185, %v4117, -inf
        %v4258 = vsel %vm4186, %v4118, -inf
        %v4259 = vsel %vm4187, %v4119, -inf
        %v4260 = vsel %vm4184, %v4120, -inf
        %v4261 = vsel %vm4185, %v4121, -inf
        %v4262 = vsel %vm4186, %v4122, -inf
        %v4263 = vsel %vm4187, %v4123, -inf
        %v4264 = vsel %vm4184, %v4124, -inf
        %v4265 = vsel %vm4185, %v4125, -inf
        %v4266 = vsel %vm4186, %v4126, -inf
        %v4267 = vsel %vm4187, %v4127, -inf
        %v4268 = vsel %vm4184, %v4128, -inf
        %v4269 = vsel %vm4185, %v4129, -inf
        %v4270 = vsel %vm4186, %v4130, -inf
        %v4271 = vsel %vm4187, %v4131, -inf
        %v4272 = vsel %vm4184, %v4132, -inf
        %v4273 = vsel %vm4185, %v4133, -inf
        %v4274 = vsel %vm4186, %v4134, -inf
        %v4275 = vsel %vm4187, %v4135, -inf
        %v4276 = vsel %vm4184, %v4136, -inf
        %v4277 = vsel %vm4185, %v4137, -inf
        %v4278 = vsel %vm4186, %v4138, -inf
        %v4279 = vsel %vm4187, %v4139, -inf
        %v4280 = vsel %vm4184, %v4140, -inf
        %v4281 = vsel %vm4185, %v4141, -inf
        %v4282 = vsel %vm4186, %v4142, -inf
        %v4283 = vsel %vm4187, %v4143, -inf
        %v4284 = vsel %vm4184, %v4144, -inf
        %v4285 = vsel %vm4185, %v4145, -inf
        %v4286 = vsel %vm4186, %v4146, -inf
        %v4287 = vsel %vm4187, %v4147, -inf
        %v4288 = vsel %vm4184, %v4148, -inf
        %v4289 = vsel %vm4185, %v4149, -inf
        %v4290 = vsel %vm4186, %v4150, -inf
        %v4291 = vsel %vm4187, %v4151, -inf
        %v4292 = vsel %vm4184, %v4152, -inf
        %v4293 = vsel %vm4185, %v4153, -inf
        %v4294 = vsel %vm4186, %v4154, -inf
        %v4295 = vsel %vm4187, %v4155, -inf
        %v4296 = vsel %vm4184, %v4156, -inf
        %v4297 = vsel %vm4185, %v4157, -inf
        %v4298 = vsel %vm4186, %v4158, -inf
        %v4299 = vsel %vm4187, %v4159, -inf
        %v4300 = vsel %vm4184, %v4160, -inf
        %v4301 = vsel %vm4185, %v4161, -inf
        %v4302 = vsel %vm4186, %v4162, -inf
        %v4303 = vsel %vm4187, %v4163, -inf
        %v4304 = vsel %vm4184, %v4164, -inf
        %v4305 = vsel %vm4185, %v4165, -inf
        %v4306 = vsel %vm4186, %v4166, -inf
        %v4307 = vsel %vm4187, %v4167, -inf
        %v4308 = vsel %vm4184, %v4168, -inf
        %v4309 = vsel %vm4185, %v4169, -inf
        %v4310 = vsel %vm4186, %v4170, -inf
        %v4311 = vsel %vm4187, %v4171, -inf
        %v4312 = vsel %vm4184, %v4172, -inf
        %v4313 = vsel %vm4185, %v4173, -inf
        %v4314 = vsel %vm4186, %v4174, -inf
        %v4315 = vsel %vm4187, %v4175, -inf
        %v4316 = vmax.f32 %v4188, %v4189
        %v4317 = vmax.f32 %v4316, %v4190
        %v4318 = vmax.f32 %v4317, %v4191
        %v4319 = vrot.slane %v4318, 4
        %v4320 = vmax.f32 %v4318, %v4319
        %v4321 = vrot.slane %v4320, 2
        %v4322 = vmax.f32 %v4320, %v4321
        %v4323 = vrot.slane %v4322, 1
        %v4324 = vmax.f32 %v4322, %v4323
        %v4325 = vmax.f32 %v4192, %v4193
        %v4326 = vmax.f32 %v4325, %v4194
        %v4327 = vmax.f32 %v4326, %v4195
        %v4328 = vrot.slane %v4327, 4
        %v4329 = vmax.f32 %v4327, %v4328
        %v4330 = vrot.slane %v4329, 2
        %v4331 = vmax.f32 %v4329, %v4330
        %v4332 = vrot.slane %v4331, 1
        %v4333 = vmax.f32 %v4331, %v4332
        %v4334 = vmax.f32 %v4196, %v4197
        %v4335 = vmax.f32 %v4334, %v4198
        %v4336 = vmax.f32 %v4335, %v4199
        %v4337 = vrot.slane %v4336, 4
        %v4338 = vmax.f32 %v4336, %v4337
        %v4339 = vrot.slane %v4338, 2
        %v4340 = vmax.f32 %v4338, %v4339
        %v4341 = vrot.slane %v4340, 1
        %v4342 = vmax.f32 %v4340, %v4341
        %v4343 = vmax.f32 %v4200, %v4201
        %v4344 = vmax.f32 %v4343, %v4202
        %v4345 = vmax.f32 %v4344, %v4203
        %v4346 = vrot.slane %v4345, 4
        %v4347 = vmax.f32 %v4345, %v4346
        %v4348 = vrot.slane %v4347, 2
        %v4349 = vmax.f32 %v4347, %v4348
        %v4350 = vrot.slane %v4349, 1
        %v4351 = vmax.f32 %v4349, %v4350
        %v4352 = vmax.f32 %v4204, %v4205
        %v4353 = vmax.f32 %v4352, %v4206
        %v4354 = vmax.f32 %v4353, %v4207
        %v4355 = vrot.slane %v4354, 4
        %v4356 = vmax.f32 %v4354, %v4355
        %v4357 = vrot.slane %v4356, 2
        %v4358 = vmax.f32 %v4356, %v4357
        %v4359 = vrot.slane %v4358, 1
        %v4360 = vmax.f32 %v4358, %v4359
        %v4361 = vmax.f32 %v4208, %v4209
        %v4362 = vmax.f32 %v4361, %v4210
        %v4363 = vmax.f32 %v4362, %v4211
        %v4364 = vrot.slane %v4363, 4
        %v4365 = vmax.f32 %v4363, %v4364
        %v4366 = vrot.slane %v4365, 2
        %v4367 = vmax.f32 %v4365, %v4366
        %v4368 = vrot.slane %v4367, 1
        %v4369 = vmax.f32 %v4367, %v4368
        %v4370 = vmax.f32 %v4212, %v4213
        %v4371 = vmax.f32 %v4370, %v4214
        %v4372 = vmax.f32 %v4371, %v4215
        %v4373 = vrot.slane %v4372, 4
        %v4374 = vmax.f32 %v4372, %v4373
        %v4375 = vrot.slane %v4374, 2
        %v4376 = vmax.f32 %v4374, %v4375
        %v4377 = vrot.slane %v4376, 1
        %v4378 = vmax.f32 %v4376, %v4377
        %v4379 = vmax.f32 %v4216, %v4217
        %v4380 = vmax.f32 %v4379, %v4218
        %v4381 = vmax.f32 %v4380, %v4219
        %v4382 = vrot.slane %v4381, 4
        %v4383 = vmax.f32 %v4381, %v4382
        %v4384 = vrot.slane %v4383, 2
        %v4385 = vmax.f32 %v4383, %v4384
        %v4386 = vrot.slane %v4385, 1
        %v4387 = vmax.f32 %v4385, %v4386
        %v4388 = vmax.f32 %v4220, %v4221
        %v4389 = vmax.f32 %v4388, %v4222
        %v4390 = vmax.f32 %v4389, %v4223
        %v4391 = vrot.slane %v4390, 4
        %v4392 = vmax.f32 %v4390, %v4391
        %v4393 = vrot.slane %v4392, 2
        %v4394 = vmax.f32 %v4392, %v4393
        %v4395 = vrot.slane %v4394, 1
        %v4396 = vmax.f32 %v4394, %v4395
        %v4397 = vmax.f32 %v4224, %v4225
        %v4398 = vmax.f32 %v4397, %v4226
        %v4399 = vmax.f32 %v4398, %v4227
        %v4400 = vrot.slane %v4399, 4
        %v4401 = vmax.f32 %v4399, %v4400
        %v4402 = vrot.slane %v4401, 2
        %v4403 = vmax.f32 %v4401, %v4402
        %v4404 = vrot.slane %v4403, 1
        %v4405 = vmax.f32 %v4403, %v4404
        %v4406 = vmax.f32 %v4228, %v4229
        %v4407 = vmax.f32 %v4406, %v4230
        %v4408 = vmax.f32 %v4407, %v4231
        %v4409 = vrot.slane %v4408, 4
        %v4410 = vmax.f32 %v4408, %v4409
        %v4411 = vrot.slane %v4410, 2
        %v4412 = vmax.f32 %v4410, %v4411
        %v4413 = vrot.slane %v4412, 1
        %v4414 = vmax.f32 %v4412, %v4413
        %v4415 = vmax.f32 %v4232, %v4233
        %v4416 = vmax.f32 %v4415, %v4234
        %v4417 = vmax.f32 %v4416, %v4235
        %v4418 = vrot.slane %v4417, 4
        %v4419 = vmax.f32 %v4417, %v4418
        %v4420 = vrot.slane %v4419, 2
        %v4421 = vmax.f32 %v4419, %v4420
        %v4422 = vrot.slane %v4421, 1
        %v4423 = vmax.f32 %v4421, %v4422
        %v4424 = vmax.f32 %v4236, %v4237
        %v4425 = vmax.f32 %v4424, %v4238
        %v4426 = vmax.f32 %v4425, %v4239
        %v4427 = vrot.slane %v4426, 4
        %v4428 = vmax.f32 %v4426, %v4427
        %v4429 = vrot.slane %v4428, 2
        %v4430 = vmax.f32 %v4428, %v4429
        %v4431 = vrot.slane %v4430, 1
        %v4432 = vmax.f32 %v4430, %v4431
        %v4433 = vmax.f32 %v4240, %v4241
        %v4434 = vmax.f32 %v4433, %v4242
        %v4435 = vmax.f32 %v4434, %v4243
        %v4436 = vrot.slane %v4435, 4
        %v4437 = vmax.f32 %v4435, %v4436
        %v4438 = vrot.slane %v4437, 2
        %v4439 = vmax.f32 %v4437, %v4438
        %v4440 = vrot.slane %v4439, 1
        %v4441 = vmax.f32 %v4439, %v4440
        %v4442 = vmax.f32 %v4244, %v4245
        %v4443 = vmax.f32 %v4442, %v4246
        %v4444 = vmax.f32 %v4443, %v4247
        %v4445 = vrot.slane %v4444, 4
        %v4446 = vmax.f32 %v4444, %v4445
        %v4447 = vrot.slane %v4446, 2
        %v4448 = vmax.f32 %v4446, %v4447
        %v4449 = vrot.slane %v4448, 1
        %v4450 = vmax.f32 %v4448, %v4449
        %v4451 = vmax.f32 %v4248, %v4249
        %v4452 = vmax.f32 %v4451, %v4250
        %v4453 = vmax.f32 %v4452, %v4251
        %v4454 = vrot.slane %v4453, 4
        %v4455 = vmax.f32 %v4453, %v4454
        %v4456 = vrot.slane %v4455, 2
        %v4457 = vmax.f32 %v4455, %v4456
        %v4458 = vrot.slane %v4457, 1
        %v4459 = vmax.f32 %v4457, %v4458
        %v4460 = vmax.f32 %v4252, %v4253
        %v4461 = vmax.f32 %v4460, %v4254
        %v4462 = vmax.f32 %v4461, %v4255
        %v4463 = vrot.slane %v4462, 4
        %v4464 = vmax.f32 %v4462, %v4463
        %v4465 = vrot.slane %v4464, 2
        %v4466 = vmax.f32 %v4464, %v4465
        %v4467 = vrot.slane %v4466, 1
        %v4468 = vmax.f32 %v4466, %v4467
        %v4469 = vmax.f32 %v4256, %v4257
        %v4470 = vmax.f32 %v4469, %v4258
        %v4471 = vmax.f32 %v4470, %v4259
        %v4472 = vrot.slane %v4471, 4
        %v4473 = vmax.f32 %v4471, %v4472
        %v4474 = vrot.slane %v4473, 2
        %v4475 = vmax.f32 %v4473, %v4474
        %v4476 = vrot.slane %v4475, 1
        %v4477 = vmax.f32 %v4475, %v4476
        %v4478 = vmax.f32 %v4260, %v4261
        %v4479 = vmax.f32 %v4478, %v4262
        %v4480 = vmax.f32 %v4479, %v4263
        %v4481 = vrot.slane %v4480, 4
        %v4482 = vmax.f32 %v4480, %v4481
        %v4483 = vrot.slane %v4482, 2
        %v4484 = vmax.f32 %v4482, %v4483
        %v4485 = vrot.slane %v4484, 1
        %v4486 = vmax.f32 %v4484, %v4485
        %v4487 = vmax.f32 %v4264, %v4265
        %v4488 = vmax.f32 %v4487, %v4266
        %v4489 = vmax.f32 %v4488, %v4267
        %v4490 = vrot.slane %v4489, 4
        %v4491 = vmax.f32 %v4489, %v4490
        %v4492 = vrot.slane %v4491, 2
        %v4493 = vmax.f32 %v4491, %v4492
        %v4494 = vrot.slane %v4493, 1
        %v4495 = vmax.f32 %v4493, %v4494
        %v4496 = vmax.f32 %v4268, %v4269
        %v4497 = vmax.f32 %v4496, %v4270
        %v4498 = vmax.f32 %v4497, %v4271
        %v4499 = vrot.slane %v4498, 4
        %v4500 = vmax.f32 %v4498, %v4499
        %v4501 = vrot.slane %v4500, 2
        %v4502 = vmax.f32 %v4500, %v4501
        %v4503 = vrot.slane %v4502, 1
        %v4504 = vmax.f32 %v4502, %v4503
        %v4505 = vmax.f32 %v4272, %v4273
        %v4506 = vmax.f32 %v4505, %v4274
        %v4507 = vmax.f32 %v4506, %v4275
        %v4508 = vrot.slane %v4507, 4
        %v4509 = vmax.f32 %v4507, %v4508
        %v4510 = vrot.slane %v4509, 2
        %v4511 = vmax.f32 %v4509, %v4510
        %v4512 = vrot.slane %v4511, 1
        %v4513 = vmax.f32 %v4511, %v4512
        %v4514 = vmax.f32 %v4276, %v4277
        %v4515 = vmax.f32 %v4514, %v4278
        %v4516 = vmax.f32 %v4515, %v4279
        %v4517 = vrot.slane %v4516, 4
        %v4518 = vmax.f32 %v4516, %v4517
        %v4519 = vrot.slane %v4518, 2
        %v4520 = vmax.f32 %v4518, %v4519
        %v4521 = vrot.slane %v4520, 1
        %v4522 = vmax.f32 %v4520, %v4521
        %v4523 = vmax.f32 %v4280, %v4281
        %v4524 = vmax.f32 %v4523, %v4282
        %v4525 = vmax.f32 %v4524, %v4283
        %v4526 = vrot.slane %v4525, 4
        %v4527 = vmax.f32 %v4525, %v4526
        %v4528 = vrot.slane %v4527, 2
        %v4529 = vmax.f32 %v4527, %v4528
        %v4530 = vrot.slane %v4529, 1
        %v4531 = vmax.f32 %v4529, %v4530
        %v4532 = vmax.f32 %v4284, %v4285
        %v4533 = vmax.f32 %v4532, %v4286
        %v4534 = vmax.f32 %v4533, %v4287
        %v4535 = vrot.slane %v4534, 4
        %v4536 = vmax.f32 %v4534, %v4535
        %v4537 = vrot.slane %v4536, 2
        %v4538 = vmax.f32 %v4536, %v4537
        %v4539 = vrot.slane %v4538, 1
        %v4540 = vmax.f32 %v4538, %v4539
        %v4541 = vmax.f32 %v4288, %v4289
        %v4542 = vmax.f32 %v4541, %v4290
        %v4543 = vmax.f32 %v4542, %v4291
        %v4544 = vrot.slane %v4543, 4
        %v4545 = vmax.f32 %v4543, %v4544
        %v4546 = vrot.slane %v4545, 2
        %v4547 = vmax.f32 %v4545, %v4546
        %v4548 = vrot.slane %v4547, 1
        %v4549 = vmax.f32 %v4547, %v4548
        %v4550 = vmax.f32 %v4292, %v4293
        %v4551 = vmax.f32 %v4550, %v4294
        %v4552 = vmax.f32 %v4551, %v4295
        %v4553 = vrot.slane %v4552, 4
        %v4554 = vmax.f32 %v4552, %v4553
        %v4555 = vrot.slane %v4554, 2
        %v4556 = vmax.f32 %v4554, %v4555
        %v4557 = vrot.slane %v4556, 1
        %v4558 = vmax.f32 %v4556, %v4557
        %v4559 = vmax.f32 %v4296, %v4297
        %v4560 = vmax.f32 %v4559, %v4298
        %v4561 = vmax.f32 %v4560, %v4299
        %v4562 = vrot.slane %v4561, 4
        %v4563 = vmax.f32 %v4561, %v4562
        %v4564 = vrot.slane %v4563, 2
        %v4565 = vmax.f32 %v4563, %v4564
        %v4566 = vrot.slane %v4565, 1
        %v4567 = vmax.f32 %v4565, %v4566
        %v4568 = vmax.f32 %v4300, %v4301
        %v4569 = vmax.f32 %v4568, %v4302
        %v4570 = vmax.f32 %v4569, %v4303
        %v4571 = vrot.slane %v4570, 4
        %v4572 = vmax.f32 %v4570, %v4571
        %v4573 = vrot.slane %v4572, 2
        %v4574 = vmax.f32 %v4572, %v4573
        %v4575 = vrot.slane %v4574, 1
        %v4576 = vmax.f32 %v4574, %v4575
        %v4577 = vmax.f32 %v4304, %v4305
        %v4578 = vmax.f32 %v4577, %v4306
        %v4579 = vmax.f32 %v4578, %v4307
        %v4580 = vrot.slane %v4579, 4
        %v4581 = vmax.f32 %v4579, %v4580
        %v4582 = vrot.slane %v4581, 2
        %v4583 = vmax.f32 %v4581, %v4582
        %v4584 = vrot.slane %v4583, 1
        %v4585 = vmax.f32 %v4583, %v4584
        %v4586 = vmax.f32 %v4308, %v4309
        %v4587 = vmax.f32 %v4586, %v4310
        %v4588 = vmax.f32 %v4587, %v4311
        %v4589 = vrot.slane %v4588, 4
        %v4590 = vmax.f32 %v4588, %v4589
        %v4591 = vrot.slane %v4590, 2
        %v4592 = vmax.f32 %v4590, %v4591
        %v4593 = vrot.slane %v4592, 1
        %v4594 = vmax.f32 %v4592, %v4593
        %v4595 = vmax.f32 %v4312, %v4313
        %v4596 = vmax.f32 %v4595, %v4314
        %v4597 = vmax.f32 %v4596, %v4315
        %v4598 = vrot.slane %v4597, 4
        %v4599 = vmax.f32 %v4597, %v4598
        %v4600 = vrot.slane %v4599, 2
        %v4601 = vmax.f32 %v4599, %v4600
        %v4602 = vrot.slane %v4601, 1
        %v4603 = vmax.f32 %v4601, %v4602
        %v4604 = vrot.slane %v2086, 6
        %v4605 = vrot.slane %v2090, 6
        %v4606 = vrot.slane %v2096, 6
        %v4607 = vrot.slane %v2100, 6
        %v4608 = vrot.slane %v2106, 6
        %v4609 = vrot.slane %v2110, 6
        %v4610 = vrot.slane %v2116, 6
        %v4611 = vrot.slane %v2120, 6
        %v4612 = vrot.slane %v2126, 6
        %v4613 = vrot.slane %v2130, 6
        %v4614 = vrot.slane %v2136, 6
        %v4615 = vrot.slane %v2140, 6
        %v4616 = vrot.slane %v2146, 6
        %v4617 = vrot.slane %v2150, 6
        %v4618 = vrot.slane %v2156, 6
        %v4619 = vrot.slane %v2160, 6
        %v4620 = vrot.slane %v2166, 6
        %v4621 = vrot.slane %v2170, 6
        %v4622 = vrot.slane %v2176, 6
        %v4623 = vrot.slane %v2180, 6
        %v4624 = vrot.slane %v2186, 6
        %v4625 = vrot.slane %v2190, 6
        %v4626 = vrot.slane %v2196, 6
        %v4627 = vrot.slane %v2200, 6
        %v4628 = vrot.slane %v2206, 6
        %v4629 = vrot.slane %v2210, 6
        %v4630 = vrot.slane %v2216, 6
        %v4631 = vrot.slane %v2220, 6
        %v4632 = vrot.slane %v2226, 6
        %v4633 = vrot.slane %v2230, 6
        %v4634 = vrot.slane %v2236, 6
        %v4635 = vrot.slane %v2240, 6
        %v4636 = vrot.slane %v2246, 6
        %v4637 = vrot.slane %v2250, 6
        %v4638 = vrot.slane %v2256, 6
        %v4639 = vrot.slane %v2260, 6
        %v4640 = vrot.slane %v2266, 6
        %v4641 = vrot.slane %v2270, 6
        %v4642 = vrot.slane %v2276, 6
        %v4643 = vrot.slane %v2280, 6
        %v4644 = vrot.slane %v2286, 6
        %v4645 = vrot.slane %v2290, 6
        %v4646 = vrot.slane %v2296, 6
        %v4647 = vrot.slane %v2300, 6
        %v4648 = vrot.slane %v2306, 6
        %v4649 = vrot.slane %v2310, 6
        %v4650 = vrot.slane %v2316, 6
        %v4651 = vrot.slane %v2320, 6
        %v4652 = vrot.slane %v2326, 6
        %v4653 = vrot.slane %v2330, 6
        %v4654 = vrot.slane %v2336, 6
        %v4655 = vrot.slane %v2340, 6
        %v4656 = vrot.slane %v2346, 6
        %v4657 = vrot.slane %v2350, 6
        %v4658 = vrot.slane %v2356, 6
        %v4659 = vrot.slane %v2360, 6
        %v4660 = vrot.slane %v2366, 6
        %v4661 = vrot.slane %v2370, 6
        %v4662 = vrot.slane %v2376, 6
        %v4663 = vrot.slane %v2380, 6
        %v4664 = vrot.slane %v2386, 6
        %v4665 = vrot.slane %v2390, 6
        %v4666 = vrot.slane %v2396, 6
        %v4667 = vrot.slane %v2400, 6
        %v4668 = vrot.slane %v2406, 6
        %v4669 = vrot.slane %v2410, 6
        %v4670 = vrot.slane %v2416, 6
        %v4671 = vrot.slane %v2420, 6
        %v4672 = vrot.slane %v2426, 6
        %v4673 = vrot.slane %v2430, 6
        %v4674 = vrot.slane %v2436, 6
        %v4675 = vrot.slane %v2440, 6
        %v4676 = vrot.slane %v2446, 6
        %v4677 = vrot.slane %v2450, 6
        %v4678 = vrot.slane %v2456, 6
        %v4679 = vrot.slane %v2460, 6
        %v4680 = vrot.slane %v2466, 6
        %v4681 = vrot.slane %v2470, 6
        %v4682 = vrot.slane %v2476, 6
        %v4683 = vrot.slane %v2480, 6
        %v4684 = vrot.slane %v2486, 6
        %v4685 = vrot.slane %v2490, 6
        %v4686 = vrot.slane %v2496, 6
        %v4687 = vrot.slane %v2500, 6
        %v4688 = vrot.slane %v2506, 6
        %v4689 = vrot.slane %v2510, 6
        %v4690 = vrot.slane %v2516, 6
        %v4691 = vrot.slane %v2520, 6
        %v4692 = vrot.slane %v2526, 6
        %v4693 = vrot.slane %v2530, 6
        %v4694 = vrot.slane %v2536, 6
        %v4695 = vrot.slane %v2540, 6
        %v4696 = vrot.slane %v2546, 6
        %v4697 = vrot.slane %v2550, 6
        %v4698 = vrot.slane %v2556, 6
        %v4699 = vrot.slane %v2560, 6
        %v4700 = vrot.slane %v2566, 6
        %v4701 = vrot.slane %v2570, 6
        %v4702 = vrot.slane %v2576, 6
        %v4703 = vrot.slane %v2580, 6
        %v4704 = vrot.slane %v2586, 6
        %v4705 = vrot.slane %v2590, 6
        %v4706 = vrot.slane %v2596, 6
        %v4707 = vrot.slane %v2600, 6
        %v4708 = vrot.slane %v2606, 6
        %v4709 = vrot.slane %v2610, 6
        %v4710 = vrot.slane %v2616, 6
        %v4711 = vrot.slane %v2620, 6
        %v4712 = vrot.slane %v2626, 6
        %v4713 = vrot.slane %v2630, 6
        %v4714 = vrot.slane %v2636, 6
        %v4715 = vrot.slane %v2640, 6
        %v4716 = vrot.slane %v2646, 6
        %v4717 = vrot.slane %v2650, 6
        %v4718 = vrot.slane %v2656, 6
        %v4719 = vrot.slane %v2660, 6
        %v4720 = vrot.slane %v2666, 6
        %v4721 = vrot.slane %v2670, 6
        %v4722 = vrot.slane %v2676, 6
        %v4723 = vrot.slane %v2680, 6
        %v4724 = vrot.slane %v2686, 6
        %v4725 = vrot.slane %v2690, 6
        %v4726 = vrot.slane %v2696, 6
        %v4727 = vrot.slane %v2700, 6
        %v4728 = vrot.slane %v2706, 6
        %v4729 = vrot.slane %v2710, 6
        %v4730 = vrot.slane %v2716, 6
        %v4731 = vrot.slane %v2720, 6
        %vm4732 = vcmp.lt.s32.totalorder %v3269, 2
        %v4733 = vsel %vm4732, %v4730, %v4731
        %v4734 = vsel %vm4732, %v4729, %v4730
        %v4735 = vsel %vm4732, %v4728, %v4729
        %v4736 = vsel %vm4732, %v4727, %v4728
        %v4737 = vsel %vm4732, %v4726, %v4727
        %v4738 = vsel %vm4732, %v4725, %v4726
        %v4739 = vsel %vm4732, %v4724, %v4725
        %v4740 = vsel %vm4732, %v4723, %v4724
        %v4741 = vsel %vm4732, %v4722, %v4723
        %v4742 = vsel %vm4732, %v4721, %v4722
        %v4743 = vsel %vm4732, %v4720, %v4721
        %v4744 = vsel %vm4732, %v4719, %v4720
        %v4745 = vsel %vm4732, %v4718, %v4719
        %v4746 = vsel %vm4732, %v4717, %v4718
        %v4747 = vsel %vm4732, %v4716, %v4717
        %v4748 = vsel %vm4732, %v4715, %v4716
        %v4749 = vsel %vm4732, %v4714, %v4715
        %v4750 = vsel %vm4732, %v4713, %v4714
        %v4751 = vsel %vm4732, %v4712, %v4713
        %v4752 = vsel %vm4732, %v4711, %v4712
        %v4753 = vsel %vm4732, %v4710, %v4711
        %v4754 = vsel %vm4732, %v4709, %v4710
        %v4755 = vsel %vm4732, %v4708, %v4709
        %v4756 = vsel %vm4732, %v4707, %v4708
        %v4757 = vsel %vm4732, %v4706, %v4707
        %v4758 = vsel %vm4732, %v4705, %v4706
        %v4759 = vsel %vm4732, %v4704, %v4705
        %v4760 = vsel %vm4732, %v4703, %v4704
        %v4761 = vsel %vm4732, %v4702, %v4703
        %v4762 = vsel %vm4732, %v4701, %v4702
        %v4763 = vsel %vm4732, %v4700, %v4701
        %v4764 = vsel %vm4732, %v4699, %v4700
        %v4765 = vsel %vm4732, %v4698, %v4699
        %v4766 = vsel %vm4732, %v4697, %v4698
        %v4767 = vsel %vm4732, %v4696, %v4697
        %v4768 = vsel %vm4732, %v4695, %v4696
        %v4769 = vsel %vm4732, %v4694, %v4695
        %v4770 = vsel %vm4732, %v4693, %v4694
        %v4771 = vsel %vm4732, %v4692, %v4693
        %v4772 = vsel %vm4732, %v4691, %v4692
        %v4773 = vsel %vm4732, %v4690, %v4691
        %v4774 = vsel %vm4732, %v4689, %v4690
        %v4775 = vsel %vm4732, %v4688, %v4689
        %v4776 = vsel %vm4732, %v4687, %v4688
        %v4777 = vsel %vm4732, %v4686, %v4687
        %v4778 = vsel %vm4732, %v4685, %v4686
        %v4779 = vsel %vm4732, %v4684, %v4685
        %v4780 = vsel %vm4732, %v4683, %v4684
        %v4781 = vsel %vm4732, %v4682, %v4683
        %v4782 = vsel %vm4732, %v4681, %v4682
        %v4783 = vsel %vm4732, %v4680, %v4681
        %v4784 = vsel %vm4732, %v4679, %v4680
        %v4785 = vsel %vm4732, %v4678, %v4679
        %v4786 = vsel %vm4732, %v4677, %v4678
        %v4787 = vsel %vm4732, %v4676, %v4677
        %v4788 = vsel %vm4732, %v4675, %v4676
        %v4789 = vsel %vm4732, %v4674, %v4675
        %v4790 = vsel %vm4732, %v4673, %v4674
        %v4791 = vsel %vm4732, %v4672, %v4673
        %v4792 = vsel %vm4732, %v4671, %v4672
        %v4793 = vsel %vm4732, %v4670, %v4671
        %v4794 = vsel %vm4732, %v4669, %v4670
        %v4795 = vsel %vm4732, %v4668, %v4669
        %v4796 = vsel %vm4732, %v4667, %v4668
        %v4797 = vsel %vm4732, %v4666, %v4667
        %v4798 = vsel %vm4732, %v4665, %v4666
        %v4799 = vsel %vm4732, %v4664, %v4665
        %v4800 = vsel %vm4732, %v4663, %v4664
        %v4801 = vsel %vm4732, %v4662, %v4663
        %v4802 = vsel %vm4732, %v4661, %v4662
        %v4803 = vsel %vm4732, %v4660, %v4661
        %v4804 = vsel %vm4732, %v4659, %v4660
        %v4805 = vsel %vm4732, %v4658, %v4659
        %v4806 = vsel %vm4732, %v4657, %v4658
        %v4807 = vsel %vm4732, %v4656, %v4657
        %v4808 = vsel %vm4732, %v4655, %v4656
        %v4809 = vsel %vm4732, %v4654, %v4655
        %v4810 = vsel %vm4732, %v4653, %v4654
        %v4811 = vsel %vm4732, %v4652, %v4653
        %v4812 = vsel %vm4732, %v4651, %v4652
        %v4813 = vsel %vm4732, %v4650, %v4651
        %v4814 = vsel %vm4732, %v4649, %v4650
        %v4815 = vsel %vm4732, %v4648, %v4649
        %v4816 = vsel %vm4732, %v4647, %v4648
        %v4817 = vsel %vm4732, %v4646, %v4647
        %v4818 = vsel %vm4732, %v4645, %v4646
        %v4819 = vsel %vm4732, %v4644, %v4645
        %v4820 = vsel %vm4732, %v4643, %v4644
        %v4821 = vsel %vm4732, %v4642, %v4643
        %v4822 = vsel %vm4732, %v4641, %v4642
        %v4823 = vsel %vm4732, %v4640, %v4641
        %v4824 = vsel %vm4732, %v4639, %v4640
        %v4825 = vsel %vm4732, %v4638, %v4639
        %v4826 = vsel %vm4732, %v4637, %v4638
        %v4827 = vsel %vm4732, %v4636, %v4637
        %v4828 = vsel %vm4732, %v4635, %v4636
        %v4829 = vsel %vm4732, %v4634, %v4635
        %v4830 = vsel %vm4732, %v4633, %v4634
        %v4831 = vsel %vm4732, %v4632, %v4633
        %v4832 = vsel %vm4732, %v4631, %v4632
        %v4833 = vsel %vm4732, %v4630, %v4631
        %v4834 = vsel %vm4732, %v4629, %v4630
        %v4835 = vsel %vm4732, %v4628, %v4629
        %v4836 = vsel %vm4732, %v4627, %v4628
        %v4837 = vsel %vm4732, %v4626, %v4627
        %v4838 = vsel %vm4732, %v4625, %v4626
        %v4839 = vsel %vm4732, %v4624, %v4625
        %v4840 = vsel %vm4732, %v4623, %v4624
        %v4841 = vsel %vm4732, %v4622, %v4623
        %v4842 = vsel %vm4732, %v4621, %v4622
        %v4843 = vsel %vm4732, %v4620, %v4621
        %v4844 = vsel %vm4732, %v4619, %v4620
        %v4845 = vsel %vm4732, %v4618, %v4619
        %v4846 = vsel %vm4732, %v4617, %v4618
        %v4847 = vsel %vm4732, %v4616, %v4617
        %v4848 = vsel %vm4732, %v4615, %v4616
        %v4849 = vsel %vm4732, %v4614, %v4615
        %v4850 = vsel %vm4732, %v4613, %v4614
        %v4851 = vsel %vm4732, %v4612, %v4613
        %v4852 = vsel %vm4732, %v4611, %v4612
        %v4853 = vsel %vm4732, %v4610, %v4611
        %v4854 = vsel %vm4732, %v4609, %v4610
        %v4855 = vsel %vm4732, %v4608, %v4609
        %v4856 = vsel %vm4732, %v4607, %v4608
        %v4857 = vsel %vm4732, %v4606, %v4607
        %v4858 = vsel %vm4732, %v4605, %v4606
        %v4859 = vsel %vm4732, %v4604, %v4605
        %v4860 = vsel %vm4732, %v4731, %v4604
        %v4861 = vrot.slane %v2086, 7
        %v4862 = vrot.slane %v2090, 7
        %v4863 = vrot.slane %v2096, 7
        %v4864 = vrot.slane %v2100, 7
        %v4865 = vrot.slane %v2106, 7
        %v4866 = vrot.slane %v2110, 7
        %v4867 = vrot.slane %v2116, 7
        %v4868 = vrot.slane %v2120, 7
        %v4869 = vrot.slane %v2126, 7
        %v4870 = vrot.slane %v2130, 7
        %v4871 = vrot.slane %v2136, 7
        %v4872 = vrot.slane %v2140, 7
        %v4873 = vrot.slane %v2146, 7
        %v4874 = vrot.slane %v2150, 7
        %v4875 = vrot.slane %v2156, 7
        %v4876 = vrot.slane %v2160, 7
        %v4877 = vrot.slane %v2166, 7
        %v4878 = vrot.slane %v2170, 7
        %v4879 = vrot.slane %v2176, 7
        %v4880 = vrot.slane %v2180, 7
        %v4881 = vrot.slane %v2186, 7
        %v4882 = vrot.slane %v2190, 7
        %v4883 = vrot.slane %v2196, 7
        %v4884 = vrot.slane %v2200, 7
        %v4885 = vrot.slane %v2206, 7
        %v4886 = vrot.slane %v2210, 7
        %v4887 = vrot.slane %v2216, 7
        %v4888 = vrot.slane %v2220, 7
        %v4889 = vrot.slane %v2226, 7
        %v4890 = vrot.slane %v2230, 7
        %v4891 = vrot.slane %v2236, 7
        %v4892 = vrot.slane %v2240, 7
        %v4893 = vrot.slane %v2246, 7
        %v4894 = vrot.slane %v2250, 7
        %v4895 = vrot.slane %v2256, 7
        %v4896 = vrot.slane %v2260, 7
        %v4897 = vrot.slane %v2266, 7
        %v4898 = vrot.slane %v2270, 7
        %v4899 = vrot.slane %v2276, 7
        %v4900 = vrot.slane %v2280, 7
        %v4901 = vrot.slane %v2286, 7
        %v4902 = vrot.slane %v2290, 7
        %v4903 = vrot.slane %v2296, 7
        %v4904 = vrot.slane %v2300, 7
        %v4905 = vrot.slane %v2306, 7
        %v4906 = vrot.slane %v2310, 7
        %v4907 = vrot.slane %v2316, 7
        %v4908 = vrot.slane %v2320, 7
        %v4909 = vrot.slane %v2326, 7
        %v4910 = vrot.slane %v2330, 7
        %v4911 = vrot.slane %v2336, 7
        %v4912 = vrot.slane %v2340, 7
        %v4913 = vrot.slane %v2346, 7
        %v4914 = vrot.slane %v2350, 7
        %v4915 = vrot.slane %v2356, 7
        %v4916 = vrot.slane %v2360, 7
        %v4917 = vrot.slane %v2366, 7
        %v4918 = vrot.slane %v2370, 7
        %v4919 = vrot.slane %v2376, 7
        %v4920 = vrot.slane %v2380, 7
        %v4921 = vrot.slane %v2386, 7
        %v4922 = vrot.slane %v2390, 7
        %v4923 = vrot.slane %v2396, 7
        %v4924 = vrot.slane %v2400, 7
        %v4925 = vrot.slane %v2406, 7
        %v4926 = vrot.slane %v2410, 7
        %v4927 = vrot.slane %v2416, 7
        %v4928 = vrot.slane %v2420, 7
        %v4929 = vrot.slane %v2426, 7
        %v4930 = vrot.slane %v2430, 7
        %v4931 = vrot.slane %v2436, 7
        %v4932 = vrot.slane %v2440, 7
        %v4933 = vrot.slane %v2446, 7
        %v4934 = vrot.slane %v2450, 7
        %v4935 = vrot.slane %v2456, 7
        %v4936 = vrot.slane %v2460, 7
        %v4937 = vrot.slane %v2466, 7
        %v4938 = vrot.slane %v2470, 7
        %v4939 = vrot.slane %v2476, 7
        %v4940 = vrot.slane %v2480, 7
        %v4941 = vrot.slane %v2486, 7
        %v4942 = vrot.slane %v2490, 7
        %v4943 = vrot.slane %v2496, 7
        %v4944 = vrot.slane %v2500, 7
        %v4945 = vrot.slane %v2506, 7
        %v4946 = vrot.slane %v2510, 7
        %v4947 = vrot.slane %v2516, 7
        %v4948 = vrot.slane %v2520, 7
        %v4949 = vrot.slane %v2526, 7
        %v4950 = vrot.slane %v2530, 7
        %v4951 = vrot.slane %v2536, 7
        %v4952 = vrot.slane %v2540, 7
        %v4953 = vrot.slane %v2546, 7
        %v4954 = vrot.slane %v2550, 7
        %v4955 = vrot.slane %v2556, 7
        %v4956 = vrot.slane %v2560, 7
        %v4957 = vrot.slane %v2566, 7
        %v4958 = vrot.slane %v2570, 7
        %v4959 = vrot.slane %v2576, 7
        %v4960 = vrot.slane %v2580, 7
        %v4961 = vrot.slane %v2586, 7
        %v4962 = vrot.slane %v2590, 7
        %v4963 = vrot.slane %v2596, 7
        %v4964 = vrot.slane %v2600, 7
        %v4965 = vrot.slane %v2606, 7
        %v4966 = vrot.slane %v2610, 7
        %v4967 = vrot.slane %v2616, 7
        %v4968 = vrot.slane %v2620, 7
        %v4969 = vrot.slane %v2626, 7
        %v4970 = vrot.slane %v2630, 7
        %v4971 = vrot.slane %v2636, 7
        %v4972 = vrot.slane %v2640, 7
        %v4973 = vrot.slane %v2646, 7
        %v4974 = vrot.slane %v2650, 7
        %v4975 = vrot.slane %v2656, 7
        %v4976 = vrot.slane %v2660, 7
        %v4977 = vrot.slane %v2666, 7
        %v4978 = vrot.slane %v2670, 7
        %v4979 = vrot.slane %v2676, 7
        %v4980 = vrot.slane %v2680, 7
        %v4981 = vrot.slane %v2686, 7
        %v4982 = vrot.slane %v2690, 7
        %v4983 = vrot.slane %v2696, 7
        %v4984 = vrot.slane %v2700, 7
        %v4985 = vrot.slane %v2706, 7
        %v4986 = vrot.slane %v2710, 7
        %v4987 = vrot.slane %v2716, 7
        %v4988 = vrot.slane %v2720, 7
        %v4989 = vsel %vm3401, %v4987, %v4988
        %v4990 = vsel %vm3401, %v4986, %v4987
        %v4991 = vsel %vm3401, %v4985, %v4986
        %v4992 = vsel %vm3401, %v4984, %v4985
        %v4993 = vsel %vm3401, %v4983, %v4984
        %v4994 = vsel %vm3401, %v4982, %v4983
        %v4995 = vsel %vm3401, %v4981, %v4982
        %v4996 = vsel %vm3401, %v4980, %v4981
        %v4997 = vsel %vm3401, %v4979, %v4980
        %v4998 = vsel %vm3401, %v4978, %v4979
        %v4999 = vsel %vm3401, %v4977, %v4978
        %v5000 = vsel %vm3401, %v4976, %v4977
        %v5001 = vsel %vm3401, %v4975, %v4976
        %v5002 = vsel %vm3401, %v4974, %v4975
        %v5003 = vsel %vm3401, %v4973, %v4974
        %v5004 = vsel %vm3401, %v4972, %v4973
        %v5005 = vsel %vm3401, %v4971, %v4972
        %v5006 = vsel %vm3401, %v4970, %v4971
        %v5007 = vsel %vm3401, %v4969, %v4970
        %v5008 = vsel %vm3401, %v4968, %v4969
        %v5009 = vsel %vm3401, %v4967, %v4968
        %v5010 = vsel %vm3401, %v4966, %v4967
        %v5011 = vsel %vm3401, %v4965, %v4966
        %v5012 = vsel %vm3401, %v4964, %v4965
        %v5013 = vsel %vm3401, %v4963, %v4964
        %v5014 = vsel %vm3401, %v4962, %v4963
        %v5015 = vsel %vm3401, %v4961, %v4962
        %v5016 = vsel %vm3401, %v4960, %v4961
        %v5017 = vsel %vm3401, %v4959, %v4960
        %v5018 = vsel %vm3401, %v4958, %v4959
        %v5019 = vsel %vm3401, %v4957, %v4958
        %v5020 = vsel %vm3401, %v4956, %v4957
        %v5021 = vsel %vm3401, %v4955, %v4956
        %v5022 = vsel %vm3401, %v4954, %v4955
        %v5023 = vsel %vm3401, %v4953, %v4954
        %v5024 = vsel %vm3401, %v4952, %v4953
        %v5025 = vsel %vm3401, %v4951, %v4952
        %v5026 = vsel %vm3401, %v4950, %v4951
        %v5027 = vsel %vm3401, %v4949, %v4950
        %v5028 = vsel %vm3401, %v4948, %v4949
        %v5029 = vsel %vm3401, %v4947, %v4948
        %v5030 = vsel %vm3401, %v4946, %v4947
        %v5031 = vsel %vm3401, %v4945, %v4946
        %v5032 = vsel %vm3401, %v4944, %v4945
        %v5033 = vsel %vm3401, %v4943, %v4944
        %v5034 = vsel %vm3401, %v4942, %v4943
        %v5035 = vsel %vm3401, %v4941, %v4942
        %v5036 = vsel %vm3401, %v4940, %v4941
        %v5037 = vsel %vm3401, %v4939, %v4940
        %v5038 = vsel %vm3401, %v4938, %v4939
        %v5039 = vsel %vm3401, %v4937, %v4938
        %v5040 = vsel %vm3401, %v4936, %v4937
        %v5041 = vsel %vm3401, %v4935, %v4936
        %v5042 = vsel %vm3401, %v4934, %v4935
        %v5043 = vsel %vm3401, %v4933, %v4934
        %v5044 = vsel %vm3401, %v4932, %v4933
        %v5045 = vsel %vm3401, %v4931, %v4932
        %v5046 = vsel %vm3401, %v4930, %v4931
        %v5047 = vsel %vm3401, %v4929, %v4930
        %v5048 = vsel %vm3401, %v4928, %v4929
        %v5049 = vsel %vm3401, %v4927, %v4928
        %v5050 = vsel %vm3401, %v4926, %v4927
        %v5051 = vsel %vm3401, %v4925, %v4926
        %v5052 = vsel %vm3401, %v4924, %v4925
        %v5053 = vsel %vm3401, %v4923, %v4924
        %v5054 = vsel %vm3401, %v4922, %v4923
        %v5055 = vsel %vm3401, %v4921, %v4922
        %v5056 = vsel %vm3401, %v4920, %v4921
        %v5057 = vsel %vm3401, %v4919, %v4920
        %v5058 = vsel %vm3401, %v4918, %v4919
        %v5059 = vsel %vm3401, %v4917, %v4918
        %v5060 = vsel %vm3401, %v4916, %v4917
        %v5061 = vsel %vm3401, %v4915, %v4916
        %v5062 = vsel %vm3401, %v4914, %v4915
        %v5063 = vsel %vm3401, %v4913, %v4914
        %v5064 = vsel %vm3401, %v4912, %v4913
        %v5065 = vsel %vm3401, %v4911, %v4912
        %v5066 = vsel %vm3401, %v4910, %v4911
        %v5067 = vsel %vm3401, %v4909, %v4910
        %v5068 = vsel %vm3401, %v4908, %v4909
        %v5069 = vsel %vm3401, %v4907, %v4908
        %v5070 = vsel %vm3401, %v4906, %v4907
        %v5071 = vsel %vm3401, %v4905, %v4906
        %v5072 = vsel %vm3401, %v4904, %v4905
        %v5073 = vsel %vm3401, %v4903, %v4904
        %v5074 = vsel %vm3401, %v4902, %v4903
        %v5075 = vsel %vm3401, %v4901, %v4902
        %v5076 = vsel %vm3401, %v4900, %v4901
        %v5077 = vsel %vm3401, %v4899, %v4900
        %v5078 = vsel %vm3401, %v4898, %v4899
        %v5079 = vsel %vm3401, %v4897, %v4898
        %v5080 = vsel %vm3401, %v4896, %v4897
        %v5081 = vsel %vm3401, %v4895, %v4896
        %v5082 = vsel %vm3401, %v4894, %v4895
        %v5083 = vsel %vm3401, %v4893, %v4894
        %v5084 = vsel %vm3401, %v4892, %v4893
        %v5085 = vsel %vm3401, %v4891, %v4892
        %v5086 = vsel %vm3401, %v4890, %v4891
        %v5087 = vsel %vm3401, %v4889, %v4890
        %v5088 = vsel %vm3401, %v4888, %v4889
        %v5089 = vsel %vm3401, %v4887, %v4888
        %v5090 = vsel %vm3401, %v4886, %v4887
        %v5091 = vsel %vm3401, %v4885, %v4886
        %v5092 = vsel %vm3401, %v4884, %v4885
        %v5093 = vsel %vm3401, %v4883, %v4884
        %v5094 = vsel %vm3401, %v4882, %v4883
        %v5095 = vsel %vm3401, %v4881, %v4882
        %v5096 = vsel %vm3401, %v4880, %v4881
        %v5097 = vsel %vm3401, %v4879, %v4880
        %v5098 = vsel %vm3401, %v4878, %v4879
        %v5099 = vsel %vm3401, %v4877, %v4878
        %v5100 = vsel %vm3401, %v4876, %v4877
        %v5101 = vsel %vm3401, %v4875, %v4876
        %v5102 = vsel %vm3401, %v4874, %v4875
        %v5103 = vsel %vm3401, %v4873, %v4874
        %v5104 = vsel %vm3401, %v4872, %v4873
        %v5105 = vsel %vm3401, %v4871, %v4872
        %v5106 = vsel %vm3401, %v4870, %v4871
        %v5107 = vsel %vm3401, %v4869, %v4870
        %v5108 = vsel %vm3401, %v4868, %v4869
        %v5109 = vsel %vm3401, %v4867, %v4868
        %v5110 = vsel %vm3401, %v4866, %v4867
        %v5111 = vsel %vm3401, %v4865, %v4866
        %v5112 = vsel %vm3401, %v4864, %v4865
        %v5113 = vsel %vm3401, %v4863, %v4864
        %v5114 = vsel %vm3401, %v4862, %v4863
        %v5115 = vsel %vm3401, %v4861, %v4862
        %v5116 = vsel %vm3401, %v4988, %v4861
        %5117 = vrot.lane.b32.xlu0 %v5116, 120
        %v5118 = vpop.permute.xlu0 %5117
        %5119 = vrot.lane.b32.xlu0 %v5115, 120
        %v5120 = vpop.permute.xlu0 %5119
        %5121 = vrot.lane.b32.xlu0 %v5114, 120
        %v5122 = vpop.permute.xlu0 %5121
        %5123 = vrot.lane.b32.xlu0 %v5113, 120
        %v5124 = vpop.permute.xlu0 %5123
        %5125 = vrot.lane.b32.xlu0 %v5112, 120
        %v5126 = vpop.permute.xlu0 %5125
        %5127 = vrot.lane.b32.xlu0 %v5111, 120
        %v5128 = vpop.permute.xlu0 %5127
        %5129 = vrot.lane.b32.xlu0 %v5110, 120
        %v5130 = vpop.permute.xlu0 %5129
        %5131 = vrot.lane.b32.xlu0 %v5109, 120
        %v5132 = vpop.permute.xlu0 %5131
        %5133 = vrot.lane.b32.xlu0 %v5108, 120
        %v5134 = vpop.permute.xlu0 %5133
        %5135 = vrot.lane.b32.xlu0 %v5107, 120
        %v5136 = vpop.permute.xlu0 %5135
        %5137 = vrot.lane.b32.xlu0 %v5106, 120
        %v5138 = vpop.permute.xlu0 %5137
        %5139 = vrot.lane.b32.xlu0 %v5105, 120
        %v5140 = vpop.permute.xlu0 %5139
        %5141 = vrot.lane.b32.xlu0 %v5104, 120
        %v5142 = vpop.permute.xlu0 %5141
        %5143 = vrot.lane.b32.xlu0 %v5103, 120
        %v5144 = vpop.permute.xlu0 %5143
        %5145 = vrot.lane.b32.xlu0 %v5102, 120
        %v5146 = vpop.permute.xlu0 %5145
        %5147 = vrot.lane.b32.xlu0 %v5101, 120
        %v5148 = vpop.permute.xlu0 %5147
        %5149 = vrot.lane.b32.xlu0 %v5100, 120
        %v5150 = vpop.permute.xlu0 %5149
        %5151 = vrot.lane.b32.xlu0 %v5099, 120
        %v5152 = vpop.permute.xlu0 %5151
        %5153 = vrot.lane.b32.xlu0 %v5098, 120
        %v5154 = vpop.permute.xlu0 %5153
        %5155 = vrot.lane.b32.xlu0 %v5097, 120
        %v5156 = vpop.permute.xlu0 %5155
        %5157 = vrot.lane.b32.xlu0 %v5096, 120
        %v5158 = vpop.permute.xlu0 %5157
        %5159 = vrot.lane.b32.xlu0 %v5095, 120
        %v5160 = vpop.permute.xlu0 %5159
        %5161 = vrot.lane.b32.xlu0 %v5094, 120
        %v5162 = vpop.permute.xlu0 %5161
        %5163 = vrot.lane.b32.xlu0 %v5093, 120
        %v5164 = vpop.permute.xlu0 %5163
        %5165 = vrot.lane.b32.xlu0 %v5092, 120
        %v5166 = vpop.permute.xlu0 %5165
        %5167 = vrot.lane.b32.xlu0 %v5091, 120
        %v5168 = vpop.permute.xlu0 %5167
        %5169 = vrot.lane.b32.xlu0 %v5090, 120
        %v5170 = vpop.permute.xlu0 %5169
        %5171 = vrot.lane.b32.xlu0 %v5089, 120
        %v5172 = vpop.permute.xlu0 %5171
        %5173 = vrot.lane.b32.xlu0 %v5088, 120
        %v5174 = vpop.permute.xlu0 %5173
        %5175 = vrot.lane.b32.xlu0 %v5087, 120
        %v5176 = vpop.permute.xlu0 %5175
        %5177 = vrot.lane.b32.xlu0 %v5086, 120
        %v5178 = vpop.permute.xlu0 %5177
        %5179 = vrot.lane.b32.xlu0 %v5085, 120
        %v5180 = vpop.permute.xlu0 %5179
        %5181 = vrot.lane.b32.xlu0 %v5084, 120
        %v5182 = vpop.permute.xlu0 %5181
        %5183 = vrot.lane.b32.xlu0 %v5083, 120
        %v5184 = vpop.permute.xlu0 %5183
        %5185 = vrot.lane.b32.xlu0 %v5082, 120
        %v5186 = vpop.permute.xlu0 %5185
        %5187 = vrot.lane.b32.xlu0 %v5081, 120
        %v5188 = vpop.permute.xlu0 %5187
        %5189 = vrot.lane.b32.xlu0 %v5080, 120
        %v5190 = vpop.permute.xlu0 %5189
        %5191 = vrot.lane.b32.xlu0 %v5079, 120
        %v5192 = vpop.permute.xlu0 %5191
        %5193 = vrot.lane.b32.xlu0 %v5078, 120
        %v5194 = vpop.permute.xlu0 %5193
        %5195 = vrot.lane.b32.xlu0 %v5077, 120
        %v5196 = vpop.permute.xlu0 %5195
        %5197 = vrot.lane.b32.xlu0 %v5076, 120
        %v5198 = vpop.permute.xlu0 %5197
        %5199 = vrot.lane.b32.xlu0 %v5075, 120
        %v5200 = vpop.permute.xlu0 %5199
        %5201 = vrot.lane.b32.xlu0 %v5074, 120
        %v5202 = vpop.permute.xlu0 %5201
        %5203 = vrot.lane.b32.xlu0 %v5073, 120
        %v5204 = vpop.permute.xlu0 %5203
        %5205 = vrot.lane.b32.xlu0 %v5072, 120
        %v5206 = vpop.permute.xlu0 %5205
        %5207 = vrot.lane.b32.xlu0 %v5071, 120
        %v5208 = vpop.permute.xlu0 %5207
        %5209 = vrot.lane.b32.xlu0 %v5070, 120
        %v5210 = vpop.permute.xlu0 %5209
        %5211 = vrot.lane.b32.xlu0 %v5069, 120
        %v5212 = vpop.permute.xlu0 %5211
        %5213 = vrot.lane.b32.xlu0 %v5068, 120
        %v5214 = vpop.permute.xlu0 %5213
        %5215 = vrot.lane.b32.xlu0 %v5067, 120
        %v5216 = vpop.permute.xlu0 %5215
        %5217 = vrot.lane.b32.xlu0 %v5066, 120
        %v5218 = vpop.permute.xlu0 %5217
        %5219 = vrot.lane.b32.xlu0 %v5065, 120
        %v5220 = vpop.permute.xlu0 %5219
        %5221 = vrot.lane.b32.xlu0 %v5064, 120
        %v5222 = vpop.permute.xlu0 %5221
        %5223 = vrot.lane.b32.xlu0 %v5063, 120
        %v5224 = vpop.permute.xlu0 %5223
        %5225 = vrot.lane.b32.xlu0 %v5062, 120
        %v5226 = vpop.permute.xlu0 %5225
        %5227 = vrot.lane.b32.xlu0 %v5061, 120
        %v5228 = vpop.permute.xlu0 %5227
        %5229 = vrot.lane.b32.xlu0 %v5060, 120
        %v5230 = vpop.permute.xlu0 %5229
        %5231 = vrot.lane.b32.xlu0 %v5059, 120
        %v5232 = vpop.permute.xlu0 %5231
        %5233 = vrot.lane.b32.xlu0 %v5058, 120
        %v5234 = vpop.permute.xlu0 %5233
        %5235 = vrot.lane.b32.xlu0 %v5057, 120
        %v5236 = vpop.permute.xlu0 %5235
        %5237 = vrot.lane.b32.xlu0 %v5056, 120
        %v5238 = vpop.permute.xlu0 %5237
        %5239 = vrot.lane.b32.xlu0 %v5055, 120
        %v5240 = vpop.permute.xlu0 %5239
        %5241 = vrot.lane.b32.xlu0 %v5054, 120
        %v5242 = vpop.permute.xlu0 %5241
        %5243 = vrot.lane.b32.xlu0 %v5053, 120
        %v5244 = vpop.permute.xlu0 %5243
        %5245 = vrot.lane.b32.xlu0 %v5052, 120
        %v5246 = vpop.permute.xlu0 %5245
        %5247 = vrot.lane.b32.xlu0 %v5051, 120
        %v5248 = vpop.permute.xlu0 %5247
        %5249 = vrot.lane.b32.xlu0 %v5050, 120
        %v5250 = vpop.permute.xlu0 %5249
        %5251 = vrot.lane.b32.xlu0 %v5049, 120
        %v5252 = vpop.permute.xlu0 %5251
        %5253 = vrot.lane.b32.xlu0 %v5048, 120
        %v5254 = vpop.permute.xlu0 %5253
        %5255 = vrot.lane.b32.xlu0 %v5047, 120
        %v5256 = vpop.permute.xlu0 %5255
        %5257 = vrot.lane.b32.xlu0 %v5046, 120
        %v5258 = vpop.permute.xlu0 %5257
        %5259 = vrot.lane.b32.xlu0 %v5045, 120
        %v5260 = vpop.permute.xlu0 %5259
        %5261 = vrot.lane.b32.xlu0 %v5044, 120
        %v5262 = vpop.permute.xlu0 %5261
        %5263 = vrot.lane.b32.xlu0 %v5043, 120
        %v5264 = vpop.permute.xlu0 %5263
        %5265 = vrot.lane.b32.xlu0 %v5042, 120
        %v5266 = vpop.permute.xlu0 %5265
        %5267 = vrot.lane.b32.xlu0 %v5041, 120
        %v5268 = vpop.permute.xlu0 %5267
        %5269 = vrot.lane.b32.xlu0 %v5040, 120
        %v5270 = vpop.permute.xlu0 %5269
        %5271 = vrot.lane.b32.xlu0 %v5039, 120
        %v5272 = vpop.permute.xlu0 %5271
        %5273 = vrot.lane.b32.xlu0 %v5038, 120
        %v5274 = vpop.permute.xlu0 %5273
        %5275 = vrot.lane.b32.xlu0 %v5037, 120
        %v5276 = vpop.permute.xlu0 %5275
        %5277 = vrot.lane.b32.xlu0 %v5036, 120
        %v5278 = vpop.permute.xlu0 %5277
        %5279 = vrot.lane.b32.xlu0 %v5035, 120
        %v5280 = vpop.permute.xlu0 %5279
        %5281 = vrot.lane.b32.xlu0 %v5034, 120
        %v5282 = vpop.permute.xlu0 %5281
        %5283 = vrot.lane.b32.xlu0 %v5033, 120
        %v5284 = vpop.permute.xlu0 %5283
        %5285 = vrot.lane.b32.xlu0 %v5032, 120
        %v5286 = vpop.permute.xlu0 %5285
        %5287 = vrot.lane.b32.xlu0 %v5031, 120
        %v5288 = vpop.permute.xlu0 %5287
        %5289 = vrot.lane.b32.xlu0 %v5030, 120
        %v5290 = vpop.permute.xlu0 %5289
        %5291 = vrot.lane.b32.xlu0 %v5029, 120
        %v5292 = vpop.permute.xlu0 %5291
        %5293 = vrot.lane.b32.xlu0 %v5028, 120
        %v5294 = vpop.permute.xlu0 %5293
        %5295 = vrot.lane.b32.xlu0 %v5027, 120
        %v5296 = vpop.permute.xlu0 %5295
        %5297 = vrot.lane.b32.xlu0 %v5026, 120
        %v5298 = vpop.permute.xlu0 %5297
        %5299 = vrot.lane.b32.xlu0 %v5025, 120
        %v5300 = vpop.permute.xlu0 %5299
        %5301 = vrot.lane.b32.xlu0 %v5024, 120
        %v5302 = vpop.permute.xlu0 %5301
        %5303 = vrot.lane.b32.xlu0 %v5023, 120
        %v5304 = vpop.permute.xlu0 %5303
        %5305 = vrot.lane.b32.xlu0 %v5022, 120
        %v5306 = vpop.permute.xlu0 %5305
        %5307 = vrot.lane.b32.xlu0 %v5021, 120
        %v5308 = vpop.permute.xlu0 %5307
        %5309 = vrot.lane.b32.xlu0 %v5020, 120
        %v5310 = vpop.permute.xlu0 %5309
        %5311 = vrot.lane.b32.xlu0 %v5019, 120
        %v5312 = vpop.permute.xlu0 %5311
        %5313 = vrot.lane.b32.xlu0 %v5018, 120
        %v5314 = vpop.permute.xlu0 %5313
        %5315 = vrot.lane.b32.xlu0 %v5017, 120
        %v5316 = vpop.permute.xlu0 %5315
        %5317 = vrot.lane.b32.xlu0 %v5016, 120
        %v5318 = vpop.permute.xlu0 %5317
        %5319 = vrot.lane.b32.xlu0 %v5015, 120
        %v5320 = vpop.permute.xlu0 %5319
        %5321 = vrot.lane.b32.xlu0 %v5014, 120
        %v5322 = vpop.permute.xlu0 %5321
        %5323 = vrot.lane.b32.xlu0 %v5013, 120
        %v5324 = vpop.permute.xlu0 %5323
        %5325 = vrot.lane.b32.xlu0 %v5012, 120
        %v5326 = vpop.permute.xlu0 %5325
        %5327 = vrot.lane.b32.xlu0 %v5011, 120
        %v5328 = vpop.permute.xlu0 %5327
        %5329 = vrot.lane.b32.xlu0 %v5010, 120
        %v5330 = vpop.permute.xlu0 %5329
        %5331 = vrot.lane.b32.xlu0 %v5009, 120
        %v5332 = vpop.permute.xlu0 %5331
        %5333 = vrot.lane.b32.xlu0 %v5008, 120
        %v5334 = vpop.permute.xlu0 %5333
        %5335 = vrot.lane.b32.xlu0 %v5007, 120
        %v5336 = vpop.permute.xlu0 %5335
        %5337 = vrot.lane.b32.xlu0 %v5006, 120
        %v5338 = vpop.permute.xlu0 %5337
        %5339 = vrot.lane.b32.xlu0 %v5005, 120
        %v5340 = vpop.permute.xlu0 %5339
        %5341 = vrot.lane.b32.xlu0 %v5004, 120
        %v5342 = vpop.permute.xlu0 %5341
        %5343 = vrot.lane.b32.xlu0 %v5003, 120
        %v5344 = vpop.permute.xlu0 %5343
        %5345 = vrot.lane.b32.xlu0 %v5002, 120
        %v5346 = vpop.permute.xlu0 %5345
        %5347 = vrot.lane.b32.xlu0 %v5001, 120
        %v5348 = vpop.permute.xlu0 %5347
        %5349 = vrot.lane.b32.xlu0 %v5000, 120
        %v5350 = vpop.permute.xlu0 %5349
        %5351 = vrot.lane.b32.xlu0 %v4999, 120
        %v5352 = vpop.permute.xlu0 %5351
        %5353 = vrot.lane.b32.xlu0 %v4998, 120
        %v5354 = vpop.permute.xlu0 %5353
        %5355 = vrot.lane.b32.xlu0 %v4997, 120
        %v5356 = vpop.permute.xlu0 %5355
        %5357 = vrot.lane.b32.xlu0 %v4996, 120
        %v5358 = vpop.permute.xlu0 %5357
        %5359 = vrot.lane.b32.xlu0 %v4995, 120
        %v5360 = vpop.permute.xlu0 %5359
        %5361 = vrot.lane.b32.xlu0 %v4994, 120
        %v5362 = vpop.permute.xlu0 %5361
        %5363 = vrot.lane.b32.xlu0 %v4993, 120
        %v5364 = vpop.permute.xlu0 %5363
        %5365 = vrot.lane.b32.xlu0 %v4992, 120
        %v5366 = vpop.permute.xlu0 %5365
        %5367 = vrot.lane.b32.xlu0 %v4991, 120
        %v5368 = vpop.permute.xlu0 %5367
        %5369 = vrot.lane.b32.xlu0 %v4990, 120
        %v5370 = vpop.permute.xlu0 %5369
        %5371 = vrot.lane.b32.xlu0 %v4989, 120
        %v5372 = vpop.permute.xlu0 %5371
        %v5373 = vadd.f32 %v4860, %v5118
        %v5374 = vadd.f32 %v4859, %v5120
        %v5375 = vadd.f32 %v4858, %v5122
        %v5376 = vadd.f32 %v4857, %v5124
        %v5377 = vadd.f32 %v4856, %v5126
        %v5378 = vadd.f32 %v4855, %v5128
        %v5379 = vadd.f32 %v4854, %v5130
        %v5380 = vadd.f32 %v4853, %v5132
        %v5381 = vadd.f32 %v4852, %v5134
        %v5382 = vadd.f32 %v4851, %v5136
        %v5383 = vadd.f32 %v4850, %v5138
        %v5384 = vadd.f32 %v4849, %v5140
        %v5385 = vadd.f32 %v4848, %v5142
        %v5386 = vadd.f32 %v4847, %v5144
        %v5387 = vadd.f32 %v4846, %v5146
        %v5388 = vadd.f32 %v4845, %v5148
        %v5389 = vadd.f32 %v4844, %v5150
        %v5390 = vadd.f32 %v4843, %v5152
        %v5391 = vadd.f32 %v4842, %v5154
        %v5392 = vadd.f32 %v4841, %v5156
        %v5393 = vadd.f32 %v4840, %v5158
        %v5394 = vadd.f32 %v4839, %v5160
        %v5395 = vadd.f32 %v4838, %v5162
        %v5396 = vadd.f32 %v4837, %v5164
        %v5397 = vadd.f32 %v4836, %v5166
        %v5398 = vadd.f32 %v4835, %v5168
        %v5399 = vadd.f32 %v4834, %v5170
        %v5400 = vadd.f32 %v4833, %v5172
        %v5401 = vadd.f32 %v4832, %v5174
        %v5402 = vadd.f32 %v4831, %v5176
        %v5403 = vadd.f32 %v4830, %v5178
        %v5404 = vadd.f32 %v4829, %v5180
        %v5405 = vadd.f32 %v4828, %v5182
        %v5406 = vadd.f32 %v4827, %v5184
        %v5407 = vadd.f32 %v4826, %v5186
        %v5408 = vadd.f32 %v4825, %v5188
        %v5409 = vadd.f32 %v4824, %v5190
        %v5410 = vadd.f32 %v4823, %v5192
        %v5411 = vadd.f32 %v4822, %v5194
        %v5412 = vadd.f32 %v4821, %v5196
        %v5413 = vadd.f32 %v4820, %v5198
        %v5414 = vadd.f32 %v4819, %v5200
        %v5415 = vadd.f32 %v4818, %v5202
        %v5416 = vadd.f32 %v4817, %v5204
        %v5417 = vadd.f32 %v4816, %v5206
        %v5418 = vadd.f32 %v4815, %v5208
        %v5419 = vadd.f32 %v4814, %v5210
        %v5420 = vadd.f32 %v4813, %v5212
        %v5421 = vadd.f32 %v4812, %v5214
        %v5422 = vadd.f32 %v4811, %v5216
        %v5423 = vadd.f32 %v4810, %v5218
        %v5424 = vadd.f32 %v4809, %v5220
        %v5425 = vadd.f32 %v4808, %v5222
        %v5426 = vadd.f32 %v4807, %v5224
        %v5427 = vadd.f32 %v4806, %v5226
        %v5428 = vadd.f32 %v4805, %v5228
        %v5429 = vadd.f32 %v4804, %v5230
        %v5430 = vadd.f32 %v4803, %v5232
        %v5431 = vadd.f32 %v4802, %v5234
        %v5432 = vadd.f32 %v4801, %v5236
        %v5433 = vadd.f32 %v4800, %v5238
        %v5434 = vadd.f32 %v4799, %v5240
        %v5435 = vadd.f32 %v4798, %v5242
        %v5436 = vadd.f32 %v4797, %v5244
        %v5437 = vadd.f32 %v4796, %v5246
        %v5438 = vadd.f32 %v4795, %v5248
        %v5439 = vadd.f32 %v4794, %v5250
        %v5440 = vadd.f32 %v4793, %v5252
        %v5441 = vadd.f32 %v4792, %v5254
        %v5442 = vadd.f32 %v4791, %v5256
        %v5443 = vadd.f32 %v4790, %v5258
        %v5444 = vadd.f32 %v4789, %v5260
        %v5445 = vadd.f32 %v4788, %v5262
        %v5446 = vadd.f32 %v4787, %v5264
        %v5447 = vadd.f32 %v4786, %v5266
        %v5448 = vadd.f32 %v4785, %v5268
        %v5449 = vadd.f32 %v4784, %v5270
        %v5450 = vadd.f32 %v4783, %v5272
        %v5451 = vadd.f32 %v4782, %v5274
        %v5452 = vadd.f32 %v4781, %v5276
        %v5453 = vadd.f32 %v4780, %v5278
        %v5454 = vadd.f32 %v4779, %v5280
        %v5455 = vadd.f32 %v4778, %v5282
        %v5456 = vadd.f32 %v4777, %v5284
        %v5457 = vadd.f32 %v4776, %v5286
        %v5458 = vadd.f32 %v4775, %v5288
        %v5459 = vadd.f32 %v4774, %v5290
        %v5460 = vadd.f32 %v4773, %v5292
        %v5461 = vadd.f32 %v4772, %v5294
        %v5462 = vadd.f32 %v4771, %v5296
        %v5463 = vadd.f32 %v4770, %v5298
        %v5464 = vadd.f32 %v4769, %v5300
        %v5465 = vadd.f32 %v4768, %v5302
        %v5466 = vadd.f32 %v4767, %v5304
        %v5467 = vadd.f32 %v4766, %v5306
        %v5468 = vadd.f32 %v4765, %v5308
        %v5469 = vadd.f32 %v4764, %v5310
        %v5470 = vadd.f32 %v4763, %v5312
        %v5471 = vadd.f32 %v4762, %v5314
        %v5472 = vadd.f32 %v4761, %v5316
        %v5473 = vadd.f32 %v4760, %v5318
        %v5474 = vadd.f32 %v4759, %v5320
        %v5475 = vadd.f32 %v4758, %v5322
        %v5476 = vadd.f32 %v4757, %v5324
        %v5477 = vadd.f32 %v4756, %v5326
        %v5478 = vadd.f32 %v4755, %v5328
        %v5479 = vadd.f32 %v4754, %v5330
        %v5480 = vadd.f32 %v4753, %v5332
        %v5481 = vadd.f32 %v4752, %v5334
        %v5482 = vadd.f32 %v4751, %v5336
        %v5483 = vadd.f32 %v4750, %v5338
        %v5484 = vadd.f32 %v4749, %v5340
        %v5485 = vadd.f32 %v4748, %v5342
        %v5486 = vadd.f32 %v4747, %v5344
        %v5487 = vadd.f32 %v4746, %v5346
        %v5488 = vadd.f32 %v4745, %v5348
        %v5489 = vadd.f32 %v4744, %v5350
        %v5490 = vadd.f32 %v4743, %v5352
        %v5491 = vadd.f32 %v4742, %v5354
        %v5492 = vadd.f32 %v4741, %v5356
        %v5493 = vadd.f32 %v4740, %v5358
        %v5494 = vadd.f32 %v4739, %v5360
        %v5495 = vadd.f32 %v4738, %v5362
        %v5496 = vadd.f32 %v4737, %v5364
        %v5497 = vadd.f32 %v4736, %v5366
        %v5498 = vadd.f32 %v4735, %v5368
        %v5499 = vadd.f32 %v4734, %v5370
        %v5500 = vadd.f32 %v4733, %v5372
        %5501 = vrot.lane.b32.xlu0 %v2086, 112
        %v5502 = vpop.permute.xlu0 %5501
        %5503 = vrot.lane.b32.xlu0 %v2090, 112
        %v5504 = vpop.permute.xlu0 %5503
        %5505 = vrot.lane.b32.xlu0 %v2096, 112
        %v5506 = vpop.permute.xlu0 %5505
        %5507 = vrot.lane.b32.xlu0 %v2100, 112
        %v5508 = vpop.permute.xlu0 %5507
        %5509 = vrot.lane.b32.xlu0 %v2106, 112
        %v5510 = vpop.permute.xlu0 %5509
        %5511 = vrot.lane.b32.xlu0 %v2110, 112
        %v5512 = vpop.permute.xlu0 %5511
        %5513 = vrot.lane.b32.xlu0 %v2116, 112
        %v5514 = vpop.permute.xlu0 %5513
        %5515 = vrot.lane.b32.xlu0 %v2120, 112
        %v5516 = vpop.permute.xlu0 %5515
        %5517 = vrot.lane.b32.xlu0 %v2126, 112
        %v5518 = vpop.permute.xlu0 %5517
        %5519 = vrot.lane.b32.xlu0 %v2130, 112
        %v5520 = vpop.permute.xlu0 %5519
        %5521 = vrot.lane.b32.xlu0 %v2136, 112
        %v5522 = vpop.permute.xlu0 %5521
        %5523 = vrot.lane.b32.xlu0 %v2140, 112
        %v5524 = vpop.permute.xlu0 %5523
        %5525 = vrot.lane.b32.xlu0 %v2146, 112
        %v5526 = vpop.permute.xlu0 %5525
        %5527 = vrot.lane.b32.xlu0 %v2150, 112
        %v5528 = vpop.permute.xlu0 %5527
        %5529 = vrot.lane.b32.xlu0 %v2156, 112
        %v5530 = vpop.permute.xlu0 %5529
        %5531 = vrot.lane.b32.xlu0 %v2160, 112
        %v5532 = vpop.permute.xlu0 %5531
        %5533 = vrot.lane.b32.xlu0 %v2166, 112
        %v5534 = vpop.permute.xlu0 %5533
        %5535 = vrot.lane.b32.xlu0 %v2170, 112
        %v5536 = vpop.permute.xlu0 %5535
        %5537 = vrot.lane.b32.xlu0 %v2176, 112
        %v5538 = vpop.permute.xlu0 %5537
        %5539 = vrot.lane.b32.xlu0 %v2180, 112
        %v5540 = vpop.permute.xlu0 %5539
        %5541 = vrot.lane.b32.xlu0 %v2186, 112
        %v5542 = vpop.permute.xlu0 %5541
        %5543 = vrot.lane.b32.xlu0 %v2190, 112
        %v5544 = vpop.permute.xlu0 %5543
        %5545 = vrot.lane.b32.xlu0 %v2196, 112
        %v5546 = vpop.permute.xlu0 %5545
        %5547 = vrot.lane.b32.xlu0 %v2200, 112
        %v5548 = vpop.permute.xlu0 %5547
        %5549 = vrot.lane.b32.xlu0 %v2206, 112
        %v5550 = vpop.permute.xlu0 %5549
        %5551 = vrot.lane.b32.xlu0 %v2210, 112
        %v5552 = vpop.permute.xlu0 %5551
        %5553 = vrot.lane.b32.xlu0 %v2216, 112
        %v5554 = vpop.permute.xlu0 %5553
        %5555 = vrot.lane.b32.xlu0 %v2220, 112
        %v5556 = vpop.permute.xlu0 %5555
        %5557 = vrot.lane.b32.xlu0 %v2226, 112
        %v5558 = vpop.permute.xlu0 %5557
        %5559 = vrot.lane.b32.xlu0 %v2230, 112
        %v5560 = vpop.permute.xlu0 %5559
        %5561 = vrot.lane.b32.xlu0 %v2236, 112
        %v5562 = vpop.permute.xlu0 %5561
        %5563 = vrot.lane.b32.xlu0 %v2240, 112
        %v5564 = vpop.permute.xlu0 %5563
        %5565 = vrot.lane.b32.xlu0 %v2246, 112
        %v5566 = vpop.permute.xlu0 %5565
        %5567 = vrot.lane.b32.xlu0 %v2250, 112
        %v5568 = vpop.permute.xlu0 %5567
        %5569 = vrot.lane.b32.xlu0 %v2256, 112
        %v5570 = vpop.permute.xlu0 %5569
        %5571 = vrot.lane.b32.xlu0 %v2260, 112
        %v5572 = vpop.permute.xlu0 %5571
        %5573 = vrot.lane.b32.xlu0 %v2266, 112
        %v5574 = vpop.permute.xlu0 %5573
        %5575 = vrot.lane.b32.xlu0 %v2270, 112
        %v5576 = vpop.permute.xlu0 %5575
        %5577 = vrot.lane.b32.xlu0 %v2276, 112
        %v5578 = vpop.permute.xlu0 %5577
        %5579 = vrot.lane.b32.xlu0 %v2280, 112
        %v5580 = vpop.permute.xlu0 %5579
        %5581 = vrot.lane.b32.xlu0 %v2286, 112
        %v5582 = vpop.permute.xlu0 %5581
        %5583 = vrot.lane.b32.xlu0 %v2290, 112
        %v5584 = vpop.permute.xlu0 %5583
        %5585 = vrot.lane.b32.xlu0 %v2296, 112
        %v5586 = vpop.permute.xlu0 %5585
        %5587 = vrot.lane.b32.xlu0 %v2300, 112
        %v5588 = vpop.permute.xlu0 %5587
        %5589 = vrot.lane.b32.xlu0 %v2306, 112
        %v5590 = vpop.permute.xlu0 %5589
        %5591 = vrot.lane.b32.xlu0 %v2310, 112
        %v5592 = vpop.permute.xlu0 %5591
        %5593 = vrot.lane.b32.xlu0 %v2316, 112
        %v5594 = vpop.permute.xlu0 %5593
        %5595 = vrot.lane.b32.xlu0 %v2320, 112
        %v5596 = vpop.permute.xlu0 %5595
        %5597 = vrot.lane.b32.xlu0 %v2326, 112
        %v5598 = vpop.permute.xlu0 %5597
        %5599 = vrot.lane.b32.xlu0 %v2330, 112
        %v5600 = vpop.permute.xlu0 %5599
        %5601 = vrot.lane.b32.xlu0 %v2336, 112
        %v5602 = vpop.permute.xlu0 %5601
        %5603 = vrot.lane.b32.xlu0 %v2340, 112
        %v5604 = vpop.permute.xlu0 %5603
        %5605 = vrot.lane.b32.xlu0 %v2346, 112
        %v5606 = vpop.permute.xlu0 %5605
        %5607 = vrot.lane.b32.xlu0 %v2350, 112
        %v5608 = vpop.permute.xlu0 %5607
        %5609 = vrot.lane.b32.xlu0 %v2356, 112
        %v5610 = vpop.permute.xlu0 %5609
        %5611 = vrot.lane.b32.xlu0 %v2360, 112
        %v5612 = vpop.permute.xlu0 %5611
        %5613 = vrot.lane.b32.xlu0 %v2366, 112
        %v5614 = vpop.permute.xlu0 %5613
        %5615 = vrot.lane.b32.xlu0 %v2370, 112
        %v5616 = vpop.permute.xlu0 %5615
        %5617 = vrot.lane.b32.xlu0 %v2376, 112
        %v5618 = vpop.permute.xlu0 %5617
        %5619 = vrot.lane.b32.xlu0 %v2380, 112
        %v5620 = vpop.permute.xlu0 %5619
        %5621 = vrot.lane.b32.xlu0 %v2386, 112
        %v5622 = vpop.permute.xlu0 %5621
        %5623 = vrot.lane.b32.xlu0 %v2390, 112
        %v5624 = vpop.permute.xlu0 %5623
        %5625 = vrot.lane.b32.xlu0 %v2396, 112
        %v5626 = vpop.permute.xlu0 %5625
        %5627 = vrot.lane.b32.xlu0 %v2400, 112
        %v5628 = vpop.permute.xlu0 %5627
        %5629 = vrot.lane.b32.xlu0 %v2406, 112
        %v5630 = vpop.permute.xlu0 %5629
        %5631 = vrot.lane.b32.xlu0 %v2410, 112
        %v5632 = vpop.permute.xlu0 %5631
        %5633 = vrot.lane.b32.xlu0 %v2416, 112
        %v5634 = vpop.permute.xlu0 %5633
        %5635 = vrot.lane.b32.xlu0 %v2420, 112
        %v5636 = vpop.permute.xlu0 %5635
        %5637 = vrot.lane.b32.xlu0 %v2426, 112
        %v5638 = vpop.permute.xlu0 %5637
        %5639 = vrot.lane.b32.xlu0 %v2430, 112
        %v5640 = vpop.permute.xlu0 %5639
        %5641 = vrot.lane.b32.xlu0 %v2436, 112
        %v5642 = vpop.permute.xlu0 %5641
        %5643 = vrot.lane.b32.xlu0 %v2440, 112
        %v5644 = vpop.permute.xlu0 %5643
        %5645 = vrot.lane.b32.xlu0 %v2446, 112
        %v5646 = vpop.permute.xlu0 %5645
        %5647 = vrot.lane.b32.xlu0 %v2450, 112
        %v5648 = vpop.permute.xlu0 %5647
        %5649 = vrot.lane.b32.xlu0 %v2456, 112
        %v5650 = vpop.permute.xlu0 %5649
        %5651 = vrot.lane.b32.xlu0 %v2460, 112
        %v5652 = vpop.permute.xlu0 %5651
        %5653 = vrot.lane.b32.xlu0 %v2466, 112
        %v5654 = vpop.permute.xlu0 %5653
        %5655 = vrot.lane.b32.xlu0 %v2470, 112
        %v5656 = vpop.permute.xlu0 %5655
        %5657 = vrot.lane.b32.xlu0 %v2476, 112
        %v5658 = vpop.permute.xlu0 %5657
        %5659 = vrot.lane.b32.xlu0 %v2480, 112
        %v5660 = vpop.permute.xlu0 %5659
        %5661 = vrot.lane.b32.xlu0 %v2486, 112
        %v5662 = vpop.permute.xlu0 %5661
        %5663 = vrot.lane.b32.xlu0 %v2490, 112
        %v5664 = vpop.permute.xlu0 %5663
        %5665 = vrot.lane.b32.xlu0 %v2496, 112
        %v5666 = vpop.permute.xlu0 %5665
        %5667 = vrot.lane.b32.xlu0 %v2500, 112
        %v5668 = vpop.permute.xlu0 %5667
        %5669 = vrot.lane.b32.xlu0 %v2506, 112
        %v5670 = vpop.permute.xlu0 %5669
        %5671 = vrot.lane.b32.xlu0 %v2510, 112
        %v5672 = vpop.permute.xlu0 %5671
        %5673 = vrot.lane.b32.xlu0 %v2516, 112
        %v5674 = vpop.permute.xlu0 %5673
        %5675 = vrot.lane.b32.xlu0 %v2520, 112
        %v5676 = vpop.permute.xlu0 %5675
        %5677 = vrot.lane.b32.xlu0 %v2526, 112
        %v5678 = vpop.permute.xlu0 %5677
        %5679 = vrot.lane.b32.xlu0 %v2530, 112
        %v5680 = vpop.permute.xlu0 %5679
        %5681 = vrot.lane.b32.xlu0 %v2536, 112
        %v5682 = vpop.permute.xlu0 %5681
        %5683 = vrot.lane.b32.xlu0 %v2540, 112
        %v5684 = vpop.permute.xlu0 %5683
        %5685 = vrot.lane.b32.xlu0 %v2546, 112
        %v5686 = vpop.permute.xlu0 %5685
        %5687 = vrot.lane.b32.xlu0 %v2550, 112
        %v5688 = vpop.permute.xlu0 %5687
        %5689 = vrot.lane.b32.xlu0 %v2556, 112
        %v5690 = vpop.permute.xlu0 %5689
        %5691 = vrot.lane.b32.xlu0 %v2560, 112
        %v5692 = vpop.permute.xlu0 %5691
        %5693 = vrot.lane.b32.xlu0 %v2566, 112
        %v5694 = vpop.permute.xlu0 %5693
        %5695 = vrot.lane.b32.xlu0 %v2570, 112
        %v5696 = vpop.permute.xlu0 %5695
        %5697 = vrot.lane.b32.xlu0 %v2576, 112
        %v5698 = vpop.permute.xlu0 %5697
        %5699 = vrot.lane.b32.xlu0 %v2580, 112
        %v5700 = vpop.permute.xlu0 %5699
        %5701 = vrot.lane.b32.xlu0 %v2586, 112
        %v5702 = vpop.permute.xlu0 %5701
        %5703 = vrot.lane.b32.xlu0 %v2590, 112
        %v5704 = vpop.permute.xlu0 %5703
        %5705 = vrot.lane.b32.xlu0 %v2596, 112
        %v5706 = vpop.permute.xlu0 %5705
        %5707 = vrot.lane.b32.xlu0 %v2600, 112
        %v5708 = vpop.permute.xlu0 %5707
        %5709 = vrot.lane.b32.xlu0 %v2606, 112
        %v5710 = vpop.permute.xlu0 %5709
        %5711 = vrot.lane.b32.xlu0 %v2610, 112
        %v5712 = vpop.permute.xlu0 %5711
        %5713 = vrot.lane.b32.xlu0 %v2616, 112
        %v5714 = vpop.permute.xlu0 %5713
        %5715 = vrot.lane.b32.xlu0 %v2620, 112
        %v5716 = vpop.permute.xlu0 %5715
        %5717 = vrot.lane.b32.xlu0 %v2626, 112
        %v5718 = vpop.permute.xlu0 %5717
        %5719 = vrot.lane.b32.xlu0 %v2630, 112
        %v5720 = vpop.permute.xlu0 %5719
        %5721 = vrot.lane.b32.xlu0 %v2636, 112
        %v5722 = vpop.permute.xlu0 %5721
        %5723 = vrot.lane.b32.xlu0 %v2640, 112
        %v5724 = vpop.permute.xlu0 %5723
        %5725 = vrot.lane.b32.xlu0 %v2646, 112
        %v5726 = vpop.permute.xlu0 %5725
        %5727 = vrot.lane.b32.xlu0 %v2650, 112
        %v5728 = vpop.permute.xlu0 %5727
        %5729 = vrot.lane.b32.xlu0 %v2656, 112
        %v5730 = vpop.permute.xlu0 %5729
        %5731 = vrot.lane.b32.xlu0 %v2660, 112
        %v5732 = vpop.permute.xlu0 %5731
        %5733 = vrot.lane.b32.xlu0 %v2666, 112
        %v5734 = vpop.permute.xlu0 %5733
        %5735 = vrot.lane.b32.xlu0 %v2670, 112
        %v5736 = vpop.permute.xlu0 %5735
        %5737 = vrot.lane.b32.xlu0 %v2676, 112
        %v5738 = vpop.permute.xlu0 %5737
        %5739 = vrot.lane.b32.xlu0 %v2680, 112
        %v5740 = vpop.permute.xlu0 %5739
        %5741 = vrot.lane.b32.xlu0 %v2686, 112
        %v5742 = vpop.permute.xlu0 %5741
        %5743 = vrot.lane.b32.xlu0 %v2690, 112
        %v5744 = vpop.permute.xlu0 %5743
        %5745 = vrot.lane.b32.xlu0 %v2696, 112
        %v5746 = vpop.permute.xlu0 %5745
        %5747 = vrot.lane.b32.xlu0 %v2700, 112
        %v5748 = vpop.permute.xlu0 %5747
        %5749 = vrot.lane.b32.xlu0 %v2706, 112
        %v5750 = vpop.permute.xlu0 %5749
        %5751 = vrot.lane.b32.xlu0 %v2710, 112
        %v5752 = vpop.permute.xlu0 %5751
        %5753 = vrot.lane.b32.xlu0 %v2716, 112
        %v5754 = vpop.permute.xlu0 %5753
        %5755 = vrot.lane.b32.xlu0 %v2720, 112
        %v5756 = vpop.permute.xlu0 %5755
        %v5757 = vadd.f32 %v5373, %v5502
        %v5758 = vadd.f32 %v5374, %v5504
        %v5759 = vadd.f32 %v5375, %v5506
        %v5760 = vadd.f32 %v5376, %v5508
        %v5761 = vadd.f32 %v5377, %v5510
        %v5762 = vadd.f32 %v5378, %v5512
        %v5763 = vadd.f32 %v5379, %v5514
        %v5764 = vadd.f32 %v5380, %v5516
        %v5765 = vadd.f32 %v5381, %v5518
        %v5766 = vadd.f32 %v5382, %v5520
        %v5767 = vadd.f32 %v5383, %v5522
        %v5768 = vadd.f32 %v5384, %v5524
        %v5769 = vadd.f32 %v5385, %v5526
        %v5770 = vadd.f32 %v5386, %v5528
        %v5771 = vadd.f32 %v5387, %v5530
        %v5772 = vadd.f32 %v5388, %v5532
        %v5773 = vadd.f32 %v5389, %v5534
        %v5774 = vadd.f32 %v5390, %v5536
        %v5775 = vadd.f32 %v5391, %v5538
        %v5776 = vadd.f32 %v5392, %v5540
        %v5777 = vadd.f32 %v5393, %v5542
        %v5778 = vadd.f32 %v5394, %v5544
        %v5779 = vadd.f32 %v5395, %v5546
        %v5780 = vadd.f32 %v5396, %v5548
        %v5781 = vadd.f32 %v5397, %v5550
        %v5782 = vadd.f32 %v5398, %v5552
        %v5783 = vadd.f32 %v5399, %v5554
        %v5784 = vadd.f32 %v5400, %v5556
        %v5785 = vadd.f32 %v5401, %v5558
        %v5786 = vadd.f32 %v5402, %v5560
        %v5787 = vadd.f32 %v5403, %v5562
        %v5788 = vadd.f32 %v5404, %v5564
        %v5789 = vadd.f32 %v5405, %v5566
        %v5790 = vadd.f32 %v5406, %v5568
        %v5791 = vadd.f32 %v5407, %v5570
        %v5792 = vadd.f32 %v5408, %v5572
        %v5793 = vadd.f32 %v5409, %v5574
        %v5794 = vadd.f32 %v5410, %v5576
        %v5795 = vadd.f32 %v5411, %v5578
        %v5796 = vadd.f32 %v5412, %v5580
        %v5797 = vadd.f32 %v5413, %v5582
        %v5798 = vadd.f32 %v5414, %v5584
        %v5799 = vadd.f32 %v5415, %v5586
        %v5800 = vadd.f32 %v5416, %v5588
        %v5801 = vadd.f32 %v5417, %v5590
        %v5802 = vadd.f32 %v5418, %v5592
        %v5803 = vadd.f32 %v5419, %v5594
        %v5804 = vadd.f32 %v5420, %v5596
        %v5805 = vadd.f32 %v5421, %v5598
        %v5806 = vadd.f32 %v5422, %v5600
        %v5807 = vadd.f32 %v5423, %v5602
        %v5808 = vadd.f32 %v5424, %v5604
        %v5809 = vadd.f32 %v5425, %v5606
        %v5810 = vadd.f32 %v5426, %v5608
        %v5811 = vadd.f32 %v5427, %v5610
        %v5812 = vadd.f32 %v5428, %v5612
        %v5813 = vadd.f32 %v5429, %v5614
        %v5814 = vadd.f32 %v5430, %v5616
        %v5815 = vadd.f32 %v5431, %v5618
        %v5816 = vadd.f32 %v5432, %v5620
        %v5817 = vadd.f32 %v5433, %v5622
        %v5818 = vadd.f32 %v5434, %v5624
        %v5819 = vadd.f32 %v5435, %v5626
        %v5820 = vadd.f32 %v5436, %v5628
        %v5821 = vadd.f32 %v5437, %v5630
        %v5822 = vadd.f32 %v5438, %v5632
        %v5823 = vadd.f32 %v5439, %v5634
        %v5824 = vadd.f32 %v5440, %v5636
        %v5825 = vadd.f32 %v5441, %v5638
        %v5826 = vadd.f32 %v5442, %v5640
        %v5827 = vadd.f32 %v5443, %v5642
        %v5828 = vadd.f32 %v5444, %v5644
        %v5829 = vadd.f32 %v5445, %v5646
        %v5830 = vadd.f32 %v5446, %v5648
        %v5831 = vadd.f32 %v5447, %v5650
        %v5832 = vadd.f32 %v5448, %v5652
        %v5833 = vadd.f32 %v5449, %v5654
        %v5834 = vadd.f32 %v5450, %v5656
        %v5835 = vadd.f32 %v5451, %v5658
        %v5836 = vadd.f32 %v5452, %v5660
        %v5837 = vadd.f32 %v5453, %v5662
        %v5838 = vadd.f32 %v5454, %v5664
        %v5839 = vadd.f32 %v5455, %v5666
        %v5840 = vadd.f32 %v5456, %v5668
        %v5841 = vadd.f32 %v5457, %v5670
        %v5842 = vadd.f32 %v5458, %v5672
        %v5843 = vadd.f32 %v5459, %v5674
        %v5844 = vadd.f32 %v5460, %v5676
        %v5845 = vadd.f32 %v5461, %v5678
        %v5846 = vadd.f32 %v5462, %v5680
        %v5847 = vadd.f32 %v5463, %v5682
        %v5848 = vadd.f32 %v5464, %v5684
        %v5849 = vadd.f32 %v5465, %v5686
        %v5850 = vadd.f32 %v5466, %v5688
        %v5851 = vadd.f32 %v5467, %v5690
        %v5852 = vadd.f32 %v5468, %v5692
        %v5853 = vadd.f32 %v5469, %v5694
        %v5854 = vadd.f32 %v5470, %v5696
        %v5855 = vadd.f32 %v5471, %v5698
        %v5856 = vadd.f32 %v5472, %v5700
        %v5857 = vadd.f32 %v5473, %v5702
        %v5858 = vadd.f32 %v5474, %v5704
        %v5859 = vadd.f32 %v5475, %v5706
        %v5860 = vadd.f32 %v5476, %v5708
        %v5861 = vadd.f32 %v5477, %v5710
        %v5862 = vadd.f32 %v5478, %v5712
        %v5863 = vadd.f32 %v5479, %v5714
        %v5864 = vadd.f32 %v5480, %v5716
        %v5865 = vadd.f32 %v5481, %v5718
        %v5866 = vadd.f32 %v5482, %v5720
        %v5867 = vadd.f32 %v5483, %v5722
        %v5868 = vadd.f32 %v5484, %v5724
        %v5869 = vadd.f32 %v5485, %v5726
        %v5870 = vadd.f32 %v5486, %v5728
        %v5871 = vadd.f32 %v5487, %v5730
        %v5872 = vadd.f32 %v5488, %v5732
        %v5873 = vadd.f32 %v5489, %v5734
        %v5874 = vadd.f32 %v5490, %v5736
        %v5875 = vadd.f32 %v5491, %v5738
        %v5876 = vadd.f32 %v5492, %v5740
        %v5877 = vadd.f32 %v5493, %v5742
        %v5878 = vadd.f32 %v5494, %v5744
        %v5879 = vadd.f32 %v5495, %v5746
        %v5880 = vadd.f32 %v5496, %v5748
        %v5881 = vadd.f32 %v5497, %v5750
        %v5882 = vadd.f32 %v5498, %v5752
        %v5883 = vadd.f32 %v5499, %v5754
        %v5884 = vadd.f32 %v5500, %v5756
        %v5885 = vrot.slane %v3267, 1
        %v5886 = vlaneseq
        %v5887 = vshrl.u32 %v5886, 7
        %v5888 = vsub.s32 0, %v5887
        %v5889 = vrot.slane %v5885, %v5888
        %v5891 = vadd.f32 %v5757, %v5889
        %v5892 = vadd.f32 %v5758, %v5889
        %v5893 = vadd.f32 %v5759, %v5889
        %v5894 = vadd.f32 %v5760, %v5889
        %v5895 = vadd.f32 %v5761, %v5889
        %v5896 = vadd.f32 %v5762, %v5889
        %v5897 = vadd.f32 %v5763, %v5889
        %v5898 = vadd.f32 %v5764, %v5889
        %v5899 = vadd.f32 %v5765, %v5889
        %v5900 = vadd.f32 %v5766, %v5889
        %v5901 = vadd.f32 %v5767, %v5889
        %v5902 = vadd.f32 %v5768, %v5889
        %v5903 = vadd.f32 %v5769, %v5889
        %v5904 = vadd.f32 %v5770, %v5889
        %v5905 = vadd.f32 %v5771, %v5889
        %v5906 = vadd.f32 %v5772, %v5889
        %v5907 = vadd.f32 %v5773, %v5889
        %v5908 = vadd.f32 %v5774, %v5889
        %v5909 = vadd.f32 %v5775, %v5889
        %v5910 = vadd.f32 %v5776, %v5889
        %v5911 = vadd.f32 %v5777, %v5889
        %v5912 = vadd.f32 %v5778, %v5889
        %v5913 = vadd.f32 %v5779, %v5889
        %v5914 = vadd.f32 %v5780, %v5889
        %v5915 = vadd.f32 %v5781, %v5889
        %v5916 = vadd.f32 %v5782, %v5889
        %v5917 = vadd.f32 %v5783, %v5889
        %v5918 = vadd.f32 %v5784, %v5889
        %v5919 = vadd.f32 %v5785, %v5889
        %v5920 = vadd.f32 %v5786, %v5889
        %v5921 = vadd.f32 %v5787, %v5889
        %v5922 = vadd.f32 %v5788, %v5889
        %v5923 = vadd.f32 %v5789, %v5889
        %v5924 = vadd.f32 %v5790, %v5889
        %v5925 = vadd.f32 %v5791, %v5889
        %v5926 = vadd.f32 %v5792, %v5889
        %v5927 = vadd.f32 %v5793, %v5889
        %v5928 = vadd.f32 %v5794, %v5889
        %v5929 = vadd.f32 %v5795, %v5889
        %v5930 = vadd.f32 %v5796, %v5889
        %v5931 = vadd.f32 %v5797, %v5889
        %v5932 = vadd.f32 %v5798, %v5889
        %v5933 = vadd.f32 %v5799, %v5889
        %v5934 = vadd.f32 %v5800, %v5889
        %v5935 = vadd.f32 %v5801, %v5889
        %v5936 = vadd.f32 %v5802, %v5889
        %v5937 = vadd.f32 %v5803, %v5889
        %v5938 = vadd.f32 %v5804, %v5889
        %v5939 = vadd.f32 %v5805, %v5889
        %v5940 = vadd.f32 %v5806, %v5889
        %v5941 = vadd.f32 %v5807, %v5889
        %v5942 = vadd.f32 %v5808, %v5889
        %v5943 = vadd.f32 %v5809, %v5889
        %v5944 = vadd.f32 %v5810, %v5889
        %v5945 = vadd.f32 %v5811, %v5889
        %v5946 = vadd.f32 %v5812, %v5889
        %v5947 = vadd.f32 %v5813, %v5889
        %v5948 = vadd.f32 %v5814, %v5889
        %v5949 = vadd.f32 %v5815, %v5889
        %v5950 = vadd.f32 %v5816, %v5889
        %v5951 = vadd.f32 %v5817, %v5889
        %v5952 = vadd.f32 %v5818, %v5889
        %v5953 = vadd.f32 %v5819, %v5889
        %v5954 = vadd.f32 %v5820, %v5889
        %v5955 = vadd.f32 %v5821, %v5889
        %v5956 = vadd.f32 %v5822, %v5889
        %v5957 = vadd.f32 %v5823, %v5889
        %v5958 = vadd.f32 %v5824, %v5889
        %v5959 = vadd.f32 %v5825, %v5889
        %v5960 = vadd.f32 %v5826, %v5889
        %v5961 = vadd.f32 %v5827, %v5889
        %v5962 = vadd.f32 %v5828, %v5889
        %v5963 = vadd.f32 %v5829, %v5889
        %v5964 = vadd.f32 %v5830, %v5889
        %v5965 = vadd.f32 %v5831, %v5889
        %v5966 = vadd.f32 %v5832, %v5889
        %v5967 = vadd.f32 %v5833, %v5889
        %v5968 = vadd.f32 %v5834, %v5889
        %v5969 = vadd.f32 %v5835, %v5889
        %v5970 = vadd.f32 %v5836, %v5889
        %v5971 = vadd.f32 %v5837, %v5889
        %v5972 = vadd.f32 %v5838, %v5889
        %v5973 = vadd.f32 %v5839, %v5889
        %v5974 = vadd.f32 %v5840, %v5889
        %v5975 = vadd.f32 %v5841, %v5889
        %v5976 = vadd.f32 %v5842, %v5889
        %v5977 = vadd.f32 %v5843, %v5889
        %v5978 = vadd.f32 %v5844, %v5889
        %v5979 = vadd.f32 %v5845, %v5889
        %v5980 = vadd.f32 %v5846, %v5889
        %v5981 = vadd.f32 %v5847, %v5889
        %v5982 = vadd.f32 %v5848, %v5889
        %v5983 = vadd.f32 %v5849, %v5889
        %v5984 = vadd.f32 %v5850, %v5889
        %v5985 = vadd.f32 %v5851, %v5889
        %v5986 = vadd.f32 %v5852, %v5889
        %v5987 = vadd.f32 %v5853, %v5889
        %v5988 = vadd.f32 %v5854, %v5889
        %v5989 = vadd.f32 %v5855, %v5889
        %v5990 = vadd.f32 %v5856, %v5889
        %v5991 = vadd.f32 %v5857, %v5889
        %v5992 = vadd.f32 %v5858, %v5889
        %v5993 = vadd.f32 %v5859, %v5889
        %v5994 = vadd.f32 %v5860, %v5889
        %v5995 = vadd.f32 %v5861, %v5889
        %v5996 = vadd.f32 %v5862, %v5889
        %v5997 = vadd.f32 %v5863, %v5889
        %v5998 = vadd.f32 %v5864, %v5889
        %v5999 = vadd.f32 %v5865, %v5889
        %v6000 = vadd.f32 %v5866, %v5889
        %v6001 = vadd.f32 %v5867, %v5889
        %v6002 = vadd.f32 %v5868, %v5889
        %v6003 = vadd.f32 %v5869, %v5889
        %v6004 = vadd.f32 %v5870, %v5889
        %v6005 = vadd.f32 %v5871, %v5889
        %v6006 = vadd.f32 %v5872, %v5889
        %v6007 = vadd.f32 %v5873, %v5889
        %v6008 = vadd.f32 %v5874, %v5889
        %v6009 = vadd.f32 %v5875, %v5889
        %v6010 = vadd.f32 %v5876, %v5889
        %v6011 = vadd.f32 %v5877, %v5889
        %v6012 = vadd.f32 %v5878, %v5889
        %v6013 = vadd.f32 %v5879, %v5889
        %v6014 = vadd.f32 %v5880, %v5889
        %v6015 = vadd.f32 %v5881, %v5889
        %v6016 = vadd.f32 %v5882, %v5889
        %v6017 = vadd.f32 %v5883, %v5889
        %v6018 = vadd.f32 %v5884, %v5889
        %v6019 = vmax.f32 %v5891, 0.0
        %v6020 = vmax.f32 %v5892, 0.0
        %v6021 = vmax.f32 %v5893, 0.0
        %v6022 = vmax.f32 %v5894, 0.0
        %v6023 = vmax.f32 %v5895, 0.0
        %v6024 = vmax.f32 %v5896, 0.0
        %v6025 = vmax.f32 %v5897, 0.0
        %v6026 = vmax.f32 %v5898, 0.0
        %v6027 = vmax.f32 %v5899, 0.0
        %v6028 = vmax.f32 %v5900, 0.0
        %v6029 = vmax.f32 %v5901, 0.0
        %v6030 = vmax.f32 %v5902, 0.0
        %v6031 = vmax.f32 %v5903, 0.0
        %v6032 = vmax.f32 %v5904, 0.0
        %v6033 = vmax.f32 %v5905, 0.0
        %v6034 = vmax.f32 %v5906, 0.0
        %v6035 = vmax.f32 %v5907, 0.0
        %v6036 = vmax.f32 %v5908, 0.0
        %v6037 = vmax.f32 %v5909, 0.0
        %v6038 = vmax.f32 %v5910, 0.0
        %v6039 = vmax.f32 %v5911, 0.0
        %v6040 = vmax.f32 %v5912, 0.0
        %v6041 = vmax.f32 %v5913, 0.0
        %v6042 = vmax.f32 %v5914, 0.0
        %v6043 = vmax.f32 %v5915, 0.0
        %v6044 = vmax.f32 %v5916, 0.0
        %v6045 = vmax.f32 %v5917, 0.0
        %v6046 = vmax.f32 %v5918, 0.0
        %v6047 = vmax.f32 %v5919, 0.0
        %v6048 = vmax.f32 %v5920, 0.0
        %v6049 = vmax.f32 %v5921, 0.0
        %v6050 = vmax.f32 %v5922, 0.0
        %v6051 = vmax.f32 %v5923, 0.0
        %v6052 = vmax.f32 %v5924, 0.0
        %v6053 = vmax.f32 %v5925, 0.0
        %v6054 = vmax.f32 %v5926, 0.0
        %v6055 = vmax.f32 %v5927, 0.0
        %v6056 = vmax.f32 %v5928, 0.0
        %v6057 = vmax.f32 %v5929, 0.0
        %v6058 = vmax.f32 %v5930, 0.0
        %v6059 = vmax.f32 %v5931, 0.0
        %v6060 = vmax.f32 %v5932, 0.0
        %v6061 = vmax.f32 %v5933, 0.0
        %v6062 = vmax.f32 %v5934, 0.0
        %v6063 = vmax.f32 %v5935, 0.0
        %v6064 = vmax.f32 %v5936, 0.0
        %v6065 = vmax.f32 %v5937, 0.0
        %v6066 = vmax.f32 %v5938, 0.0
        %v6067 = vmax.f32 %v5939, 0.0
        %v6068 = vmax.f32 %v5940, 0.0
        %v6069 = vmax.f32 %v5941, 0.0
        %v6070 = vmax.f32 %v5942, 0.0
        %v6071 = vmax.f32 %v5943, 0.0
        %v6072 = vmax.f32 %v5944, 0.0
        %v6073 = vmax.f32 %v5945, 0.0
        %v6074 = vmax.f32 %v5946, 0.0
        %v6075 = vmax.f32 %v5947, 0.0
        %v6076 = vmax.f32 %v5948, 0.0
        %v6077 = vmax.f32 %v5949, 0.0
        %v6078 = vmax.f32 %v5950, 0.0
        %v6079 = vmax.f32 %v5951, 0.0
        %v6080 = vmax.f32 %v5952, 0.0
        %v6081 = vmax.f32 %v5953, 0.0
        %v6082 = vmax.f32 %v5954, 0.0
        %v6083 = vmax.f32 %v5955, 0.0
        %v6084 = vmax.f32 %v5956, 0.0
        %v6085 = vmax.f32 %v5957, 0.0
        %v6086 = vmax.f32 %v5958, 0.0
        %v6087 = vmax.f32 %v5959, 0.0
        %v6088 = vmax.f32 %v5960, 0.0
        %v6089 = vmax.f32 %v5961, 0.0
        %v6090 = vmax.f32 %v5962, 0.0
        %v6091 = vmax.f32 %v5963, 0.0
        %v6092 = vmax.f32 %v5964, 0.0
        %v6093 = vmax.f32 %v5965, 0.0
        %v6094 = vmax.f32 %v5966, 0.0
        %v6095 = vmax.f32 %v5967, 0.0
        %v6096 = vmax.f32 %v5968, 0.0
        %v6097 = vmax.f32 %v5969, 0.0
        %v6098 = vmax.f32 %v5970, 0.0
        %v6099 = vmax.f32 %v5971, 0.0
        %v6100 = vmax.f32 %v5972, 0.0
        %v6101 = vmax.f32 %v5973, 0.0
        %v6102 = vmax.f32 %v5974, 0.0
        %v6103 = vmax.f32 %v5975, 0.0
        %v6104 = vmax.f32 %v5976, 0.0
        %v6105 = vmax.f32 %v5977, 0.0
        %v6106 = vmax.f32 %v5978, 0.0
        %v6107 = vmax.f32 %v5979, 0.0
        %v6108 = vmax.f32 %v5980, 0.0
        %v6109 = vmax.f32 %v5981, 0.0
        %v6110 = vmax.f32 %v5982, 0.0
        %v6111 = vmax.f32 %v5983, 0.0
        %v6112 = vmax.f32 %v5984, 0.0
        %v6113 = vmax.f32 %v5985, 0.0
        %v6114 = vmax.f32 %v5986, 0.0
        %v6115 = vmax.f32 %v5987, 0.0
        %v6116 = vmax.f32 %v5988, 0.0
        %v6117 = vmax.f32 %v5989, 0.0
        %v6118 = vmax.f32 %v5990, 0.0
        %v6119 = vmax.f32 %v5991, 0.0
        %v6120 = vmax.f32 %v5992, 0.0
        %v6121 = vmax.f32 %v5993, 0.0
        %v6122 = vmax.f32 %v5994, 0.0
        %v6123 = vmax.f32 %v5995, 0.0
        %v6124 = vmax.f32 %v5996, 0.0
        %v6125 = vmax.f32 %v5997, 0.0
        %v6126 = vmax.f32 %v5998, 0.0
        %v6127 = vmax.f32 %v5999, 0.0
        %v6128 = vmax.f32 %v6000, 0.0
        %v6129 = vmax.f32 %v6001, 0.0
        %v6130 = vmax.f32 %v6002, 0.0
        %v6131 = vmax.f32 %v6003, 0.0
        %v6132 = vmax.f32 %v6004, 0.0
        %v6133 = vmax.f32 %v6005, 0.0
        %v6134 = vmax.f32 %v6006, 0.0
        %v6135 = vmax.f32 %v6007, 0.0
        %v6136 = vmax.f32 %v6008, 0.0
        %v6137 = vmax.f32 %v6009, 0.0
        %v6138 = vmax.f32 %v6010, 0.0
        %v6139 = vmax.f32 %v6011, 0.0
        %v6140 = vmax.f32 %v6012, 0.0
        %v6141 = vmax.f32 %v6013, 0.0
        %v6142 = vmax.f32 %v6014, 0.0
        %v6143 = vmax.f32 %v6015, 0.0
        %v6144 = vmax.f32 %v6016, 0.0
        %v6145 = vmax.f32 %v6017, 0.0
        %v6146 = vmax.f32 %v6018, 0.0
        %vm6147 = vcmp.ge.s32.totalorder %v3269, 2
        %vm6148 = vcmp.ge.s32.totalorder %v3270, 2
        %vm6149 = vcmp.ge.s32.totalorder %v3271, 2
        %vm6150 = vcmp.ge.s32.totalorder %v3272, 2
        %v6151 = vsel %vm6147, 1, 0
        %v6152 = vsel %vm6148, 1, 0
        %v6153 = vsel %vm6149, 1, 0
        %v6154 = vsel %vm6150, 1, 0
        %vm6155 = vcmp.eq.s32.totalorder %v6151, 1
        %vm6156 = vcmp.eq.s32.totalorder %v6152, 1
        %vm6157 = vcmp.eq.s32.totalorder %v6153, 1
        %vm6158 = vcmp.eq.s32.totalorder %v6154, 1
        %v6159 = vsel %vm6155, %v6019, -inf
        %v6160 = vsel %vm6156, %v6020, -inf
        %v6161 = vsel %vm6157, %v6021, -inf
        %v6162 = vsel %vm6158, %v6022, -inf
        %v6163 = vsel %vm6155, %v6023, -inf
        %v6164 = vsel %vm6156, %v6024, -inf
        %v6165 = vsel %vm6157, %v6025, -inf
        %v6166 = vsel %vm6158, %v6026, -inf
        %v6167 = vsel %vm6155, %v6027, -inf
        %v6168 = vsel %vm6156, %v6028, -inf
        %v6169 = vsel %vm6157, %v6029, -inf
        %v6170 = vsel %vm6158, %v6030, -inf
        %v6171 = vsel %vm6155, %v6031, -inf
        %v6172 = vsel %vm6156, %v6032, -inf
        %v6173 = vsel %vm6157, %v6033, -inf
        %v6174 = vsel %vm6158, %v6034, -inf
        %v6175 = vsel %vm6155, %v6035, -inf
        %v6176 = vsel %vm6156, %v6036, -inf
        %v6177 = vsel %vm6157, %v6037, -inf
        %v6178 = vsel %vm6158, %v6038, -inf
        %v6179 = vsel %vm6155, %v6039, -inf
        %v6180 = vsel %vm6156, %v6040, -inf
        %v6181 = vsel %vm6157, %v6041, -inf
        %v6182 = vsel %vm6158, %v6042, -inf
        %v6183 = vsel %vm6155, %v6043, -inf
        %v6184 = vsel %vm6156, %v6044, -inf
        %v6185 = vsel %vm6157, %v6045, -inf
        %v6186 = vsel %vm6158, %v6046, -inf
        %v6187 = vsel %vm6155, %v6047, -inf
        %v6188 = vsel %vm6156, %v6048, -inf
        %v6189 = vsel %vm6157, %v6049, -inf
        %v6190 = vsel %vm6158, %v6050, -inf
        %v6191 = vsel %vm6155, %v6051, -inf
        %v6192 = vsel %vm6156, %v6052, -inf
        %v6193 = vsel %vm6157, %v6053, -inf
        %v6194 = vsel %vm6158, %v6054, -inf
        %v6195 = vsel %vm6155, %v6055, -inf
        %v6196 = vsel %vm6156, %v6056, -inf
        %v6197 = vsel %vm6157, %v6057, -inf
        %v6198 = vsel %vm6158, %v6058, -inf
        %v6199 = vsel %vm6155, %v6059, -inf
        %v6200 = vsel %vm6156, %v6060, -inf
        %v6201 = vsel %vm6157, %v6061, -inf
        %v6202 = vsel %vm6158, %v6062, -inf
        %v6203 = vsel %vm6155, %v6063, -inf
        %v6204 = vsel %vm6156, %v6064, -inf
        %v6205 = vsel %vm6157, %v6065, -inf
        %v6206 = vsel %vm6158, %v6066, -inf
        %v6207 = vsel %vm6155, %v6067, -inf
        %v6208 = vsel %vm6156, %v6068, -inf
        %v6209 = vsel %vm6157, %v6069, -inf
        %v6210 = vsel %vm6158, %v6070, -inf
        %v6211 = vsel %vm6155, %v6071, -inf
        %v6212 = vsel %vm6156, %v6072, -inf
        %v6213 = vsel %vm6157, %v6073, -inf
        %v6214 = vsel %vm6158, %v6074, -inf
        %v6215 = vsel %vm6155, %v6075, -inf
        %v6216 = vsel %vm6156, %v6076, -inf
        %v6217 = vsel %vm6157, %v6077, -inf
        %v6218 = vsel %vm6158, %v6078, -inf
        %v6219 = vsel %vm6155, %v6079, -inf
        %v6220 = vsel %vm6156, %v6080, -inf
        %v6221 = vsel %vm6157, %v6081, -inf
        %v6222 = vsel %vm6158, %v6082, -inf
        %v6223 = vsel %vm6155, %v6083, -inf
        %v6224 = vsel %vm6156, %v6084, -inf
        %v6225 = vsel %vm6157, %v6085, -inf
        %v6226 = vsel %vm6158, %v6086, -inf
        %v6227 = vsel %vm6155, %v6087, -inf
        %v6228 = vsel %vm6156, %v6088, -inf
        %v6229 = vsel %vm6157, %v6089, -inf
        %v6230 = vsel %vm6158, %v6090, -inf
        %v6231 = vsel %vm6155, %v6091, -inf
        %v6232 = vsel %vm6156, %v6092, -inf
        %v6233 = vsel %vm6157, %v6093, -inf
        %v6234 = vsel %vm6158, %v6094, -inf
        %v6235 = vsel %vm6155, %v6095, -inf
        %v6236 = vsel %vm6156, %v6096, -inf
        %v6237 = vsel %vm6157, %v6097, -inf
        %v6238 = vsel %vm6158, %v6098, -inf
        %v6239 = vsel %vm6155, %v6099, -inf
        %v6240 = vsel %vm6156, %v6100, -inf
        %v6241 = vsel %vm6157, %v6101, -inf
        %v6242 = vsel %vm6158, %v6102, -inf
        %v6243 = vsel %vm6155, %v6103, -inf
        %v6244 = vsel %vm6156, %v6104, -inf
        %v6245 = vsel %vm6157, %v6105, -inf
        %v6246 = vsel %vm6158, %v6106, -inf
        %v6247 = vsel %vm6155, %v6107, -inf
        %v6248 = vsel %vm6156, %v6108, -inf
        %v6249 = vsel %vm6157, %v6109, -inf
        %v6250 = vsel %vm6158, %v6110, -inf
        %v6251 = vsel %vm6155, %v6111, -inf
        %v6252 = vsel %vm6156, %v6112, -inf
        %v6253 = vsel %vm6157, %v6113, -inf
        %v6254 = vsel %vm6158, %v6114, -inf
        %v6255 = vsel %vm6155, %v6115, -inf
        %v6256 = vsel %vm6156, %v6116, -inf
        %v6257 = vsel %vm6157, %v6117, -inf
        %v6258 = vsel %vm6158, %v6118, -inf
        %v6259 = vsel %vm6155, %v6119, -inf
        %v6260 = vsel %vm6156, %v6120, -inf
        %v6261 = vsel %vm6157, %v6121, -inf
        %v6262 = vsel %vm6158, %v6122, -inf
        %v6263 = vsel %vm6155, %v6123, -inf
        %v6264 = vsel %vm6156, %v6124, -inf
        %v6265 = vsel %vm6157, %v6125, -inf
        %v6266 = vsel %vm6158, %v6126, -inf
        %v6267 = vsel %vm6155, %v6127, -inf
        %v6268 = vsel %vm6156, %v6128, -inf
        %v6269 = vsel %vm6157, %v6129, -inf
        %v6270 = vsel %vm6158, %v6130, -inf
        %v6271 = vsel %vm6155, %v6131, -inf
        %v6272 = vsel %vm6156, %v6132, -inf
        %v6273 = vsel %vm6157, %v6133, -inf
        %v6274 = vsel %vm6158, %v6134, -inf
        %v6275 = vsel %vm6155, %v6135, -inf
        %v6276 = vsel %vm6156, %v6136, -inf
        %v6277 = vsel %vm6157, %v6137, -inf
        %v6278 = vsel %vm6158, %v6138, -inf
        %v6279 = vsel %vm6155, %v6139, -inf
        %v6280 = vsel %vm6156, %v6140, -inf
        %v6281 = vsel %vm6157, %v6141, -inf
        %v6282 = vsel %vm6158, %v6142, -inf
        %v6283 = vsel %vm6155, %v6143, -inf
        %v6284 = vsel %vm6156, %v6144, -inf
        %v6285 = vsel %vm6157, %v6145, -inf
        %v6286 = vsel %vm6158, %v6146, -inf
        %v6287 = vmax.f32 %v6159, %v6160
        %v6288 = vmax.f32 %v6287, %v6161
        %v6289 = vmax.f32 %v6288, %v6162
        %v6290 = vrot.slane %v6289, 4
        %v6291 = vmax.f32 %v6289, %v6290
        %v6292 = vrot.slane %v6291, 2
        %v6293 = vmax.f32 %v6291, %v6292
        %v6294 = vrot.slane %v6293, 1
        %v6295 = vmax.f32 %v6293, %v6294
        %v6296 = vmax.f32 %v6163, %v6164
        %v6297 = vmax.f32 %v6296, %v6165
        %v6298 = vmax.f32 %v6297, %v6166
        %v6299 = vrot.slane %v6298, 4
        %v6300 = vmax.f32 %v6298, %v6299
        %v6301 = vrot.slane %v6300, 2
        %v6302 = vmax.f32 %v6300, %v6301
        %v6303 = vrot.slane %v6302, 1
        %v6304 = vmax.f32 %v6302, %v6303
        %v6305 = vmax.f32 %v6167, %v6168
        %v6306 = vmax.f32 %v6305, %v6169
        %v6307 = vmax.f32 %v6306, %v6170
        %v6308 = vrot.slane %v6307, 4
        %v6309 = vmax.f32 %v6307, %v6308
        %v6310 = vrot.slane %v6309, 2
        %v6311 = vmax.f32 %v6309, %v6310
        %v6312 = vrot.slane %v6311, 1
        %v6313 = vmax.f32 %v6311, %v6312
        %v6314 = vmax.f32 %v6171, %v6172
        %v6315 = vmax.f32 %v6314, %v6173
        %v6316 = vmax.f32 %v6315, %v6174
        %v6317 = vrot.slane %v6316, 4
        %v6318 = vmax.f32 %v6316, %v6317
        %v6319 = vrot.slane %v6318, 2
        %v6320 = vmax.f32 %v6318, %v6319
        %v6321 = vrot.slane %v6320, 1
        %v6322 = vmax.f32 %v6320, %v6321
        %v6323 = vmax.f32 %v6175, %v6176
        %v6324 = vmax.f32 %v6323, %v6177
        %v6325 = vmax.f32 %v6324, %v6178
        %v6326 = vrot.slane %v6325, 4
        %v6327 = vmax.f32 %v6325, %v6326
        %v6328 = vrot.slane %v6327, 2
        %v6329 = vmax.f32 %v6327, %v6328
        %v6330 = vrot.slane %v6329, 1
        %v6331 = vmax.f32 %v6329, %v6330
        %v6332 = vmax.f32 %v6179, %v6180
        %v6333 = vmax.f32 %v6332, %v6181
        %v6334 = vmax.f32 %v6333, %v6182
        %v6335 = vrot.slane %v6334, 4
        %v6336 = vmax.f32 %v6334, %v6335
        %v6337 = vrot.slane %v6336, 2
        %v6338 = vmax.f32 %v6336, %v6337
        %v6339 = vrot.slane %v6338, 1
        %v6340 = vmax.f32 %v6338, %v6339
        %v6341 = vmax.f32 %v6183, %v6184
        %v6342 = vmax.f32 %v6341, %v6185
        %v6343 = vmax.f32 %v6342, %v6186
        %v6344 = vrot.slane %v6343, 4
        %v6345 = vmax.f32 %v6343, %v6344
        %v6346 = vrot.slane %v6345, 2
        %v6347 = vmax.f32 %v6345, %v6346
        %v6348 = vrot.slane %v6347, 1
        %v6349 = vmax.f32 %v6347, %v6348
        %v6350 = vmax.f32 %v6187, %v6188
        %v6351 = vmax.f32 %v6350, %v6189
        %v6352 = vmax.f32 %v6351, %v6190
        %v6353 = vrot.slane %v6352, 4
        %v6354 = vmax.f32 %v6352, %v6353
        %v6355 = vrot.slane %v6354, 2
        %v6356 = vmax.f32 %v6354, %v6355
        %v6357 = vrot.slane %v6356, 1
        %v6358 = vmax.f32 %v6356, %v6357
        %v6359 = vmax.f32 %v6191, %v6192
        %v6360 = vmax.f32 %v6359, %v6193
        %v6361 = vmax.f32 %v6360, %v6194
        %v6362 = vrot.slane %v6361, 4
        %v6363 = vmax.f32 %v6361, %v6362
        %v6364 = vrot.slane %v6363, 2
        %v6365 = vmax.f32 %v6363, %v6364
        %v6366 = vrot.slane %v6365, 1
        %v6367 = vmax.f32 %v6365, %v6366
        %v6368 = vmax.f32 %v6195, %v6196
        %v6369 = vmax.f32 %v6368, %v6197
        %v6370 = vmax.f32 %v6369, %v6198
        %v6371 = vrot.slane %v6370, 4
        %v6372 = vmax.f32 %v6370, %v6371
        %v6373 = vrot.slane %v6372, 2
        %v6374 = vmax.f32 %v6372, %v6373
        %v6375 = vrot.slane %v6374, 1
        %v6376 = vmax.f32 %v6374, %v6375
        %v6377 = vmax.f32 %v6199, %v6200
        %v6378 = vmax.f32 %v6377, %v6201
        %v6379 = vmax.f32 %v6378, %v6202
        %v6380 = vrot.slane %v6379, 4
        %v6381 = vmax.f32 %v6379, %v6380
        %v6382 = vrot.slane %v6381, 2
        %v6383 = vmax.f32 %v6381, %v6382
        %v6384 = vrot.slane %v6383, 1
        %v6385 = vmax.f32 %v6383, %v6384
        %v6386 = vmax.f32 %v6203, %v6204
        %v6387 = vmax.f32 %v6386, %v6205
        %v6388 = vmax.f32 %v6387, %v6206
        %v6389 = vrot.slane %v6388, 4
        %v6390 = vmax.f32 %v6388, %v6389
        %v6391 = vrot.slane %v6390, 2
        %v6392 = vmax.f32 %v6390, %v6391
        %v6393 = vrot.slane %v6392, 1
        %v6394 = vmax.f32 %v6392, %v6393
        %v6395 = vmax.f32 %v6207, %v6208
        %v6396 = vmax.f32 %v6395, %v6209
        %v6397 = vmax.f32 %v6396, %v6210
        %v6398 = vrot.slane %v6397, 4
        %v6399 = vmax.f32 %v6397, %v6398
        %v6400 = vrot.slane %v6399, 2
        %v6401 = vmax.f32 %v6399, %v6400
        %v6402 = vrot.slane %v6401, 1
        %v6403 = vmax.f32 %v6401, %v6402
        %v6404 = vmax.f32 %v6211, %v6212
        %v6405 = vmax.f32 %v6404, %v6213
        %v6406 = vmax.f32 %v6405, %v6214
        %v6407 = vrot.slane %v6406, 4
        %v6408 = vmax.f32 %v6406, %v6407
        %v6409 = vrot.slane %v6408, 2
        %v6410 = vmax.f32 %v6408, %v6409
        %v6411 = vrot.slane %v6410, 1
        %v6412 = vmax.f32 %v6410, %v6411
        %v6413 = vmax.f32 %v6215, %v6216
        %v6414 = vmax.f32 %v6413, %v6217
        %v6415 = vmax.f32 %v6414, %v6218
        %v6416 = vrot.slane %v6415, 4
        %v6417 = vmax.f32 %v6415, %v6416
        %v6418 = vrot.slane %v6417, 2
        %v6419 = vmax.f32 %v6417, %v6418
        %v6420 = vrot.slane %v6419, 1
        %v6421 = vmax.f32 %v6419, %v6420
        %v6422 = vmax.f32 %v6219, %v6220
        %v6423 = vmax.f32 %v6422, %v6221
        %v6424 = vmax.f32 %v6423, %v6222
        %v6425 = vrot.slane %v6424, 4
        %v6426 = vmax.f32 %v6424, %v6425
        %v6427 = vrot.slane %v6426, 2
        %v6428 = vmax.f32 %v6426, %v6427
        %v6429 = vrot.slane %v6428, 1
        %v6430 = vmax.f32 %v6428, %v6429
        %v6431 = vmax.f32 %v6223, %v6224
        %v6432 = vmax.f32 %v6431, %v6225
        %v6433 = vmax.f32 %v6432, %v6226
        %v6434 = vrot.slane %v6433, 4
        %v6435 = vmax.f32 %v6433, %v6434
        %v6436 = vrot.slane %v6435, 2
        %v6437 = vmax.f32 %v6435, %v6436
        %v6438 = vrot.slane %v6437, 1
        %v6439 = vmax.f32 %v6437, %v6438
        %v6440 = vmax.f32 %v6227, %v6228
        %v6441 = vmax.f32 %v6440, %v6229
        %v6442 = vmax.f32 %v6441, %v6230
        %v6443 = vrot.slane %v6442, 4
        %v6444 = vmax.f32 %v6442, %v6443
        %v6445 = vrot.slane %v6444, 2
        %v6446 = vmax.f32 %v6444, %v6445
        %v6447 = vrot.slane %v6446, 1
        %v6448 = vmax.f32 %v6446, %v6447
        %v6449 = vmax.f32 %v6231, %v6232
        %v6450 = vmax.f32 %v6449, %v6233
        %v6451 = vmax.f32 %v6450, %v6234
        %v6452 = vrot.slane %v6451, 4
        %v6453 = vmax.f32 %v6451, %v6452
        %v6454 = vrot.slane %v6453, 2
        %v6455 = vmax.f32 %v6453, %v6454
        %v6456 = vrot.slane %v6455, 1
        %v6457 = vmax.f32 %v6455, %v6456
        %v6458 = vmax.f32 %v6235, %v6236
        %v6459 = vmax.f32 %v6458, %v6237
        %v6460 = vmax.f32 %v6459, %v6238
        %v6461 = vrot.slane %v6460, 4
        %v6462 = vmax.f32 %v6460, %v6461
        %v6463 = vrot.slane %v6462, 2
        %v6464 = vmax.f32 %v6462, %v6463
        %v6465 = vrot.slane %v6464, 1
        %v6466 = vmax.f32 %v6464, %v6465
        %v6467 = vmax.f32 %v6239, %v6240
        %v6468 = vmax.f32 %v6467, %v6241
        %v6469 = vmax.f32 %v6468, %v6242
        %v6470 = vrot.slane %v6469, 4
        %v6471 = vmax.f32 %v6469, %v6470
        %v6472 = vrot.slane %v6471, 2
        %v6473 = vmax.f32 %v6471, %v6472
        %v6474 = vrot.slane %v6473, 1
        %v6475 = vmax.f32 %v6473, %v6474
        %v6476 = vmax.f32 %v6243, %v6244
        %v6477 = vmax.f32 %v6476, %v6245
        %v6478 = vmax.f32 %v6477, %v6246
        %v6479 = vrot.slane %v6478, 4
        %v6480 = vmax.f32 %v6478, %v6479
        %v6481 = vrot.slane %v6480, 2
        %v6482 = vmax.f32 %v6480, %v6481
        %v6483 = vrot.slane %v6482, 1
        %v6484 = vmax.f32 %v6482, %v6483
        %v6485 = vmax.f32 %v6247, %v6248
        %v6486 = vmax.f32 %v6485, %v6249
        %v6487 = vmax.f32 %v6486, %v6250
        %v6488 = vrot.slane %v6487, 4
        %v6489 = vmax.f32 %v6487, %v6488
        %v6490 = vrot.slane %v6489, 2
        %v6491 = vmax.f32 %v6489, %v6490
        %v6492 = vrot.slane %v6491, 1
        %v6493 = vmax.f32 %v6491, %v6492
        %v6494 = vmax.f32 %v6251, %v6252
        %v6495 = vmax.f32 %v6494, %v6253
        %v6496 = vmax.f32 %v6495, %v6254
        %v6497 = vrot.slane %v6496, 4
        %v6498 = vmax.f32 %v6496, %v6497
        %v6499 = vrot.slane %v6498, 2
        %v6500 = vmax.f32 %v6498, %v6499
        %v6501 = vrot.slane %v6500, 1
        %v6502 = vmax.f32 %v6500, %v6501
        %v6503 = vmax.f32 %v6255, %v6256
        %v6504 = vmax.f32 %v6503, %v6257
        %v6505 = vmax.f32 %v6504, %v6258
        %v6506 = vrot.slane %v6505, 4
        %v6507 = vmax.f32 %v6505, %v6506
        %v6508 = vrot.slane %v6507, 2
        %v6509 = vmax.f32 %v6507, %v6508
        %v6510 = vrot.slane %v6509, 1
        %v6511 = vmax.f32 %v6509, %v6510
        %v6512 = vmax.f32 %v6259, %v6260
        %v6513 = vmax.f32 %v6512, %v6261
        %v6514 = vmax.f32 %v6513, %v6262
        %v6515 = vrot.slane %v6514, 4
        %v6516 = vmax.f32 %v6514, %v6515
        %v6517 = vrot.slane %v6516, 2
        %v6518 = vmax.f32 %v6516, %v6517
        %v6519 = vrot.slane %v6518, 1
        %v6520 = vmax.f32 %v6518, %v6519
        %v6521 = vmax.f32 %v6263, %v6264
        %v6522 = vmax.f32 %v6521, %v6265
        %v6523 = vmax.f32 %v6522, %v6266
        %v6524 = vrot.slane %v6523, 4
        %v6525 = vmax.f32 %v6523, %v6524
        %v6526 = vrot.slane %v6525, 2
        %v6527 = vmax.f32 %v6525, %v6526
        %v6528 = vrot.slane %v6527, 1
        %v6529 = vmax.f32 %v6527, %v6528
        %v6530 = vmax.f32 %v6267, %v6268
        %v6531 = vmax.f32 %v6530, %v6269
        %v6532 = vmax.f32 %v6531, %v6270
        %v6533 = vrot.slane %v6532, 4
        %v6534 = vmax.f32 %v6532, %v6533
        %v6535 = vrot.slane %v6534, 2
        %v6536 = vmax.f32 %v6534, %v6535
        %v6537 = vrot.slane %v6536, 1
        %v6538 = vmax.f32 %v6536, %v6537
        %v6539 = vmax.f32 %v6271, %v6272
        %v6540 = vmax.f32 %v6539, %v6273
        %v6541 = vmax.f32 %v6540, %v6274
        %v6542 = vrot.slane %v6541, 4
        %v6543 = vmax.f32 %v6541, %v6542
        %v6544 = vrot.slane %v6543, 2
        %v6545 = vmax.f32 %v6543, %v6544
        %v6546 = vrot.slane %v6545, 1
        %v6547 = vmax.f32 %v6545, %v6546
        %v6548 = vmax.f32 %v6275, %v6276
        %v6549 = vmax.f32 %v6548, %v6277
        %v6550 = vmax.f32 %v6549, %v6278
        %v6551 = vrot.slane %v6550, 4
        %v6552 = vmax.f32 %v6550, %v6551
        %v6553 = vrot.slane %v6552, 2
        %v6554 = vmax.f32 %v6552, %v6553
        %v6555 = vrot.slane %v6554, 1
        %v6556 = vmax.f32 %v6554, %v6555
        %v6557 = vmax.f32 %v6279, %v6280
        %v6558 = vmax.f32 %v6557, %v6281
        %v6559 = vmax.f32 %v6558, %v6282
        %v6560 = vrot.slane %v6559, 4
        %v6561 = vmax.f32 %v6559, %v6560
        %v6562 = vrot.slane %v6561, 2
        %v6563 = vmax.f32 %v6561, %v6562
        %v6564 = vrot.slane %v6563, 1
        %v6565 = vmax.f32 %v6563, %v6564
        %v6566 = vmax.f32 %v6283, %v6284
        %v6567 = vmax.f32 %v6566, %v6285
        %v6568 = vmax.f32 %v6567, %v6286
        %v6569 = vrot.slane %v6568, 4
        %v6570 = vmax.f32 %v6568, %v6569
        %v6571 = vrot.slane %v6570, 2
        %v6572 = vmax.f32 %v6570, %v6571
        %v6573 = vrot.slane %v6572, 1
        %v6574 = vmax.f32 %v6572, %v6573
        %v6575 = vrot.slane %v2757, 5
        %v6576 = vrot.slane %v2760, 5
        %v6577 = vrot.slane %v2765, 5
        %v6578 = vrot.slane %v2768, 5
        %v6579 = vrot.slane %v2773, 5
        %v6580 = vrot.slane %v2776, 5
        %v6581 = vrot.slane %v2781, 5
        %v6582 = vrot.slane %v2784, 5
        %v6583 = vrot.slane %v2789, 5
        %v6584 = vrot.slane %v2792, 5
        %v6585 = vrot.slane %v2797, 5
        %v6586 = vrot.slane %v2800, 5
        %v6587 = vrot.slane %v2805, 5
        %v6588 = vrot.slane %v2808, 5
        %v6589 = vrot.slane %v2813, 5
        %v6590 = vrot.slane %v2816, 5
        %v6591 = vrot.slane %v2821, 5
        %v6592 = vrot.slane %v2824, 5
        %v6593 = vrot.slane %v2829, 5
        %v6594 = vrot.slane %v2832, 5
        %v6595 = vrot.slane %v2837, 5
        %v6596 = vrot.slane %v2840, 5
        %v6597 = vrot.slane %v2845, 5
        %v6598 = vrot.slane %v2848, 5
        %v6599 = vrot.slane %v2853, 5
        %v6600 = vrot.slane %v2856, 5
        %v6601 = vrot.slane %v2861, 5
        %v6602 = vrot.slane %v2864, 5
        %v6603 = vrot.slane %v2869, 5
        %v6604 = vrot.slane %v2872, 5
        %v6605 = vrot.slane %v2877, 5
        %v6606 = vrot.slane %v2880, 5
        %v6607 = vrot.slane %v2885, 5
        %v6608 = vrot.slane %v2888, 5
        %v6609 = vrot.slane %v2893, 5
        %v6610 = vrot.slane %v2896, 5
        %v6611 = vrot.slane %v2901, 5
        %v6612 = vrot.slane %v2904, 5
        %v6613 = vrot.slane %v2909, 5
        %v6614 = vrot.slane %v2912, 5
        %v6615 = vrot.slane %v2917, 5
        %v6616 = vrot.slane %v2920, 5
        %v6617 = vrot.slane %v2925, 5
        %v6618 = vrot.slane %v2928, 5
        %v6619 = vrot.slane %v2933, 5
        %v6620 = vrot.slane %v2936, 5
        %v6621 = vrot.slane %v2941, 5
        %v6622 = vrot.slane %v2944, 5
        %v6623 = vrot.slane %v2949, 5
        %v6624 = vrot.slane %v2952, 5
        %v6625 = vrot.slane %v2957, 5
        %v6626 = vrot.slane %v2960, 5
        %v6627 = vrot.slane %v2965, 5
        %v6628 = vrot.slane %v2968, 5
        %v6629 = vrot.slane %v2973, 5
        %v6630 = vrot.slane %v2976, 5
        %v6631 = vrot.slane %v2981, 5
        %v6632 = vrot.slane %v2984, 5
        %v6633 = vrot.slane %v2989, 5
        %v6634 = vrot.slane %v2992, 5
        %v6635 = vrot.slane %v2997, 5
        %v6636 = vrot.slane %v3000, 5
        %v6637 = vrot.slane %v3005, 5
        %v6638 = vrot.slane %v3008, 5
        %v6639 = vrot.slane %v3013, 5
        %v6640 = vrot.slane %v3016, 5
        %v6641 = vrot.slane %v3021, 5
        %v6642 = vrot.slane %v3024, 5
        %v6643 = vrot.slane %v3029, 5
        %v6644 = vrot.slane %v3032, 5
        %v6645 = vrot.slane %v3037, 5
        %v6646 = vrot.slane %v3040, 5
        %v6647 = vrot.slane %v3045, 5
        %v6648 = vrot.slane %v3048, 5
        %v6649 = vrot.slane %v3053, 5
        %v6650 = vrot.slane %v3056, 5
        %v6651 = vrot.slane %v3061, 5
        %v6652 = vrot.slane %v3064, 5
        %v6653 = vrot.slane %v3069, 5
        %v6654 = vrot.slane %v3072, 5
        %v6655 = vrot.slane %v3077, 5
        %v6656 = vrot.slane %v3080, 5
        %v6657 = vrot.slane %v3085, 5
        %v6658 = vrot.slane %v3088, 5
        %v6659 = vrot.slane %v3093, 5
        %v6660 = vrot.slane %v3096, 5
        %v6661 = vrot.slane %v3101, 5
        %v6662 = vrot.slane %v3104, 5
        %v6663 = vrot.slane %v3109, 5
        %v6664 = vrot.slane %v3112, 5
        %v6665 = vrot.slane %v3117, 5
        %v6666 = vrot.slane %v3120, 5
        %v6667 = vrot.slane %v3125, 5
        %v6668 = vrot.slane %v3128, 5
        %v6669 = vrot.slane %v3133, 5
        %v6670 = vrot.slane %v3136, 5
        %v6671 = vrot.slane %v3141, 5
        %v6672 = vrot.slane %v3144, 5
        %v6673 = vrot.slane %v3149, 5
        %v6674 = vrot.slane %v3152, 5
        %v6675 = vrot.slane %v3157, 5
        %v6676 = vrot.slane %v3160, 5
        %v6677 = vrot.slane %v3165, 5
        %v6678 = vrot.slane %v3168, 5
        %v6679 = vrot.slane %v3173, 5
        %v6680 = vrot.slane %v3176, 5
        %v6681 = vrot.slane %v3181, 5
        %v6682 = vrot.slane %v3184, 5
        %v6683 = vrot.slane %v3189, 5
        %v6684 = vrot.slane %v3192, 5
        %v6685 = vrot.slane %v3197, 5
        %v6686 = vrot.slane %v3200, 5
        %v6687 = vrot.slane %v3205, 5
        %v6688 = vrot.slane %v3208, 5
        %v6689 = vrot.slane %v3213, 5
        %v6690 = vrot.slane %v3216, 5
        %v6691 = vrot.slane %v3221, 5
        %v6692 = vrot.slane %v3224, 5
        %v6693 = vrot.slane %v3229, 5
        %v6694 = vrot.slane %v3232, 5
        %v6695 = vrot.slane %v3237, 5
        %v6696 = vrot.slane %v3240, 5
        %v6697 = vrot.slane %v3245, 5
        %v6698 = vrot.slane %v3248, 5
        %v6699 = vrot.slane %v3253, 5
        %v6700 = vrot.slane %v3256, 5
        %v6701 = vrot.slane %v3261, 5
        %v6702 = vrot.slane %v3264, 5
        %vm6703 = vcmp.lt.s32.totalorder %v3269, 3
        %v6704 = vsel %vm6703, %v6701, %v6702
        %v6705 = vsel %vm6703, %v6700, %v6701
        %v6706 = vsel %vm6703, %v6699, %v6700
        %v6707 = vsel %vm6703, %v6698, %v6699
        %v6708 = vsel %vm6703, %v6697, %v6698
        %v6709 = vsel %vm6703, %v6696, %v6697
        %v6710 = vsel %vm6703, %v6695, %v6696
        %v6711 = vsel %vm6703, %v6694, %v6695
        %v6712 = vsel %vm6703, %v6693, %v6694
        %v6713 = vsel %vm6703, %v6692, %v6693
        %v6714 = vsel %vm6703, %v6691, %v6692
        %v6715 = vsel %vm6703, %v6690, %v6691
        %v6716 = vsel %vm6703, %v6689, %v6690
        %v6717 = vsel %vm6703, %v6688, %v6689
        %v6718 = vsel %vm6703, %v6687, %v6688
        %v6719 = vsel %vm6703, %v6686, %v6687
        %v6720 = vsel %vm6703, %v6685, %v6686
        %v6721 = vsel %vm6703, %v6684, %v6685
        %v6722 = vsel %vm6703, %v6683, %v6684
        %v6723 = vsel %vm6703, %v6682, %v6683
        %v6724 = vsel %vm6703, %v6681, %v6682
        %v6725 = vsel %vm6703, %v6680, %v6681
        %v6726 = vsel %vm6703, %v6679, %v6680
        %v6727 = vsel %vm6703, %v6678, %v6679
        %v6728 = vsel %vm6703, %v6677, %v6678
        %v6729 = vsel %vm6703, %v6676, %v6677
        %v6730 = vsel %vm6703, %v6675, %v6676
        %v6731 = vsel %vm6703, %v6674, %v6675
        %v6732 = vsel %vm6703, %v6673, %v6674
        %v6733 = vsel %vm6703, %v6672, %v6673
        %v6734 = vsel %vm6703, %v6671, %v6672
        %v6735 = vsel %vm6703, %v6670, %v6671
        %v6736 = vsel %vm6703, %v6669, %v6670
        %v6737 = vsel %vm6703, %v6668, %v6669
        %v6738 = vsel %vm6703, %v6667, %v6668
        %v6739 = vsel %vm6703, %v6666, %v6667
        %v6740 = vsel %vm6703, %v6665, %v6666
        %v6741 = vsel %vm6703, %v6664, %v6665
        %v6742 = vsel %vm6703, %v6663, %v6664
        %v6743 = vsel %vm6703, %v6662, %v6663
        %v6744 = vsel %vm6703, %v6661, %v6662
        %v6745 = vsel %vm6703, %v6660, %v6661
        %v6746 = vsel %vm6703, %v6659, %v6660
        %v6747 = vsel %vm6703, %v6658, %v6659
        %v6748 = vsel %vm6703, %v6657, %v6658
        %v6749 = vsel %vm6703, %v6656, %v6657
        %v6750 = vsel %vm6703, %v6655, %v6656
        %v6751 = vsel %vm6703, %v6654, %v6655
        %v6752 = vsel %vm6703, %v6653, %v6654
        %v6753 = vsel %vm6703, %v6652, %v6653
        %v6754 = vsel %vm6703, %v6651, %v6652
        %v6755 = vsel %vm6703, %v6650, %v6651
        %v6756 = vsel %vm6703, %v6649, %v6650
        %v6757 = vsel %vm6703, %v6648, %v6649
        %v6758 = vsel %vm6703, %v6647, %v6648
        %v6759 = vsel %vm6703, %v6646, %v6647
        %v6760 = vsel %vm6703, %v6645, %v6646
        %v6761 = vsel %vm6703, %v6644, %v6645
        %v6762 = vsel %vm6703, %v6643, %v6644
        %v6763 = vsel %vm6703, %v6642, %v6643
        %v6764 = vsel %vm6703, %v6641, %v6642
        %v6765 = vsel %vm6703, %v6640, %v6641
        %v6766 = vsel %vm6703, %v6639, %v6640
        %v6767 = vsel %vm6703, %v6638, %v6639
        %v6768 = vsel %vm6703, %v6637, %v6638
        %v6769 = vsel %vm6703, %v6636, %v6637
        %v6770 = vsel %vm6703, %v6635, %v6636
        %v6771 = vsel %vm6703, %v6634, %v6635
        %v6772 = vsel %vm6703, %v6633, %v6634
        %v6773 = vsel %vm6703, %v6632, %v6633
        %v6774 = vsel %vm6703, %v6631, %v6632
        %v6775 = vsel %vm6703, %v6630, %v6631
        %v6776 = vsel %vm6703, %v6629, %v6630
        %v6777 = vsel %vm6703, %v6628, %v6629
        %v6778 = vsel %vm6703, %v6627, %v6628
        %v6779 = vsel %vm6703, %v6626, %v6627
        %v6780 = vsel %vm6703, %v6625, %v6626
        %v6781 = vsel %vm6703, %v6624, %v6625
        %v6782 = vsel %vm6703, %v6623, %v6624
        %v6783 = vsel %vm6703, %v6622, %v6623
        %v6784 = vsel %vm6703, %v6621, %v6622
        %v6785 = vsel %vm6703, %v6620, %v6621
        %v6786 = vsel %vm6703, %v6619, %v6620
        %v6787 = vsel %vm6703, %v6618, %v6619
        %v6788 = vsel %vm6703, %v6617, %v6618
        %v6789 = vsel %vm6703, %v6616, %v6617
        %v6790 = vsel %vm6703, %v6615, %v6616
        %v6791 = vsel %vm6703, %v6614, %v6615
        %v6792 = vsel %vm6703, %v6613, %v6614
        %v6793 = vsel %vm6703, %v6612, %v6613
        %v6794 = vsel %vm6703, %v6611, %v6612
        %v6795 = vsel %vm6703, %v6610, %v6611
        %v6796 = vsel %vm6703, %v6609, %v6610
        %v6797 = vsel %vm6703, %v6608, %v6609
        %v6798 = vsel %vm6703, %v6607, %v6608
        %v6799 = vsel %vm6703, %v6606, %v6607
        %v6800 = vsel %vm6703, %v6605, %v6606
        %v6801 = vsel %vm6703, %v6604, %v6605
        %v6802 = vsel %vm6703, %v6603, %v6604
        %v6803 = vsel %vm6703, %v6602, %v6603
        %v6804 = vsel %vm6703, %v6601, %v6602
        %v6805 = vsel %vm6703, %v6600, %v6601
        %v6806 = vsel %vm6703, %v6599, %v6600
        %v6807 = vsel %vm6703, %v6598, %v6599
        %v6808 = vsel %vm6703, %v6597, %v6598
        %v6809 = vsel %vm6703, %v6596, %v6597
        %v6810 = vsel %vm6703, %v6595, %v6596
        %v6811 = vsel %vm6703, %v6594, %v6595
        %v6812 = vsel %vm6703, %v6593, %v6594
        %v6813 = vsel %vm6703, %v6592, %v6593
        %v6814 = vsel %vm6703, %v6591, %v6592
        %v6815 = vsel %vm6703, %v6590, %v6591
        %v6816 = vsel %vm6703, %v6589, %v6590
        %v6817 = vsel %vm6703, %v6588, %v6589
        %v6818 = vsel %vm6703, %v6587, %v6588
        %v6819 = vsel %vm6703, %v6586, %v6587
        %v6820 = vsel %vm6703, %v6585, %v6586
        %v6821 = vsel %vm6703, %v6584, %v6585
        %v6822 = vsel %vm6703, %v6583, %v6584
        %v6823 = vsel %vm6703, %v6582, %v6583
        %v6824 = vsel %vm6703, %v6581, %v6582
        %v6825 = vsel %vm6703, %v6580, %v6581
        %v6826 = vsel %vm6703, %v6579, %v6580
        %v6827 = vsel %vm6703, %v6578, %v6579
        %v6828 = vsel %vm6703, %v6577, %v6578
        %v6829 = vsel %vm6703, %v6576, %v6577
        %v6830 = vsel %vm6703, %v6575, %v6576
        %v6831 = vsel %vm6703, %v6702, %v6575
        %v6832 = vrot.slane %v2757, 6
        %v6833 = vrot.slane %v2760, 6
        %v6834 = vrot.slane %v2765, 6
        %v6835 = vrot.slane %v2768, 6
        %v6836 = vrot.slane %v2773, 6
        %v6837 = vrot.slane %v2776, 6
        %v6838 = vrot.slane %v2781, 6
        %v6839 = vrot.slane %v2784, 6
        %v6840 = vrot.slane %v2789, 6
        %v6841 = vrot.slane %v2792, 6
        %v6842 = vrot.slane %v2797, 6
        %v6843 = vrot.slane %v2800, 6
        %v6844 = vrot.slane %v2805, 6
        %v6845 = vrot.slane %v2808, 6
        %v6846 = vrot.slane %v2813, 6
        %v6847 = vrot.slane %v2816, 6
        %v6848 = vrot.slane %v2821, 6
        %v6849 = vrot.slane %v2824, 6
        %v6850 = vrot.slane %v2829, 6
        %v6851 = vrot.slane %v2832, 6
        %v6852 = vrot.slane %v2837, 6
        %v6853 = vrot.slane %v2840, 6
        %v6854 = vrot.slane %v2845, 6
        %v6855 = vrot.slane %v2848, 6
        %v6856 = vrot.slane %v2853, 6
        %v6857 = vrot.slane %v2856, 6
        %v6858 = vrot.slane %v2861, 6
        %v6859 = vrot.slane %v2864, 6
        %v6860 = vrot.slane %v2869, 6
        %v6861 = vrot.slane %v2872, 6
        %v6862 = vrot.slane %v2877, 6
        %v6863 = vrot.slane %v2880, 6
        %v6864 = vrot.slane %v2885, 6
        %v6865 = vrot.slane %v2888, 6
        %v6866 = vrot.slane %v2893, 6
        %v6867 = vrot.slane %v2896, 6
        %v6868 = vrot.slane %v2901, 6
        %v6869 = vrot.slane %v2904, 6
        %v6870 = vrot.slane %v2909, 6
        %v6871 = vrot.slane %v2912, 6
        %v6872 = vrot.slane %v2917, 6
        %v6873 = vrot.slane %v2920, 6
        %v6874 = vrot.slane %v2925, 6
        %v6875 = vrot.slane %v2928, 6
        %v6876 = vrot.slane %v2933, 6
        %v6877 = vrot.slane %v2936, 6
        %v6878 = vrot.slane %v2941, 6
        %v6879 = vrot.slane %v2944, 6
        %v6880 = vrot.slane %v2949, 6
        %v6881 = vrot.slane %v2952, 6
        %v6882 = vrot.slane %v2957, 6
        %v6883 = vrot.slane %v2960, 6
        %v6884 = vrot.slane %v2965, 6
        %v6885 = vrot.slane %v2968, 6
        %v6886 = vrot.slane %v2973, 6
        %v6887 = vrot.slane %v2976, 6
        %v6888 = vrot.slane %v2981, 6
        %v6889 = vrot.slane %v2984, 6
        %v6890 = vrot.slane %v2989, 6
        %v6891 = vrot.slane %v2992, 6
        %v6892 = vrot.slane %v2997, 6
        %v6893 = vrot.slane %v3000, 6
        %v6894 = vrot.slane %v3005, 6
        %v6895 = vrot.slane %v3008, 6
        %v6896 = vrot.slane %v3013, 6
        %v6897 = vrot.slane %v3016, 6
        %v6898 = vrot.slane %v3021, 6
        %v6899 = vrot.slane %v3024, 6
        %v6900 = vrot.slane %v3029, 6
        %v6901 = vrot.slane %v3032, 6
        %v6902 = vrot.slane %v3037, 6
        %v6903 = vrot.slane %v3040, 6
        %v6904 = vrot.slane %v3045, 6
        %v6905 = vrot.slane %v3048, 6
        %v6906 = vrot.slane %v3053, 6
        %v6907 = vrot.slane %v3056, 6
        %v6908 = vrot.slane %v3061, 6
        %v6909 = vrot.slane %v3064, 6
        %v6910 = vrot.slane %v3069, 6
        %v6911 = vrot.slane %v3072, 6
        %v6912 = vrot.slane %v3077, 6
        %v6913 = vrot.slane %v3080, 6
        %v6914 = vrot.slane %v3085, 6
        %v6915 = vrot.slane %v3088, 6
        %v6916 = vrot.slane %v3093, 6
        %v6917 = vrot.slane %v3096, 6
        %v6918 = vrot.slane %v3101, 6
        %v6919 = vrot.slane %v3104, 6
        %v6920 = vrot.slane %v3109, 6
        %v6921 = vrot.slane %v3112, 6
        %v6922 = vrot.slane %v3117, 6
        %v6923 = vrot.slane %v3120, 6
        %v6924 = vrot.slane %v3125, 6
        %v6925 = vrot.slane %v3128, 6
        %v6926 = vrot.slane %v3133, 6
        %v6927 = vrot.slane %v3136, 6
        %v6928 = vrot.slane %v3141, 6
        %v6929 = vrot.slane %v3144, 6
        %v6930 = vrot.slane %v3149, 6
        %v6931 = vrot.slane %v3152, 6
        %v6932 = vrot.slane %v3157, 6
        %v6933 = vrot.slane %v3160, 6
        %v6934 = vrot.slane %v3165, 6
        %v6935 = vrot.slane %v3168, 6
        %v6936 = vrot.slane %v3173, 6
        %v6937 = vrot.slane %v3176, 6
        %v6938 = vrot.slane %v3181, 6
        %v6939 = vrot.slane %v3184, 6
        %v6940 = vrot.slane %v3189, 6
        %v6941 = vrot.slane %v3192, 6
        %v6942 = vrot.slane %v3197, 6
        %v6943 = vrot.slane %v3200, 6
        %v6944 = vrot.slane %v3205, 6
        %v6945 = vrot.slane %v3208, 6
        %v6946 = vrot.slane %v3213, 6
        %v6947 = vrot.slane %v3216, 6
        %v6948 = vrot.slane %v3221, 6
        %v6949 = vrot.slane %v3224, 6
        %v6950 = vrot.slane %v3229, 6
        %v6951 = vrot.slane %v3232, 6
        %v6952 = vrot.slane %v3237, 6
        %v6953 = vrot.slane %v3240, 6
        %v6954 = vrot.slane %v3245, 6
        %v6955 = vrot.slane %v3248, 6
        %v6956 = vrot.slane %v3253, 6
        %v6957 = vrot.slane %v3256, 6
        %v6958 = vrot.slane %v3261, 6
        %v6959 = vrot.slane %v3264, 6
        %v6960 = vsel %vm4732, %v6958, %v6959
        %v6961 = vsel %vm4732, %v6957, %v6958
        %v6962 = vsel %vm4732, %v6956, %v6957
        %v6963 = vsel %vm4732, %v6955, %v6956
        %v6964 = vsel %vm4732, %v6954, %v6955
        %v6965 = vsel %vm4732, %v6953, %v6954
        %v6966 = vsel %vm4732, %v6952, %v6953
        %v6967 = vsel %vm4732, %v6951, %v6952
        %v6968 = vsel %vm4732, %v6950, %v6951
        %v6969 = vsel %vm4732, %v6949, %v6950
        %v6970 = vsel %vm4732, %v6948, %v6949
        %v6971 = vsel %vm4732, %v6947, %v6948
        %v6972 = vsel %vm4732, %v6946, %v6947
        %v6973 = vsel %vm4732, %v6945, %v6946
        %v6974 = vsel %vm4732, %v6944, %v6945
        %v6975 = vsel %vm4732, %v6943, %v6944
        %v6976 = vsel %vm4732, %v6942, %v6943
        %v6977 = vsel %vm4732, %v6941, %v6942
        %v6978 = vsel %vm4732, %v6940, %v6941
        %v6979 = vsel %vm4732, %v6939, %v6940
        %v6980 = vsel %vm4732, %v6938, %v6939
        %v6981 = vsel %vm4732, %v6937, %v6938
        %v6982 = vsel %vm4732, %v6936, %v6937
        %v6983 = vsel %vm4732, %v6935, %v6936
        %v6984 = vsel %vm4732, %v6934, %v6935
        %v6985 = vsel %vm4732, %v6933, %v6934
        %v6986 = vsel %vm4732, %v6932, %v6933
        %v6987 = vsel %vm4732, %v6931, %v6932
        %v6988 = vsel %vm4732, %v6930, %v6931
        %v6989 = vsel %vm4732, %v6929, %v6930
        %v6990 = vsel %vm4732, %v6928, %v6929
        %v6991 = vsel %vm4732, %v6927, %v6928
        %v6992 = vsel %vm4732, %v6926, %v6927
        %v6993 = vsel %vm4732, %v6925, %v6926
        %v6994 = vsel %vm4732, %v6924, %v6925
        %v6995 = vsel %vm4732, %v6923, %v6924
        %v6996 = vsel %vm4732, %v6922, %v6923
        %v6997 = vsel %vm4732, %v6921, %v6922
        %v6998 = vsel %vm4732, %v6920, %v6921
        %v6999 = vsel %vm4732, %v6919, %v6920
        %v7000 = vsel %vm4732, %v6918, %v6919
        %v7001 = vsel %vm4732, %v6917, %v6918
        %v7002 = vsel %vm4732, %v6916, %v6917
        %v7003 = vsel %vm4732, %v6915, %v6916
        %v7004 = vsel %vm4732, %v6914, %v6915
        %v7005 = vsel %vm4732, %v6913, %v6914
        %v7006 = vsel %vm4732, %v6912, %v6913
        %v7007 = vsel %vm4732, %v6911, %v6912
        %v7008 = vsel %vm4732, %v6910, %v6911
        %v7009 = vsel %vm4732, %v6909, %v6910
        %v7010 = vsel %vm4732, %v6908, %v6909
        %v7011 = vsel %vm4732, %v6907, %v6908
        %v7012 = vsel %vm4732, %v6906, %v6907
        %v7013 = vsel %vm4732, %v6905, %v6906
        %v7014 = vsel %vm4732, %v6904, %v6905
        %v7015 = vsel %vm4732, %v6903, %v6904
        %v7016 = vsel %vm4732, %v6902, %v6903
        %v7017 = vsel %vm4732, %v6901, %v6902
        %v7018 = vsel %vm4732, %v6900, %v6901
        %v7019 = vsel %vm4732, %v6899, %v6900
        %v7020 = vsel %vm4732, %v6898, %v6899
        %v7021 = vsel %vm4732, %v6897, %v6898
        %v7022 = vsel %vm4732, %v6896, %v6897
        %v7023 = vsel %vm4732, %v6895, %v6896
        %v7024 = vsel %vm4732, %v6894, %v6895
        %v7025 = vsel %vm4732, %v6893, %v6894
        %v7026 = vsel %vm4732, %v6892, %v6893
        %v7027 = vsel %vm4732, %v6891, %v6892
        %v7028 = vsel %vm4732, %v6890, %v6891
        %v7029 = vsel %vm4732, %v6889, %v6890
        %v7030 = vsel %vm4732, %v6888, %v6889
        %v7031 = vsel %vm4732, %v6887, %v6888
        %v7032 = vsel %vm4732, %v6886, %v6887
        %v7033 = vsel %vm4732, %v6885, %v6886
        %v7034 = vsel %vm4732, %v6884, %v6885
        %v7035 = vsel %vm4732, %v6883, %v6884
        %v7036 = vsel %vm4732, %v6882, %v6883
        %v7037 = vsel %vm4732, %v6881, %v6882
        %v7038 = vsel %vm4732, %v6880, %v6881
        %v7039 = vsel %vm4732, %v6879, %v6880
        %v7040 = vsel %vm4732, %v6878, %v6879
        %v7041 = vsel %vm4732, %v6877, %v6878
        %v7042 = vsel %vm4732, %v6876, %v6877
        %v7043 = vsel %vm4732, %v6875, %v6876
        %v7044 = vsel %vm4732, %v6874, %v6875
        %v7045 = vsel %vm4732, %v6873, %v6874
        %v7046 = vsel %vm4732, %v6872, %v6873
        %v7047 = vsel %vm4732, %v6871, %v6872
        %v7048 = vsel %vm4732, %v6870, %v6871
        %v7049 = vsel %vm4732, %v6869, %v6870
        %v7050 = vsel %vm4732, %v6868, %v6869
        %v7051 = vsel %vm4732, %v6867, %v6868
        %v7052 = vsel %vm4732, %v6866, %v6867
        %v7053 = vsel %vm4732, %v6865, %v6866
        %v7054 = vsel %vm4732, %v6864, %v6865
        %v7055 = vsel %vm4732, %v6863, %v6864
        %v7056 = vsel %vm4732, %v6862, %v6863
        %v7057 = vsel %vm4732, %v6861, %v6862
        %v7058 = vsel %vm4732, %v6860, %v6861
        %v7059 = vsel %vm4732, %v6859, %v6860
        %v7060 = vsel %vm4732, %v6858, %v6859
        %v7061 = vsel %vm4732, %v6857, %v6858
        %v7062 = vsel %vm4732, %v6856, %v6857
        %v7063 = vsel %vm4732, %v6855, %v6856
        %v7064 = vsel %vm4732, %v6854, %v6855
        %v7065 = vsel %vm4732, %v6853, %v6854
        %v7066 = vsel %vm4732, %v6852, %v6853
        %v7067 = vsel %vm4732, %v6851, %v6852
        %v7068 = vsel %vm4732, %v6850, %v6851
        %v7069 = vsel %vm4732, %v6849, %v6850
        %v7070 = vsel %vm4732, %v6848, %v6849
        %v7071 = vsel %vm4732, %v6847, %v6848
        %v7072 = vsel %vm4732, %v6846, %v6847
        %v7073 = vsel %vm4732, %v6845, %v6846
        %v7074 = vsel %vm4732, %v6844, %v6845
        %v7075 = vsel %vm4732, %v6843, %v6844
        %v7076 = vsel %vm4732, %v6842, %v6843
        %v7077 = vsel %vm4732, %v6841, %v6842
        %v7078 = vsel %vm4732, %v6840, %v6841
        %v7079 = vsel %vm4732, %v6839, %v6840
        %v7080 = vsel %vm4732, %v6838, %v6839
        %v7081 = vsel %vm4732, %v6837, %v6838
        %v7082 = vsel %vm4732, %v6836, %v6837
        %v7083 = vsel %vm4732, %v6835, %v6836
        %v7084 = vsel %vm4732, %v6834, %v6835
        %v7085 = vsel %vm4732, %v6833, %v6834
        %v7086 = vsel %vm4732, %v6832, %v6833
        %v7087 = vsel %vm4732, %v6959, %v6832
        %7088 = vrot.lane.b32.xlu0 %v7087, 120
        %v7089 = vpop.permute.xlu0 %7088
        %7090 = vrot.lane.b32.xlu0 %v7086, 120
        %v7091 = vpop.permute.xlu0 %7090
        %7092 = vrot.lane.b32.xlu0 %v7085, 120
        %v7093 = vpop.permute.xlu0 %7092
        %7094 = vrot.lane.b32.xlu0 %v7084, 120
        %v7095 = vpop.permute.xlu0 %7094
        %7096 = vrot.lane.b32.xlu0 %v7083, 120
        %v7097 = vpop.permute.xlu0 %7096
        %7098 = vrot.lane.b32.xlu0 %v7082, 120
        %v7099 = vpop.permute.xlu0 %7098
        %7100 = vrot.lane.b32.xlu0 %v7081, 120
        %v7101 = vpop.permute.xlu0 %7100
        %7102 = vrot.lane.b32.xlu0 %v7080, 120
        %v7103 = vpop.permute.xlu0 %7102
        %7104 = vrot.lane.b32.xlu0 %v7079, 120
        %v7105 = vpop.permute.xlu0 %7104
        %7106 = vrot.lane.b32.xlu0 %v7078, 120
        %v7107 = vpop.permute.xlu0 %7106
        %7108 = vrot.lane.b32.xlu0 %v7077, 120
        %v7109 = vpop.permute.xlu0 %7108
        %7110 = vrot.lane.b32.xlu0 %v7076, 120
        %v7111 = vpop.permute.xlu0 %7110
        %7112 = vrot.lane.b32.xlu0 %v7075, 120
        %v7113 = vpop.permute.xlu0 %7112
        %7114 = vrot.lane.b32.xlu0 %v7074, 120
        %v7115 = vpop.permute.xlu0 %7114
        %7116 = vrot.lane.b32.xlu0 %v7073, 120
        %v7117 = vpop.permute.xlu0 %7116
        %7118 = vrot.lane.b32.xlu0 %v7072, 120
        %v7119 = vpop.permute.xlu0 %7118
        %7120 = vrot.lane.b32.xlu0 %v7071, 120
        %v7121 = vpop.permute.xlu0 %7120
        %7122 = vrot.lane.b32.xlu0 %v7070, 120
        %v7123 = vpop.permute.xlu0 %7122
        %7124 = vrot.lane.b32.xlu0 %v7069, 120
        %v7125 = vpop.permute.xlu0 %7124
        %7126 = vrot.lane.b32.xlu0 %v7068, 120
        %v7127 = vpop.permute.xlu0 %7126
        %7128 = vrot.lane.b32.xlu0 %v7067, 120
        %v7129 = vpop.permute.xlu0 %7128
        %7130 = vrot.lane.b32.xlu0 %v7066, 120
        %v7131 = vpop.permute.xlu0 %7130
        %7132 = vrot.lane.b32.xlu0 %v7065, 120
        %v7133 = vpop.permute.xlu0 %7132
        %7134 = vrot.lane.b32.xlu0 %v7064, 120
        %v7135 = vpop.permute.xlu0 %7134
        %7136 = vrot.lane.b32.xlu0 %v7063, 120
        %v7137 = vpop.permute.xlu0 %7136
        %7138 = vrot.lane.b32.xlu0 %v7062, 120
        %v7139 = vpop.permute.xlu0 %7138
        %7140 = vrot.lane.b32.xlu0 %v7061, 120
        %v7141 = vpop.permute.xlu0 %7140
        %7142 = vrot.lane.b32.xlu0 %v7060, 120
        %v7143 = vpop.permute.xlu0 %7142
        %7144 = vrot.lane.b32.xlu0 %v7059, 120
        %v7145 = vpop.permute.xlu0 %7144
        %7146 = vrot.lane.b32.xlu0 %v7058, 120
        %v7147 = vpop.permute.xlu0 %7146
        %7148 = vrot.lane.b32.xlu0 %v7057, 120
        %v7149 = vpop.permute.xlu0 %7148
        %7150 = vrot.lane.b32.xlu0 %v7056, 120
        %v7151 = vpop.permute.xlu0 %7150
        %7152 = vrot.lane.b32.xlu0 %v7055, 120
        %v7153 = vpop.permute.xlu0 %7152
        %7154 = vrot.lane.b32.xlu0 %v7054, 120
        %v7155 = vpop.permute.xlu0 %7154
        %7156 = vrot.lane.b32.xlu0 %v7053, 120
        %v7157 = vpop.permute.xlu0 %7156
        %7158 = vrot.lane.b32.xlu0 %v7052, 120
        %v7159 = vpop.permute.xlu0 %7158
        %7160 = vrot.lane.b32.xlu0 %v7051, 120
        %v7161 = vpop.permute.xlu0 %7160
        %7162 = vrot.lane.b32.xlu0 %v7050, 120
        %v7163 = vpop.permute.xlu0 %7162
        %7164 = vrot.lane.b32.xlu0 %v7049, 120
        %v7165 = vpop.permute.xlu0 %7164
        %7166 = vrot.lane.b32.xlu0 %v7048, 120
        %v7167 = vpop.permute.xlu0 %7166
        %7168 = vrot.lane.b32.xlu0 %v7047, 120
        %v7169 = vpop.permute.xlu0 %7168
        %7170 = vrot.lane.b32.xlu0 %v7046, 120
        %v7171 = vpop.permute.xlu0 %7170
        %7172 = vrot.lane.b32.xlu0 %v7045, 120
        %v7173 = vpop.permute.xlu0 %7172
        %7174 = vrot.lane.b32.xlu0 %v7044, 120
        %v7175 = vpop.permute.xlu0 %7174
        %7176 = vrot.lane.b32.xlu0 %v7043, 120
        %v7177 = vpop.permute.xlu0 %7176
        %7178 = vrot.lane.b32.xlu0 %v7042, 120
        %v7179 = vpop.permute.xlu0 %7178
        %7180 = vrot.lane.b32.xlu0 %v7041, 120
        %v7181 = vpop.permute.xlu0 %7180
        %7182 = vrot.lane.b32.xlu0 %v7040, 120
        %v7183 = vpop.permute.xlu0 %7182
        %7184 = vrot.lane.b32.xlu0 %v7039, 120
        %v7185 = vpop.permute.xlu0 %7184
        %7186 = vrot.lane.b32.xlu0 %v7038, 120
        %v7187 = vpop.permute.xlu0 %7186
        %7188 = vrot.lane.b32.xlu0 %v7037, 120
        %v7189 = vpop.permute.xlu0 %7188
        %7190 = vrot.lane.b32.xlu0 %v7036, 120
        %v7191 = vpop.permute.xlu0 %7190
        %7192 = vrot.lane.b32.xlu0 %v7035, 120
        %v7193 = vpop.permute.xlu0 %7192
        %7194 = vrot.lane.b32.xlu0 %v7034, 120
        %v7195 = vpop.permute.xlu0 %7194
        %7196 = vrot.lane.b32.xlu0 %v7033, 120
        %v7197 = vpop.permute.xlu0 %7196
        %7198 = vrot.lane.b32.xlu0 %v7032, 120
        %v7199 = vpop.permute.xlu0 %7198
        %7200 = vrot.lane.b32.xlu0 %v7031, 120
        %v7201 = vpop.permute.xlu0 %7200
        %7202 = vrot.lane.b32.xlu0 %v7030, 120
        %v7203 = vpop.permute.xlu0 %7202
        %7204 = vrot.lane.b32.xlu0 %v7029, 120
        %v7205 = vpop.permute.xlu0 %7204
        %7206 = vrot.lane.b32.xlu0 %v7028, 120
        %v7207 = vpop.permute.xlu0 %7206
        %7208 = vrot.lane.b32.xlu0 %v7027, 120
        %v7209 = vpop.permute.xlu0 %7208
        %7210 = vrot.lane.b32.xlu0 %v7026, 120
        %v7211 = vpop.permute.xlu0 %7210
        %7212 = vrot.lane.b32.xlu0 %v7025, 120
        %v7213 = vpop.permute.xlu0 %7212
        %7214 = vrot.lane.b32.xlu0 %v7024, 120
        %v7215 = vpop.permute.xlu0 %7214
        %7216 = vrot.lane.b32.xlu0 %v7023, 120
        %v7217 = vpop.permute.xlu0 %7216
        %7218 = vrot.lane.b32.xlu0 %v7022, 120
        %v7219 = vpop.permute.xlu0 %7218
        %7220 = vrot.lane.b32.xlu0 %v7021, 120
        %v7221 = vpop.permute.xlu0 %7220
        %7222 = vrot.lane.b32.xlu0 %v7020, 120
        %v7223 = vpop.permute.xlu0 %7222
        %7224 = vrot.lane.b32.xlu0 %v7019, 120
        %v7225 = vpop.permute.xlu0 %7224
        %7226 = vrot.lane.b32.xlu0 %v7018, 120
        %v7227 = vpop.permute.xlu0 %7226
        %7228 = vrot.lane.b32.xlu0 %v7017, 120
        %v7229 = vpop.permute.xlu0 %7228
        %7230 = vrot.lane.b32.xlu0 %v7016, 120
        %v7231 = vpop.permute.xlu0 %7230
        %7232 = vrot.lane.b32.xlu0 %v7015, 120
        %v7233 = vpop.permute.xlu0 %7232
        %7234 = vrot.lane.b32.xlu0 %v7014, 120
        %v7235 = vpop.permute.xlu0 %7234
        %7236 = vrot.lane.b32.xlu0 %v7013, 120
        %v7237 = vpop.permute.xlu0 %7236
        %7238 = vrot.lane.b32.xlu0 %v7012, 120
        %v7239 = vpop.permute.xlu0 %7238
        %7240 = vrot.lane.b32.xlu0 %v7011, 120
        %v7241 = vpop.permute.xlu0 %7240
        %7242 = vrot.lane.b32.xlu0 %v7010, 120
        %v7243 = vpop.permute.xlu0 %7242
        %7244 = vrot.lane.b32.xlu0 %v7009, 120
        %v7245 = vpop.permute.xlu0 %7244
        %7246 = vrot.lane.b32.xlu0 %v7008, 120
        %v7247 = vpop.permute.xlu0 %7246
        %7248 = vrot.lane.b32.xlu0 %v7007, 120
        %v7249 = vpop.permute.xlu0 %7248
        %7250 = vrot.lane.b32.xlu0 %v7006, 120
        %v7251 = vpop.permute.xlu0 %7250
        %7252 = vrot.lane.b32.xlu0 %v7005, 120
        %v7253 = vpop.permute.xlu0 %7252
        %7254 = vrot.lane.b32.xlu0 %v7004, 120
        %v7255 = vpop.permute.xlu0 %7254
        %7256 = vrot.lane.b32.xlu0 %v7003, 120
        %v7257 = vpop.permute.xlu0 %7256
        %7258 = vrot.lane.b32.xlu0 %v7002, 120
        %v7259 = vpop.permute.xlu0 %7258
        %7260 = vrot.lane.b32.xlu0 %v7001, 120
        %v7261 = vpop.permute.xlu0 %7260
        %7262 = vrot.lane.b32.xlu0 %v7000, 120
        %v7263 = vpop.permute.xlu0 %7262
        %7264 = vrot.lane.b32.xlu0 %v6999, 120
        %v7265 = vpop.permute.xlu0 %7264
        %7266 = vrot.lane.b32.xlu0 %v6998, 120
        %v7267 = vpop.permute.xlu0 %7266
        %7268 = vrot.lane.b32.xlu0 %v6997, 120
        %v7269 = vpop.permute.xlu0 %7268
        %7270 = vrot.lane.b32.xlu0 %v6996, 120
        %v7271 = vpop.permute.xlu0 %7270
        %7272 = vrot.lane.b32.xlu0 %v6995, 120
        %v7273 = vpop.permute.xlu0 %7272
        %7274 = vrot.lane.b32.xlu0 %v6994, 120
        %v7275 = vpop.permute.xlu0 %7274
        %7276 = vrot.lane.b32.xlu0 %v6993, 120
        %v7277 = vpop.permute.xlu0 %7276
        %7278 = vrot.lane.b32.xlu0 %v6992, 120
        %v7279 = vpop.permute.xlu0 %7278
        %7280 = vrot.lane.b32.xlu0 %v6991, 120
        %v7281 = vpop.permute.xlu0 %7280
        %7282 = vrot.lane.b32.xlu0 %v6990, 120
        %v7283 = vpop.permute.xlu0 %7282
        %7284 = vrot.lane.b32.xlu0 %v6989, 120
        %v7285 = vpop.permute.xlu0 %7284
        %7286 = vrot.lane.b32.xlu0 %v6988, 120
        %v7287 = vpop.permute.xlu0 %7286
        %7288 = vrot.lane.b32.xlu0 %v6987, 120
        %v7289 = vpop.permute.xlu0 %7288
        %7290 = vrot.lane.b32.xlu0 %v6986, 120
        %v7291 = vpop.permute.xlu0 %7290
        %7292 = vrot.lane.b32.xlu0 %v6985, 120
        %v7293 = vpop.permute.xlu0 %7292
        %7294 = vrot.lane.b32.xlu0 %v6984, 120
        %v7295 = vpop.permute.xlu0 %7294
        %7296 = vrot.lane.b32.xlu0 %v6983, 120
        %v7297 = vpop.permute.xlu0 %7296
        %7298 = vrot.lane.b32.xlu0 %v6982, 120
        %v7299 = vpop.permute.xlu0 %7298
        %7300 = vrot.lane.b32.xlu0 %v6981, 120
        %v7301 = vpop.permute.xlu0 %7300
        %7302 = vrot.lane.b32.xlu0 %v6980, 120
        %v7303 = vpop.permute.xlu0 %7302
        %7304 = vrot.lane.b32.xlu0 %v6979, 120
        %v7305 = vpop.permute.xlu0 %7304
        %7306 = vrot.lane.b32.xlu0 %v6978, 120
        %v7307 = vpop.permute.xlu0 %7306
        %7308 = vrot.lane.b32.xlu0 %v6977, 120
        %v7309 = vpop.permute.xlu0 %7308
        %7310 = vrot.lane.b32.xlu0 %v6976, 120
        %v7311 = vpop.permute.xlu0 %7310
        %7312 = vrot.lane.b32.xlu0 %v6975, 120
        %v7313 = vpop.permute.xlu0 %7312
        %7314 = vrot.lane.b32.xlu0 %v6974, 120
        %v7315 = vpop.permute.xlu0 %7314
        %7316 = vrot.lane.b32.xlu0 %v6973, 120
        %v7317 = vpop.permute.xlu0 %7316
        %7318 = vrot.lane.b32.xlu0 %v6972, 120
        %v7319 = vpop.permute.xlu0 %7318
        %7320 = vrot.lane.b32.xlu0 %v6971, 120
        %v7321 = vpop.permute.xlu0 %7320
        %7322 = vrot.lane.b32.xlu0 %v6970, 120
        %v7323 = vpop.permute.xlu0 %7322
        %7324 = vrot.lane.b32.xlu0 %v6969, 120
        %v7325 = vpop.permute.xlu0 %7324
        %7326 = vrot.lane.b32.xlu0 %v6968, 120
        %v7327 = vpop.permute.xlu0 %7326
        %7328 = vrot.lane.b32.xlu0 %v6967, 120
        %v7329 = vpop.permute.xlu0 %7328
        %7330 = vrot.lane.b32.xlu0 %v6966, 120
        %v7331 = vpop.permute.xlu0 %7330
        %7332 = vrot.lane.b32.xlu0 %v6965, 120
        %v7333 = vpop.permute.xlu0 %7332
        %7334 = vrot.lane.b32.xlu0 %v6964, 120
        %v7335 = vpop.permute.xlu0 %7334
        %7336 = vrot.lane.b32.xlu0 %v6963, 120
        %v7337 = vpop.permute.xlu0 %7336
        %7338 = vrot.lane.b32.xlu0 %v6962, 120
        %v7339 = vpop.permute.xlu0 %7338
        %7340 = vrot.lane.b32.xlu0 %v6961, 120
        %v7341 = vpop.permute.xlu0 %7340
        %7342 = vrot.lane.b32.xlu0 %v6960, 120
        %v7343 = vpop.permute.xlu0 %7342
        %v7344 = vadd.f32 %v6831, %v7089
        %v7345 = vadd.f32 %v6830, %v7091
        %v7346 = vadd.f32 %v6829, %v7093
        %v7347 = vadd.f32 %v6828, %v7095
        %v7348 = vadd.f32 %v6827, %v7097
        %v7349 = vadd.f32 %v6826, %v7099
        %v7350 = vadd.f32 %v6825, %v7101
        %v7351 = vadd.f32 %v6824, %v7103
        %v7352 = vadd.f32 %v6823, %v7105
        %v7353 = vadd.f32 %v6822, %v7107
        %v7354 = vadd.f32 %v6821, %v7109
        %v7355 = vadd.f32 %v6820, %v7111
        %v7356 = vadd.f32 %v6819, %v7113
        %v7357 = vadd.f32 %v6818, %v7115
        %v7358 = vadd.f32 %v6817, %v7117
        %v7359 = vadd.f32 %v6816, %v7119
        %v7360 = vadd.f32 %v6815, %v7121
        %v7361 = vadd.f32 %v6814, %v7123
        %v7362 = vadd.f32 %v6813, %v7125
        %v7363 = vadd.f32 %v6812, %v7127
        %v7364 = vadd.f32 %v6811, %v7129
        %v7365 = vadd.f32 %v6810, %v7131
        %v7366 = vadd.f32 %v6809, %v7133
        %v7367 = vadd.f32 %v6808, %v7135
        %v7368 = vadd.f32 %v6807, %v7137
        %v7369 = vadd.f32 %v6806, %v7139
        %v7370 = vadd.f32 %v6805, %v7141
        %v7371 = vadd.f32 %v6804, %v7143
        %v7372 = vadd.f32 %v6803, %v7145
        %v7373 = vadd.f32 %v6802, %v7147
        %v7374 = vadd.f32 %v6801, %v7149
        %v7375 = vadd.f32 %v6800, %v7151
        %v7376 = vadd.f32 %v6799, %v7153
        %v7377 = vadd.f32 %v6798, %v7155
        %v7378 = vadd.f32 %v6797, %v7157
        %v7379 = vadd.f32 %v6796, %v7159
        %v7380 = vadd.f32 %v6795, %v7161
        %v7381 = vadd.f32 %v6794, %v7163
        %v7382 = vadd.f32 %v6793, %v7165
        %v7383 = vadd.f32 %v6792, %v7167
        %v7384 = vadd.f32 %v6791, %v7169
        %v7385 = vadd.f32 %v6790, %v7171
        %v7386 = vadd.f32 %v6789, %v7173
        %v7387 = vadd.f32 %v6788, %v7175
        %v7388 = vadd.f32 %v6787, %v7177
        %v7389 = vadd.f32 %v6786, %v7179
        %v7390 = vadd.f32 %v6785, %v7181
        %v7391 = vadd.f32 %v6784, %v7183
        %v7392 = vadd.f32 %v6783, %v7185
        %v7393 = vadd.f32 %v6782, %v7187
        %v7394 = vadd.f32 %v6781, %v7189
        %v7395 = vadd.f32 %v6780, %v7191
        %v7396 = vadd.f32 %v6779, %v7193
        %v7397 = vadd.f32 %v6778, %v7195
        %v7398 = vadd.f32 %v6777, %v7197
        %v7399 = vadd.f32 %v6776, %v7199
        %v7400 = vadd.f32 %v6775, %v7201
        %v7401 = vadd.f32 %v6774, %v7203
        %v7402 = vadd.f32 %v6773, %v7205
        %v7403 = vadd.f32 %v6772, %v7207
        %v7404 = vadd.f32 %v6771, %v7209
        %v7405 = vadd.f32 %v6770, %v7211
        %v7406 = vadd.f32 %v6769, %v7213
        %v7407 = vadd.f32 %v6768, %v7215
        %v7408 = vadd.f32 %v6767, %v7217
        %v7409 = vadd.f32 %v6766, %v7219
        %v7410 = vadd.f32 %v6765, %v7221
        %v7411 = vadd.f32 %v6764, %v7223
        %v7412 = vadd.f32 %v6763, %v7225
        %v7413 = vadd.f32 %v6762, %v7227
        %v7414 = vadd.f32 %v6761, %v7229
        %v7415 = vadd.f32 %v6760, %v7231
        %v7416 = vadd.f32 %v6759, %v7233
        %v7417 = vadd.f32 %v6758, %v7235
        %v7418 = vadd.f32 %v6757, %v7237
        %v7419 = vadd.f32 %v6756, %v7239
        %v7420 = vadd.f32 %v6755, %v7241
        %v7421 = vadd.f32 %v6754, %v7243
        %v7422 = vadd.f32 %v6753, %v7245
        %v7423 = vadd.f32 %v6752, %v7247
        %v7424 = vadd.f32 %v6751, %v7249
        %v7425 = vadd.f32 %v6750, %v7251
        %v7426 = vadd.f32 %v6749, %v7253
        %v7427 = vadd.f32 %v6748, %v7255
        %v7428 = vadd.f32 %v6747, %v7257
        %v7429 = vadd.f32 %v6746, %v7259
        %v7430 = vadd.f32 %v6745, %v7261
        %v7431 = vadd.f32 %v6744, %v7263
        %v7432 = vadd.f32 %v6743, %v7265
        %v7433 = vadd.f32 %v6742, %v7267
        %v7434 = vadd.f32 %v6741, %v7269
        %v7435 = vadd.f32 %v6740, %v7271
        %v7436 = vadd.f32 %v6739, %v7273
        %v7437 = vadd.f32 %v6738, %v7275
        %v7438 = vadd.f32 %v6737, %v7277
        %v7439 = vadd.f32 %v6736, %v7279
        %v7440 = vadd.f32 %v6735, %v7281
        %v7441 = vadd.f32 %v6734, %v7283
        %v7442 = vadd.f32 %v6733, %v7285
        %v7443 = vadd.f32 %v6732, %v7287
        %v7444 = vadd.f32 %v6731, %v7289
        %v7445 = vadd.f32 %v6730, %v7291
        %v7446 = vadd.f32 %v6729, %v7293
        %v7447 = vadd.f32 %v6728, %v7295
        %v7448 = vadd.f32 %v6727, %v7297
        %v7449 = vadd.f32 %v6726, %v7299
        %v7450 = vadd.f32 %v6725, %v7301
        %v7451 = vadd.f32 %v6724, %v7303
        %v7452 = vadd.f32 %v6723, %v7305
        %v7453 = vadd.f32 %v6722, %v7307
        %v7454 = vadd.f32 %v6721, %v7309
        %v7455 = vadd.f32 %v6720, %v7311
        %v7456 = vadd.f32 %v6719, %v7313
        %v7457 = vadd.f32 %v6718, %v7315
        %v7458 = vadd.f32 %v6717, %v7317
        %v7459 = vadd.f32 %v6716, %v7319
        %v7460 = vadd.f32 %v6715, %v7321
        %v7461 = vadd.f32 %v6714, %v7323
        %v7462 = vadd.f32 %v6713, %v7325
        %v7463 = vadd.f32 %v6712, %v7327
        %v7464 = vadd.f32 %v6711, %v7329
        %v7465 = vadd.f32 %v6710, %v7331
        %v7466 = vadd.f32 %v6709, %v7333
        %v7467 = vadd.f32 %v6708, %v7335
        %v7468 = vadd.f32 %v6707, %v7337
        %v7469 = vadd.f32 %v6706, %v7339
        %v7470 = vadd.f32 %v6705, %v7341
        %v7471 = vadd.f32 %v6704, %v7343
        %v7472 = vrot.slane %v2757, 7
        %v7473 = vrot.slane %v2760, 7
        %v7474 = vrot.slane %v2765, 7
        %v7475 = vrot.slane %v2768, 7
        %v7476 = vrot.slane %v2773, 7
        %v7477 = vrot.slane %v2776, 7
        %v7478 = vrot.slane %v2781, 7
        %v7479 = vrot.slane %v2784, 7
        %v7480 = vrot.slane %v2789, 7
        %v7481 = vrot.slane %v2792, 7
        %v7482 = vrot.slane %v2797, 7
        %v7483 = vrot.slane %v2800, 7
        %v7484 = vrot.slane %v2805, 7
        %v7485 = vrot.slane %v2808, 7
        %v7486 = vrot.slane %v2813, 7
        %v7487 = vrot.slane %v2816, 7
        %v7488 = vrot.slane %v2821, 7
        %v7489 = vrot.slane %v2824, 7
        %v7490 = vrot.slane %v2829, 7
        %v7491 = vrot.slane %v2832, 7
        %v7492 = vrot.slane %v2837, 7
        %v7493 = vrot.slane %v2840, 7
        %v7494 = vrot.slane %v2845, 7
        %v7495 = vrot.slane %v2848, 7
        %v7496 = vrot.slane %v2853, 7
        %v7497 = vrot.slane %v2856, 7
        %v7498 = vrot.slane %v2861, 7
        %v7499 = vrot.slane %v2864, 7
        %v7500 = vrot.slane %v2869, 7
        %v7501 = vrot.slane %v2872, 7
        %v7502 = vrot.slane %v2877, 7
        %v7503 = vrot.slane %v2880, 7
        %v7504 = vrot.slane %v2885, 7
        %v7505 = vrot.slane %v2888, 7
        %v7506 = vrot.slane %v2893, 7
        %v7507 = vrot.slane %v2896, 7
        %v7508 = vrot.slane %v2901, 7
        %v7509 = vrot.slane %v2904, 7
        %v7510 = vrot.slane %v2909, 7
        %v7511 = vrot.slane %v2912, 7
        %v7512 = vrot.slane %v2917, 7
        %v7513 = vrot.slane %v2920, 7
        %v7514 = vrot.slane %v2925, 7
        %v7515 = vrot.slane %v2928, 7
        %v7516 = vrot.slane %v2933, 7
        %v7517 = vrot.slane %v2936, 7
        %v7518 = vrot.slane %v2941, 7
        %v7519 = vrot.slane %v2944, 7
        %v7520 = vrot.slane %v2949, 7
        %v7521 = vrot.slane %v2952, 7
        %v7522 = vrot.slane %v2957, 7
        %v7523 = vrot.slane %v2960, 7
        %v7524 = vrot.slane %v2965, 7
        %v7525 = vrot.slane %v2968, 7
        %v7526 = vrot.slane %v2973, 7
        %v7527 = vrot.slane %v2976, 7
        %v7528 = vrot.slane %v2981, 7
        %v7529 = vrot.slane %v2984, 7
        %v7530 = vrot.slane %v2989, 7
        %v7531 = vrot.slane %v2992, 7
        %v7532 = vrot.slane %v2997, 7
        %v7533 = vrot.slane %v3000, 7
        %v7534 = vrot.slane %v3005, 7
        %v7535 = vrot.slane %v3008, 7
        %v7536 = vrot.slane %v3013, 7
        %v7537 = vrot.slane %v3016, 7
        %v7538 = vrot.slane %v3021, 7
        %v7539 = vrot.slane %v3024, 7
        %v7540 = vrot.slane %v3029, 7
        %v7541 = vrot.slane %v3032, 7
        %v7542 = vrot.slane %v3037, 7
        %v7543 = vrot.slane %v3040, 7
        %v7544 = vrot.slane %v3045, 7
        %v7545 = vrot.slane %v3048, 7
        %v7546 = vrot.slane %v3053, 7
        %v7547 = vrot.slane %v3056, 7
        %v7548 = vrot.slane %v3061, 7
        %v7549 = vrot.slane %v3064, 7
        %v7550 = vrot.slane %v3069, 7
        %v7551 = vrot.slane %v3072, 7
        %v7552 = vrot.slane %v3077, 7
        %v7553 = vrot.slane %v3080, 7
        %v7554 = vrot.slane %v3085, 7
        %v7555 = vrot.slane %v3088, 7
        %v7556 = vrot.slane %v3093, 7
        %v7557 = vrot.slane %v3096, 7
        %v7558 = vrot.slane %v3101, 7
        %v7559 = vrot.slane %v3104, 7
        %v7560 = vrot.slane %v3109, 7
        %v7561 = vrot.slane %v3112, 7
        %v7562 = vrot.slane %v3117, 7
        %v7563 = vrot.slane %v3120, 7
        %v7564 = vrot.slane %v3125, 7
        %v7565 = vrot.slane %v3128, 7
        %v7566 = vrot.slane %v3133, 7
        %v7567 = vrot.slane %v3136, 7
        %v7568 = vrot.slane %v3141, 7
        %v7569 = vrot.slane %v3144, 7
        %v7570 = vrot.slane %v3149, 7
        %v7571 = vrot.slane %v3152, 7
        %v7572 = vrot.slane %v3157, 7
        %v7573 = vrot.slane %v3160, 7
        %v7574 = vrot.slane %v3165, 7
        %v7575 = vrot.slane %v3168, 7
        %v7576 = vrot.slane %v3173, 7
        %v7577 = vrot.slane %v3176, 7
        %v7578 = vrot.slane %v3181, 7
        %v7579 = vrot.slane %v3184, 7
        %v7580 = vrot.slane %v3189, 7
        %v7581 = vrot.slane %v3192, 7
        %v7582 = vrot.slane %v3197, 7
        %v7583 = vrot.slane %v3200, 7
        %v7584 = vrot.slane %v3205, 7
        %v7585 = vrot.slane %v3208, 7
        %v7586 = vrot.slane %v3213, 7
        %v7587 = vrot.slane %v3216, 7
        %v7588 = vrot.slane %v3221, 7
        %v7589 = vrot.slane %v3224, 7
        %v7590 = vrot.slane %v3229, 7
        %v7591 = vrot.slane %v3232, 7
        %v7592 = vrot.slane %v3237, 7
        %v7593 = vrot.slane %v3240, 7
        %v7594 = vrot.slane %v3245, 7
        %v7595 = vrot.slane %v3248, 7
        %v7596 = vrot.slane %v3253, 7
        %v7597 = vrot.slane %v3256, 7
        %v7598 = vrot.slane %v3261, 7
        %v7599 = vrot.slane %v3264, 7
        %v7600 = vsel %vm3401, %v7598, %v7599
        %v7601 = vsel %vm3401, %v7597, %v7598
        %v7602 = vsel %vm3401, %v7596, %v7597
        %v7603 = vsel %vm3401, %v7595, %v7596
        %v7604 = vsel %vm3401, %v7594, %v7595
        %v7605 = vsel %vm3401, %v7593, %v7594
        %v7606 = vsel %vm3401, %v7592, %v7593
        %v7607 = vsel %vm3401, %v7591, %v7592
        %v7608 = vsel %vm3401, %v7590, %v7591
        %v7609 = vsel %vm3401, %v7589, %v7590
        %v7610 = vsel %vm3401, %v7588, %v7589
        %v7611 = vsel %vm3401, %v7587, %v7588
        %v7612 = vsel %vm3401, %v7586, %v7587
        %v7613 = vsel %vm3401, %v7585, %v7586
        %v7614 = vsel %vm3401, %v7584, %v7585
        %v7615 = vsel %vm3401, %v7583, %v7584
        %v7616 = vsel %vm3401, %v7582, %v7583
        %v7617 = vsel %vm3401, %v7581, %v7582
        %v7618 = vsel %vm3401, %v7580, %v7581
        %v7619 = vsel %vm3401, %v7579, %v7580
        %v7620 = vsel %vm3401, %v7578, %v7579
        %v7621 = vsel %vm3401, %v7577, %v7578
        %v7622 = vsel %vm3401, %v7576, %v7577
        %v7623 = vsel %vm3401, %v7575, %v7576
        %v7624 = vsel %vm3401, %v7574, %v7575
        %v7625 = vsel %vm3401, %v7573, %v7574
        %v7626 = vsel %vm3401, %v7572, %v7573
        %v7627 = vsel %vm3401, %v7571, %v7572
        %v7628 = vsel %vm3401, %v7570, %v7571
        %v7629 = vsel %vm3401, %v7569, %v7570
        %v7630 = vsel %vm3401, %v7568, %v7569
        %v7631 = vsel %vm3401, %v7567, %v7568
        %v7632 = vsel %vm3401, %v7566, %v7567
        %v7633 = vsel %vm3401, %v7565, %v7566
        %v7634 = vsel %vm3401, %v7564, %v7565
        %v7635 = vsel %vm3401, %v7563, %v7564
        %v7636 = vsel %vm3401, %v7562, %v7563
        %v7637 = vsel %vm3401, %v7561, %v7562
        %v7638 = vsel %vm3401, %v7560, %v7561
        %v7639 = vsel %vm3401, %v7559, %v7560
        %v7640 = vsel %vm3401, %v7558, %v7559
        %v7641 = vsel %vm3401, %v7557, %v7558
        %v7642 = vsel %vm3401, %v7556, %v7557
        %v7643 = vsel %vm3401, %v7555, %v7556
        %v7644 = vsel %vm3401, %v7554, %v7555
        %v7645 = vsel %vm3401, %v7553, %v7554
        %v7646 = vsel %vm3401, %v7552, %v7553
        %v7647 = vsel %vm3401, %v7551, %v7552
        %v7648 = vsel %vm3401, %v7550, %v7551
        %v7649 = vsel %vm3401, %v7549, %v7550
        %v7650 = vsel %vm3401, %v7548, %v7549
        %v7651 = vsel %vm3401, %v7547, %v7548
        %v7652 = vsel %vm3401, %v7546, %v7547
        %v7653 = vsel %vm3401, %v7545, %v7546
        %v7654 = vsel %vm3401, %v7544, %v7545
        %v7655 = vsel %vm3401, %v7543, %v7544
        %v7656 = vsel %vm3401, %v7542, %v7543
        %v7657 = vsel %vm3401, %v7541, %v7542
        %v7658 = vsel %vm3401, %v7540, %v7541
        %v7659 = vsel %vm3401, %v7539, %v7540
        %v7660 = vsel %vm3401, %v7538, %v7539
        %v7661 = vsel %vm3401, %v7537, %v7538
        %v7662 = vsel %vm3401, %v7536, %v7537
        %v7663 = vsel %vm3401, %v7535, %v7536
        %v7664 = vsel %vm3401, %v7534, %v7535
        %v7665 = vsel %vm3401, %v7533, %v7534
        %v7666 = vsel %vm3401, %v7532, %v7533
        %v7667 = vsel %vm3401, %v7531, %v7532
        %v7668 = vsel %vm3401, %v7530, %v7531
        %v7669 = vsel %vm3401, %v7529, %v7530
        %v7670 = vsel %vm3401, %v7528, %v7529
        %v7671 = vsel %vm3401, %v7527, %v7528
        %v7672 = vsel %vm3401, %v7526, %v7527
        %v7673 = vsel %vm3401, %v7525, %v7526
        %v7674 = vsel %vm3401, %v7524, %v7525
        %v7675 = vsel %vm3401, %v7523, %v7524
        %v7676 = vsel %vm3401, %v7522, %v7523
        %v7677 = vsel %vm3401, %v7521, %v7522
        %v7678 = vsel %vm3401, %v7520, %v7521
        %v7679 = vsel %vm3401, %v7519, %v7520
        %v7680 = vsel %vm3401, %v7518, %v7519
        %v7681 = vsel %vm3401, %v7517, %v7518
        %v7682 = vsel %vm3401, %v7516, %v7517
        %v7683 = vsel %vm3401, %v7515, %v7516
        %v7684 = vsel %vm3401, %v7514, %v7515
        %v7685 = vsel %vm3401, %v7513, %v7514
        %v7686 = vsel %vm3401, %v7512, %v7513
        %v7687 = vsel %vm3401, %v7511, %v7512
        %v7688 = vsel %vm3401, %v7510, %v7511
        %v7689 = vsel %vm3401, %v7509, %v7510
        %v7690 = vsel %vm3401, %v7508, %v7509
        %v7691 = vsel %vm3401, %v7507, %v7508
        %v7692 = vsel %vm3401, %v7506, %v7507
        %v7693 = vsel %vm3401, %v7505, %v7506
        %v7694 = vsel %vm3401, %v7504, %v7505
        %v7695 = vsel %vm3401, %v7503, %v7504
        %v7696 = vsel %vm3401, %v7502, %v7503
        %v7697 = vsel %vm3401, %v7501, %v7502
        %v7698 = vsel %vm3401, %v7500, %v7501
        %v7699 = vsel %vm3401, %v7499, %v7500
        %v7700 = vsel %vm3401, %v7498, %v7499
        %v7701 = vsel %vm3401, %v7497, %v7498
        %v7702 = vsel %vm3401, %v7496, %v7497
        %v7703 = vsel %vm3401, %v7495, %v7496
        %v7704 = vsel %vm3401, %v7494, %v7495
        %v7705 = vsel %vm3401, %v7493, %v7494
        %v7706 = vsel %vm3401, %v7492, %v7493
        %v7707 = vsel %vm3401, %v7491, %v7492
        %v7708 = vsel %vm3401, %v7490, %v7491
        %v7709 = vsel %vm3401, %v7489, %v7490
        %v7710 = vsel %vm3401, %v7488, %v7489
        %v7711 = vsel %vm3401, %v7487, %v7488
        %v7712 = vsel %vm3401, %v7486, %v7487
        %v7713 = vsel %vm3401, %v7485, %v7486
        %v7714 = vsel %vm3401, %v7484, %v7485
        %v7715 = vsel %vm3401, %v7483, %v7484
        %v7716 = vsel %vm3401, %v7482, %v7483
        %v7717 = vsel %vm3401, %v7481, %v7482
        %v7718 = vsel %vm3401, %v7480, %v7481
        %v7719 = vsel %vm3401, %v7479, %v7480
        %v7720 = vsel %vm3401, %v7478, %v7479
        %v7721 = vsel %vm3401, %v7477, %v7478
        %v7722 = vsel %vm3401, %v7476, %v7477
        %v7723 = vsel %vm3401, %v7475, %v7476
        %v7724 = vsel %vm3401, %v7474, %v7475
        %v7725 = vsel %vm3401, %v7473, %v7474
        %v7726 = vsel %vm3401, %v7472, %v7473
        %v7727 = vsel %vm3401, %v7599, %v7472
        %7728 = vrot.lane.b32.xlu0 %v7727, 112
        %v7729 = vpop.permute.xlu0 %7728
        %7730 = vrot.lane.b32.xlu0 %v7726, 112
        %v7731 = vpop.permute.xlu0 %7730
        %7732 = vrot.lane.b32.xlu0 %v7725, 112
        %v7733 = vpop.permute.xlu0 %7732
        %7734 = vrot.lane.b32.xlu0 %v7724, 112
        %v7735 = vpop.permute.xlu0 %7734
        %7736 = vrot.lane.b32.xlu0 %v7723, 112
        %v7737 = vpop.permute.xlu0 %7736
        %7738 = vrot.lane.b32.xlu0 %v7722, 112
        %v7739 = vpop.permute.xlu0 %7738
        %7740 = vrot.lane.b32.xlu0 %v7721, 112
        %v7741 = vpop.permute.xlu0 %7740
        %7742 = vrot.lane.b32.xlu0 %v7720, 112
        %v7743 = vpop.permute.xlu0 %7742
        %7744 = vrot.lane.b32.xlu0 %v7719, 112
        %v7745 = vpop.permute.xlu0 %7744
        %7746 = vrot.lane.b32.xlu0 %v7718, 112
        %v7747 = vpop.permute.xlu0 %7746
        %7748 = vrot.lane.b32.xlu0 %v7717, 112
        %v7749 = vpop.permute.xlu0 %7748
        %7750 = vrot.lane.b32.xlu0 %v7716, 112
        %v7751 = vpop.permute.xlu0 %7750
        %7752 = vrot.lane.b32.xlu0 %v7715, 112
        %v7753 = vpop.permute.xlu0 %7752
        %7754 = vrot.lane.b32.xlu0 %v7714, 112
        %v7755 = vpop.permute.xlu0 %7754
        %7756 = vrot.lane.b32.xlu0 %v7713, 112
        %v7757 = vpop.permute.xlu0 %7756
        %7758 = vrot.lane.b32.xlu0 %v7712, 112
        %v7759 = vpop.permute.xlu0 %7758
        %7760 = vrot.lane.b32.xlu0 %v7711, 112
        %v7761 = vpop.permute.xlu0 %7760
        %7762 = vrot.lane.b32.xlu0 %v7710, 112
        %v7763 = vpop.permute.xlu0 %7762
        %7764 = vrot.lane.b32.xlu0 %v7709, 112
        %v7765 = vpop.permute.xlu0 %7764
        %7766 = vrot.lane.b32.xlu0 %v7708, 112
        %v7767 = vpop.permute.xlu0 %7766
        %7768 = vrot.lane.b32.xlu0 %v7707, 112
        %v7769 = vpop.permute.xlu0 %7768
        %7770 = vrot.lane.b32.xlu0 %v7706, 112
        %v7771 = vpop.permute.xlu0 %7770
        %7772 = vrot.lane.b32.xlu0 %v7705, 112
        %v7773 = vpop.permute.xlu0 %7772
        %7774 = vrot.lane.b32.xlu0 %v7704, 112
        %v7775 = vpop.permute.xlu0 %7774
        %7776 = vrot.lane.b32.xlu0 %v7703, 112
        %v7777 = vpop.permute.xlu0 %7776
        %7778 = vrot.lane.b32.xlu0 %v7702, 112
        %v7779 = vpop.permute.xlu0 %7778
        %7780 = vrot.lane.b32.xlu0 %v7701, 112
        %v7781 = vpop.permute.xlu0 %7780
        %7782 = vrot.lane.b32.xlu0 %v7700, 112
        %v7783 = vpop.permute.xlu0 %7782
        %7784 = vrot.lane.b32.xlu0 %v7699, 112
        %v7785 = vpop.permute.xlu0 %7784
        %7786 = vrot.lane.b32.xlu0 %v7698, 112
        %v7787 = vpop.permute.xlu0 %7786
        %7788 = vrot.lane.b32.xlu0 %v7697, 112
        %v7789 = vpop.permute.xlu0 %7788
        %7790 = vrot.lane.b32.xlu0 %v7696, 112
        %v7791 = vpop.permute.xlu0 %7790
        %7792 = vrot.lane.b32.xlu0 %v7695, 112
        %v7793 = vpop.permute.xlu0 %7792
        %7794 = vrot.lane.b32.xlu0 %v7694, 112
        %v7795 = vpop.permute.xlu0 %7794
        %7796 = vrot.lane.b32.xlu0 %v7693, 112
        %v7797 = vpop.permute.xlu0 %7796
        %7798 = vrot.lane.b32.xlu0 %v7692, 112
        %v7799 = vpop.permute.xlu0 %7798
        %7800 = vrot.lane.b32.xlu0 %v7691, 112
        %v7801 = vpop.permute.xlu0 %7800
        %7802 = vrot.lane.b32.xlu0 %v7690, 112
        %v7803 = vpop.permute.xlu0 %7802
        %7804 = vrot.lane.b32.xlu0 %v7689, 112
        %v7805 = vpop.permute.xlu0 %7804
        %7806 = vrot.lane.b32.xlu0 %v7688, 112
        %v7807 = vpop.permute.xlu0 %7806
        %7808 = vrot.lane.b32.xlu0 %v7687, 112
        %v7809 = vpop.permute.xlu0 %7808
        %7810 = vrot.lane.b32.xlu0 %v7686, 112
        %v7811 = vpop.permute.xlu0 %7810
        %7812 = vrot.lane.b32.xlu0 %v7685, 112
        %v7813 = vpop.permute.xlu0 %7812
        %7814 = vrot.lane.b32.xlu0 %v7684, 112
        %v7815 = vpop.permute.xlu0 %7814
        %7816 = vrot.lane.b32.xlu0 %v7683, 112
        %v7817 = vpop.permute.xlu0 %7816
        %7818 = vrot.lane.b32.xlu0 %v7682, 112
        %v7819 = vpop.permute.xlu0 %7818
        %7820 = vrot.lane.b32.xlu0 %v7681, 112
        %v7821 = vpop.permute.xlu0 %7820
        %7822 = vrot.lane.b32.xlu0 %v7680, 112
        %v7823 = vpop.permute.xlu0 %7822
        %7824 = vrot.lane.b32.xlu0 %v7679, 112
        %v7825 = vpop.permute.xlu0 %7824
        %7826 = vrot.lane.b32.xlu0 %v7678, 112
        %v7827 = vpop.permute.xlu0 %7826
        %7828 = vrot.lane.b32.xlu0 %v7677, 112
        %v7829 = vpop.permute.xlu0 %7828
        %7830 = vrot.lane.b32.xlu0 %v7676, 112
        %v7831 = vpop.permute.xlu0 %7830
        %7832 = vrot.lane.b32.xlu0 %v7675, 112
        %v7833 = vpop.permute.xlu0 %7832
        %7834 = vrot.lane.b32.xlu0 %v7674, 112
        %v7835 = vpop.permute.xlu0 %7834
        %7836 = vrot.lane.b32.xlu0 %v7673, 112
        %v7837 = vpop.permute.xlu0 %7836
        %7838 = vrot.lane.b32.xlu0 %v7672, 112
        %v7839 = vpop.permute.xlu0 %7838
        %7840 = vrot.lane.b32.xlu0 %v7671, 112
        %v7841 = vpop.permute.xlu0 %7840
        %7842 = vrot.lane.b32.xlu0 %v7670, 112
        %v7843 = vpop.permute.xlu0 %7842
        %7844 = vrot.lane.b32.xlu0 %v7669, 112
        %v7845 = vpop.permute.xlu0 %7844
        %7846 = vrot.lane.b32.xlu0 %v7668, 112
        %v7847 = vpop.permute.xlu0 %7846
        %7848 = vrot.lane.b32.xlu0 %v7667, 112
        %v7849 = vpop.permute.xlu0 %7848
        %7850 = vrot.lane.b32.xlu0 %v7666, 112
        %v7851 = vpop.permute.xlu0 %7850
        %7852 = vrot.lane.b32.xlu0 %v7665, 112
        %v7853 = vpop.permute.xlu0 %7852
        %7854 = vrot.lane.b32.xlu0 %v7664, 112
        %v7855 = vpop.permute.xlu0 %7854
        %7856 = vrot.lane.b32.xlu0 %v7663, 112
        %v7857 = vpop.permute.xlu0 %7856
        %7858 = vrot.lane.b32.xlu0 %v7662, 112
        %v7859 = vpop.permute.xlu0 %7858
        %7860 = vrot.lane.b32.xlu0 %v7661, 112
        %v7861 = vpop.permute.xlu0 %7860
        %7862 = vrot.lane.b32.xlu0 %v7660, 112
        %v7863 = vpop.permute.xlu0 %7862
        %7864 = vrot.lane.b32.xlu0 %v7659, 112
        %v7865 = vpop.permute.xlu0 %7864
        %7866 = vrot.lane.b32.xlu0 %v7658, 112
        %v7867 = vpop.permute.xlu0 %7866
        %7868 = vrot.lane.b32.xlu0 %v7657, 112
        %v7869 = vpop.permute.xlu0 %7868
        %7870 = vrot.lane.b32.xlu0 %v7656, 112
        %v7871 = vpop.permute.xlu0 %7870
        %7872 = vrot.lane.b32.xlu0 %v7655, 112
        %v7873 = vpop.permute.xlu0 %7872
        %7874 = vrot.lane.b32.xlu0 %v7654, 112
        %v7875 = vpop.permute.xlu0 %7874
        %7876 = vrot.lane.b32.xlu0 %v7653, 112
        %v7877 = vpop.permute.xlu0 %7876
        %7878 = vrot.lane.b32.xlu0 %v7652, 112
        %v7879 = vpop.permute.xlu0 %7878
        %7880 = vrot.lane.b32.xlu0 %v7651, 112
        %v7881 = vpop.permute.xlu0 %7880
        %7882 = vrot.lane.b32.xlu0 %v7650, 112
        %v7883 = vpop.permute.xlu0 %7882
        %7884 = vrot.lane.b32.xlu0 %v7649, 112
        %v7885 = vpop.permute.xlu0 %7884
        %7886 = vrot.lane.b32.xlu0 %v7648, 112
        %v7887 = vpop.permute.xlu0 %7886
        %7888 = vrot.lane.b32.xlu0 %v7647, 112
        %v7889 = vpop.permute.xlu0 %7888
        %7890 = vrot.lane.b32.xlu0 %v7646, 112
        %v7891 = vpop.permute.xlu0 %7890
        %7892 = vrot.lane.b32.xlu0 %v7645, 112
        %v7893 = vpop.permute.xlu0 %7892
        %7894 = vrot.lane.b32.xlu0 %v7644, 112
        %v7895 = vpop.permute.xlu0 %7894
        %7896 = vrot.lane.b32.xlu0 %v7643, 112
        %v7897 = vpop.permute.xlu0 %7896
        %7898 = vrot.lane.b32.xlu0 %v7642, 112
        %v7899 = vpop.permute.xlu0 %7898
        %7900 = vrot.lane.b32.xlu0 %v7641, 112
        %v7901 = vpop.permute.xlu0 %7900
        %7902 = vrot.lane.b32.xlu0 %v7640, 112
        %v7903 = vpop.permute.xlu0 %7902
        %7904 = vrot.lane.b32.xlu0 %v7639, 112
        %v7905 = vpop.permute.xlu0 %7904
        %7906 = vrot.lane.b32.xlu0 %v7638, 112
        %v7907 = vpop.permute.xlu0 %7906
        %7908 = vrot.lane.b32.xlu0 %v7637, 112
        %v7909 = vpop.permute.xlu0 %7908
        %7910 = vrot.lane.b32.xlu0 %v7636, 112
        %v7911 = vpop.permute.xlu0 %7910
        %7912 = vrot.lane.b32.xlu0 %v7635, 112
        %v7913 = vpop.permute.xlu0 %7912
        %7914 = vrot.lane.b32.xlu0 %v7634, 112
        %v7915 = vpop.permute.xlu0 %7914
        %7916 = vrot.lane.b32.xlu0 %v7633, 112
        %v7917 = vpop.permute.xlu0 %7916
        %7918 = vrot.lane.b32.xlu0 %v7632, 112
        %v7919 = vpop.permute.xlu0 %7918
        %7920 = vrot.lane.b32.xlu0 %v7631, 112
        %v7921 = vpop.permute.xlu0 %7920
        %7922 = vrot.lane.b32.xlu0 %v7630, 112
        %v7923 = vpop.permute.xlu0 %7922
        %7924 = vrot.lane.b32.xlu0 %v7629, 112
        %v7925 = vpop.permute.xlu0 %7924
        %7926 = vrot.lane.b32.xlu0 %v7628, 112
        %v7927 = vpop.permute.xlu0 %7926
        %7928 = vrot.lane.b32.xlu0 %v7627, 112
        %v7929 = vpop.permute.xlu0 %7928
        %7930 = vrot.lane.b32.xlu0 %v7626, 112
        %v7931 = vpop.permute.xlu0 %7930
        %7932 = vrot.lane.b32.xlu0 %v7625, 112
        %v7933 = vpop.permute.xlu0 %7932
        %7934 = vrot.lane.b32.xlu0 %v7624, 112
        %v7935 = vpop.permute.xlu0 %7934
        %7936 = vrot.lane.b32.xlu0 %v7623, 112
        %v7937 = vpop.permute.xlu0 %7936
        %7938 = vrot.lane.b32.xlu0 %v7622, 112
        %v7939 = vpop.permute.xlu0 %7938
        %7940 = vrot.lane.b32.xlu0 %v7621, 112
        %v7941 = vpop.permute.xlu0 %7940
        %7942 = vrot.lane.b32.xlu0 %v7620, 112
        %v7943 = vpop.permute.xlu0 %7942
        %7944 = vrot.lane.b32.xlu0 %v7619, 112
        %v7945 = vpop.permute.xlu0 %7944
        %7946 = vrot.lane.b32.xlu0 %v7618, 112
        %v7947 = vpop.permute.xlu0 %7946
        %7948 = vrot.lane.b32.xlu0 %v7617, 112
        %v7949 = vpop.permute.xlu0 %7948
        %7950 = vrot.lane.b32.xlu0 %v7616, 112
        %v7951 = vpop.permute.xlu0 %7950
        %7952 = vrot.lane.b32.xlu0 %v7615, 112
        %v7953 = vpop.permute.xlu0 %7952
        %7954 = vrot.lane.b32.xlu0 %v7614, 112
        %v7955 = vpop.permute.xlu0 %7954
        %7956 = vrot.lane.b32.xlu0 %v7613, 112
        %v7957 = vpop.permute.xlu0 %7956
        %7958 = vrot.lane.b32.xlu0 %v7612, 112
        %v7959 = vpop.permute.xlu0 %7958
        %7960 = vrot.lane.b32.xlu0 %v7611, 112
        %v7961 = vpop.permute.xlu0 %7960
        %7962 = vrot.lane.b32.xlu0 %v7610, 112
        %v7963 = vpop.permute.xlu0 %7962
        %7964 = vrot.lane.b32.xlu0 %v7609, 112
        %v7965 = vpop.permute.xlu0 %7964
        %7966 = vrot.lane.b32.xlu0 %v7608, 112
        %v7967 = vpop.permute.xlu0 %7966
        %7968 = vrot.lane.b32.xlu0 %v7607, 112
        %v7969 = vpop.permute.xlu0 %7968
        %7970 = vrot.lane.b32.xlu0 %v7606, 112
        %v7971 = vpop.permute.xlu0 %7970
        %7972 = vrot.lane.b32.xlu0 %v7605, 112
        %v7973 = vpop.permute.xlu0 %7972
        %7974 = vrot.lane.b32.xlu0 %v7604, 112
        %v7975 = vpop.permute.xlu0 %7974
        %7976 = vrot.lane.b32.xlu0 %v7603, 112
        %v7977 = vpop.permute.xlu0 %7976
        %7978 = vrot.lane.b32.xlu0 %v7602, 112
        %v7979 = vpop.permute.xlu0 %7978
        %7980 = vrot.lane.b32.xlu0 %v7601, 112
        %v7981 = vpop.permute.xlu0 %7980
        %7982 = vrot.lane.b32.xlu0 %v7600, 112
        %v7983 = vpop.permute.xlu0 %7982
        %v7984 = vadd.f32 %v7344, %v7729
        %v7985 = vadd.f32 %v7345, %v7731
        %v7986 = vadd.f32 %v7346, %v7733
        %v7987 = vadd.f32 %v7347, %v7735
        %v7988 = vadd.f32 %v7348, %v7737
        %v7989 = vadd.f32 %v7349, %v7739
        %v7990 = vadd.f32 %v7350, %v7741
        %v7991 = vadd.f32 %v7351, %v7743
        %v7992 = vadd.f32 %v7352, %v7745
        %v7993 = vadd.f32 %v7353, %v7747
        %v7994 = vadd.f32 %v7354, %v7749
        %v7995 = vadd.f32 %v7355, %v7751
        %v7996 = vadd.f32 %v7356, %v7753
        %v7997 = vadd.f32 %v7357, %v7755
        %v7998 = vadd.f32 %v7358, %v7757
        %v7999 = vadd.f32 %v7359, %v7759
        %v8000 = vadd.f32 %v7360, %v7761
        %v8001 = vadd.f32 %v7361, %v7763
        %v8002 = vadd.f32 %v7362, %v7765
        %v8003 = vadd.f32 %v7363, %v7767
        %v8004 = vadd.f32 %v7364, %v7769
        %v8005 = vadd.f32 %v7365, %v7771
        %v8006 = vadd.f32 %v7366, %v7773
        %v8007 = vadd.f32 %v7367, %v7775
        %v8008 = vadd.f32 %v7368, %v7777
        %v8009 = vadd.f32 %v7369, %v7779
        %v8010 = vadd.f32 %v7370, %v7781
        %v8011 = vadd.f32 %v7371, %v7783
        %v8012 = vadd.f32 %v7372, %v7785
        %v8013 = vadd.f32 %v7373, %v7787
        %v8014 = vadd.f32 %v7374, %v7789
        %v8015 = vadd.f32 %v7375, %v7791
        %v8016 = vadd.f32 %v7376, %v7793
        %v8017 = vadd.f32 %v7377, %v7795
        %v8018 = vadd.f32 %v7378, %v7797
        %v8019 = vadd.f32 %v7379, %v7799
        %v8020 = vadd.f32 %v7380, %v7801
        %v8021 = vadd.f32 %v7381, %v7803
        %v8022 = vadd.f32 %v7382, %v7805
        %v8023 = vadd.f32 %v7383, %v7807
        %v8024 = vadd.f32 %v7384, %v7809
        %v8025 = vadd.f32 %v7385, %v7811
        %v8026 = vadd.f32 %v7386, %v7813
        %v8027 = vadd.f32 %v7387, %v7815
        %v8028 = vadd.f32 %v7388, %v7817
        %v8029 = vadd.f32 %v7389, %v7819
        %v8030 = vadd.f32 %v7390, %v7821
        %v8031 = vadd.f32 %v7391, %v7823
        %v8032 = vadd.f32 %v7392, %v7825
        %v8033 = vadd.f32 %v7393, %v7827
        %v8034 = vadd.f32 %v7394, %v7829
        %v8035 = vadd.f32 %v7395, %v7831
        %v8036 = vadd.f32 %v7396, %v7833
        %v8037 = vadd.f32 %v7397, %v7835
        %v8038 = vadd.f32 %v7398, %v7837
        %v8039 = vadd.f32 %v7399, %v7839
        %v8040 = vadd.f32 %v7400, %v7841
        %v8041 = vadd.f32 %v7401, %v7843
        %v8042 = vadd.f32 %v7402, %v7845
        %v8043 = vadd.f32 %v7403, %v7847
        %v8044 = vadd.f32 %v7404, %v7849
        %v8045 = vadd.f32 %v7405, %v7851
        %v8046 = vadd.f32 %v7406, %v7853
        %v8047 = vadd.f32 %v7407, %v7855
        %v8048 = vadd.f32 %v7408, %v7857
        %v8049 = vadd.f32 %v7409, %v7859
        %v8050 = vadd.f32 %v7410, %v7861
        %v8051 = vadd.f32 %v7411, %v7863
        %v8052 = vadd.f32 %v7412, %v7865
        %v8053 = vadd.f32 %v7413, %v7867
        %v8054 = vadd.f32 %v7414, %v7869
        %v8055 = vadd.f32 %v7415, %v7871
        %v8056 = vadd.f32 %v7416, %v7873
        %v8057 = vadd.f32 %v7417, %v7875
        %v8058 = vadd.f32 %v7418, %v7877
        %v8059 = vadd.f32 %v7419, %v7879
        %v8060 = vadd.f32 %v7420, %v7881
        %v8061 = vadd.f32 %v7421, %v7883
        %v8062 = vadd.f32 %v7422, %v7885
        %v8063 = vadd.f32 %v7423, %v7887
        %v8064 = vadd.f32 %v7424, %v7889
        %v8065 = vadd.f32 %v7425, %v7891
        %v8066 = vadd.f32 %v7426, %v7893
        %v8067 = vadd.f32 %v7427, %v7895
        %v8068 = vadd.f32 %v7428, %v7897
        %v8069 = vadd.f32 %v7429, %v7899
        %v8070 = vadd.f32 %v7430, %v7901
        %v8071 = vadd.f32 %v7431, %v7903
        %v8072 = vadd.f32 %v7432, %v7905
        %v8073 = vadd.f32 %v7433, %v7907
        %v8074 = vadd.f32 %v7434, %v7909
        %v8075 = vadd.f32 %v7435, %v7911
        %v8076 = vadd.f32 %v7436, %v7913
        %v8077 = vadd.f32 %v7437, %v7915
        %v8078 = vadd.f32 %v7438, %v7917
        %v8079 = vadd.f32 %v7439, %v7919
        %v8080 = vadd.f32 %v7440, %v7921
        %v8081 = vadd.f32 %v7441, %v7923
        %v8082 = vadd.f32 %v7442, %v7925
        %v8083 = vadd.f32 %v7443, %v7927
        %v8084 = vadd.f32 %v7444, %v7929
        %v8085 = vadd.f32 %v7445, %v7931
        %v8086 = vadd.f32 %v7446, %v7933
        %v8087 = vadd.f32 %v7447, %v7935
        %v8088 = vadd.f32 %v7448, %v7937
        %v8089 = vadd.f32 %v7449, %v7939
        %v8090 = vadd.f32 %v7450, %v7941
        %v8091 = vadd.f32 %v7451, %v7943
        %v8092 = vadd.f32 %v7452, %v7945
        %v8093 = vadd.f32 %v7453, %v7947
        %v8094 = vadd.f32 %v7454, %v7949
        %v8095 = vadd.f32 %v7455, %v7951
        %v8096 = vadd.f32 %v7456, %v7953
        %v8097 = vadd.f32 %v7457, %v7955
        %v8098 = vadd.f32 %v7458, %v7957
        %v8099 = vadd.f32 %v7459, %v7959
        %v8100 = vadd.f32 %v7460, %v7961
        %v8101 = vadd.f32 %v7461, %v7963
        %v8102 = vadd.f32 %v7462, %v7965
        %v8103 = vadd.f32 %v7463, %v7967
        %v8104 = vadd.f32 %v7464, %v7969
        %v8105 = vadd.f32 %v7465, %v7971
        %v8106 = vadd.f32 %v7466, %v7973
        %v8107 = vadd.f32 %v7467, %v7975
        %v8108 = vadd.f32 %v7468, %v7977
        %v8109 = vadd.f32 %v7469, %v7979
        %v8110 = vadd.f32 %v7470, %v7981
        %v8111 = vadd.f32 %v7471, %v7983
        %8112 = vrot.lane.b32.xlu0 %v2757, 104
        %v8113 = vpop.permute.xlu0 %8112
        %8114 = vrot.lane.b32.xlu0 %v2760, 104
        %v8115 = vpop.permute.xlu0 %8114
        %8116 = vrot.lane.b32.xlu0 %v2765, 104
        %v8117 = vpop.permute.xlu0 %8116
        %8118 = vrot.lane.b32.xlu0 %v2768, 104
        %v8119 = vpop.permute.xlu0 %8118
        %8120 = vrot.lane.b32.xlu0 %v2773, 104
        %v8121 = vpop.permute.xlu0 %8120
        %8122 = vrot.lane.b32.xlu0 %v2776, 104
        %v8123 = vpop.permute.xlu0 %8122
        %8124 = vrot.lane.b32.xlu0 %v2781, 104
        %v8125 = vpop.permute.xlu0 %8124
        %8126 = vrot.lane.b32.xlu0 %v2784, 104
        %v8127 = vpop.permute.xlu0 %8126
        %8128 = vrot.lane.b32.xlu0 %v2789, 104
        %v8129 = vpop.permute.xlu0 %8128
        %8130 = vrot.lane.b32.xlu0 %v2792, 104
        %v8131 = vpop.permute.xlu0 %8130
        %8132 = vrot.lane.b32.xlu0 %v2797, 104
        %v8133 = vpop.permute.xlu0 %8132
        %8134 = vrot.lane.b32.xlu0 %v2800, 104
        %v8135 = vpop.permute.xlu0 %8134
        %8136 = vrot.lane.b32.xlu0 %v2805, 104
        %v8137 = vpop.permute.xlu0 %8136
        %8138 = vrot.lane.b32.xlu0 %v2808, 104
        %v8139 = vpop.permute.xlu0 %8138
        %8140 = vrot.lane.b32.xlu0 %v2813, 104
        %v8141 = vpop.permute.xlu0 %8140
        %8142 = vrot.lane.b32.xlu0 %v2816, 104
        %v8143 = vpop.permute.xlu0 %8142
        %8144 = vrot.lane.b32.xlu0 %v2821, 104
        %v8145 = vpop.permute.xlu0 %8144
        %8146 = vrot.lane.b32.xlu0 %v2824, 104
        %v8147 = vpop.permute.xlu0 %8146
        %8148 = vrot.lane.b32.xlu0 %v2829, 104
        %v8149 = vpop.permute.xlu0 %8148
        %8150 = vrot.lane.b32.xlu0 %v2832, 104
        %v8151 = vpop.permute.xlu0 %8150
        %8152 = vrot.lane.b32.xlu0 %v2837, 104
        %v8153 = vpop.permute.xlu0 %8152
        %8154 = vrot.lane.b32.xlu0 %v2840, 104
        %v8155 = vpop.permute.xlu0 %8154
        %8156 = vrot.lane.b32.xlu0 %v2845, 104
        %v8157 = vpop.permute.xlu0 %8156
        %8158 = vrot.lane.b32.xlu0 %v2848, 104
        %v8159 = vpop.permute.xlu0 %8158
        %8160 = vrot.lane.b32.xlu0 %v2853, 104
        %v8161 = vpop.permute.xlu0 %8160
        %8162 = vrot.lane.b32.xlu0 %v2856, 104
        %v8163 = vpop.permute.xlu0 %8162
        %8164 = vrot.lane.b32.xlu0 %v2861, 104
        %v8165 = vpop.permute.xlu0 %8164
        %8166 = vrot.lane.b32.xlu0 %v2864, 104
        %v8167 = vpop.permute.xlu0 %8166
        %8168 = vrot.lane.b32.xlu0 %v2869, 104
        %v8169 = vpop.permute.xlu0 %8168
        %8170 = vrot.lane.b32.xlu0 %v2872, 104
        %v8171 = vpop.permute.xlu0 %8170
        %8172 = vrot.lane.b32.xlu0 %v2877, 104
        %v8173 = vpop.permute.xlu0 %8172
        %8174 = vrot.lane.b32.xlu0 %v2880, 104
        %v8175 = vpop.permute.xlu0 %8174
        %8176 = vrot.lane.b32.xlu0 %v2885, 104
        %v8177 = vpop.permute.xlu0 %8176
        %8178 = vrot.lane.b32.xlu0 %v2888, 104
        %v8179 = vpop.permute.xlu0 %8178
        %8180 = vrot.lane.b32.xlu0 %v2893, 104
        %v8181 = vpop.permute.xlu0 %8180
        %8182 = vrot.lane.b32.xlu0 %v2896, 104
        %v8183 = vpop.permute.xlu0 %8182
        %8184 = vrot.lane.b32.xlu0 %v2901, 104
        %v8185 = vpop.permute.xlu0 %8184
        %8186 = vrot.lane.b32.xlu0 %v2904, 104
        %v8187 = vpop.permute.xlu0 %8186
        %8188 = vrot.lane.b32.xlu0 %v2909, 104
        %v8189 = vpop.permute.xlu0 %8188
        %8190 = vrot.lane.b32.xlu0 %v2912, 104
        %v8191 = vpop.permute.xlu0 %8190
        %8192 = vrot.lane.b32.xlu0 %v2917, 104
        %v8193 = vpop.permute.xlu0 %8192
        %8194 = vrot.lane.b32.xlu0 %v2920, 104
        %v8195 = vpop.permute.xlu0 %8194
        %8196 = vrot.lane.b32.xlu0 %v2925, 104
        %v8197 = vpop.permute.xlu0 %8196
        %8198 = vrot.lane.b32.xlu0 %v2928, 104
        %v8199 = vpop.permute.xlu0 %8198
        %8200 = vrot.lane.b32.xlu0 %v2933, 104
        %v8201 = vpop.permute.xlu0 %8200
        %8202 = vrot.lane.b32.xlu0 %v2936, 104
        %v8203 = vpop.permute.xlu0 %8202
        %8204 = vrot.lane.b32.xlu0 %v2941, 104
        %v8205 = vpop.permute.xlu0 %8204
        %8206 = vrot.lane.b32.xlu0 %v2944, 104
        %v8207 = vpop.permute.xlu0 %8206
        %8208 = vrot.lane.b32.xlu0 %v2949, 104
        %v8209 = vpop.permute.xlu0 %8208
        %8210 = vrot.lane.b32.xlu0 %v2952, 104
        %v8211 = vpop.permute.xlu0 %8210
        %8212 = vrot.lane.b32.xlu0 %v2957, 104
        %v8213 = vpop.permute.xlu0 %8212
        %8214 = vrot.lane.b32.xlu0 %v2960, 104
        %v8215 = vpop.permute.xlu0 %8214
        %8216 = vrot.lane.b32.xlu0 %v2965, 104
        %v8217 = vpop.permute.xlu0 %8216
        %8218 = vrot.lane.b32.xlu0 %v2968, 104
        %v8219 = vpop.permute.xlu0 %8218
        %8220 = vrot.lane.b32.xlu0 %v2973, 104
        %v8221 = vpop.permute.xlu0 %8220
        %8222 = vrot.lane.b32.xlu0 %v2976, 104
        %v8223 = vpop.permute.xlu0 %8222
        %8224 = vrot.lane.b32.xlu0 %v2981, 104
        %v8225 = vpop.permute.xlu0 %8224
        %8226 = vrot.lane.b32.xlu0 %v2984, 104
        %v8227 = vpop.permute.xlu0 %8226
        %8228 = vrot.lane.b32.xlu0 %v2989, 104
        %v8229 = vpop.permute.xlu0 %8228
        %8230 = vrot.lane.b32.xlu0 %v2992, 104
        %v8231 = vpop.permute.xlu0 %8230
        %8232 = vrot.lane.b32.xlu0 %v2997, 104
        %v8233 = vpop.permute.xlu0 %8232
        %8234 = vrot.lane.b32.xlu0 %v3000, 104
        %v8235 = vpop.permute.xlu0 %8234
        %8236 = vrot.lane.b32.xlu0 %v3005, 104
        %v8237 = vpop.permute.xlu0 %8236
        %8238 = vrot.lane.b32.xlu0 %v3008, 104
        %v8239 = vpop.permute.xlu0 %8238
        %8240 = vrot.lane.b32.xlu0 %v3013, 104
        %v8241 = vpop.permute.xlu0 %8240
        %8242 = vrot.lane.b32.xlu0 %v3016, 104
        %v8243 = vpop.permute.xlu0 %8242
        %8244 = vrot.lane.b32.xlu0 %v3021, 104
        %v8245 = vpop.permute.xlu0 %8244
        %8246 = vrot.lane.b32.xlu0 %v3024, 104
        %v8247 = vpop.permute.xlu0 %8246
        %8248 = vrot.lane.b32.xlu0 %v3029, 104
        %v8249 = vpop.permute.xlu0 %8248
        %8250 = vrot.lane.b32.xlu0 %v3032, 104
        %v8251 = vpop.permute.xlu0 %8250
        %8252 = vrot.lane.b32.xlu0 %v3037, 104
        %v8253 = vpop.permute.xlu0 %8252
        %8254 = vrot.lane.b32.xlu0 %v3040, 104
        %v8255 = vpop.permute.xlu0 %8254
        %8256 = vrot.lane.b32.xlu0 %v3045, 104
        %v8257 = vpop.permute.xlu0 %8256
        %8258 = vrot.lane.b32.xlu0 %v3048, 104
        %v8259 = vpop.permute.xlu0 %8258
        %8260 = vrot.lane.b32.xlu0 %v3053, 104
        %v8261 = vpop.permute.xlu0 %8260
        %8262 = vrot.lane.b32.xlu0 %v3056, 104
        %v8263 = vpop.permute.xlu0 %8262
        %8264 = vrot.lane.b32.xlu0 %v3061, 104
        %v8265 = vpop.permute.xlu0 %8264
        %8266 = vrot.lane.b32.xlu0 %v3064, 104
        %v8267 = vpop.permute.xlu0 %8266
        %8268 = vrot.lane.b32.xlu0 %v3069, 104
        %v8269 = vpop.permute.xlu0 %8268
        %8270 = vrot.lane.b32.xlu0 %v3072, 104
        %v8271 = vpop.permute.xlu0 %8270
        %8272 = vrot.lane.b32.xlu0 %v3077, 104
        %v8273 = vpop.permute.xlu0 %8272
        %8274 = vrot.lane.b32.xlu0 %v3080, 104
        %v8275 = vpop.permute.xlu0 %8274
        %8276 = vrot.lane.b32.xlu0 %v3085, 104
        %v8277 = vpop.permute.xlu0 %8276
        %8278 = vrot.lane.b32.xlu0 %v3088, 104
        %v8279 = vpop.permute.xlu0 %8278
        %8280 = vrot.lane.b32.xlu0 %v3093, 104
        %v8281 = vpop.permute.xlu0 %8280
        %8282 = vrot.lane.b32.xlu0 %v3096, 104
        %v8283 = vpop.permute.xlu0 %8282
        %8284 = vrot.lane.b32.xlu0 %v3101, 104
        %v8285 = vpop.permute.xlu0 %8284
        %8286 = vrot.lane.b32.xlu0 %v3104, 104
        %v8287 = vpop.permute.xlu0 %8286
        %8288 = vrot.lane.b32.xlu0 %v3109, 104
        %v8289 = vpop.permute.xlu0 %8288
        %8290 = vrot.lane.b32.xlu0 %v3112, 104
        %v8291 = vpop.permute.xlu0 %8290
        %8292 = vrot.lane.b32.xlu0 %v3117, 104
        %v8293 = vpop.permute.xlu0 %8292
        %8294 = vrot.lane.b32.xlu0 %v3120, 104
        %v8295 = vpop.permute.xlu0 %8294
        %8296 = vrot.lane.b32.xlu0 %v3125, 104
        %v8297 = vpop.permute.xlu0 %8296
        %8298 = vrot.lane.b32.xlu0 %v3128, 104
        %v8299 = vpop.permute.xlu0 %8298
        %8300 = vrot.lane.b32.xlu0 %v3133, 104
        %v8301 = vpop.permute.xlu0 %8300
        %8302 = vrot.lane.b32.xlu0 %v3136, 104
        %v8303 = vpop.permute.xlu0 %8302
        %8304 = vrot.lane.b32.xlu0 %v3141, 104
        %v8305 = vpop.permute.xlu0 %8304
        %8306 = vrot.lane.b32.xlu0 %v3144, 104
        %v8307 = vpop.permute.xlu0 %8306
        %8308 = vrot.lane.b32.xlu0 %v3149, 104
        %v8309 = vpop.permute.xlu0 %8308
        %8310 = vrot.lane.b32.xlu0 %v3152, 104
        %v8311 = vpop.permute.xlu0 %8310
        %8312 = vrot.lane.b32.xlu0 %v3157, 104
        %v8313 = vpop.permute.xlu0 %8312
        %8314 = vrot.lane.b32.xlu0 %v3160, 104
        %v8315 = vpop.permute.xlu0 %8314
        %8316 = vrot.lane.b32.xlu0 %v3165, 104
        %v8317 = vpop.permute.xlu0 %8316
        %8318 = vrot.lane.b32.xlu0 %v3168, 104
        %v8319 = vpop.permute.xlu0 %8318
        %8320 = vrot.lane.b32.xlu0 %v3173, 104
        %v8321 = vpop.permute.xlu0 %8320
        %8322 = vrot.lane.b32.xlu0 %v3176, 104
        %v8323 = vpop.permute.xlu0 %8322
        %8324 = vrot.lane.b32.xlu0 %v3181, 104
        %v8325 = vpop.permute.xlu0 %8324
        %8326 = vrot.lane.b32.xlu0 %v3184, 104
        %v8327 = vpop.permute.xlu0 %8326
        %8328 = vrot.lane.b32.xlu0 %v3189, 104
        %v8329 = vpop.permute.xlu0 %8328
        %8330 = vrot.lane.b32.xlu0 %v3192, 104
        %v8331 = vpop.permute.xlu0 %8330
        %8332 = vrot.lane.b32.xlu0 %v3197, 104
        %v8333 = vpop.permute.xlu0 %8332
        %8334 = vrot.lane.b32.xlu0 %v3200, 104
        %v8335 = vpop.permute.xlu0 %8334
        %8336 = vrot.lane.b32.xlu0 %v3205, 104
        %v8337 = vpop.permute.xlu0 %8336
        %8338 = vrot.lane.b32.xlu0 %v3208, 104
        %v8339 = vpop.permute.xlu0 %8338
        %8340 = vrot.lane.b32.xlu0 %v3213, 104
        %v8341 = vpop.permute.xlu0 %8340
        %8342 = vrot.lane.b32.xlu0 %v3216, 104
        %v8343 = vpop.permute.xlu0 %8342
        %8344 = vrot.lane.b32.xlu0 %v3221, 104
        %v8345 = vpop.permute.xlu0 %8344
        %8346 = vrot.lane.b32.xlu0 %v3224, 104
        %v8347 = vpop.permute.xlu0 %8346
        %8348 = vrot.lane.b32.xlu0 %v3229, 104
        %v8349 = vpop.permute.xlu0 %8348
        %8350 = vrot.lane.b32.xlu0 %v3232, 104
        %v8351 = vpop.permute.xlu0 %8350
        %8352 = vrot.lane.b32.xlu0 %v3237, 104
        %v8353 = vpop.permute.xlu0 %8352
        %8354 = vrot.lane.b32.xlu0 %v3240, 104
        %v8355 = vpop.permute.xlu0 %8354
        %8356 = vrot.lane.b32.xlu0 %v3245, 104
        %v8357 = vpop.permute.xlu0 %8356
        %8358 = vrot.lane.b32.xlu0 %v3248, 104
        %v8359 = vpop.permute.xlu0 %8358
        %8360 = vrot.lane.b32.xlu0 %v3253, 104
        %v8361 = vpop.permute.xlu0 %8360
        %8362 = vrot.lane.b32.xlu0 %v3256, 104
        %v8363 = vpop.permute.xlu0 %8362
        %8364 = vrot.lane.b32.xlu0 %v3261, 104
        %v8365 = vpop.permute.xlu0 %8364
        %8366 = vrot.lane.b32.xlu0 %v3264, 104
        %v8367 = vpop.permute.xlu0 %8366
        %v8368 = vadd.f32 %v7984, %v8113
        %v8369 = vadd.f32 %v7985, %v8115
        %v8370 = vadd.f32 %v7986, %v8117
        %v8371 = vadd.f32 %v7987, %v8119
        %v8372 = vadd.f32 %v7988, %v8121
        %v8373 = vadd.f32 %v7989, %v8123
        %v8374 = vadd.f32 %v7990, %v8125
        %v8375 = vadd.f32 %v7991, %v8127
        %v8376 = vadd.f32 %v7992, %v8129
        %v8377 = vadd.f32 %v7993, %v8131
        %v8378 = vadd.f32 %v7994, %v8133
        %v8379 = vadd.f32 %v7995, %v8135
        %v8380 = vadd.f32 %v7996, %v8137
        %v8381 = vadd.f32 %v7997, %v8139
        %v8382 = vadd.f32 %v7998, %v8141
        %v8383 = vadd.f32 %v7999, %v8143
        %v8384 = vadd.f32 %v8000, %v8145
        %v8385 = vadd.f32 %v8001, %v8147
        %v8386 = vadd.f32 %v8002, %v8149
        %v8387 = vadd.f32 %v8003, %v8151
        %v8388 = vadd.f32 %v8004, %v8153
        %v8389 = vadd.f32 %v8005, %v8155
        %v8390 = vadd.f32 %v8006, %v8157
        %v8391 = vadd.f32 %v8007, %v8159
        %v8392 = vadd.f32 %v8008, %v8161
        %v8393 = vadd.f32 %v8009, %v8163
        %v8394 = vadd.f32 %v8010, %v8165
        %v8395 = vadd.f32 %v8011, %v8167
        %v8396 = vadd.f32 %v8012, %v8169
        %v8397 = vadd.f32 %v8013, %v8171
        %v8398 = vadd.f32 %v8014, %v8173
        %v8399 = vadd.f32 %v8015, %v8175
        %v8400 = vadd.f32 %v8016, %v8177
        %v8401 = vadd.f32 %v8017, %v8179
        %v8402 = vadd.f32 %v8018, %v8181
        %v8403 = vadd.f32 %v8019, %v8183
        %v8404 = vadd.f32 %v8020, %v8185
        %v8405 = vadd.f32 %v8021, %v8187
        %v8406 = vadd.f32 %v8022, %v8189
        %v8407 = vadd.f32 %v8023, %v8191
        %v8408 = vadd.f32 %v8024, %v8193
        %v8409 = vadd.f32 %v8025, %v8195
        %v8410 = vadd.f32 %v8026, %v8197
        %v8411 = vadd.f32 %v8027, %v8199
        %v8412 = vadd.f32 %v8028, %v8201
        %v8413 = vadd.f32 %v8029, %v8203
        %v8414 = vadd.f32 %v8030, %v8205
        %v8415 = vadd.f32 %v8031, %v8207
        %v8416 = vadd.f32 %v8032, %v8209
        %v8417 = vadd.f32 %v8033, %v8211
        %v8418 = vadd.f32 %v8034, %v8213
        %v8419 = vadd.f32 %v8035, %v8215
        %v8420 = vadd.f32 %v8036, %v8217
        %v8421 = vadd.f32 %v8037, %v8219
        %v8422 = vadd.f32 %v8038, %v8221
        %v8423 = vadd.f32 %v8039, %v8223
        %v8424 = vadd.f32 %v8040, %v8225
        %v8425 = vadd.f32 %v8041, %v8227
        %v8426 = vadd.f32 %v8042, %v8229
        %v8427 = vadd.f32 %v8043, %v8231
        %v8428 = vadd.f32 %v8044, %v8233
        %v8429 = vadd.f32 %v8045, %v8235
        %v8430 = vadd.f32 %v8046, %v8237
        %v8431 = vadd.f32 %v8047, %v8239
        %v8432 = vadd.f32 %v8048, %v8241
        %v8433 = vadd.f32 %v8049, %v8243
        %v8434 = vadd.f32 %v8050, %v8245
        %v8435 = vadd.f32 %v8051, %v8247
        %v8436 = vadd.f32 %v8052, %v8249
        %v8437 = vadd.f32 %v8053, %v8251
        %v8438 = vadd.f32 %v8054, %v8253
        %v8439 = vadd.f32 %v8055, %v8255
        %v8440 = vadd.f32 %v8056, %v8257
        %v8441 = vadd.f32 %v8057, %v8259
        %v8442 = vadd.f32 %v8058, %v8261
        %v8443 = vadd.f32 %v8059, %v8263
        %v8444 = vadd.f32 %v8060, %v8265
        %v8445 = vadd.f32 %v8061, %v8267
        %v8446 = vadd.f32 %v8062, %v8269
        %v8447 = vadd.f32 %v8063, %v8271
        %v8448 = vadd.f32 %v8064, %v8273
        %v8449 = vadd.f32 %v8065, %v8275
        %v8450 = vadd.f32 %v8066, %v8277
        %v8451 = vadd.f32 %v8067, %v8279
        %v8452 = vadd.f32 %v8068, %v8281
        %v8453 = vadd.f32 %v8069, %v8283
        %v8454 = vadd.f32 %v8070, %v8285
        %v8455 = vadd.f32 %v8071, %v8287
        %v8456 = vadd.f32 %v8072, %v8289
        %v8457 = vadd.f32 %v8073, %v8291
        %v8458 = vadd.f32 %v8074, %v8293
        %v8459 = vadd.f32 %v8075, %v8295
        %v8460 = vadd.f32 %v8076, %v8297
        %v8461 = vadd.f32 %v8077, %v8299
        %v8462 = vadd.f32 %v8078, %v8301
        %v8463 = vadd.f32 %v8079, %v8303
        %v8464 = vadd.f32 %v8080, %v8305
        %v8465 = vadd.f32 %v8081, %v8307
        %v8466 = vadd.f32 %v8082, %v8309
        %v8467 = vadd.f32 %v8083, %v8311
        %v8468 = vadd.f32 %v8084, %v8313
        %v8469 = vadd.f32 %v8085, %v8315
        %v8470 = vadd.f32 %v8086, %v8317
        %v8471 = vadd.f32 %v8087, %v8319
        %v8472 = vadd.f32 %v8088, %v8321
        %v8473 = vadd.f32 %v8089, %v8323
        %v8474 = vadd.f32 %v8090, %v8325
        %v8475 = vadd.f32 %v8091, %v8327
        %v8476 = vadd.f32 %v8092, %v8329
        %v8477 = vadd.f32 %v8093, %v8331
        %v8478 = vadd.f32 %v8094, %v8333
        %v8479 = vadd.f32 %v8095, %v8335
        %v8480 = vadd.f32 %v8096, %v8337
        %v8481 = vadd.f32 %v8097, %v8339
        %v8482 = vadd.f32 %v8098, %v8341
        %v8483 = vadd.f32 %v8099, %v8343
        %v8484 = vadd.f32 %v8100, %v8345
        %v8485 = vadd.f32 %v8101, %v8347
        %v8486 = vadd.f32 %v8102, %v8349
        %v8487 = vadd.f32 %v8103, %v8351
        %v8488 = vadd.f32 %v8104, %v8353
        %v8489 = vadd.f32 %v8105, %v8355
        %v8490 = vadd.f32 %v8106, %v8357
        %v8491 = vadd.f32 %v8107, %v8359
        %v8492 = vadd.f32 %v8108, %v8361
        %v8493 = vadd.f32 %v8109, %v8363
        %v8494 = vadd.f32 %v8110, %v8365
        %v8495 = vadd.f32 %v8111, %v8367
        %v8496 = vrot.slane %v3267, 2
        %v8497 = vlaneseq
        %v8498 = vshrl.u32 %v8497, 7
        %v8499 = vsub.s32 0, %v8498
        %v8500 = vrot.slane %v8496, %v8499
        %v8502 = vadd.f32 %v8368, %v8500
        %v8503 = vadd.f32 %v8369, %v8500
        %v8504 = vadd.f32 %v8370, %v8500
        %v8505 = vadd.f32 %v8371, %v8500
        %v8506 = vadd.f32 %v8372, %v8500
        %v8507 = vadd.f32 %v8373, %v8500
        %v8508 = vadd.f32 %v8374, %v8500
        %v8509 = vadd.f32 %v8375, %v8500
        %v8510 = vadd.f32 %v8376, %v8500
        %v8511 = vadd.f32 %v8377, %v8500
        %v8512 = vadd.f32 %v8378, %v8500
        %v8513 = vadd.f32 %v8379, %v8500
        %v8514 = vadd.f32 %v8380, %v8500
        %v8515 = vadd.f32 %v8381, %v8500
        %v8516 = vadd.f32 %v8382, %v8500
        %v8517 = vadd.f32 %v8383, %v8500
        %v8518 = vadd.f32 %v8384, %v8500
        %v8519 = vadd.f32 %v8385, %v8500
        %v8520 = vadd.f32 %v8386, %v8500
        %v8521 = vadd.f32 %v8387, %v8500
        %v8522 = vadd.f32 %v8388, %v8500
        %v8523 = vadd.f32 %v8389, %v8500
        %v8524 = vadd.f32 %v8390, %v8500
        %v8525 = vadd.f32 %v8391, %v8500
        %v8526 = vadd.f32 %v8392, %v8500
        %v8527 = vadd.f32 %v8393, %v8500
        %v8528 = vadd.f32 %v8394, %v8500
        %v8529 = vadd.f32 %v8395, %v8500
        %v8530 = vadd.f32 %v8396, %v8500
        %v8531 = vadd.f32 %v8397, %v8500
        %v8532 = vadd.f32 %v8398, %v8500
        %v8533 = vadd.f32 %v8399, %v8500
        %v8534 = vadd.f32 %v8400, %v8500
        %v8535 = vadd.f32 %v8401, %v8500
        %v8536 = vadd.f32 %v8402, %v8500
        %v8537 = vadd.f32 %v8403, %v8500
        %v8538 = vadd.f32 %v8404, %v8500
        %v8539 = vadd.f32 %v8405, %v8500
        %v8540 = vadd.f32 %v8406, %v8500
        %v8541 = vadd.f32 %v8407, %v8500
        %v8542 = vadd.f32 %v8408, %v8500
        %v8543 = vadd.f32 %v8409, %v8500
        %v8544 = vadd.f32 %v8410, %v8500
        %v8545 = vadd.f32 %v8411, %v8500
        %v8546 = vadd.f32 %v8412, %v8500
        %v8547 = vadd.f32 %v8413, %v8500
        %v8548 = vadd.f32 %v8414, %v8500
        %v8549 = vadd.f32 %v8415, %v8500
        %v8550 = vadd.f32 %v8416, %v8500
        %v8551 = vadd.f32 %v8417, %v8500
        %v8552 = vadd.f32 %v8418, %v8500
        %v8553 = vadd.f32 %v8419, %v8500
        %v8554 = vadd.f32 %v8420, %v8500
        %v8555 = vadd.f32 %v8421, %v8500
        %v8556 = vadd.f32 %v8422, %v8500
        %v8557 = vadd.f32 %v8423, %v8500
        %v8558 = vadd.f32 %v8424, %v8500
        %v8559 = vadd.f32 %v8425, %v8500
        %v8560 = vadd.f32 %v8426, %v8500
        %v8561 = vadd.f32 %v8427, %v8500
        %v8562 = vadd.f32 %v8428, %v8500
        %v8563 = vadd.f32 %v8429, %v8500
        %v8564 = vadd.f32 %v8430, %v8500
        %v8565 = vadd.f32 %v8431, %v8500
        %v8566 = vadd.f32 %v8432, %v8500
        %v8567 = vadd.f32 %v8433, %v8500
        %v8568 = vadd.f32 %v8434, %v8500
        %v8569 = vadd.f32 %v8435, %v8500
        %v8570 = vadd.f32 %v8436, %v8500
        %v8571 = vadd.f32 %v8437, %v8500
        %v8572 = vadd.f32 %v8438, %v8500
        %v8573 = vadd.f32 %v8439, %v8500
        %v8574 = vadd.f32 %v8440, %v8500
        %v8575 = vadd.f32 %v8441, %v8500
        %v8576 = vadd.f32 %v8442, %v8500
        %v8577 = vadd.f32 %v8443, %v8500
        %v8578 = vadd.f32 %v8444, %v8500
        %v8579 = vadd.f32 %v8445, %v8500
        %v8580 = vadd.f32 %v8446, %v8500
        %v8581 = vadd.f32 %v8447, %v8500
        %v8582 = vadd.f32 %v8448, %v8500
        %v8583 = vadd.f32 %v8449, %v8500
        %v8584 = vadd.f32 %v8450, %v8500
        %v8585 = vadd.f32 %v8451, %v8500
        %v8586 = vadd.f32 %v8452, %v8500
        %v8587 = vadd.f32 %v8453, %v8500
        %v8588 = vadd.f32 %v8454, %v8500
        %v8589 = vadd.f32 %v8455, %v8500
        %v8590 = vadd.f32 %v8456, %v8500
        %v8591 = vadd.f32 %v8457, %v8500
        %v8592 = vadd.f32 %v8458, %v8500
        %v8593 = vadd.f32 %v8459, %v8500
        %v8594 = vadd.f32 %v8460, %v8500
        %v8595 = vadd.f32 %v8461, %v8500
        %v8596 = vadd.f32 %v8462, %v8500
        %v8597 = vadd.f32 %v8463, %v8500
        %v8598 = vadd.f32 %v8464, %v8500
        %v8599 = vadd.f32 %v8465, %v8500
        %v8600 = vadd.f32 %v8466, %v8500
        %v8601 = vadd.f32 %v8467, %v8500
        %v8602 = vadd.f32 %v8468, %v8500
        %v8603 = vadd.f32 %v8469, %v8500
        %v8604 = vadd.f32 %v8470, %v8500
        %v8605 = vadd.f32 %v8471, %v8500
        %v8606 = vadd.f32 %v8472, %v8500
        %v8607 = vadd.f32 %v8473, %v8500
        %v8608 = vadd.f32 %v8474, %v8500
        %v8609 = vadd.f32 %v8475, %v8500
        %v8610 = vadd.f32 %v8476, %v8500
        %v8611 = vadd.f32 %v8477, %v8500
        %v8612 = vadd.f32 %v8478, %v8500
        %v8613 = vadd.f32 %v8479, %v8500
        %v8614 = vadd.f32 %v8480, %v8500
        %v8615 = vadd.f32 %v8481, %v8500
        %v8616 = vadd.f32 %v8482, %v8500
        %v8617 = vadd.f32 %v8483, %v8500
        %v8618 = vadd.f32 %v8484, %v8500
        %v8619 = vadd.f32 %v8485, %v8500
        %v8620 = vadd.f32 %v8486, %v8500
        %v8621 = vadd.f32 %v8487, %v8500
        %v8622 = vadd.f32 %v8488, %v8500
        %v8623 = vadd.f32 %v8489, %v8500
        %v8624 = vadd.f32 %v8490, %v8500
        %v8625 = vadd.f32 %v8491, %v8500
        %v8626 = vadd.f32 %v8492, %v8500
        %v8627 = vadd.f32 %v8493, %v8500
        %v8628 = vadd.f32 %v8494, %v8500
        %v8629 = vadd.f32 %v8495, %v8500
        %v8630 = vmax.f32 %v8502, 0.0
        %v8631 = vmax.f32 %v8503, 0.0
        %v8632 = vmax.f32 %v8504, 0.0
        %v8633 = vmax.f32 %v8505, 0.0
        %v8634 = vmax.f32 %v8506, 0.0
        %v8635 = vmax.f32 %v8507, 0.0
        %v8636 = vmax.f32 %v8508, 0.0
        %v8637 = vmax.f32 %v8509, 0.0
        %v8638 = vmax.f32 %v8510, 0.0
        %v8639 = vmax.f32 %v8511, 0.0
        %v8640 = vmax.f32 %v8512, 0.0
        %v8641 = vmax.f32 %v8513, 0.0
        %v8642 = vmax.f32 %v8514, 0.0
        %v8643 = vmax.f32 %v8515, 0.0
        %v8644 = vmax.f32 %v8516, 0.0
        %v8645 = vmax.f32 %v8517, 0.0
        %v8646 = vmax.f32 %v8518, 0.0
        %v8647 = vmax.f32 %v8519, 0.0
        %v8648 = vmax.f32 %v8520, 0.0
        %v8649 = vmax.f32 %v8521, 0.0
        %v8650 = vmax.f32 %v8522, 0.0
        %v8651 = vmax.f32 %v8523, 0.0
        %v8652 = vmax.f32 %v8524, 0.0
        %v8653 = vmax.f32 %v8525, 0.0
        %v8654 = vmax.f32 %v8526, 0.0
        %v8655 = vmax.f32 %v8527, 0.0
        %v8656 = vmax.f32 %v8528, 0.0
        %v8657 = vmax.f32 %v8529, 0.0
        %v8658 = vmax.f32 %v8530, 0.0
        %v8659 = vmax.f32 %v8531, 0.0
        %v8660 = vmax.f32 %v8532, 0.0
        %v8661 = vmax.f32 %v8533, 0.0
        %v8662 = vmax.f32 %v8534, 0.0
        %v8663 = vmax.f32 %v8535, 0.0
        %v8664 = vmax.f32 %v8536, 0.0
        %v8665 = vmax.f32 %v8537, 0.0
        %v8666 = vmax.f32 %v8538, 0.0
        %v8667 = vmax.f32 %v8539, 0.0
        %v8668 = vmax.f32 %v8540, 0.0
        %v8669 = vmax.f32 %v8541, 0.0
        %v8670 = vmax.f32 %v8542, 0.0
        %v8671 = vmax.f32 %v8543, 0.0
        %v8672 = vmax.f32 %v8544, 0.0
        %v8673 = vmax.f32 %v8545, 0.0
        %v8674 = vmax.f32 %v8546, 0.0
        %v8675 = vmax.f32 %v8547, 0.0
        %v8676 = vmax.f32 %v8548, 0.0
        %v8677 = vmax.f32 %v8549, 0.0
        %v8678 = vmax.f32 %v8550, 0.0
        %v8679 = vmax.f32 %v8551, 0.0
        %v8680 = vmax.f32 %v8552, 0.0
        %v8681 = vmax.f32 %v8553, 0.0
        %v8682 = vmax.f32 %v8554, 0.0
        %v8683 = vmax.f32 %v8555, 0.0
        %v8684 = vmax.f32 %v8556, 0.0
        %v8685 = vmax.f32 %v8557, 0.0
        %v8686 = vmax.f32 %v8558, 0.0
        %v8687 = vmax.f32 %v8559, 0.0
        %v8688 = vmax.f32 %v8560, 0.0
        %v8689 = vmax.f32 %v8561, 0.0
        %v8690 = vmax.f32 %v8562, 0.0
        %v8691 = vmax.f32 %v8563, 0.0
        %v8692 = vmax.f32 %v8564, 0.0
        %v8693 = vmax.f32 %v8565, 0.0
        %v8694 = vmax.f32 %v8566, 0.0
        %v8695 = vmax.f32 %v8567, 0.0
        %v8696 = vmax.f32 %v8568, 0.0
        %v8697 = vmax.f32 %v8569, 0.0
        %v8698 = vmax.f32 %v8570, 0.0
        %v8699 = vmax.f32 %v8571, 0.0
        %v8700 = vmax.f32 %v8572, 0.0
        %v8701 = vmax.f32 %v8573, 0.0
        %v8702 = vmax.f32 %v8574, 0.0
        %v8703 = vmax.f32 %v8575, 0.0
        %v8704 = vmax.f32 %v8576, 0.0
        %v8705 = vmax.f32 %v8577, 0.0
        %v8706 = vmax.f32 %v8578, 0.0
        %v8707 = vmax.f32 %v8579, 0.0
        %v8708 = vmax.f32 %v8580, 0.0
        %v8709 = vmax.f32 %v8581, 0.0
        %v8710 = vmax.f32 %v8582, 0.0
        %v8711 = vmax.f32 %v8583, 0.0
        %v8712 = vmax.f32 %v8584, 0.0
        %v8713 = vmax.f32 %v8585, 0.0
        %v8714 = vmax.f32 %v8586, 0.0
        %v8715 = vmax.f32 %v8587, 0.0
        %v8716 = vmax.f32 %v8588, 0.0
        %v8717 = vmax.f32 %v8589, 0.0
        %v8718 = vmax.f32 %v8590, 0.0
        %v8719 = vmax.f32 %v8591, 0.0
        %v8720 = vmax.f32 %v8592, 0.0
        %v8721 = vmax.f32 %v8593, 0.0
        %v8722 = vmax.f32 %v8594, 0.0
        %v8723 = vmax.f32 %v8595, 0.0
        %v8724 = vmax.f32 %v8596, 0.0
        %v8725 = vmax.f32 %v8597, 0.0
        %v8726 = vmax.f32 %v8598, 0.0
        %v8727 = vmax.f32 %v8599, 0.0
        %v8728 = vmax.f32 %v8600, 0.0
        %v8729 = vmax.f32 %v8601, 0.0
        %v8730 = vmax.f32 %v8602, 0.0
        %v8731 = vmax.f32 %v8603, 0.0
        %v8732 = vmax.f32 %v8604, 0.0
        %v8733 = vmax.f32 %v8605, 0.0
        %v8734 = vmax.f32 %v8606, 0.0
        %v8735 = vmax.f32 %v8607, 0.0
        %v8736 = vmax.f32 %v8608, 0.0
        %v8737 = vmax.f32 %v8609, 0.0
        %v8738 = vmax.f32 %v8610, 0.0
        %v8739 = vmax.f32 %v8611, 0.0
        %v8740 = vmax.f32 %v8612, 0.0
        %v8741 = vmax.f32 %v8613, 0.0
        %v8742 = vmax.f32 %v8614, 0.0
        %v8743 = vmax.f32 %v8615, 0.0
        %v8744 = vmax.f32 %v8616, 0.0
        %v8745 = vmax.f32 %v8617, 0.0
        %v8746 = vmax.f32 %v8618, 0.0
        %v8747 = vmax.f32 %v8619, 0.0
        %v8748 = vmax.f32 %v8620, 0.0
        %v8749 = vmax.f32 %v8621, 0.0
        %v8750 = vmax.f32 %v8622, 0.0
        %v8751 = vmax.f32 %v8623, 0.0
        %v8752 = vmax.f32 %v8624, 0.0
        %v8753 = vmax.f32 %v8625, 0.0
        %v8754 = vmax.f32 %v8626, 0.0
        %v8755 = vmax.f32 %v8627, 0.0
        %v8756 = vmax.f32 %v8628, 0.0
        %v8757 = vmax.f32 %v8629, 0.0
        %vm8758 = vcmp.ge.s32.totalorder %v3269, 3
        %vm8759 = vcmp.ge.s32.totalorder %v3270, 3
        %vm8760 = vcmp.ge.s32.totalorder %v3271, 3
        %vm8761 = vcmp.ge.s32.totalorder %v3272, 3
        %v8762 = vsel %vm8758, 1, 0
        %v8763 = vsel %vm8759, 1, 0
        %v8764 = vsel %vm8760, 1, 0
        %v8765 = vsel %vm8761, 1, 0
        %vm8766 = vcmp.eq.s32.totalorder %v8762, 1
        %vm8767 = vcmp.eq.s32.totalorder %v8763, 1
        %vm8768 = vcmp.eq.s32.totalorder %v8764, 1
        %vm8769 = vcmp.eq.s32.totalorder %v8765, 1
        %v8770 = vsel %vm8766, %v8630, -inf
        %v8771 = vsel %vm8767, %v8631, -inf
        %v8772 = vsel %vm8768, %v8632, -inf
        %v8773 = vsel %vm8769, %v8633, -inf
        %v8774 = vsel %vm8766, %v8634, -inf
        %v8775 = vsel %vm8767, %v8635, -inf
        %v8776 = vsel %vm8768, %v8636, -inf
        %v8777 = vsel %vm8769, %v8637, -inf
        %v8778 = vsel %vm8766, %v8638, -inf
        %v8779 = vsel %vm8767, %v8639, -inf
        %v8780 = vsel %vm8768, %v8640, -inf
        %v8781 = vsel %vm8769, %v8641, -inf
        %v8782 = vsel %vm8766, %v8642, -inf
        %v8783 = vsel %vm8767, %v8643, -inf
        %v8784 = vsel %vm8768, %v8644, -inf
        %v8785 = vsel %vm8769, %v8645, -inf
        %v8786 = vsel %vm8766, %v8646, -inf
        %v8787 = vsel %vm8767, %v8647, -inf
        %v8788 = vsel %vm8768, %v8648, -inf
        %v8789 = vsel %vm8769, %v8649, -inf
        %v8790 = vsel %vm8766, %v8650, -inf
        %v8791 = vsel %vm8767, %v8651, -inf
        %v8792 = vsel %vm8768, %v8652, -inf
        %v8793 = vsel %vm8769, %v8653, -inf
        %v8794 = vsel %vm8766, %v8654, -inf
        %v8795 = vsel %vm8767, %v8655, -inf
        %v8796 = vsel %vm8768, %v8656, -inf
        %v8797 = vsel %vm8769, %v8657, -inf
        %v8798 = vsel %vm8766, %v8658, -inf
        %v8799 = vsel %vm8767, %v8659, -inf
        %v8800 = vsel %vm8768, %v8660, -inf
        %v8801 = vsel %vm8769, %v8661, -inf
        %v8802 = vsel %vm8766, %v8662, -inf
        %v8803 = vsel %vm8767, %v8663, -inf
        %v8804 = vsel %vm8768, %v8664, -inf
        %v8805 = vsel %vm8769, %v8665, -inf
        %v8806 = vsel %vm8766, %v8666, -inf
        %v8807 = vsel %vm8767, %v8667, -inf
        %v8808 = vsel %vm8768, %v8668, -inf
        %v8809 = vsel %vm8769, %v8669, -inf
        %v8810 = vsel %vm8766, %v8670, -inf
        %v8811 = vsel %vm8767, %v8671, -inf
        %v8812 = vsel %vm8768, %v8672, -inf
        %v8813 = vsel %vm8769, %v8673, -inf
        %v8814 = vsel %vm8766, %v8674, -inf
        %v8815 = vsel %vm8767, %v8675, -inf
        %v8816 = vsel %vm8768, %v8676, -inf
        %v8817 = vsel %vm8769, %v8677, -inf
        %v8818 = vsel %vm8766, %v8678, -inf
        %v8819 = vsel %vm8767, %v8679, -inf
        %v8820 = vsel %vm8768, %v8680, -inf
        %v8821 = vsel %vm8769, %v8681, -inf
        %v8822 = vsel %vm8766, %v8682, -inf
        %v8823 = vsel %vm8767, %v8683, -inf
        %v8824 = vsel %vm8768, %v8684, -inf
        %v8825 = vsel %vm8769, %v8685, -inf
        %v8826 = vsel %vm8766, %v8686, -inf
        %v8827 = vsel %vm8767, %v8687, -inf
        %v8828 = vsel %vm8768, %v8688, -inf
        %v8829 = vsel %vm8769, %v8689, -inf
        %v8830 = vsel %vm8766, %v8690, -inf
        %v8831 = vsel %vm8767, %v8691, -inf
        %v8832 = vsel %vm8768, %v8692, -inf
        %v8833 = vsel %vm8769, %v8693, -inf
        %v8834 = vsel %vm8766, %v8694, -inf
        %v8835 = vsel %vm8767, %v8695, -inf
        %v8836 = vsel %vm8768, %v8696, -inf
        %v8837 = vsel %vm8769, %v8697, -inf
        %v8838 = vsel %vm8766, %v8698, -inf
        %v8839 = vsel %vm8767, %v8699, -inf
        %v8840 = vsel %vm8768, %v8700, -inf
        %v8841 = vsel %vm8769, %v8701, -inf
        %v8842 = vsel %vm8766, %v8702, -inf
        %v8843 = vsel %vm8767, %v8703, -inf
        %v8844 = vsel %vm8768, %v8704, -inf
        %v8845 = vsel %vm8769, %v8705, -inf
        %v8846 = vsel %vm8766, %v8706, -inf
        %v8847 = vsel %vm8767, %v8707, -inf
        %v8848 = vsel %vm8768, %v8708, -inf
        %v8849 = vsel %vm8769, %v8709, -inf
        %v8850 = vsel %vm8766, %v8710, -inf
        %v8851 = vsel %vm8767, %v8711, -inf
        %v8852 = vsel %vm8768, %v8712, -inf
        %v8853 = vsel %vm8769, %v8713, -inf
        %v8854 = vsel %vm8766, %v8714, -inf
        %v8855 = vsel %vm8767, %v8715, -inf
        %v8856 = vsel %vm8768, %v8716, -inf
        %v8857 = vsel %vm8769, %v8717, -inf
        %v8858 = vsel %vm8766, %v8718, -inf
        %v8859 = vsel %vm8767, %v8719, -inf
        %v8860 = vsel %vm8768, %v8720, -inf
        %v8861 = vsel %vm8769, %v8721, -inf
        %v8862 = vsel %vm8766, %v8722, -inf
        %v8863 = vsel %vm8767, %v8723, -inf
        %v8864 = vsel %vm8768, %v8724, -inf
        %v8865 = vsel %vm8769, %v8725, -inf
        %v8866 = vsel %vm8766, %v8726, -inf
        %v8867 = vsel %vm8767, %v8727, -inf
        %v8868 = vsel %vm8768, %v8728, -inf
        %v8869 = vsel %vm8769, %v8729, -inf
        %v8870 = vsel %vm8766, %v8730, -inf
        %v8871 = vsel %vm8767, %v8731, -inf
        %v8872 = vsel %vm8768, %v8732, -inf
        %v8873 = vsel %vm8769, %v8733, -inf
        %v8874 = vsel %vm8766, %v8734, -inf
        %v8875 = vsel %vm8767, %v8735, -inf
        %v8876 = vsel %vm8768, %v8736, -inf
        %v8877 = vsel %vm8769, %v8737, -inf
        %v8878 = vsel %vm8766, %v8738, -inf
        %v8879 = vsel %vm8767, %v8739, -inf
        %v8880 = vsel %vm8768, %v8740, -inf
        %v8881 = vsel %vm8769, %v8741, -inf
        %v8882 = vsel %vm8766, %v8742, -inf
        %v8883 = vsel %vm8767, %v8743, -inf
        %v8884 = vsel %vm8768, %v8744, -inf
        %v8885 = vsel %vm8769, %v8745, -inf
        %v8886 = vsel %vm8766, %v8746, -inf
        %v8887 = vsel %vm8767, %v8747, -inf
        %v8888 = vsel %vm8768, %v8748, -inf
        %v8889 = vsel %vm8769, %v8749, -inf
        %v8890 = vsel %vm8766, %v8750, -inf
        %v8891 = vsel %vm8767, %v8751, -inf
        %v8892 = vsel %vm8768, %v8752, -inf
        %v8893 = vsel %vm8769, %v8753, -inf
        %v8894 = vsel %vm8766, %v8754, -inf
        %v8895 = vsel %vm8767, %v8755, -inf
        %v8896 = vsel %vm8768, %v8756, -inf
        %v8897 = vsel %vm8769, %v8757, -inf
        %v8898 = vmax.f32 %v8770, %v8771
        %v8899 = vmax.f32 %v8898, %v8772
        %v8900 = vmax.f32 %v8899, %v8773
        %v8901 = vrot.slane %v8900, 4
        %v8902 = vmax.f32 %v8900, %v8901
        %v8903 = vrot.slane %v8902, 2
        %v8904 = vmax.f32 %v8902, %v8903
        %v8905 = vrot.slane %v8904, 1
        %v8906 = vmax.f32 %v8904, %v8905
        %v8907 = vmax.f32 %v8774, %v8775
        %v8908 = vmax.f32 %v8907, %v8776
        %v8909 = vmax.f32 %v8908, %v8777
        %v8910 = vrot.slane %v8909, 4
        %v8911 = vmax.f32 %v8909, %v8910
        %v8912 = vrot.slane %v8911, 2
        %v8913 = vmax.f32 %v8911, %v8912
        %v8914 = vrot.slane %v8913, 1
        %v8915 = vmax.f32 %v8913, %v8914
        %v8916 = vmax.f32 %v8778, %v8779
        %v8917 = vmax.f32 %v8916, %v8780
        %v8918 = vmax.f32 %v8917, %v8781
        %v8919 = vrot.slane %v8918, 4
        %v8920 = vmax.f32 %v8918, %v8919
        %v8921 = vrot.slane %v8920, 2
        %v8922 = vmax.f32 %v8920, %v8921
        %v8923 = vrot.slane %v8922, 1
        %v8924 = vmax.f32 %v8922, %v8923
        %v8925 = vmax.f32 %v8782, %v8783
        %v8926 = vmax.f32 %v8925, %v8784
        %v8927 = vmax.f32 %v8926, %v8785
        %v8928 = vrot.slane %v8927, 4
        %v8929 = vmax.f32 %v8927, %v8928
        %v8930 = vrot.slane %v8929, 2
        %v8931 = vmax.f32 %v8929, %v8930
        %v8932 = vrot.slane %v8931, 1
        %v8933 = vmax.f32 %v8931, %v8932
        %v8934 = vmax.f32 %v8786, %v8787
        %v8935 = vmax.f32 %v8934, %v8788
        %v8936 = vmax.f32 %v8935, %v8789
        %v8937 = vrot.slane %v8936, 4
        %v8938 = vmax.f32 %v8936, %v8937
        %v8939 = vrot.slane %v8938, 2
        %v8940 = vmax.f32 %v8938, %v8939
        %v8941 = vrot.slane %v8940, 1
        %v8942 = vmax.f32 %v8940, %v8941
        %v8943 = vmax.f32 %v8790, %v8791
        %v8944 = vmax.f32 %v8943, %v8792
        %v8945 = vmax.f32 %v8944, %v8793
        %v8946 = vrot.slane %v8945, 4
        %v8947 = vmax.f32 %v8945, %v8946
        %v8948 = vrot.slane %v8947, 2
        %v8949 = vmax.f32 %v8947, %v8948
        %v8950 = vrot.slane %v8949, 1
        %v8951 = vmax.f32 %v8949, %v8950
        %v8952 = vmax.f32 %v8794, %v8795
        %v8953 = vmax.f32 %v8952, %v8796
        %v8954 = vmax.f32 %v8953, %v8797
        %v8955 = vrot.slane %v8954, 4
        %v8956 = vmax.f32 %v8954, %v8955
        %v8957 = vrot.slane %v8956, 2
        %v8958 = vmax.f32 %v8956, %v8957
        %v8959 = vrot.slane %v8958, 1
        %v8960 = vmax.f32 %v8958, %v8959
        %v8961 = vmax.f32 %v8798, %v8799
        %v8962 = vmax.f32 %v8961, %v8800
        %v8963 = vmax.f32 %v8962, %v8801
        %v8964 = vrot.slane %v8963, 4
        %v8965 = vmax.f32 %v8963, %v8964
        %v8966 = vrot.slane %v8965, 2
        %v8967 = vmax.f32 %v8965, %v8966
        %v8968 = vrot.slane %v8967, 1
        %v8969 = vmax.f32 %v8967, %v8968
        %v8970 = vmax.f32 %v8802, %v8803
        %v8971 = vmax.f32 %v8970, %v8804
        %v8972 = vmax.f32 %v8971, %v8805
        %v8973 = vrot.slane %v8972, 4
        %v8974 = vmax.f32 %v8972, %v8973
        %v8975 = vrot.slane %v8974, 2
        %v8976 = vmax.f32 %v8974, %v8975
        %v8977 = vrot.slane %v8976, 1
        %v8978 = vmax.f32 %v8976, %v8977
        %v8979 = vmax.f32 %v8806, %v8807
        %v8980 = vmax.f32 %v8979, %v8808
        %v8981 = vmax.f32 %v8980, %v8809
        %v8982 = vrot.slane %v8981, 4
        %v8983 = vmax.f32 %v8981, %v8982
        %v8984 = vrot.slane %v8983, 2
        %v8985 = vmax.f32 %v8983, %v8984
        %v8986 = vrot.slane %v8985, 1
        %v8987 = vmax.f32 %v8985, %v8986
        %v8988 = vmax.f32 %v8810, %v8811
        %v8989 = vmax.f32 %v8988, %v8812
        %v8990 = vmax.f32 %v8989, %v8813
        %v8991 = vrot.slane %v8990, 4
        %v8992 = vmax.f32 %v8990, %v8991
        %v8993 = vrot.slane %v8992, 2
        %v8994 = vmax.f32 %v8992, %v8993
        %v8995 = vrot.slane %v8994, 1
        %v8996 = vmax.f32 %v8994, %v8995
        %v8997 = vmax.f32 %v8814, %v8815
        %v8998 = vmax.f32 %v8997, %v8816
        %v8999 = vmax.f32 %v8998, %v8817
        %v9000 = vrot.slane %v8999, 4
        %v9001 = vmax.f32 %v8999, %v9000
        %v9002 = vrot.slane %v9001, 2
        %v9003 = vmax.f32 %v9001, %v9002
        %v9004 = vrot.slane %v9003, 1
        %v9005 = vmax.f32 %v9003, %v9004
        %v9006 = vmax.f32 %v8818, %v8819
        %v9007 = vmax.f32 %v9006, %v8820
        %v9008 = vmax.f32 %v9007, %v8821
        %v9009 = vrot.slane %v9008, 4
        %v9010 = vmax.f32 %v9008, %v9009
        %v9011 = vrot.slane %v9010, 2
        %v9012 = vmax.f32 %v9010, %v9011
        %v9013 = vrot.slane %v9012, 1
        %v9014 = vmax.f32 %v9012, %v9013
        %v9015 = vmax.f32 %v8822, %v8823
        %v9016 = vmax.f32 %v9015, %v8824
        %v9017 = vmax.f32 %v9016, %v8825
        %v9018 = vrot.slane %v9017, 4
        %v9019 = vmax.f32 %v9017, %v9018
        %v9020 = vrot.slane %v9019, 2
        %v9021 = vmax.f32 %v9019, %v9020
        %v9022 = vrot.slane %v9021, 1
        %v9023 = vmax.f32 %v9021, %v9022
        %v9024 = vmax.f32 %v8826, %v8827
        %v9025 = vmax.f32 %v9024, %v8828
        %v9026 = vmax.f32 %v9025, %v8829
        %v9027 = vrot.slane %v9026, 4
        %v9028 = vmax.f32 %v9026, %v9027
        %v9029 = vrot.slane %v9028, 2
        %v9030 = vmax.f32 %v9028, %v9029
        %v9031 = vrot.slane %v9030, 1
        %v9032 = vmax.f32 %v9030, %v9031
        %v9033 = vmax.f32 %v8830, %v8831
        %v9034 = vmax.f32 %v9033, %v8832
        %v9035 = vmax.f32 %v9034, %v8833
        %v9036 = vrot.slane %v9035, 4
        %v9037 = vmax.f32 %v9035, %v9036
        %v9038 = vrot.slane %v9037, 2
        %v9039 = vmax.f32 %v9037, %v9038
        %v9040 = vrot.slane %v9039, 1
        %v9041 = vmax.f32 %v9039, %v9040
        %v9042 = vmax.f32 %v8834, %v8835
        %v9043 = vmax.f32 %v9042, %v8836
        %v9044 = vmax.f32 %v9043, %v8837
        %v9045 = vrot.slane %v9044, 4
        %v9046 = vmax.f32 %v9044, %v9045
        %v9047 = vrot.slane %v9046, 2
        %v9048 = vmax.f32 %v9046, %v9047
        %v9049 = vrot.slane %v9048, 1
        %v9050 = vmax.f32 %v9048, %v9049
        %v9051 = vmax.f32 %v8838, %v8839
        %v9052 = vmax.f32 %v9051, %v8840
        %v9053 = vmax.f32 %v9052, %v8841
        %v9054 = vrot.slane %v9053, 4
        %v9055 = vmax.f32 %v9053, %v9054
        %v9056 = vrot.slane %v9055, 2
        %v9057 = vmax.f32 %v9055, %v9056
        %v9058 = vrot.slane %v9057, 1
        %v9059 = vmax.f32 %v9057, %v9058
        %v9060 = vmax.f32 %v8842, %v8843
        %v9061 = vmax.f32 %v9060, %v8844
        %v9062 = vmax.f32 %v9061, %v8845
        %v9063 = vrot.slane %v9062, 4
        %v9064 = vmax.f32 %v9062, %v9063
        %v9065 = vrot.slane %v9064, 2
        %v9066 = vmax.f32 %v9064, %v9065
        %v9067 = vrot.slane %v9066, 1
        %v9068 = vmax.f32 %v9066, %v9067
        %v9069 = vmax.f32 %v8846, %v8847
        %v9070 = vmax.f32 %v9069, %v8848
        %v9071 = vmax.f32 %v9070, %v8849
        %v9072 = vrot.slane %v9071, 4
        %v9073 = vmax.f32 %v9071, %v9072
        %v9074 = vrot.slane %v9073, 2
        %v9075 = vmax.f32 %v9073, %v9074
        %v9076 = vrot.slane %v9075, 1
        %v9077 = vmax.f32 %v9075, %v9076
        %v9078 = vmax.f32 %v8850, %v8851
        %v9079 = vmax.f32 %v9078, %v8852
        %v9080 = vmax.f32 %v9079, %v8853
        %v9081 = vrot.slane %v9080, 4
        %v9082 = vmax.f32 %v9080, %v9081
        %v9083 = vrot.slane %v9082, 2
        %v9084 = vmax.f32 %v9082, %v9083
        %v9085 = vrot.slane %v9084, 1
        %v9086 = vmax.f32 %v9084, %v9085
        %v9087 = vmax.f32 %v8854, %v8855
        %v9088 = vmax.f32 %v9087, %v8856
        %v9089 = vmax.f32 %v9088, %v8857
        %v9090 = vrot.slane %v9089, 4
        %v9091 = vmax.f32 %v9089, %v9090
        %v9092 = vrot.slane %v9091, 2
        %v9093 = vmax.f32 %v9091, %v9092
        %v9094 = vrot.slane %v9093, 1
        %v9095 = vmax.f32 %v9093, %v9094
        %v9096 = vmax.f32 %v8858, %v8859
        %v9097 = vmax.f32 %v9096, %v8860
        %v9098 = vmax.f32 %v9097, %v8861
        %v9099 = vrot.slane %v9098, 4
        %v9100 = vmax.f32 %v9098, %v9099
        %v9101 = vrot.slane %v9100, 2
        %v9102 = vmax.f32 %v9100, %v9101
        %v9103 = vrot.slane %v9102, 1
        %v9104 = vmax.f32 %v9102, %v9103
        %v9105 = vmax.f32 %v8862, %v8863
        %v9106 = vmax.f32 %v9105, %v8864
        %v9107 = vmax.f32 %v9106, %v8865
        %v9108 = vrot.slane %v9107, 4
        %v9109 = vmax.f32 %v9107, %v9108
        %v9110 = vrot.slane %v9109, 2
        %v9111 = vmax.f32 %v9109, %v9110
        %v9112 = vrot.slane %v9111, 1
        %v9113 = vmax.f32 %v9111, %v9112
        %v9114 = vmax.f32 %v8866, %v8867
        %v9115 = vmax.f32 %v9114, %v8868
        %v9116 = vmax.f32 %v9115, %v8869
        %v9117 = vrot.slane %v9116, 4
        %v9118 = vmax.f32 %v9116, %v9117
        %v9119 = vrot.slane %v9118, 2
        %v9120 = vmax.f32 %v9118, %v9119
        %v9121 = vrot.slane %v9120, 1
        %v9122 = vmax.f32 %v9120, %v9121
        %v9123 = vmax.f32 %v8870, %v8871
        %v9124 = vmax.f32 %v9123, %v8872
        %v9125 = vmax.f32 %v9124, %v8873
        %v9126 = vrot.slane %v9125, 4
        %v9127 = vmax.f32 %v9125, %v9126
        %v9128 = vrot.slane %v9127, 2
        %v9129 = vmax.f32 %v9127, %v9128
        %v9130 = vrot.slane %v9129, 1
        %v9131 = vmax.f32 %v9129, %v9130
        %v9132 = vmax.f32 %v8874, %v8875
        %v9133 = vmax.f32 %v9132, %v8876
        %v9134 = vmax.f32 %v9133, %v8877
        %v9135 = vrot.slane %v9134, 4
        %v9136 = vmax.f32 %v9134, %v9135
        %v9137 = vrot.slane %v9136, 2
        %v9138 = vmax.f32 %v9136, %v9137
        %v9139 = vrot.slane %v9138, 1
        %v9140 = vmax.f32 %v9138, %v9139
        %v9141 = vmax.f32 %v8878, %v8879
        %v9142 = vmax.f32 %v9141, %v8880
        %v9143 = vmax.f32 %v9142, %v8881
        %v9144 = vrot.slane %v9143, 4
        %v9145 = vmax.f32 %v9143, %v9144
        %v9146 = vrot.slane %v9145, 2
        %v9147 = vmax.f32 %v9145, %v9146
        %v9148 = vrot.slane %v9147, 1
        %v9149 = vmax.f32 %v9147, %v9148
        %v9150 = vmax.f32 %v8882, %v8883
        %v9151 = vmax.f32 %v9150, %v8884
        %v9152 = vmax.f32 %v9151, %v8885
        %v9153 = vrot.slane %v9152, 4
        %v9154 = vmax.f32 %v9152, %v9153
        %v9155 = vrot.slane %v9154, 2
        %v9156 = vmax.f32 %v9154, %v9155
        %v9157 = vrot.slane %v9156, 1
        %v9158 = vmax.f32 %v9156, %v9157
        %v9159 = vmax.f32 %v8886, %v8887
        %v9160 = vmax.f32 %v9159, %v8888
        %v9161 = vmax.f32 %v9160, %v8889
        %v9162 = vrot.slane %v9161, 4
        %v9163 = vmax.f32 %v9161, %v9162
        %v9164 = vrot.slane %v9163, 2
        %v9165 = vmax.f32 %v9163, %v9164
        %v9166 = vrot.slane %v9165, 1
        %v9167 = vmax.f32 %v9165, %v9166
        %v9168 = vmax.f32 %v8890, %v8891
        %v9169 = vmax.f32 %v9168, %v8892
        %v9170 = vmax.f32 %v9169, %v8893
        %v9171 = vrot.slane %v9170, 4
        %v9172 = vmax.f32 %v9170, %v9171
        %v9173 = vrot.slane %v9172, 2
        %v9174 = vmax.f32 %v9172, %v9173
        %v9175 = vrot.slane %v9174, 1
        %v9176 = vmax.f32 %v9174, %v9175
        %v9177 = vmax.f32 %v8894, %v8895
        %v9178 = vmax.f32 %v9177, %v8896
        %v9179 = vmax.f32 %v9178, %v8897
        %v9180 = vrot.slane %v9179, 4
        %v9181 = vmax.f32 %v9179, %v9180
        %v9182 = vrot.slane %v9181, 2
        %v9183 = vmax.f32 %v9181, %v9182
        %v9184 = vrot.slane %v9183, 1
        %v9185 = vmax.f32 %v9183, %v9184
        %vm9218 = vcmask 1041409
        %v9219 = vsel %vm9218, %v4333, %v4324
        %vm9220 = vcmask 1042434
        %v9221 = vsel %vm9220, %v4342, %v9219
        %vm9222 = vcmask 1043459
        %v9223 = vsel %vm9222, %v4351, %v9221
        %vm9224 = vcmask 1044484
        %v9225 = vsel %vm9224, %v4360, %v9223
        %vm9226 = vcmask 1045509
        %v9227 = vsel %vm9226, %v4369, %v9225
        %vm9228 = vcmask 1046534
        %v9229 = vsel %vm9228, %v4378, %v9227
        %vm9230 = vcmask 1047559
        %v9231 = vsel %vm9230, %v4387, %v9229
        %v9232 = vsel %vm9218, %v4405, %v4396
        %v9233 = vsel %vm9220, %v4414, %v9232
        %v9234 = vsel %vm9222, %v4423, %v9233
        %v9235 = vsel %vm9224, %v4432, %v9234
        %v9236 = vsel %vm9226, %v4441, %v9235
        %v9237 = vsel %vm9228, %v4450, %v9236
        %v9238 = vsel %vm9230, %v4459, %v9237
        %v9239 = vsel %vm9218, %v4477, %v4468
        %v9240 = vsel %vm9220, %v4486, %v9239
        %v9241 = vsel %vm9222, %v4495, %v9240
        %v9242 = vsel %vm9224, %v4504, %v9241
        %v9243 = vsel %vm9226, %v4513, %v9242
        %v9244 = vsel %vm9228, %v4522, %v9243
        %v9245 = vsel %vm9230, %v4531, %v9244
        %v9246 = vsel %vm9218, %v4549, %v4540
        %v9247 = vsel %vm9220, %v4558, %v9246
        %v9248 = vsel %vm9222, %v4567, %v9247
        %v9249 = vsel %vm9224, %v4576, %v9248
        %v9250 = vsel %vm9226, %v4585, %v9249
        %v9251 = vsel %vm9228, %v4594, %v9250
        %v9252 = vsel %vm9230, %v4603, %v9251
        %v9289 = vsel %vm9218, %v6304, %v6295
        %v9290 = vsel %vm9220, %v6313, %v9289
        %v9291 = vsel %vm9222, %v6322, %v9290
        %v9292 = vsel %vm9224, %v6331, %v9291
        %v9293 = vsel %vm9226, %v6340, %v9292
        %v9294 = vsel %vm9228, %v6349, %v9293
        %v9295 = vsel %vm9230, %v6358, %v9294
        %v9296 = vsel %vm9218, %v6376, %v6367
        %v9297 = vsel %vm9220, %v6385, %v9296
        %v9298 = vsel %vm9222, %v6394, %v9297
        %v9299 = vsel %vm9224, %v6403, %v9298
        %v9300 = vsel %vm9226, %v6412, %v9299
        %v9301 = vsel %vm9228, %v6421, %v9300
        %v9302 = vsel %vm9230, %v6430, %v9301
        %v9303 = vsel %vm9218, %v6448, %v6439
        %v9304 = vsel %vm9220, %v6457, %v9303
        %v9305 = vsel %vm9222, %v6466, %v9304
        %v9306 = vsel %vm9224, %v6475, %v9305
        %v9307 = vsel %vm9226, %v6484, %v9306
        %v9308 = vsel %vm9228, %v6493, %v9307
        %v9309 = vsel %vm9230, %v6502, %v9308
        %v9310 = vsel %vm9218, %v6520, %v6511
        %v9311 = vsel %vm9220, %v6529, %v9310
        %v9312 = vsel %vm9222, %v6538, %v9311
        %v9313 = vsel %vm9224, %v6547, %v9312
        %v9314 = vsel %vm9226, %v6556, %v9313
        %v9315 = vsel %vm9228, %v6565, %v9314
        %v9316 = vsel %vm9230, %v6574, %v9315
        %v9353 = vsel %vm9218, %v8915, %v8906
        %v9354 = vsel %vm9220, %v8924, %v9353
        %v9355 = vsel %vm9222, %v8933, %v9354
        %v9356 = vsel %vm9224, %v8942, %v9355
        %v9357 = vsel %vm9226, %v8951, %v9356
        %v9358 = vsel %vm9228, %v8960, %v9357
        %v9359 = vsel %vm9230, %v8969, %v9358
        %v9360 = vsel %vm9218, %v8987, %v8978
        %v9361 = vsel %vm9220, %v8996, %v9360
        %v9362 = vsel %vm9222, %v9005, %v9361
        %v9363 = vsel %vm9224, %v9014, %v9362
        %v9364 = vsel %vm9226, %v9023, %v9363
        %v9365 = vsel %vm9228, %v9032, %v9364
        %v9366 = vsel %vm9230, %v9041, %v9365
        %v9367 = vsel %vm9218, %v9059, %v9050
        %v9368 = vsel %vm9220, %v9068, %v9367
        %v9369 = vsel %vm9222, %v9077, %v9368
        %v9370 = vsel %vm9224, %v9086, %v9369
        %v9371 = vsel %vm9226, %v9095, %v9370
        %v9372 = vsel %vm9228, %v9104, %v9371
        %v9373 = vsel %vm9230, %v9113, %v9372
        %v9374 = vsel %vm9218, %v9131, %v9122
        %v9375 = vsel %vm9220, %v9140, %v9374
        %v9376 = vsel %vm9222, %v9149, %v9375
        %v9377 = vsel %vm9224, %v9158, %v9376
        %v9378 = vsel %vm9226, %v9167, %v9377
        %v9379 = vsel %vm9228, %v9176, %v9378
        %v9380 = vsel %vm9230, %v9185, %v9379
        %v9385 = vpack.c.bf16 %v9238, %v9231
        %v9386 = vpack.c.bf16 %v9302, %v9295
        %v9387 = vpack.c.bf16 %v9366, %v9359
        %v9388 = vpack.c.bf16 %v9252, %v9245
        %v9389 = vpack.c.bf16 %v9316, %v9309
        %v9390 = vpack.c.bf16 %v9380, %v9373
        %v9391 = vld [vmem:[%s4] sm:$0xf]
        %v9392 = vld [vmem:[%s4 + $0x4] sm:$0xf]
        %v9393 = vld [vmem:[%s4 + $0x8] sm:$0xf]
        %v9394 = vld [vmem:[%s4 + $0xc] sm:$0xf]
        %v9395 = vld [vmem:[%s4 + $0x10] sm:$0xf]
        %v9396 = vld [vmem:[%s4 + $0x14] sm:$0xf]
        %v9397 = vld [vmem:[%s4 + $0x18] sm:$0xf]
        %v9398 = vld [vmem:[%s4 + $0x1c] sm:$0xf]
        %v9399 = vld [vmem:[%s4 + $0x20] sm:$0xf]
        %v9400 = vld [vmem:[%s4 + $0x24] sm:$0xf]
        %v9401 = vld [vmem:[%s4 + $0x28] sm:$0xf]
        %v9402 = vld [vmem:[%s4 + $0x2c] sm:$0xf]
        %v9403 = vld [vmem:[%s4 + $0x30] sm:$0xf]
        %v9404 = vld [vmem:[%s4 + $0x34] sm:$0xf]
        %v9405 = vld [vmem:[%s4 + $0x38] sm:$0xf]
        %v9406 = vld [vmem:[%s4 + $0x3c] sm:$0xf]
        %v9407 = vld [vmem:[%s4 + $0x40] sm:$0xf]
        %v9408 = vld [vmem:[%s4 + $0x44] sm:$0xf]
        %v9409 = vld [vmem:[%s4 + $0x48] sm:$0xf]
        %v9410 = vld [vmem:[%s4 + $0x4c] sm:$0xf]
        %v9411 = vld [vmem:[%s4 + $0x50] sm:$0xf]
        %v9412 = vld [vmem:[%s4 + $0x54] sm:$0xf]
        %v9413 = vld [vmem:[%s4 + $0x58] sm:$0xf]
        %v9414 = vld [vmem:[%s4 + $0x5c] sm:$0xf]
        %v9415 = vld [vmem:[%s4 + $0x60] sm:$0xf]
        %v9416 = vld [vmem:[%s4 + $0x64] sm:$0xf]
        %v9417 = vld [vmem:[%s4 + $0x68] sm:$0xf]
        %v9418 = vld [vmem:[%s4 + $0x6c] sm:$0xf]
        %v9419 = vld [vmem:[%s4 + $0x70] sm:$0xf]
        %v9420 = vld [vmem:[%s4 + $0x74] sm:$0xf]
        %v9421 = vld [vmem:[%s4 + $0x78] sm:$0xf]
        %v9422 = vld [vmem:[%s4 + $0x7c] sm:$0xf]
        %v9423 = vld [vmem:[%s4 + $0x80] sm:$0xf]
        %v9424 = vld [vmem:[%s4 + $0x84] sm:$0xf]
        %v9425 = vld [vmem:[%s4 + $0x88] sm:$0xf]
        %v9426 = vld [vmem:[%s4 + $0x8c] sm:$0xf]
        %v9427 = vld [vmem:[%s4 + $0x90] sm:$0xf]
        %v9428 = vld [vmem:[%s4 + $0x94] sm:$0xf]
        %v9429 = vld [vmem:[%s4 + $0x98] sm:$0xf]
        %v9430 = vld [vmem:[%s4 + $0x9c] sm:$0xf]
        %v9431 = vld [vmem:[%s4 + $0xa0] sm:$0xf]
        %v9432 = vld [vmem:[%s4 + $0xa4] sm:$0xf]
        %v9433 = vld [vmem:[%s4 + $0xa8] sm:$0xf]
        %v9434 = vld [vmem:[%s4 + $0xac] sm:$0xf]
        %v9435 = vld [vmem:[%s4 + $0xb0] sm:$0xf]
        %v9436 = vld [vmem:[%s4 + $0xb4] sm:$0xf]
        %v9437 = vld [vmem:[%s4 + $0xb8] sm:$0xf]
        %v9438 = vld [vmem:[%s4 + $0xbc] sm:$0xf]
        %v9439 = vld [vmem:[%s5] sm:$0x1]
        %v9441 = vlaneseq
        %v9442 = vshrl.u32 %v9441, 7
        %v9443 = vsub.s32 0, %v9442
        %v9444 = vrot.slane %v9439, %v9443
        %v9494 = vunpack.c.l.b16 %v9391
        %v9495 = vunpack.c.l.b16 %v9392
        %v9496 = vunpack.c.l.b16 %v9393
        %v9497 = vunpack.c.l.b16 %v9394
        %v9498 = vunpack.c.l.b16 %v9395
        %v9499 = vunpack.c.l.b16 %v9396
        %v9500 = vunpack.c.l.b16 %v9397
        %v9501 = vunpack.c.l.b16 %v9398
        %v9502 = vunpack.c.l.b16 %v9399
        %v9503 = vunpack.c.l.b16 %v9400
        %v9504 = vunpack.c.l.b16 %v9401
        %v9505 = vunpack.c.l.b16 %v9402
        %v9506 = vunpack.c.l.b16 %v9403
        %v9507 = vunpack.c.l.b16 %v9404
        %v9508 = vunpack.c.l.b16 %v9405
        %v9509 = vunpack.c.l.b16 %v9406
        %v9510 = vunpack.c.l.b16 %v9407
        %v9511 = vunpack.c.l.b16 %v9408
        %v9512 = vunpack.c.l.b16 %v9409
        %v9513 = vunpack.c.l.b16 %v9410
        %v9514 = vunpack.c.l.b16 %v9411
        %v9515 = vunpack.c.l.b16 %v9412
        %v9516 = vunpack.c.l.b16 %v9413
        %v9517 = vunpack.c.l.b16 %v9414
        %v9518 = vunpack.c.l.b16 %v9415
        %v9519 = vunpack.c.l.b16 %v9416
        %v9520 = vunpack.c.l.b16 %v9417
        %v9521 = vunpack.c.l.b16 %v9418
        %v9522 = vunpack.c.l.b16 %v9419
        %v9523 = vunpack.c.l.b16 %v9420
        %v9524 = vunpack.c.l.b16 %v9421
        %v9525 = vunpack.c.l.b16 %v9422
        %v9526 = vunpack.c.l.b16 %v9423
        %v9527 = vunpack.c.l.b16 %v9424
        %v9528 = vunpack.c.l.b16 %v9425
        %v9529 = vunpack.c.l.b16 %v9426
        %v9530 = vunpack.c.l.b16 %v9427
        %v9531 = vunpack.c.l.b16 %v9428
        %v9532 = vunpack.c.l.b16 %v9429
        %v9533 = vunpack.c.l.b16 %v9430
        %v9534 = vunpack.c.l.b16 %v9431
        %v9535 = vunpack.c.l.b16 %v9432
        %v9536 = vunpack.c.l.b16 %v9433
        %v9537 = vunpack.c.l.b16 %v9434
        %v9538 = vunpack.c.l.b16 %v9435
        %v9539 = vunpack.c.l.b16 %v9436
        %v9540 = vunpack.c.l.b16 %v9437
        %v9541 = vunpack.c.l.b16 %v9438
        %v9542 = vpack.c.b16 %v9495, %v9494
        %v9543 = vpack.c.b16 %v9497, %v9496
        %v9544 = vpack.c.b16 %v9499, %v9498
        %v9545 = vpack.c.b16 %v9501, %v9500
        %v9546 = vpack.c.b16 %v9503, %v9502
        %v9547 = vpack.c.b16 %v9505, %v9504
        %v9548 = vpack.c.b16 %v9507, %v9506
        %v9549 = vpack.c.b16 %v9509, %v9508
        %v9550 = vpack.c.b16 %v9511, %v9510
        %v9551 = vpack.c.b16 %v9513, %v9512
        %v9552 = vpack.c.b16 %v9515, %v9514
        %v9553 = vpack.c.b16 %v9517, %v9516
        %v9554 = vpack.c.b16 %v9519, %v9518
        %v9555 = vpack.c.b16 %v9521, %v9520
        %v9556 = vpack.c.b16 %v9523, %v9522
        %v9557 = vpack.c.b16 %v9525, %v9524
        %v9558 = vpack.c.b16 %v9527, %v9526
        %v9559 = vpack.c.b16 %v9529, %v9528
        %v9560 = vpack.c.b16 %v9531, %v9530
        %v9561 = vpack.c.b16 %v9533, %v9532
        %v9562 = vpack.c.b16 %v9535, %v9534
        %v9563 = vpack.c.b16 %v9537, %v9536
        %v9564 = vpack.c.b16 %v9539, %v9538
        %v9565 = vpack.c.b16 %v9541, %v9540
        %9590 = vmatprep.subr.bf16.mxu0 0
        %9591 = vmatpush1.bf16.msra.mxu0 %v9549
        %9592 = vmatprep.subr.bf16.mxu0 0
        %9593 = vmatpush1.bf16.msra.mxu0 %v9548
        %9594 = vmatprep.subr.bf16.mxu0 0
        %9595 = vmatpush1.bf16.msra.mxu0 %v9547
        %9596 = vmatprep.subr.bf16.mxu0 0
        %9597 = vmatpush1.bf16.msra.mxu0 %v9546
        %9598 = vmatprep.subr.bf16.mxu0 0
        %9599 = vmatpush1.bf16.msra.mxu0 %v9545
        %9600 = vmatprep.subr.bf16.mxu0 0
        %9601 = vmatpush1.bf16.msra.mxu0 %v9544
        %9602 = vmatprep.subr.bf16.mxu0 0
        %9603 = vmatpush1.bf16.msra.mxu0 %v9543
        %9604 = vmatprep.subr.bf16.mxu0 0
        %9605 = vmatpush1.bf16.msra.mxu0 %v9542
        %9606 = vmatprep.subr.bf16.mxu0 0
        %9607 = vmatpush2.bf16.msra.mxu0 %v9557
        %9608 = vmatprep.subr.bf16.mxu0 0
        %9609 = vmatpush2.bf16.msra.mxu0 %v9556
        %9610 = vmatprep.subr.bf16.mxu0 0
        %9611 = vmatpush2.bf16.msra.mxu0 %v9555
        %9612 = vmatprep.subr.bf16.mxu0 0
        %9613 = vmatpush2.bf16.msra.mxu0 %v9554
        %9614 = vmatprep.subr.bf16.mxu0 0
        %9615 = vmatpush2.bf16.msra.mxu0 %v9553
        %9616 = vmatprep.subr.bf16.mxu0 0
        %9617 = vmatpush2.bf16.msra.mxu0 %v9552
        %9618 = vmatprep.subr.bf16.mxu0 0
        %9619 = vmatpush2.bf16.msra.mxu0 %v9551
        %9620 = vmatprep.subr.bf16.mxu0 0
        %9621 = vmatpush2.bf16.msra.mxu0 %v9550
        %9622 = vmatprep.mubr.bf16.mxu0 %v9386
        %9623 = vmatmul.mubr.bf16.gmra.mxu0 %v9385
        %v9624 = vpop.f32.mrf.mxu0
        %v9625 = vadd.f32 %v9444, %v9624
        %v9626 = vpop.f32.mrf.mxu0
        %v9627 = vpop.f32.mrf.mxu0
        %v9628 = vadd.f32 %v9444, %v9627
        %v9629 = vpop.f32.mrf.mxu0
        %9630 = vmatprep.mubr.bf16.mxu0 %v9389
        %9631 = vmatmul.mubr.bf16.gmra.mxu0 %v9388
        %v9632 = vpop.f32.mrf.mxu0
        %v9633 = vadd.f32 %v9444, %v9632
        %v9634 = vpop.f32.mrf.mxu0
        %v9635 = vpop.f32.mrf.mxu0
        %v9636 = vadd.f32 %v9444, %v9635
        %v9637 = vpop.f32.mrf.mxu0
        %9638 = vdwg.mxu0
        %9639 = vmatprep.subr.bf16.mxu0 0
        %9640 = vmatpush1.bf16.msra.mxu0 %v9565
        %9641 = vmatprep.subr.bf16.mxu0 0
        %9642 = vmatpush1.bf16.msra.mxu0 %v9564
        %9643 = vmatprep.subr.bf16.mxu0 0
        %9644 = vmatpush1.bf16.msra.mxu0 %v9563
        %9645 = vmatprep.subr.bf16.mxu0 0
        %9646 = vmatpush1.bf16.msra.mxu0 %v9562
        %9647 = vmatprep.subr.bf16.mxu0 0
        %9648 = vmatpush1.bf16.msra.mxu0 %v9561
        %9649 = vmatprep.subr.bf16.mxu0 0
        %9650 = vmatpush1.bf16.msra.mxu0 %v9560
        %9651 = vmatprep.subr.bf16.mxu0 0
        %9652 = vmatpush1.bf16.msra.mxu0 %v9559
        %9653 = vmatprep.subr.bf16.mxu0 0
        %9654 = vmatpush1.bf16.msra.mxu0 %v9558
        %9655 = vmatprep.subr.bf16.mxu0 0
        %9656 = vmatpush2.bf16.msra.mxu0 0
        %9657 = vmatprep.subr.bf16.mxu0 0
        %9658 = vmatpush2.bf16.msra.mxu0 0
        %9659 = vmatprep.subr.bf16.mxu0 0
        %9660 = vmatpush2.bf16.msra.mxu0 0
        %9661 = vmatprep.subr.bf16.mxu0 0
        %9662 = vmatpush2.bf16.msra.mxu0 0
        %9663 = vmatprep.subr.bf16.mxu0 0
        %9664 = vmatpush2.bf16.msra.mxu0 0
        %9665 = vmatprep.subr.bf16.mxu0 0
        %9666 = vmatpush2.bf16.msra.mxu0 0
        %9667 = vmatprep.subr.bf16.mxu0 0
        %9668 = vmatpush2.bf16.msra.mxu0 0
        %9669 = vmatprep.subr.bf16.mxu0 0
        %9670 = vmatpush2.bf16.msra.mxu0 0
        %9671 = vmatprep.mubr.bf16.mxu0 0
        %9672 = vmatmul.mubr.bf16.gmra.mxu0 %v9387
        %v9673 = vpop.f32.mrf.mxu0
        %v9674 = vadd.f32 %v9625, %v9673
        %v9675 = vpop.f32.mrf.mxu0
        %v9676 = vpop.f32.mrf.mxu0
        %v9677 = vadd.f32 %v9628, %v9676
        %v9678 = vpop.f32.mrf.mxu0
        %9679 = vmatprep.mubr.bf16.mxu0 0
        %9680 = vmatmul.mubr.bf16.gmra.mxu0 %v9390
        %v9681 = vpop.f32.mrf.mxu0
        %v9682 = vadd.f32 %v9633, %v9681
        %v9683 = vpop.f32.mrf.mxu0
        %v9684 = vpop.f32.mrf.mxu0
        %v9685 = vadd.f32 %v9636, %v9684
        %v9686 = vpop.f32.mrf.mxu0
        %9687 = vdwg.mxu0
        %9688 = vst [vmem:[%s245] sm:$0xff] %v9674
        %9689 = vst [vmem:[%s245 + $0x8] sm:$0xff] %v9677
        %9690 = vst [vmem:[%s245 + $0x10] sm:$0xff] %v9682
        %9691 = vst [vmem:[%s245 + $0x18] sm:$0xff] %v9685
        %s9692 = sand.u32 %s159, 1
        %s9693 = scalar_lea.sflag [#allocation3], %s9692
        %s9694 = sand.u32 %s159, 1
        %s9695 = smul.addr %s9694, 32
        %s9696 = scalar_lea.vmem [#allocation2], %s9695
        // Predicated region
        $region45: #{tpu_custom_call.1} parent=43 // pred_check
          %p9697 = pneg %p169
        $region46: #{tpu_custom_call.1} parent=43 // pred_check_branch
          %9699 = sbr.rel (%p9697) target = $region48
        $region47: #{tpu_custom_call.1} parent=43 // pred_region
          %s9700 = smul.u32 4, %s20
          %s9702 = ssub.s32 512, 512
          %9703 = vsyncadd %s9693, %s9702
          %s9704 = smul.addr %s9700, 128
          %s9705 = scalar_lea.hbm %s6, %s9704
          %s9706 = sshll.u32 %s9696, 4
          %s9707 = int_to_ptr.vmem [resolvable:$true] %s9706
          %9712 = dma.vmem_to_hbm [thread:$0]  %s9707, 512, %s9705, %s9693, 128, 128, 8
        $region48: #{tpu_custom_call.1} parent=43 // pred_fallthru
          _
      $region44: #{tpu_custom_call.1} parent=5 // pred_fallthru
        _
      %p9713 = scmp.le.s32.totalorder 2, %s15
      // Predicated region
      $region49: #{tpu_custom_call.1} parent=5 // pred_check
        %p9714 = pneg %p9713
      $region50: #{tpu_custom_call.1} parent=5 // pred_check_branch
        %9716 = sbr.rel (%p9714) target = $region52
      $region51: #{tpu_custom_call.1} parent=5 // pred_region
        %s9717 = ssub.s32 %s15, 2
        // Predicated region
        $region53: #{tpu_custom_call.1} parent=51 // pred_check
          %p9718 = pneg %p175
        $region54: #{tpu_custom_call.1} parent=51 // pred_check_branch
          %9720 = sbr.rel (%p9718) target = $region56
        $region55: #{tpu_custom_call.1} parent=51 // pred_region
          %s9721 = sand.u32 %s160, 1
          %s9722 = scalar_lea.sflag [#allocation3], %s9721
          %s9723 = sand.u32 %s160, 1
          %s9724 = smul.addr %s9723, 32
          %s9725 = scalar_lea.vmem [#allocation2], %s9724
          %9726 = dma.done %s9722, 512
        $region56: #{tpu_custom_call.1} parent=51 // pred_fallthru
          _
      $region52: #{tpu_custom_call.1} parent=5 // pred_fallthru
        _
    $region6: #{tpu_custom_call.1} parent=1 // loop_footer
      %s19 = sadd.s32 1, %s15
    $region7: #{tpu_custom_call.1} parent=1 // loop_footer_branch
      %14 = sbr.rel target = $region3
    $region8: #{tpu_custom_call.1} parent=1 // loop_exit
      _
    %9727 = vsyncpa [#allocation3], 1
    %s9728 = scalar_lea.sflag [#allocation3], 1
    %9729 = vsyncpa %s9728, 1

</llo_original>
